<compile_context>
chip_gen: v7x
topology: tpu7x:2x2x1
jax: 0.10.0
libtpu: 0.0.40
codegen_flags: <defaults>
</compile_context>

<pallas_src>
import functools

import jax
import jax.numpy as jnp
from jax import lax
from jax.experimental import pallas as pl
from jax.experimental.pallas import tpu as pltpu

DIM_HIDDEN = 64
NUM_HEADS = 8
HEAD_DIM = DIM_HIDDEN // NUM_HEADS
DIM_FFN = 512
NUM_LAYERS = 4
NODE_INPUT_DIM = 133
SMILES_DIM = 384
LN_EPS = 1e-5
BN_EPS = 1e-5
NEG_INF = -1e9


# -------------------- per-side encoder kernel (grid=(2,)) --------------------

def _encoder_side_kernel(
        B,
        # per-side data (leading grid dim squeezed by indexing [0])
        x_ref, smiles_ref, brow_ref, bcol_ref, gamma_ref,
        # shared weights
        atom_w_ref, map_s_w_ref, map_s_b_ref,
        wqkv_ref, bqkv_ref, wo_ref, bo_ref, ln1g_ref, ln1b_ref,
        w1_ref, b1_ref, w2_ref, b2_ref, ln2g_ref, ln2b_ref,
        # output: fused per-graph features for this side
        fused_ref):
    f32 = jnp.float32
    bf16 = jnp.bfloat16

    x = x_ref[0]            # [NT, 133]
    smiles = smiles_ref[0]  # [B, 384]
    brow = brow_ref[0]      # [1, NT]  int32 graph ids (pad nodes = -1)
    bcol = bcol_ref[0]      # [NT, 1]
    NT = x.shape[0]

    def layer_norm(t, g, b):
        mu = jnp.mean(t, axis=-1, keepdims=True)
        var = jnp.mean((t - mu) ** 2, axis=-1, keepdims=True)
        return (t - mu) * lax.rsqrt(var + LN_EPS) * g + b

    # ---- map_s smiles projection (one matmul per side) -------------------
    s_proj = jnp.dot(smiles.astype(bf16), map_s_w_ref[...],
                     preferred_element_type=f32) + map_s_b_ref[...]   # [B,64]

    # ---- atom embedding (no bias) -----------------------------------------
    h = jnp.dot(x.astype(bf16), atom_w_ref[...],
                preferred_element_type=f32)                           # [NT,64]

    # ---- block-diagonal attention mask kept as bool (applied at use) ------
    same = brow == bcol                                               # [NT,NT]

    def split_heads(mat):  # [NT, 64] f32 -> [H, NT, dh] bf16 (lane slices)
        return jnp.stack(
            [mat[:, hd * HEAD_DIM:(hd + 1) * HEAD_DIM]
             for hd in range(NUM_HEADS)], axis=0).astype(bf16)

    # ---- 4 post-norm transformer encoder layers ---------------------------
    for l in range(NUM_LAYERS):
        # fused Q/K/V projection; 1/sqrt(head_dim) folded into Wq/bq.
        qkv = jnp.dot(h.astype(bf16), wqkv_ref[l],
                      preferred_element_type=f32) + bqkv_ref[l]       # [NT,192]
        q_h = split_heads(qkv[:, 0:DIM_HIDDEN])                       # [H,NT,dh]
        k_h = split_heads(qkv[:, DIM_HIDDEN:2 * DIM_HIDDEN])
        v_h = split_heads(qkv[:, 2 * DIM_HIDDEN:3 * DIM_HIDDEN])

        # head-batched scores + ONE softmax chain per layer
        s = jnp.einsum('hqd,hkd->hqk', q_h, k_h,
                       preferred_element_type=f32)                    # [H,NT,NT]
        s = jnp.where(same[None, :, :], s, NEG_INF)
        m = jnp.max(s, axis=-1, keepdims=True)
        p = jnp.exp(s - m)
        denom = jnp.sum(p, axis=-1, keepdims=True)
        p = p * pl.reciprocal(denom, approx=True)

        ctx = jnp.einsum('hqk,hkd->hqd', p.astype(bf16), v_h,
                         preferred_element_type=f32)                  # [H,NT,dh]
        ctx2d = jnp.concatenate([ctx[hd] for hd in range(NUM_HEADS)],
                                axis=-1)                              # [NT,64]
        # single bf16 output projection for all heads
        attn = jnp.dot(ctx2d.astype(bf16), wo_ref[l],
                       preferred_element_type=f32) + bo_ref[l]

        h = layer_norm(h + attn, ln1g_ref[l], ln1b_ref[l])

        f = jnp.dot(h.astype(bf16), w1_ref[l],
                    preferred_element_type=f32) + b1_ref[l]
        f = jnp.maximum(f, 0.0)                                       # ReLU
        f = jnp.dot(f.astype(bf16), w2_ref[l],
                    preferred_element_type=f32) + b2_ref[l]
        h = layer_norm(h + f, ln2g_ref[l], ln2b_ref[l])

    # ---- global_mean_pool for all graphs of this side (one matmul) --------
    gids = lax.broadcasted_iota(jnp.int32, (B, NT), 0)                # 0..B-1
    onehot = (brow == gids).astype(f32)                               # [B,NT]
    counts = jnp.maximum(jnp.sum(onehot, axis=-1, keepdims=True), 1.0)
    pool = jnp.dot(onehot / counts, h, preferred_element_type=f32)    # [B,64]

    # ---- gamma fusion ------------------------------------------------------
    gamma = 1.0 / (1.0 + jnp.exp(-gamma_ref[...]))                    # [1,1]
    fused_ref[0] = (1.0 - gamma) * pool + gamma * s_proj


# ----------------------------- mlp2 head kernel -------------------------------

def _head_kernel(fused_ref, hw1_ref, hb1_ref, bng_ref, bnb_ref,
                 hw2_ref, hb2_ref, o_ref):
    f32 = jnp.float32
    bf16 = jnp.bfloat16
    # cat([fused1, fused2], dim=1) -> [B, 128]
    f_cat = jnp.concatenate([fused_ref[0], fused_ref[1]], axis=-1)
    hh = jnp.dot(f_cat.astype(bf16), hw1_ref[...],
                 preferred_element_type=f32) + hb1_ref[...]           # [B,64]
    # BatchNorm1d with per-call batch statistics (training mode, biased var)
    mu = jnp.mean(hh, axis=0, keepdims=True)
    var = jnp.mean((hh - mu) ** 2, axis=0, keepdims=True)
    hh = (hh - mu) * lax.rsqrt(var + BN_EPS) * bng_ref[...] + bnb_ref[...]
    hh = jnp.maximum(hh, 0.0)                  # ReLU; Dropout(p=0) is a no-op
    o_ref[...] = jnp.dot(hh, hw2_ref[...],
                         preferred_element_type=f32) + hb2_ref[...]


# ------------------------------ wrapper ---------------------------------------

def _side_spec(a):
    nd = a.ndim
    return pl.BlockSpec((1,) + a.shape[1:], lambda i, _n=nd: (i,) + (0,) * (_n - 1))


def _shared_spec(a):
    zeros = (0,) * a.ndim
    return pl.BlockSpec(a.shape, lambda i, _z=zeros: _z)


@jax.jit
def d1model1_forward(packed, x1, smiles1, batch1, x2, smiles2, batch2):
    """D1Model1 forward: per-side encoder pallas_call (grid=(2,), parallel)
    followed by a tiny head pallas_call."""
    B = smiles1.shape[0]                       # graphs per side
    n1, n2 = x1.shape[0], x2.shape[0]
    NT = max(n1, n2)                           # pad both sides to same node count

    def pad_side(x, batch, n):
        xp = jnp.pad(x.astype(jnp.float32), ((0, NT - n), (0, 0)))
        bp = jnp.pad(batch.astype(jnp.int32), (0, NT - n), constant_values=-1)
        return xp, bp

    x1p, b1p = pad_side(x1, batch1, n1)
    x2p, b2p = pad_side(x2, batch2, n2)
    x_all = jnp.stack([x1p, x2p], axis=0)                       # [2, NT, 133]
    b_all = jnp.stack([b1p, b2p], axis=0)                       # [2, NT]
    brow = b_all.reshape(2, 1, NT)
    bcol = b_all.reshape(2, NT, 1)
    smiles = jnp.stack([smiles1, smiles2], axis=0).astype(jnp.float32)  # [2,B,384]

    side_args = (x_all, smiles, brow, bcol)
    shared_args = (packed['gamma_raw'],
                   packed['atom_w'], packed['map_s_w'], packed['map_s_b'],
                   packed['wqkv'], packed['bqkv'], packed['wo'], packed['bo'],
                   packed['ln1_g'], packed['ln1_b'],
                   packed['w1'], packed['b1'], packed['w2'], packed['b2'],
                   packed['ln2_g'], packed['ln2_b'])

    in_specs = ([_side_spec(a) for a in side_args]
                + [_shared_spec(a) for a in shared_args])

    fused = pl.pallas_call(
        functools.partial(_encoder_side_kernel, B),
        out_shape=jax.ShapeDtypeStruct((2, B, DIM_HIDDEN), jnp.float32),
        grid=(2,),
        in_specs=in_specs,
        out_specs=pl.BlockSpec((1, B, DIM_HIDDEN), lambda i: (i, 0, 0)),
        compiler_params=pltpu.CompilerParams(
            dimension_semantics=("parallel",)),     # v7x: one side per TC
    )(*side_args, *shared_args)

    # tiny fused head: cat -> Linear(128,64) -> BN(train) -> ReLU -> Linear(64,1)
    return pl.pallas_call(
        _head_kernel,
        out_shape=jax.ShapeDtypeStruct((B, 1), jnp.float32),
    )(fused, packed['hw1'], packed['hb1'], packed['bn_g'], packed['bn_b'],
      packed['hw2'], packed['hb2'])


# --------------------------- parameter packing --------------------------------

def pack_params(p):
    """Stack per-layer weights and pre-cast all MXU operands to bf16."""
    bf16 = jnp.bfloat16
    f32 = jnp.float32
    scale = HEAD_DIM ** -0.5
    layers = p['layers']

    def stack(fn, dtype=f32):
        return jnp.stack([fn(lp) for lp in layers]).astype(dtype)

    return {
        'gamma_raw': p['gamma_raw'].reshape(1, 1).astype(f32),
        'atom_w': p['atom_w'].astype(bf16),
        'map_s_w': p['map_s_w'].astype(bf16),
        'map_s_b': p['map_s_b'].reshape(1, -1).astype(f32),
        # merged QKV projection, 1/sqrt(head_dim) folded into Q weight+bias
        'wqkv': stack(lambda lp: jnp.concatenate(
            [lp['wq'] * scale, lp['wk'], lp['wv']], axis=1), bf16),
        'bqkv': stack(lambda lp: jnp.concatenate(
            [lp['bq'] * scale, lp['bk'], lp['bv']]).reshape(1, -1)),
        'wo': stack(lambda lp: lp['wo'], bf16),
        'bo': stack(lambda lp: lp['bo'].reshape(1, -1)),
        'ln1_g': stack(lambda lp: lp['ln1_g'].reshape(1, -1)),
        'ln1_b': stack(lambda lp: lp['ln1_b'].reshape(1, -1)),
        'w1': stack(lambda lp: lp['w1'], bf16),
        'b1': stack(lambda lp: lp['b1'].reshape(1, -1)),
        'w2': stack(lambda lp: lp['w2'], bf16),
        'b2': stack(lambda lp: lp['b2'].reshape(1, -1)),
        'ln2_g': stack(lambda lp: lp['ln2_g'].reshape(1, -1)),
        'ln2_b': stack(lambda lp: lp['ln2_b'].reshape(1, -1)),
        'hw1': p['mlp2_w1'].astype(bf16),                 # [128, 64]
        'hb1': p['mlp2_b1'].reshape(1, -1).astype(f32),
        'bn_g': p['bn_gamma'].reshape(1, -1).astype(f32),
        'bn_b': p['bn_beta'].reshape(1, -1).astype(f32),
        'hw2': p['mlp2_w2'].astype(f32),                  # [64, 1]
        'hb2': p['mlp2_b2'].reshape(1, 1).astype(f32),
    }


# --------------------------- deterministic init --------------------------------

def xavier_uniform(key, fan_in, fan_out):
    limit = (6.0 / (fan_in + fan_out)) ** 0.5
    return jax.random.uniform(key, (fan_in, fan_out), jnp.float32, -limit, limit)


def init_params(key):
    keys = iter(jax.random.split(key, 64))
    p = {
        'map_s_w': xavier_uniform(next(keys), SMILES_DIM, DIM_HIDDEN),
        'map_s_b': jnp.zeros((DIM_HIDDEN,), jnp.float32),
        'atom_w': xavier_uniform(next(keys), NODE_INPUT_DIM, DIM_HIDDEN),
        'gamma_raw': jnp.zeros((), jnp.float32),
        'layers': [],
    }
    for _ in range(NUM_LAYERS):
        lp = {
            'wq': xavier_uniform(next(keys), DIM_HIDDEN, DIM_HIDDEN),
            'bq': jnp.zeros((DIM_HIDDEN,), jnp.float32),
            'wk': xavier_uniform(next(keys), DIM_HIDDEN, DIM_HIDDEN),
            'bk': jnp.zeros((DIM_HIDDEN,), jnp.float32),
            'wv': xavier_uniform(next(keys), DIM_HIDDEN, DIM_HIDDEN),
            'bv': jnp.zeros((DIM_HIDDEN,), jnp.float32),
            'wo': xavier_uniform(next(keys), DIM_HIDDEN, DIM_HIDDEN),
            'bo': jnp.zeros((DIM_HIDDEN,), jnp.float32),
            'ln1_g': jnp.ones((DIM_HIDDEN,), jnp.float32),
            'ln1_b': jnp.zeros((DIM_HIDDEN,), jnp.float32),
            'w1': xavier_uniform(next(keys), DIM_HIDDEN, DIM_FFN),
            'b1': jnp.zeros((DIM_FFN,), jnp.float32),
            'w2': xavier_uniform(next(keys), DIM_FFN, DIM_HIDDEN),
            'b2': jnp.zeros((DIM_HIDDEN,), jnp.float32),
            'ln2_g': jnp.ones((DIM_HIDDEN,), jnp.float32),
            'ln2_b': jnp.zeros((DIM_HIDDEN,), jnp.float32),
        }
        p['layers'].append(lp)
    p['mlp2_w1'] = xavier_uniform(next(keys), 2 * DIM_HIDDEN, 64)  # Linear(128,64)
    p['mlp2_b1'] = jnp.zeros((64,), jnp.float32)
    p['bn_gamma'] = jnp.ones((64,), jnp.float32)
    p['bn_beta'] = jnp.zeros((64,), jnp.float32)
    p['mlp2_w2'] = xavier_uniform(next(keys), 64, 1)               # Linear(64,1)
    p['mlp2_b2'] = jnp.zeros((1,), jnp.float32)
    return p


if __name__ == "__main__":
    key = jax.random.PRNGKey(0)
    kp, k1, k2, k3, k4 = jax.random.split(key, 5)

    B = 2                 # graphs per side (batch of graph pairs)
    nodes_per_graph = 6
    N = B * nodes_per_graph

    params = init_params(kp)
    packed = pack_params(params)

    x1 = jax.random.normal(k1, (N, NODE_INPUT_DIM), jnp.float32)   # data1.x
    x2 = jax.random.normal(k2, (N, NODE_INPUT_DIM), jnp.float32)   # data2.x
    smiles1 = jax.random.normal(k3, (B, SMILES_DIM), jnp.float32)  # data1.xulie
    smiles2 = jax.random.normal(k4, (B, SMILES_DIM), jnp.float32)  # data2.xulie
    batch1 = jnp.repeat(jnp.arange(B, dtype=jnp.int32), nodes_per_graph)
    batch2 = jnp.repeat(jnp.arange(B, dtype=jnp.int32), nodes_per_graph)

    logits = d1model1_forward(packed, x1, smiles1, batch1,
                              x2, smiles2, batch2)
    logits = jax.block_until_ready(logits)
    assert logits.shape == (B, 1) and logits.dtype == jnp.float32
    assert bool(jnp.all(jnp.isfinite(logits)))
    print("KERNEL_OK")
</pallas_src>

<mosaic_0001>
module attributes {stable_mosaic.version = 11 : i64} {
  func.func @_head_kernel(%arg0: memref<2x2x64xf32, #tpu.memory_space<vmem>>, %arg1: memref<128x64xbf16, #tpu.memory_space<vmem>>, %arg2: memref<1x64xf32, #tpu.memory_space<vmem>>, %arg3: memref<1x64xf32, #tpu.memory_space<vmem>>, %arg4: memref<1x64xf32, #tpu.memory_space<vmem>>, %arg5: memref<64x1xf32, #tpu.memory_space<vmem>>, %arg6: memref<1x1xf32, #tpu.memory_space<vmem>>, %arg7: memref<2x1xf32, #tpu.memory_space<vmem>>) attributes {dimension_semantics = [], scalar_prefetch = 0 : i64, scratch_operands = 0 : i64, tpu.core_type = #tpu.core_type<tc>} {
    %c0 = arith.constant 0 : index
    %c0_0 = arith.constant 0 : index
    %c0_1 = arith.constant 0 : index
    %0 = vector.load %arg0[%c0, %c0_0, %c0_1] : memref<2x2x64xf32, #tpu.memory_space<vmem>>, vector<1x2x64xf32>
    %1 = vector.shape_cast %0 : vector<1x2x64xf32> to vector<2x64xf32>
    %c1 = arith.constant 1 : index
    %c0_2 = arith.constant 0 : index
    %c0_3 = arith.constant 0 : index
    %2 = vector.load %arg0[%c1, %c0_2, %c0_3] : memref<2x2x64xf32, #tpu.memory_space<vmem>>, vector<1x2x64xf32>
    %3 = vector.shape_cast %2 : vector<1x2x64xf32> to vector<2x64xf32>
    %4 = tpu.concatenate %1, %3 in 1 : vector<2x64xf32>, vector<2x64xf32> -> vector<2x128xf32>
    %5 = arith.truncf %4 : vector<2x128xf32> to vector<2x128xbf16>
    %c0_4 = arith.constant 0 : index
    %c0_5 = arith.constant 0 : index
    %6 = vector.load %arg1[%c0_4, %c0_5] : memref<128x64xbf16, #tpu.memory_space<vmem>>, vector<128x64xbf16>
    %cst = arith.constant dense<0.000000e+00> : vector<2x64xf32>
    %7 = tpu.matmul %5, %6, %cst {dimension_numbers = #tpu.dot_dimension_numbers<[1], [0], [0], [1], [0, 0, 1, 1], [], []>} : vector<2x128xbf16>, vector<128x64xbf16>, vector<2x64xf32> -> vector<2x64xf32>
    %c0_6 = arith.constant 0 : index
    %c0_7 = arith.constant 0 : index
    %8 = vector.load %arg2[%c0_6, %c0_7] : memref<1x64xf32, #tpu.memory_space<vmem>>, vector<1x64xf32>
    %9 = vector.broadcast %8 : vector<1x64xf32> to vector<2x64xf32>
    %10 = arith.addf %7, %9 : vector<2x64xf32>
    %cst_8 = arith.constant dense<0.000000e+00> : vector<64xf32>
    %11 = vector.multi_reduction <add>, %10, %cst_8 [0] : vector<2x64xf32> to vector<64xf32>
    %12 = vector.shape_cast %11 : vector<64xf32> to vector<1x64xf32>
    %cst_9 = arith.constant 2.000000e+00 : f32
    %13 = vector.broadcast %cst_9 : f32 to vector<1x64xf32>
    %14 = arith.divf %12, %13 : vector<1x64xf32>
    %15 = vector.broadcast %14 : vector<1x64xf32> to vector<2x64xf32>
    %16 = arith.subf %10, %15 : vector<2x64xf32>
    %17 = arith.mulf %16, %16 : vector<2x64xf32>
    %cst_10 = arith.constant dense<0.000000e+00> : vector<64xf32>
    %18 = vector.multi_reduction <add>, %17, %cst_10 [0] : vector<2x64xf32> to vector<64xf32>
    %19 = vector.shape_cast %18 : vector<64xf32> to vector<1x64xf32>
    %cst_11 = arith.constant 2.000000e+00 : f32
    %20 = vector.broadcast %cst_11 : f32 to vector<1x64xf32>
    %21 = arith.divf %19, %20 : vector<1x64xf32>
    %22 = vector.broadcast %14 : vector<1x64xf32> to vector<2x64xf32>
    %23 = arith.subf %10, %22 : vector<2x64xf32>
    %cst_12 = arith.constant 9.99999974E-6 : f32
    %24 = vector.broadcast %cst_12 : f32 to vector<1x64xf32>
    %25 = arith.addf %21, %24 : vector<1x64xf32>
    %26 = math.rsqrt %25 : vector<1x64xf32>
    %27 = vector.broadcast %26 : vector<1x64xf32> to vector<2x64xf32>
    %28 = arith.mulf %23, %27 : vector<2x64xf32>
    %c0_13 = arith.constant 0 : index
    %c0_14 = arith.constant 0 : index
    %29 = vector.load %arg3[%c0_13, %c0_14] : memref<1x64xf32, #tpu.memory_space<vmem>>, vector<1x64xf32>
    %30 = vector.broadcast %29 : vector<1x64xf32> to vector<2x64xf32>
    %31 = arith.mulf %28, %30 : vector<2x64xf32>
    %c0_15 = arith.constant 0 : index
    %c0_16 = arith.constant 0 : index
    %32 = vector.load %arg4[%c0_15, %c0_16] : memref<1x64xf32, #tpu.memory_space<vmem>>, vector<1x64xf32>
    %33 = vector.broadcast %32 : vector<1x64xf32> to vector<2x64xf32>
    %34 = arith.addf %31, %33 : vector<2x64xf32>
    %cst_17 = arith.constant 0.000000e+00 : f32
    %35 = vector.broadcast %cst_17 : f32 to vector<2x64xf32>
    %36 = arith.maximumf %34, %35 : vector<2x64xf32>
    %c0_18 = arith.constant 0 : index
    %c0_19 = arith.constant 0 : index
    %37 = vector.load %arg5[%c0_18, %c0_19] : memref<64x1xf32, #tpu.memory_space<vmem>>, vector<64x1xf32>
    %cst_20 = arith.constant dense<0.000000e+00> : vector<2x1xf32>
    %38 = tpu.matmul %36, %37, %cst_20 {dimension_numbers = #tpu.dot_dimension_numbers<[1], [0], [0], [1], [0, 0, 1, 1], [], []>} : vector<2x64xf32>, vector<64x1xf32>, vector<2x1xf32> -> vector<2x1xf32>
    %c0_21 = arith.constant 0 : index
    %c0_22 = arith.constant 0 : index
    %39 = vector.load %arg6[%c0_21, %c0_22] : memref<1x1xf32, #tpu.memory_space<vmem>>, vector<1x1xf32>
    %40 = vector.broadcast %39 : vector<1x1xf32> to vector<2x1xf32>
    %41 = arith.addf %38, %40 : vector<2x1xf32>
    %c0_23 = arith.constant 0 : index
    %c0_24 = arith.constant 0 : index
    %42 = vector.load %arg7[%c0_23, %c0_24] : memref<2x1xf32, #tpu.memory_space<vmem>>, vector<2x1xf32>
    tpu.vector_store %arg7[%c0_23, %c0_24], %41 {strides = array<i32>} : memref<2x1xf32, #tpu.memory_space<vmem>>, vector<2x1xf32>,
    return
  }
}

module attributes {stable_mosaic.version = 11 : i64} {
  func.func @_encoder_side_kernel(%arg0: i32, %arg1: memref<1x12x133xf32, #tpu.memory_space<vmem>>, %arg2: memref<1x2x384xf32, #tpu.memory_space<vmem>>, %arg3: memref<1x1x12xi32, #tpu.memory_space<vmem>>, %arg4: memref<1x12x1xi32, #tpu.memory_space<vmem>>, %arg5: memref<1x1xf32, #tpu.memory_space<vmem>>, %arg6: memref<133x64xbf16, #tpu.memory_space<vmem>>, %arg7: memref<384x64xbf16, #tpu.memory_space<vmem>>, %arg8: memref<1x64xf32, #tpu.memory_space<vmem>>, %arg9: memref<4x64x192xbf16, #tpu.memory_space<vmem>>, %arg10: memref<4x1x192xf32, #tpu.memory_space<vmem>>, %arg11: memref<4x64x64xbf16, #tpu.memory_space<vmem>>, %arg12: memref<4x1x64xf32, #tpu.memory_space<vmem>>, %arg13: memref<4x1x64xf32, #tpu.memory_space<vmem>>, %arg14: memref<4x1x64xf32, #tpu.memory_space<vmem>>, %arg15: memref<4x64x512xbf16, #tpu.memory_space<vmem>>, %arg16: memref<4x1x512xf32, #tpu.memory_space<vmem>>, %arg17: memref<4x512x64xbf16, #tpu.memory_space<vmem>>, %arg18: memref<4x1x64xf32, #tpu.memory_space<vmem>>, %arg19: memref<4x1x64xf32, #tpu.memory_space<vmem>>, %arg20: memref<4x1x64xf32, #tpu.memory_space<vmem>>, %arg21: memref<1x2x64xf32, #tpu.memory_space<vmem>>) attributes {dimension_semantics = [#tpu.dimension_semantics<parallel>], iteration_bounds = array<i64: 2>, scalar_prefetch = 0 : i64, scratch_operands = 0 : i64, tpu.core_type = #tpu.core_type<tc>, window_params = [{transform_indices = @transform_0, window_bounds = array<i64: 1, 12, 133>}, {transform_indices = @transform_1, window_bounds = array<i64: 1, 2, 384>}, {transform_indices = @transform_2, window_bounds = array<i64: 1, 1, 12>}, {transform_indices = @transform_3, window_bounds = array<i64: 1, 12, 1>}, {pipeline_mode = #tpu.pipeline_mode<synchronous>, transform_indices = @transform_4, window_bounds = array<i64: 1, 1>}, {pipeline_mode = #tpu.pipeline_mode<synchronous>, transform_indices = @transform_5, window_bounds = array<i64: 133, 64>}, {pipeline_mode = #tpu.pipeline_mode<synchronous>, transform_indices = @transform_6, window_bounds = array<i64: 384, 64>}, {pipeline_mode = #tpu.pipeline_mode<synchronous>, transform_indices = @transform_7, window_bounds = array<i64: 1, 64>}, {pipeline_mode = #tpu.pipeline_mode<synchronous>, transform_indices = @transform_8, window_bounds = array<i64: 4, 64, 192>}, {pipeline_mode = #tpu.pipeline_mode<synchronous>, transform_indices = @transform_9, window_bounds = array<i64: 4, 1, 192>}, {pipeline_mode = #tpu.pipeline_mode<synchronous>, transform_indices = @transform_10, window_bounds = array<i64: 4, 64, 64>}, {pipeline_mode = #tpu.pipeline_mode<synchronous>, transform_indices = @transform_11, window_bounds = array<i64: 4, 1, 64>}, {pipeline_mode = #tpu.pipeline_mode<synchronous>, transform_indices = @transform_12, window_bounds = array<i64: 4, 1, 64>}, {pipeline_mode = #tpu.pipeline_mode<synchronous>, transform_indices = @transform_13, window_bounds = array<i64: 4, 1, 64>}, {pipeline_mode = #tpu.pipeline_mode<synchronous>, transform_indices = @transform_14, window_bounds = array<i64: 4, 64, 512>}, {pipeline_mode = #tpu.pipeline_mode<synchronous>, transform_indices = @transform_15, window_bounds = array<i64: 4, 1, 512>}, {pipeline_mode = #tpu.pipeline_mode<synchronous>, transform_indices = @transform_16, window_bounds = array<i64: 4, 512, 64>}, {pipeline_mode = #tpu.pipeline_mode<synchronous>, transform_indices = @transform_17, window_bounds = array<i64: 4, 1, 64>}, {pipeline_mode = #tpu.pipeline_mode<synchronous>, transform_indices = @transform_18, window_bounds = array<i64: 4, 1, 64>}, {pipeline_mode = #tpu.pipeline_mode<synchronous>, transform_indices = @transform_19, window_bounds = array<i64: 4, 1, 64>}, {transform_indices = @transform_20, window_bounds = array<i64: 1, 2, 64>}]} {
    %c0 = arith.constant 0 : index
    %c0_0 = arith.constant 0 : index
    %c0_1 = arith.constant 0 : index
    %0 = vector.load %arg1[%c0, %c0_0, %c0_1] : memref<1x12x133xf32, #tpu.memory_space<vmem>>, vector<1x12x133xf32>
    %1 = vector.shape_cast %0 : vector<1x12x133xf32> to vector<12x133xf32>
    %c0_2 = arith.constant 0 : index
    %c0_3 = arith.constant 0 : index
    %c0_4 = arith.constant 0 : index
    %2 = vector.load %arg2[%c0_2, %c0_3, %c0_4] : memref<1x2x384xf32, #tpu.memory_space<vmem>>, vector<1x2x384xf32>
    %3 = vector.shape_cast %2 : vector<1x2x384xf32> to vector<2x384xf32>
    %c0_5 = arith.constant 0 : index
    %c0_6 = arith.constant 0 : index
    %c0_7 = arith.constant 0 : index
    %4 = vector.load %arg3[%c0_5, %c0_6, %c0_7] : memref<1x1x12xi32, #tpu.memory_space<vmem>>, vector<1x1x12xi32>
    %5 = vector.shape_cast %4 : vector<1x1x12xi32> to vector<1x12xi32>
    %c0_8 = arith.constant 0 : index
    %c0_9 = arith.constant 0 : index
    %c0_10 = arith.constant 0 : index
    %6 = vector.load %arg4[%c0_8, %c0_9, %c0_10] : memref<1x12x1xi32, #tpu.memory_space<vmem>>, vector<1x12x1xi32>
    %7 = vector.shape_cast %6 : vector<1x12x1xi32> to vector<12x1xi32>
    %8 = arith.truncf %3 : vector<2x384xf32> to vector<2x384xbf16>
    %c0_11 = arith.constant 0 : index
    %c0_12 = arith.constant 0 : index
    %9 = vector.load %arg7[%c0_11, %c0_12] : memref<384x64xbf16, #tpu.memory_space<vmem>>, vector<384x64xbf16>
    %cst = arith.constant dense<0.000000e+00> : vector<2x64xf32>
    %10 = tpu.matmul %8, %9, %cst {dimension_numbers = #tpu.dot_dimension_numbers<[1], [0], [0], [1], [0, 0, 1, 1], [], []>} : vector<2x384xbf16>, vector<384x64xbf16>, vector<2x64xf32> -> vector<2x64xf32>
    %c0_13 = arith.constant 0 : index
    %c0_14 = arith.constant 0 : index
    %11 = vector.load %arg8[%c0_13, %c0_14] : memref<1x64xf32, #tpu.memory_space<vmem>>, vector<1x64xf32>
    %12 = vector.broadcast %11 : vector<1x64xf32> to vector<2x64xf32>
    %13 = arith.addf %10, %12 : vector<2x64xf32>
    %14 = arith.truncf %1 : vector<12x133xf32> to vector<12x133xbf16>
    %c0_15 = arith.constant 0 : index
    %c0_16 = arith.constant 0 : index
    %15 = vector.load %arg6[%c0_15, %c0_16] : memref<133x64xbf16, #tpu.memory_space<vmem>>, vector<133x64xbf16>
    %cst_17 = arith.constant dense<0.000000e+00> : vector<12x64xf32>
    %16 = tpu.matmul %14, %15, %cst_17 {dimension_numbers = #tpu.dot_dimension_numbers<[1], [0], [0], [1], [0, 0, 1, 1], [], []>} : vector<12x133xbf16>, vector<133x64xbf16>, vector<12x64xf32> -> vector<12x64xf32>
    %17 = vector.broadcast %5 : vector<1x12xi32> to vector<12x12xi32>
    %18 = vector.broadcast %7 : vector<12x1xi32> to vector<12x12xi32>
    %19 = arith.cmpi eq, %17, %18 : vector<12x12xi32>
    %20 = arith.truncf %16 : vector<12x64xf32> to vector<12x64xbf16>
    %c0_18 = arith.constant 0 : index
    %c0_19 = arith.constant 0 : index
    %c0_20 = arith.constant 0 : index
    %21 = vector.load %arg9[%c0_18, %c0_19, %c0_20] : memref<4x64x192xbf16, #tpu.memory_space<vmem>>, vector<1x64x192xbf16>
    %22 = vector.shape_cast %21 : vector<1x64x192xbf16> to vector<64x192xbf16>
    %cst_21 = arith.constant dense<0.000000e+00> : vector<12x192xf32>
    %23 = tpu.matmul %20, %22, %cst_21 {dimension_numbers = #tpu.dot_dimension_numbers<[1], [0], [0], [1], [0, 0, 1, 1], [], []>} : vector<12x64xbf16>, vector<64x192xbf16>, vector<12x192xf32> -> vector<12x192xf32>
    %c0_22 = arith.constant 0 : index
    %c0_23 = arith.constant 0 : index
    %c0_24 = arith.constant 0 : index
    %24 = vector.load %arg10[%c0_22, %c0_23, %c0_24] : memref<4x1x192xf32, #tpu.memory_space<vmem>>, vector<1x1x192xf32>
    %25 = vector.shape_cast %24 : vector<1x1x192xf32> to vector<1x192xf32>
    %26 = vector.broadcast %25 : vector<1x192xf32> to vector<12x192xf32>
    %27 = arith.addf %23, %26 : vector<12x192xf32>
    %28 = vector.extract_strided_slice %27 {offsets = [0, 0], sizes = [12, 64], strides = [1, 1]} : vector<12x192xf32> to vector<12x64xf32>
    %29 = vector.extract_strided_slice %28 {offsets = [0, 0], sizes = [12, 8], strides = [1, 1]} : vector<12x64xf32> to vector<12x8xf32>
    %30 = vector.extract_strided_slice %28 {offsets = [0, 8], sizes = [12, 8], strides = [1, 1]} : vector<12x64xf32> to vector<12x8xf32>
    %31 = vector.extract_strided_slice %28 {offsets = [0, 16], sizes = [12, 8], strides = [1, 1]} : vector<12x64xf32> to vector<12x8xf32>
    %32 = vector.extract_strided_slice %28 {offsets = [0, 24], sizes = [12, 8], strides = [1, 1]} : vector<12x64xf32> to vector<12x8xf32>
    %33 = vector.extract_strided_slice %28 {offsets = [0, 32], sizes = [12, 8], strides = [1, 1]} : vector<12x64xf32> to vector<12x8xf32>
    %34 = vector.extract_strided_slice %28 {offsets = [0, 40], sizes = [12, 8], strides = [1, 1]} : vector<12x64xf32> to vector<12x8xf32>
    %35 = vector.extract_strided_slice %28 {offsets = [0, 48], sizes = [12, 8], strides = [1, 1]} : vector<12x64xf32> to vector<12x8xf32>
    %36 = vector.extract_strided_slice %28 {offsets = [0, 56], sizes = [12, 8], strides = [1, 1]} : vector<12x64xf32> to vector<12x8xf32>
    %37 = vector.shape_cast %29 : vector<12x8xf32> to vector<1x12x8xf32>
    %38 = vector.shape_cast %30 : vector<12x8xf32> to vector<1x12x8xf32>
    %39 = vector.shape_cast %31 : vector<12x8xf32> to vector<1x12x8xf32>
    %40 = vector.shape_cast %32 : vector<12x8xf32> to vector<1x12x8xf32>
    %41 = vector.shape_cast %33 : vector<12x8xf32> to vector<1x12x8xf32>
    %42 = vector.shape_cast %34 : vector<12x8xf32> to vector<1x12x8xf32>
    %43 = vector.shape_cast %35 : vector<12x8xf32> to vector<1x12x8xf32>
    %44 = vector.shape_cast %36 : vector<12x8xf32> to vector<1x12x8xf32>
    %45 = tpu.concatenate %37, %38, %39, %40, %41, %42, %43, %44 in 0 : vector<1x12x8xf32>, vector<1x12x8xf32>, vector<1x12x8xf32>, vector<1x12x8xf32>, vector<1x12x8xf32>, vector<1x12x8xf32>, vector<1x12x8xf32>, vector<1x12x8xf32> -> vector<8x12x8xf32>
    %46 = arith.truncf %45 : vector<8x12x8xf32> to vector<8x12x8xbf16>
    %47 = vector.extract_strided_slice %27 {offsets = [0, 64], sizes = [12, 64], strides = [1, 1]} : vector<12x192xf32> to vector<12x64xf32>
    %48 = vector.extract_strided_slice %47 {offsets = [0, 0], sizes = [12, 8], strides = [1, 1]} : vector<12x64xf32> to vector<12x8xf32>
    %49 = vector.extract_strided_slice %47 {offsets = [0, 8], sizes = [12, 8], strides = [1, 1]} : vector<12x64xf32> to vector<12x8xf32>
    %50 = vector.extract_strided_slice %47 {offsets = [0, 16], sizes = [12, 8], strides = [1, 1]} : vector<12x64xf32> to vector<12x8xf32>
    %51 = vector.extract_strided_slice %47 {offsets = [0, 24], sizes = [12, 8], strides = [1, 1]} : vector<12x64xf32> to vector<12x8xf32>
    %52 = vector.extract_strided_slice %47 {offsets = [0, 32], sizes = [12, 8], strides = [1, 1]} : vector<12x64xf32> to vector<12x8xf32>
    %53 = vector.extract_strided_slice %47 {offsets = [0, 40], sizes = [12, 8], strides = [1, 1]} : vector<12x64xf32> to vector<12x8xf32>
    %54 = vector.extract_strided_slice %47 {offsets = [0, 48], sizes = [12, 8], strides = [1, 1]} : vector<12x64xf32> to vector<12x8xf32>
    %55 = vector.extract_strided_slice %47 {offsets = [0, 56], sizes = [12, 8], strides = [1, 1]} : vector<12x64xf32> to vector<12x8xf32>
    %56 = vector.shape_cast %48 : vector<12x8xf32> to vector<1x12x8xf32>
    %57 = vector.shape_cast %49 : vector<12x8xf32> to vector<1x12x8xf32>
    %58 = vector.shape_cast %50 : vector<12x8xf32> to vector<1x12x8xf32>
    %59 = vector.shape_cast %51 : vector<12x8xf32> to vector<1x12x8xf32>
    %60 = vector.shape_cast %52 : vector<12x8xf32> to vector<1x12x8xf32>
    %61 = vector.shape_cast %53 : vector<12x8xf32> to vector<1x12x8xf32>
    %62 = vector.shape_cast %54 : vector<12x8xf32> to vector<1x12x8xf32>
    %63 = vector.shape_cast %55 : vector<12x8xf32> to vector<1x12x8xf32>
    %64 = tpu.concatenate %56, %57, %58, %59, %60, %61, %62, %63 in 0 : vector<1x12x8xf32>, vector<1x12x8xf32>, vector<1x12x8xf32>, vector<1x12x8xf32>, vector<1x12x8xf32>, vector<1x12x8xf32>, vector<1x12x8xf32>, vector<1x12x8xf32> -> vector<8x12x8xf32>
    %65 = arith.truncf %64 : vector<8x12x8xf32> to vector<8x12x8xbf16>
    %66 = vector.extract_strided_slice %27 {offsets = [0, 128], sizes = [12, 64], strides = [1, 1]} : vector<12x192xf32> to vector<12x64xf32>
    %67 = vector.extract_strided_slice %66 {offsets = [0, 0], sizes = [12, 8], strides = [1, 1]} : vector<12x64xf32> to vector<12x8xf32>
    %68 = vector.extract_strided_slice %66 {offsets = [0, 8], sizes = [12, 8], strides = [1, 1]} : vector<12x64xf32> to vector<12x8xf32>
    %69 = vector.extract_strided_slice %66 {offsets = [0, 16], sizes = [12, 8], strides = [1, 1]} : vector<12x64xf32> to vector<12x8xf32>
    %70 = vector.extract_strided_slice %66 {offsets = [0, 24], sizes = [12, 8], strides = [1, 1]} : vector<12x64xf32> to vector<12x8xf32>
    %71 = vector.extract_strided_slice %66 {offsets = [0, 32], sizes = [12, 8], strides = [1, 1]} : vector<12x64xf32> to vector<12x8xf32>
    %72 = vector.extract_strided_slice %66 {offsets = [0, 40], sizes = [12, 8], strides = [1, 1]} : vector<12x64xf32> to vector<12x8xf32>
    %73 = vector.extract_strided_slice %66 {offsets = [0, 48], sizes = [12, 8], strides = [1, 1]} : vector<12x64xf32> to vector<12x8xf32>
    %74 = vector.extract_strided_slice %66 {offsets = [0, 56], sizes = [12, 8], strides = [1, 1]} : vector<12x64xf32> to vector<12x8xf32>
    %75 = vector.shape_cast %67 : vector<12x8xf32> to vector<1x12x8xf32>
    %76 = vector.shape_cast %68 : vector<12x8xf32> to vector<1x12x8xf32>
    %77 = vector.shape_cast %69 : vector<12x8xf32> to vector<1x12x8xf32>
    %78 = vector.shape_cast %70 : vector<12x8xf32> to vector<1x12x8xf32>
    %79 = vector.shape_cast %71 : vector<12x8xf32> to vector<1x12x8xf32>
    %80 = vector.shape_cast %72 : vector<12x8xf32> to vector<1x12x8xf32>
    %81 = vector.shape_cast %73 : vector<12x8xf32> to vector<1x12x8xf32>
    %82 = vector.shape_cast %74 : vector<12x8xf32> to vector<1x12x8xf32>
    %83 = tpu.concatenate %75, %76, %77, %78, %79, %80, %81, %82 in 0 : vector<1x12x8xf32>, vector<1x12x8xf32>, vector<1x12x8xf32>, vector<1x12x8xf32>, vector<1x12x8xf32>, vector<1x12x8xf32>, vector<1x12x8xf32>, vector<1x12x8xf32> -> vector<8x12x8xf32>
    %84 = arith.truncf %83 : vector<8x12x8xf32> to vector<8x12x8xbf16>
    "tpu.trace_start"() <{level = 10 : i32, message = "hqd,hkd->hqk"}> : () -> ()
    %cst_25 = arith.constant dense<0.000000e+00> : vector<8x12x12xf32>
    %85 = tpu.matmul %46, %65, %cst_25 {dimension_numbers = #tpu.dot_dimension_numbers<[2], [2], [1], [1], [0, 0, 0, 1, 1, 1], [0], [0]>} : vector<8x12x8xbf16>, vector<8x12x8xbf16>, vector<8x12x12xf32> -> vector<8x12x12xf32>
    "tpu.trace_stop"() : () -> ()
    %86 = vector.shape_cast %19 : vector<12x12xi1> to vector<1x12x12xi1>
    %cst_26 = arith.constant -1.000000e+09 : f32
    %87 = vector.shape_cast %86 : vector<1x12x12xi1> to vector<1x12x12xi1>
    %88 = vector.broadcast %87 : vector<1x12x12xi1> to vector<8x12x12xi1>
    %89 = vector.broadcast %cst_26 : f32 to vector<8x12x12xf32>
    %90 = arith.select %88, %85, %89 : vector<8x12x12xi1>, vector<8x12x12xf32>
    %cst_27 = arith.constant dense<0xFF800000> : vector<8x12xf32>
    %91 = vector.multi_reduction <maximumf>, %90, %cst_27 [2] : vector<8x12x12xf32> to vector<8x12xf32>
    %92 = vector.shape_cast %91 : vector<8x12xf32> to vector<8x12x1xf32>
    %93 = vector.broadcast %92 : vector<8x12x1xf32> to vector<8x12x12xf32>
    %94 = arith.subf %90, %93 : vector<8x12x12xf32>
    %95 = math.exp %94 : vector<8x12x12xf32>
    %cst_28 = arith.constant dense<0.000000e+00> : vector<8x12xf32>
    %96 = vector.multi_reduction <add>, %95, %cst_28 [2] : vector<8x12x12xf32> to vector<8x12xf32>
    %97 = vector.shape_cast %96 : vector<8x12xf32> to vector<8x12x1xf32>
    %98 = tpu.reciprocal %97 {approx = true} : vector<8x12x1xf32> -> vector<8x12x1xf32>
    %99 = vector.broadcast %98 : vector<8x12x1xf32> to vector<8x12x12xf32>
    %100 = arith.mulf %95, %99 : vector<8x12x12xf32>
    %101 = arith.truncf %100 : vector<8x12x12xf32> to vector<8x12x12xbf16>
    "tpu.trace_start"() <{level = 10 : i32, message = "hqk,hkd->hqd"}> : () -> ()
    %cst_29 = arith.constant dense<0.000000e+00> : vector<8x12x8xf32>
    %102 = tpu.matmul %101, %84, %cst_29 {dimension_numbers = #tpu.dot_dimension_numbers<[2], [1], [1], [2], [0, 0, 0, 1, 1, 2], [0], [0]>} : vector<8x12x12xbf16>, vector<8x12x8xbf16>, vector<8x12x8xf32> -> vector<8x12x8xf32>
    "tpu.trace_stop"() : () -> ()
    %103 = vector.extract_strided_slice %102 {offsets = [0, 0, 0], sizes = [1, 12, 8], strides = [1, 1, 1]} : vector<8x12x8xf32> to vector<1x12x8xf32>
    %104 = vector.shape_cast %103 : vector<1x12x8xf32> to vector<12x8xf32>
    %105 = vector.extract_strided_slice %102 {offsets = [1, 0, 0], sizes = [1, 12, 8], strides = [1, 1, 1]} : vector<8x12x8xf32> to vector<1x12x8xf32>
    %106 = vector.shape_cast %105 : vector<1x12x8xf32> to vector<12x8xf32>
    %107 = vector.extract_strided_slice %102 {offsets = [2, 0, 0], sizes = [1, 12, 8], strides = [1, 1, 1]} : vector<8x12x8xf32> to vector<1x12x8xf32>
    %108 = vector.shape_cast %107 : vector<1x12x8xf32> to vector<12x8xf32>
    %109 = vector.extract_strided_slice %102 {offsets = [3, 0, 0], sizes = [1, 12, 8], strides = [1, 1, 1]} : vector<8x12x8xf32> to vector<1x12x8xf32>
    %110 = vector.shape_cast %109 : vector<1x12x8xf32> to vector<12x8xf32>
    %111 = vector.extract_strided_slice %102 {offsets = [4, 0, 0], sizes = [1, 12, 8], strides = [1, 1, 1]} : vector<8x12x8xf32> to vector<1x12x8xf32>
    %112 = vector.shape_cast %111 : vector<1x12x8xf32> to vector<12x8xf32>
    %113 = vector.extract_strided_slice %102 {offsets = [5, 0, 0], sizes = [1, 12, 8], strides = [1, 1, 1]} : vector<8x12x8xf32> to vector<1x12x8xf32>
    %114 = vector.shape_cast %113 : vector<1x12x8xf32> to vector<12x8xf32>
    %115 = vector.extract_strided_slice %102 {offsets = [6, 0, 0], sizes = [1, 12, 8], strides = [1, 1, 1]} : vector<8x12x8xf32> to vector<1x12x8xf32>
    %116 = vector.shape_cast %115 : vector<1x12x8xf32> to vector<12x8xf32>
    %117 = vector.extract_strided_slice %102 {offsets = [7, 0, 0], sizes = [1, 12, 8], strides = [1, 1, 1]} : vector<8x12x8xf32> to vector<1x12x8xf32>
    %118 = vector.shape_cast %117 : vector<1x12x8xf32> to vector<12x8xf32>
    %119 = tpu.concatenate %104, %106, %108, %110, %112, %114, %116, %118 in 1 : vector<12x8xf32>, vector<12x8xf32>, vector<12x8xf32>, vector<12x8xf32>, vector<12x8xf32>, vector<12x8xf32>, vector<12x8xf32>, vector<12x8xf32> -> vector<12x64xf32>
    %120 = arith.truncf %119 : vector<12x64xf32> to vector<12x64xbf16>
    %c0_30 = arith.constant 0 : index
    %c0_31 = arith.constant 0 : index
    %c0_32 = arith.constant 0 : index
    %121 = vector.load %arg11[%c0_30, %c0_31, %c0_32] : memref<4x64x64xbf16, #tpu.memory_space<vmem>>, vector<1x64x64xbf16>
    %122 = vector.shape_cast %121 : vector<1x64x64xbf16> to vector<64x64xbf16>
    %cst_33 = arith.constant dense<0.000000e+00> : vector<12x64xf32>
    %123 = tpu.matmul %120, %122, %cst_33 {dimension_numbers = #tpu.dot_dimension_numbers<[1], [0], [0], [1], [0, 0, 1, 1], [], []>} : vector<12x64xbf16>, vector<64x64xbf16>, vector<12x64xf32> -> vector<12x64xf32>
    %c0_34 = arith.constant 0 : index
    %c0_35 = arith.constant 0 : index
    %c0_36 = arith.constant 0 : index
    %124 = vector.load %arg12[%c0_34, %c0_35, %c0_36] : memref<4x1x64xf32, #tpu.memory_space<vmem>>, vector<1x1x64xf32>
    %125 = vector.shape_cast %124 : vector<1x1x64xf32> to vector<1x64xf32>
    %126 = vector.broadcast %125 : vector<1x64xf32> to vector<12x64xf32>
    %127 = arith.addf %123, %126 : vector<12x64xf32>
    %128 = arith.addf %16, %127 : vector<12x64xf32>
    %c0_37 = arith.constant 0 : index
    %c0_38 = arith.constant 0 : index
    %c0_39 = arith.constant 0 : index
    %129 = vector.load %arg13[%c0_37, %c0_38, %c0_39] : memref<4x1x64xf32, #tpu.memory_space<vmem>>, vector<1x1x64xf32>
    %130 = vector.shape_cast %129 : vector<1x1x64xf32> to vector<1x64xf32>
    %c0_40 = arith.constant 0 : index
    %c0_41 = arith.constant 0 : index
    %c0_42 = arith.constant 0 : index
    %131 = vector.load %arg14[%c0_40, %c0_41, %c0_42] : memref<4x1x64xf32, #tpu.memory_space<vmem>>, vector<1x1x64xf32>
    %132 = vector.shape_cast %131 : vector<1x1x64xf32> to vector<1x64xf32>
    %cst_43 = arith.constant dense<0.000000e+00> : vector<12xf32>
    %133 = vector.multi_reduction <add>, %128, %cst_43 [1] : vector<12x64xf32> to vector<12xf32>
    %134 = vector.shape_cast %133 : vector<12xf32> to vector<12x1xf32>
    %cst_44 = arith.constant 6.400000e+01 : f32
    %135 = vector.broadcast %cst_44 : f32 to vector<12x1xf32>
    %136 = arith.divf %134, %135 : vector<12x1xf32>
    %137 = vector.broadcast %136 : vector<12x1xf32> to vector<12x64xf32>
    %138 = arith.subf %128, %137 : vector<12x64xf32>
    %139 = arith.mulf %138, %138 : vector<12x64xf32>
    %cst_45 = arith.constant dense<0.000000e+00> : vector<12xf32>
    %140 = vector.multi_reduction <add>, %139, %cst_45 [1] : vector<12x64xf32> to vector<12xf32>
    %141 = vector.shape_cast %140 : vector<12xf32> to vector<12x1xf32>
    %cst_46 = arith.constant 6.400000e+01 : f32
    %142 = vector.broadcast %cst_46 : f32 to vector<12x1xf32>
    %143 = arith.divf %141, %142 : vector<12x1xf32>
    %144 = vector.broadcast %136 : vector<12x1xf32> to vector<12x64xf32>
    %145 = arith.subf %128, %144 : vector<12x64xf32>
    %cst_47 = arith.constant 9.99999974E-6 : f32
    %146 = vector.broadcast %cst_47 : f32 to vector<12x1xf32>
    %147 = arith.addf %143, %146 : vector<12x1xf32>
    %148 = math.rsqrt %147 : vector<12x1xf32>
    %149 = vector.broadcast %148 : vector<12x1xf32> to vector<12x64xf32>
    %150 = arith.mulf %145, %149 : vector<12x64xf32>
    %151 = vector.broadcast %130 : vector<1x64xf32> to vector<12x64xf32>
    %152 = arith.mulf %150, %151 : vector<12x64xf32>
    %153 = vector.broadcast %132 : vector<1x64xf32> to vector<12x64xf32>
    %154 = arith.addf %152, %153 : vector<12x64xf32>
    %155 = arith.truncf %154 : vector<12x64xf32> to vector<12x64xbf16>
    %c0_48 = arith.constant 0 : index
    %c0_49 = arith.constant 0 : index
    %c0_50 = arith.constant 0 : index
    %156 = vector.load %arg15[%c0_48, %c0_49, %c0_50] : memref<4x64x512xbf16, #tpu.memory_space<vmem>>, vector<1x64x512xbf16>
    %157 = vector.shape_cast %156 : vector<1x64x512xbf16> to vector<64x512xbf16>
    %cst_51 = arith.constant dense<0.000000e+00> : vector<12x512xf32>
    %158 = tpu.matmul %155, %157, %cst_51 {dimension_numbers = #tpu.dot_dimension_numbers<[1], [0], [0], [1], [0, 0, 1, 1], [], []>} : vector<12x64xbf16>, vector<64x512xbf16>, vector<12x512xf32> -> vector<12x512xf32>
    %c0_52 = arith.constant 0 : index
    %c0_53 = arith.constant 0 : index
    %c0_54 = arith.constant 0 : index
    %159 = vector.load %arg16[%c0_52, %c0_53, %c0_54] : memref<4x1x512xf32, #tpu.memory_space<vmem>>, vector<1x1x512xf32>
    %160 = vector.shape_cast %159 : vector<1x1x512xf32> to vector<1x512xf32>
    %161 = vector.broadcast %160 : vector<1x512xf32> to vector<12x512xf32>
    %162 = arith.addf %158, %161 : vector<12x512xf32>
    %cst_55 = arith.constant 0.000000e+00 : f32
    %163 = vector.broadcast %cst_55 : f32 to vector<12x512xf32>
    %164 = arith.maximumf %162, %163 : vector<12x512xf32>
    %165 = arith.truncf %164 : vector<12x512xf32> to vector<12x512xbf16>
    %c0_56 = arith.constant 0 : index
    %c0_57 = arith.constant 0 : index
    %c0_58 = arith.constant 0 : index
    %166 = vector.load %arg17[%c0_56, %c0_57, %c0_58] : memref<4x512x64xbf16, #tpu.memory_space<vmem>>, vector<1x512x64xbf16>
    %167 = vector.shape_cast %166 : vector<1x512x64xbf16> to vector<512x64xbf16>
    %cst_59 = arith.constant dense<0.000000e+00> : vector<12x64xf32>
    %168 = tpu.matmul %165, %167, %cst_59 {dimension_numbers = #tpu.dot_dimension_numbers<[1], [0], [0], [1], [0, 0, 1, 1], [], []>} : vector<12x512xbf16>, vector<512x64xbf16>, vector<12x64xf32> -> vector<12x64xf32>
    %c0_60 = arith.constant 0 : index
    %c0_61 = arith.constant 0 : index
    %c0_62 = arith.constant 0 : index
    %169 = vector.load %arg18[%c0_60, %c0_61, %c0_62] : memref<4x1x64xf32, #tpu.memory_space<vmem>>, vector<1x1x64xf32>
    %170 = vector.shape_cast %169 : vector<1x1x64xf32> to vector<1x64xf32>
    %171 = vector.broadcast %170 : vector<1x64xf32> to vector<12x64xf32>
    %172 = arith.addf %168, %171 : vector<12x64xf32>
    %173 = arith.addf %154, %172 : vector<12x64xf32>
    %c0_63 = arith.constant 0 : index
    %c0_64 = arith.constant 0 : index
    %c0_65 = arith.constant 0 : index
    %174 = vector.load %arg19[%c0_63, %c0_64, %c0_65] : memref<4x1x64xf32, #tpu.memory_space<vmem>>, vector<1x1x64xf32>
    %175 = vector.shape_cast %174 : vector<1x1x64xf32> to vector<1x64xf32>
    %c0_66 = arith.constant 0 : index
    %c0_67 = arith.constant 0 : index
    %c0_68 = arith.constant 0 : index
    %176 = vector.load %arg20[%c0_66, %c0_67, %c0_68] : memref<4x1x64xf32, #tpu.memory_space<vmem>>, vector<1x1x64xf32>
    %177 = vector.shape_cast %176 : vector<1x1x64xf32> to vector<1x64xf32>
    %cst_69 = arith.constant dense<0.000000e+00> : vector<12xf32>
    %178 = vector.multi_reduction <add>, %173, %cst_69 [1] : vector<12x64xf32> to vector<12xf32>
    %179 = vector.shape_cast %178 : vector<12xf32> to vector<12x1xf32>
    %cst_70 = arith.constant 6.400000e+01 : f32
    %180 = vector.broadcast %cst_70 : f32 to vector<12x1xf32>
    %181 = arith.divf %179, %180 : vector<12x1xf32>
    %182 = vector.broadcast %181 : vector<12x1xf32> to vector<12x64xf32>
    %183 = arith.subf %173, %182 : vector<12x64xf32>
    %184 = arith.mulf %183, %183 : vector<12x64xf32>
    %cst_71 = arith.constant dense<0.000000e+00> : vector<12xf32>
    %185 = vector.multi_reduction <add>, %184, %cst_71 [1] : vector<12x64xf32> to vector<12xf32>
    %186 = vector.shape_cast %185 : vector<12xf32> to vector<12x1xf32>
    %cst_72 = arith.constant 6.400000e+01 : f32
    %187 = vector.broadcast %cst_72 : f32 to vector<12x1xf32>
    %188 = arith.divf %186, %187 : vector<12x1xf32>
    %189 = vector.broadcast %181 : vector<12x1xf32> to vector<12x64xf32>
    %190 = arith.subf %173, %189 : vector<12x64xf32>
    %cst_73 = arith.constant 9.99999974E-6 : f32
    %191 = vector.broadcast %cst_73 : f32 to vector<12x1xf32>
    %192 = arith.addf %188, %191 : vector<12x1xf32>
    %193 = math.rsqrt %192 : vector<12x1xf32>
    %194 = vector.broadcast %193 : vector<12x1xf32> to vector<12x64xf32>
    %195 = arith.mulf %190, %194 : vector<12x64xf32>
    %196 = vector.broadcast %175 : vector<1x64xf32> to vector<12x64xf32>
    %197 = arith.mulf %195, %196 : vector<12x64xf32>
    %198 = vector.broadcast %177 : vector<1x64xf32> to vector<12x64xf32>
    %199 = arith.addf %197, %198 : vector<12x64xf32>
    %200 = arith.truncf %199 : vector<12x64xf32> to vector<12x64xbf16>
    %c1 = arith.constant 1 : index
    %c0_74 = arith.constant 0 : index
    %c0_75 = arith.constant 0 : index
    %201 = vector.load %arg9[%c1, %c0_74, %c0_75] : memref<4x64x192xbf16, #tpu.memory_space<vmem>>, vector<1x64x192xbf16>
    %202 = vector.shape_cast %201 : vector<1x64x192xbf16> to vector<64x192xbf16>
    %cst_76 = arith.constant dense<0.000000e+00> : vector<12x192xf32>
    %203 = tpu.matmul %200, %202, %cst_76 {dimension_numbers = #tpu.dot_dimension_numbers<[1], [0], [0], [1], [0, 0, 1, 1], [], []>} : vector<12x64xbf16>, vector<64x192xbf16>, vector<12x192xf32> -> vector<12x192xf32>
    %c1_77 = arith.constant 1 : index
    %c0_78 = arith.constant 0 : index
    %c0_79 = arith.constant 0 : index
    %204 = vector.load %arg10[%c1_77, %c0_78, %c0_79] : memref<4x1x192xf32, #tpu.memory_space<vmem>>, vector<1x1x192xf32>
    %205 = vector.shape_cast %204 : vector<1x1x192xf32> to vector<1x192xf32>
    %206 = vector.broadcast %205 : vector<1x192xf32> to vector<12x192xf32>
    %207 = arith.addf %203, %206 : vector<12x192xf32>
    %208 = vector.extract_strided_slice %207 {offsets = [0, 0], sizes = [12, 64], strides = [1, 1]} : vector<12x192xf32> to vector<12x64xf32>
    %209 = vector.extract_strided_slice %208 {offsets = [0, 0], sizes = [12, 8], strides = [1, 1]} : vector<12x64xf32> to vector<12x8xf32>
    %210 = vector.extract_strided_slice %208 {offsets = [0, 8], sizes = [12, 8], strides = [1, 1]} : vector<12x64xf32> to vector<12x8xf32>
    %211 = vector.extract_strided_slice %208 {offsets = [0, 16], sizes = [12, 8], strides = [1, 1]} : vector<12x64xf32> to vector<12x8xf32>
    %212 = vector.extract_strided_slice %208 {offsets = [0, 24], sizes = [12, 8], strides = [1, 1]} : vector<12x64xf32> to vector<12x8xf32>
    %213 = vector.extract_strided_slice %208 {offsets = [0, 32], sizes = [12, 8], strides = [1, 1]} : vector<12x64xf32> to vector<12x8xf32>
    %214 = vector.extract_strided_slice %208 {offsets = [0, 40], sizes = [12, 8], strides = [1, 1]} : vector<12x64xf32> to vector<12x8xf32>
    %215 = vector.extract_strided_slice %208 {offsets = [0, 48], sizes = [12, 8], strides = [1, 1]} : vector<12x64xf32> to vector<12x8xf32>
    %216 = vector.extract_strided_slice %208 {offsets = [0, 56], sizes = [12, 8], strides = [1, 1]} : vector<12x64xf32> to vector<12x8xf32>
    %217 = vector.shape_cast %209 : vector<12x8xf32> to vector<1x12x8xf32>
    %218 = vector.shape_cast %210 : vector<12x8xf32> to vector<1x12x8xf32>
    %219 = vector.shape_cast %211 : vector<12x8xf32> to vector<1x12x8xf32>
    %220 = vector.shape_cast %212 : vector<12x8xf32> to vector<1x12x8xf32>
    %221 = vector.shape_cast %213 : vector<12x8xf32> to vector<1x12x8xf32>
    %222 = vector.shape_cast %214 : vector<12x8xf32> to vector<1x12x8xf32>
    %223 = vector.shape_cast %215 : vector<12x8xf32> to vector<1x12x8xf32>
    %224 = vector.shape_cast %216 : vector<12x8xf32> to vector<1x12x8xf32>
    %225 = tpu.concatenate %217, %218, %219, %220, %221, %222, %223, %224 in 0 : vector<1x12x8xf32>, vector<1x12x8xf32>, vector<1x12x8xf32>, vector<1x12x8xf32>, vector<1x12x8xf32>, vector<1x12x8xf32>, vector<1x12x8xf32>, vector<1x12x8xf32> -> vector<8x12x8xf32>
    %226 = arith.truncf %225 : vector<8x12x8xf32> to vector<8x12x8xbf16>
    %227 = vector.extract_strided_slice %207 {offsets = [0, 64], sizes = [12, 64], strides = [1, 1]} : vector<12x192xf32> to vector<12x64xf32>
    %228 = vector.extract_strided_slice %227 {offsets = [0, 0], sizes = [12, 8], strides = [1, 1]} : vector<12x64xf32> to vector<12x8xf32>
    %229 = vector.extract_strided_slice %227 {offsets = [0, 8], sizes = [12, 8], strides = [1, 1]} : vector<12x64xf32> to vector<12x8xf32>
    %230 = vector.extract_strided_slice %227 {offsets = [0, 16], sizes = [12, 8], strides = [1, 1]} : vector<12x64xf32> to vector<12x8xf32>
    %231 = vector.extract_strided_slice %227 {offsets = [0, 24], sizes = [12, 8], strides = [1, 1]} : vector<12x64xf32> to vector<12x8xf32>
    %232 = vector.extract_strided_slice %227 {offsets = [0, 32], sizes = [12, 8], strides = [1, 1]} : vector<12x64xf32> to vector<12x8xf32>
    %233 = vector.extract_strided_slice %227 {offsets = [0, 40], sizes = [12, 8], strides = [1, 1]} : vector<12x64xf32> to vector<12x8xf32>
    %234 = vector.extract_strided_slice %227 {offsets = [0, 48], sizes = [12, 8], strides = [1, 1]} : vector<12x64xf32> to vector<12x8xf32>
    %235 = vector.extract_strided_slice %227 {offsets = [0, 56], sizes = [12, 8], strides = [1, 1]} : vector<12x64xf32> to vector<12x8xf32>
    %236 = vector.shape_cast %228 : vector<12x8xf32> to vector<1x12x8xf32>
    %237 = vector.shape_cast %229 : vector<12x8xf32> to vector<1x12x8xf32>
    %238 = vector.shape_cast %230 : vector<12x8xf32> to vector<1x12x8xf32>
    %239 = vector.shape_cast %231 : vector<12x8xf32> to vector<1x12x8xf32>
    %240 = vector.shape_cast %232 : vector<12x8xf32> to vector<1x12x8xf32>
    %241 = vector.shape_cast %233 : vector<12x8xf32> to vector<1x12x8xf32>
    %242 = vector.shape_cast %234 : vector<12x8xf32> to vector<1x12x8xf32>
    %243 = vector.shape_cast %235 : vector<12x8xf32> to vector<1x12x8xf32>
    %244 = tpu.concatenate %236, %237, %238, %239, %240, %241, %242, %243 in 0 : vector<1x12x8xf32>, vector<1x12x8xf32>, vector<1x12x8xf32>, vector<1x12x8xf32>, vector<1x12x8xf32>, vector<1x12x8xf32>, vector<1x12x8xf32>, vector<1x12x8xf32> -> vector<8x12x8xf32>
    %245 = arith.truncf %244 : vector<8x12x8xf32> to vector<8x12x8xbf16>
    %246 = vector.extract_strided_slice %207 {offsets = [0, 128], sizes = [12, 64], strides = [1, 1]} : vector<12x192xf32> to vector<12x64xf32>
    %247 = vector.extract_strided_slice %246 {offsets = [0, 0], sizes = [12, 8], strides = [1, 1]} : vector<12x64xf32> to vector<12x8xf32>
    %248 = vector.extract_strided_slice %246 {offsets = [0, 8], sizes = [12, 8], strides = [1, 1]} : vector<12x64xf32> to vector<12x8xf32>
    %249 = vector.extract_strided_slice %246 {offsets = [0, 16], sizes = [12, 8], strides = [1, 1]} : vector<12x64xf32> to vector<12x8xf32>
    %250 = vector.extract_strided_slice %246 {offsets = [0, 24], sizes = [12, 8], strides = [1, 1]} : vector<12x64xf32> to vector<12x8xf32>
    %251 = vector.extract_strided_slice %246 {offsets = [0, 32], sizes = [12, 8], strides = [1, 1]} : vector<12x64xf32> to vector<12x8xf32>
    %252 = vector.extract_strided_slice %246 {offsets = [0, 40], sizes = [12, 8], strides = [1, 1]} : vector<12x64xf32> to vector<12x8xf32>
    %253 = vector.extract_strided_slice %246 {offsets = [0, 48], sizes = [12, 8], strides = [1, 1]} : vector<12x64xf32> to vector<12x8xf32>
    %254 = vector.extract_strided_slice %246 {offsets = [0, 56], sizes = [12, 8], strides = [1, 1]} : vector<12x64xf32> to vector<12x8xf32>
    %255 = vector.shape_cast %247 : vector<12x8xf32> to vector<1x12x8xf32>
    %256 = vector.shape_cast %248 : vector<12x8xf32> to vector<1x12x8xf32>
    %257 = vector.shape_cast %249 : vector<12x8xf32> to vector<1x12x8xf32>
    %258 = vector.shape_cast %250 : vector<12x8xf32> to vector<1x12x8xf32>
    %259 = vector.shape_cast %251 : vector<12x8xf32> to vector<1x12x8xf32>
    %260 = vector.shape_cast %252 : vector<12x8xf32> to vector<1x12x8xf32>
    %261 = vector.shape_cast %253 : vector<12x8xf32> to vector<1x12x8xf32>
    %262 = vector.shape_cast %254 : vector<12x8xf32> to vector<1x12x8xf32>
    %263 = tpu.concatenate %255, %256, %257, %258, %259, %260, %261, %262 in 0 : vector<1x12x8xf32>, vector<1x12x8xf32>, vector<1x12x8xf32>, vector<1x12x8xf32>, vector<1x12x8xf32>, vector<1x12x8xf32>, vector<1x12x8xf32>, vector<1x12x8xf32> -> vector<8x12x8xf32>
    %264 = arith.truncf %263 : vector<8x12x8xf32> to vector<8x12x8xbf16>
    "tpu.trace_start"() <{level = 10 : i32, message = "hqd,hkd->hqk"}> : () -> ()
    %cst_80 = arith.constant dense<0.000000e+00> : vector<8x12x12xf32>
    %265 = tpu.matmul %226, %245, %cst_80 {dimension_numbers = #tpu.dot_dimension_numbers<[2], [2], [1], [1], [0, 0, 0, 1, 1, 1], [0], [0]>} : vector<8x12x8xbf16>, vector<8x12x8xbf16>, vector<8x12x12xf32> -> vector<8x12x12xf32>
    "tpu.trace_stop"() : () -> ()
    %266 = vector.shape_cast %19 : vector<12x12xi1> to vector<1x12x12xi1>
    %cst_81 = arith.constant -1.000000e+09 : f32
    %267 = vector.shape_cast %266 : vector<1x12x12xi1> to vector<1x12x12xi1>
    %268 = vector.broadcast %267 : vector<1x12x12xi1> to vector<8x12x12xi1>
    %269 = vector.broadcast %cst_81 : f32 to vector<8x12x12xf32>
    %270 = arith.select %268, %265, %269 : vector<8x12x12xi1>, vector<8x12x12xf32>
    %cst_82 = arith.constant dense<0xFF800000> : vector<8x12xf32>
    %271 = vector.multi_reduction <maximumf>, %270, %cst_82 [2] : vector<8x12x12xf32> to vector<8x12xf32>
    %272 = vector.shape_cast %271 : vector<8x12xf32> to vector<8x12x1xf32>
    %273 = vector.broadcast %272 : vector<8x12x1xf32> to vector<8x12x12xf32>
    %274 = arith.subf %270, %273 : vector<8x12x12xf32>
    %275 = math.exp %274 : vector<8x12x12xf32>
    %cst_83 = arith.constant dense<0.000000e+00> : vector<8x12xf32>
    %276 = vector.multi_reduction <add>, %275, %cst_83 [2] : vector<8x12x12xf32> to vector<8x12xf32>
    %277 = vector.shape_cast %276 : vector<8x12xf32> to vector<8x12x1xf32>
    %278 = tpu.reciprocal %277 {approx = true} : vector<8x12x1xf32> -> vector<8x12x1xf32>
    %279 = vector.broadcast %278 : vector<8x12x1xf32> to vector<8x12x12xf32>
    %280 = arith.mulf %275, %279 : vector<8x12x12xf32>
    %281 = arith.truncf %280 : vector<8x12x12xf32> to vector<8x12x12xbf16>
    "tpu.trace_start"() <{level = 10 : i32, message = "hqk,hkd->hqd"}> : () -> ()
    %cst_84 = arith.constant dense<0.000000e+00> : vector<8x12x8xf32>
    %282 = tpu.matmul %281, %264, %cst_84 {dimension_numbers = #tpu.dot_dimension_numbers<[2], [1], [1], [2], [0, 0, 0, 1, 1, 2], [0], [0]>} : vector<8x12x12xbf16>, vector<8x12x8xbf16>, vector<8x12x8xf32> -> vector<8x12x8xf32>
    "tpu.trace_stop"() : () -> ()
    %283 = vector.extract_strided_slice %282 {offsets = [0, 0, 0], sizes = [1, 12, 8], strides = [1, 1, 1]} : vector<8x12x8xf32> to vector<1x12x8xf32>
    %284 = vector.shape_cast %283 : vector<1x12x8xf32> to vector<12x8xf32>
    %285 = vector.extract_strided_slice %282 {offsets = [1, 0, 0], sizes = [1, 12, 8], strides = [1, 1, 1]} : vector<8x12x8xf32> to vector<1x12x8xf32>
    %286 = vector.shape_cast %285 : vector<1x12x8xf32> to vector<12x8xf32>
    %287 = vector.extract_strided_slice %282 {offsets = [2, 0, 0], sizes = [1, 12, 8], strides = [1, 1, 1]} : vector<8x12x8xf32> to vector<1x12x8xf32>
    %288 = vector.shape_cast %287 : vector<1x12x8xf32> to vector<12x8xf32>
    %289 = vector.extract_strided_slice %282 {offsets = [3, 0, 0], sizes = [1, 12, 8], strides = [1, 1, 1]} : vector<8x12x8xf32> to vector<1x12x8xf32>
    %290 = vector.shape_cast %289 : vector<1x12x8xf32> to vector<12x8xf32>
    %291 = vector.extract_strided_slice %282 {offsets = [4, 0, 0], sizes = [1, 12, 8], strides = [1, 1, 1]} : vector<8x12x8xf32> to vector<1x12x8xf32>
    %292 = vector.shape_cast %291 : vector<1x12x8xf32> to vector<12x8xf32>
    %293 = vector.extract_strided_slice %282 {offsets = [5, 0, 0], sizes = [1, 12, 8], strides = [1, 1, 1]} : vector<8x12x8xf32> to vector<1x12x8xf32>
    %294 = vector.shape_cast %293 : vector<1x12x8xf32> to vector<12x8xf32>
    %295 = vector.extract_strided_slice %282 {offsets = [6, 0, 0], sizes = [1, 12, 8], strides = [1, 1, 1]} : vector<8x12x8xf32> to vector<1x12x8xf32>
    %296 = vector.shape_cast %295 : vector<1x12x8xf32> to vector<12x8xf32>
    %297 = vector.extract_strided_slice %282 {offsets = [7, 0, 0], sizes = [1, 12, 8], strides = [1, 1, 1]} : vector<8x12x8xf32> to vector<1x12x8xf32>
    %298 = vector.shape_cast %297 : vector<1x12x8xf32> to vector<12x8xf32>
    %299 = tpu.concatenate %284, %286, %288, %290, %292, %294, %296, %298 in 1 : vector<12x8xf32>, vector<12x8xf32>, vector<12x8xf32>, vector<12x8xf32>, vector<12x8xf32>, vector<12x8xf32>, vector<12x8xf32>, vector<12x8xf32> -> vector<12x64xf32>
    %300 = arith.truncf %299 : vector<12x64xf32> to vector<12x64xbf16>
    %c1_85 = arith.constant 1 : index
    %c0_86 = arith.constant 0 : index
    %c0_87 = arith.constant 0 : index
    %301 = vector.load %arg11[%c1_85, %c0_86, %c0_87] : memref<4x64x64xbf16, #tpu.memory_space<vmem>>, vector<1x64x64xbf16>
    %302 = vector.shape_cast %301 : vector<1x64x64xbf16> to vector<64x64xbf16>
    %cst_88 = arith.constant dense<0.000000e+00> : vector<12x64xf32>
    %303 = tpu.matmul %300, %302, %cst_88 {dimension_numbers = #tpu.dot_dimension_numbers<[1], [0], [0], [1], [0, 0, 1, 1], [], []>} : vector<12x64xbf16>, vector<64x64xbf16>, vector<12x64xf32> -> vector<12x64xf32>
    %c1_89 = arith.constant 1 : index
    %c0_90 = arith.constant 0 : index
    %c0_91 = arith.constant 0 : index
    %304 = vector.load %arg12[%c1_89, %c0_90, %c0_91] : memref<4x1x64xf32, #tpu.memory_space<vmem>>, vector<1x1x64xf32>
    %305 = vector.shape_cast %304 : vector<1x1x64xf32> to vector<1x64xf32>
    %306 = vector.broadcast %305 : vector<1x64xf32> to vector<12x64xf32>
    %307 = arith.addf %303, %306 : vector<12x64xf32>
    %308 = arith.addf %199, %307 : vector<12x64xf32>
    %c1_92 = arith.constant 1 : index
    %c0_93 = arith.constant 0 : index
    %c0_94 = arith.constant 0 : index
    %309 = vector.load %arg13[%c1_92, %c0_93, %c0_94] : memref<4x1x64xf32, #tpu.memory_space<vmem>>, vector<1x1x64xf32>
    %310 = vector.shape_cast %309 : vector<1x1x64xf32> to vector<1x64xf32>
    %c1_95 = arith.constant 1 : index
    %c0_96 = arith.constant 0 : index
    %c0_97 = arith.constant 0 : index
    %311 = vector.load %arg14[%c1_95, %c0_96, %c0_97] : memref<4x1x64xf32, #tpu.memory_space<vmem>>, vector<1x1x64xf32>
    %312 = vector.shape_cast %311 : vector<1x1x64xf32> to vector<1x64xf32>
    %cst_98 = arith.constant dense<0.000000e+00> : vector<12xf32>
    %313 = vector.multi_reduction <add>, %308, %cst_98 [1] : vector<12x64xf32> to vector<12xf32>
    %314 = vector.shape_cast %313 : vector<12xf32> to vector<12x1xf32>
    %cst_99 = arith.constant 6.400000e+01 : f32
    %315 = vector.broadcast %cst_99 : f32 to vector<12x1xf32>
    %316 = arith.divf %314, %315 : vector<12x1xf32>
    %317 = vector.broadcast %316 : vector<12x1xf32> to vector<12x64xf32>
    %318 = arith.subf %308, %317 : vector<12x64xf32>
    %319 = arith.mulf %318, %318 : vector<12x64xf32>
    %cst_100 = arith.constant dense<0.000000e+00> : vector<12xf32>
    %320 = vector.multi_reduction <add>, %319, %cst_100 [1] : vector<12x64xf32> to vector<12xf32>
    %321 = vector.shape_cast %320 : vector<12xf32> to vector<12x1xf32>
    %cst_101 = arith.constant 6.400000e+01 : f32
    %322 = vector.broadcast %cst_101 : f32 to vector<12x1xf32>
    %323 = arith.divf %321, %322 : vector<12x1xf32>
    %324 = vector.broadcast %316 : vector<12x1xf32> to vector<12x64xf32>
    %325 = arith.subf %308, %324 : vector<12x64xf32>
    %cst_102 = arith.constant 9.99999974E-6 : f32
    %326 = vector.broadcast %cst_102 : f32 to vector<12x1xf32>
    %327 = arith.addf %323, %326 : vector<12x1xf32>
    %328 = math.rsqrt %327 : vector<12x1xf32>
    %329 = vector.broadcast %328 : vector<12x1xf32> to vector<12x64xf32>
    %330 = arith.mulf %325, %329 : vector<12x64xf32>
    %331 = vector.broadcast %310 : vector<1x64xf32> to vector<12x64xf32>
    %332 = arith.mulf %330, %331 : vector<12x64xf32>
    %333 = vector.broadcast %312 : vector<1x64xf32> to vector<12x64xf32>
    %334 = arith.addf %332, %333 : vector<12x64xf32>
    %335 = arith.truncf %334 : vector<12x64xf32> to vector<12x64xbf16>
    %c1_103 = arith.constant 1 : index
    %c0_104 = arith.constant 0 : index
    %c0_105 = arith.constant 0 : index
    %336 = vector.load %arg15[%c1_103, %c0_104, %c0_105] : memref<4x64x512xbf16, #tpu.memory_space<vmem>>, vector<1x64x512xbf16>
    %337 = vector.shape_cast %336 : vector<1x64x512xbf16> to vector<64x512xbf16>
    %cst_106 = arith.constant dense<0.000000e+00> : vector<12x512xf32>
    %338 = tpu.matmul %335, %337, %cst_106 {dimension_numbers = #tpu.dot_dimension_numbers<[1], [0], [0], [1], [0, 0, 1, 1], [], []>} : vector<12x64xbf16>, vector<64x512xbf16>, vector<12x512xf32> -> vector<12x512xf32>
    %c1_107 = arith.constant 1 : index
    %c0_108 = arith.constant 0 : index
    %c0_109 = arith.constant 0 : index
    %339 = vector.load %arg16[%c1_107, %c0_108, %c0_109] : memref<4x1x512xf32, #tpu.memory_space<vmem>>, vector<1x1x512xf32>
    %340 = vector.shape_cast %339 : vector<1x1x512xf32> to vector<1x512xf32>
    %341 = vector.broadcast %340 : vector<1x512xf32> to vector<12x512xf32>
    %342 = arith.addf %338, %341 : vector<12x512xf32>
    %cst_110 = arith.constant 0.000000e+00 : f32
    %343 = vector.broadcast %cst_110 : f32 to vector<12x512xf32>
    %344 = arith.maximumf %342, %343 : vector<12x512xf32>
    %345 = arith.truncf %344 : vector<12x512xf32> to vector<12x512xbf16>
    %c1_111 = arith.constant 1 : index
    %c0_112 = arith.constant 0 : index
    %c0_113 = arith.constant 0 : index
    %346 = vector.load %arg17[%c1_111, %c0_112, %c0_113] : memref<4x512x64xbf16, #tpu.memory_space<vmem>>, vector<1x512x64xbf16>
    %347 = vector.shape_cast %346 : vector<1x512x64xbf16> to vector<512x64xbf16>
    %cst_114 = arith.constant dense<0.000000e+00> : vector<12x64xf32>
    %348 = tpu.matmul %345, %347, %cst_114 {dimension_numbers = #tpu.dot_dimension_numbers<[1], [0], [0], [1], [0, 0, 1, 1], [], []>} : vector<12x512xbf16>, vector<512x64xbf16>, vector<12x64xf32> -> vector<12x64xf32>
    %c1_115 = arith.constant 1 : index
    %c0_116 = arith.constant 0 : index
    %c0_117 = arith.constant 0 : index
    %349 = vector.load %arg18[%c1_115, %c0_116, %c0_117] : memref<4x1x64xf32, #tpu.memory_space<vmem>>, vector<1x1x64xf32>
    %350 = vector.shape_cast %349 : vector<1x1x64xf32> to vector<1x64xf32>
    %351 = vector.broadcast %350 : vector<1x64xf32> to vector<12x64xf32>
    %352 = arith.addf %348, %351 : vector<12x64xf32>
    %353 = arith.addf %334, %352 : vector<12x64xf32>
    %c1_118 = arith.constant 1 : index
    %c0_119 = arith.constant 0 : index
    %c0_120 = arith.constant 0 : index
    %354 = vector.load %arg19[%c1_118, %c0_119, %c0_120] : memref<4x1x64xf32, #tpu.memory_space<vmem>>, vector<1x1x64xf32>
    %355 = vector.shape_cast %354 : vector<1x1x64xf32> to vector<1x64xf32>
    %c1_121 = arith.constant 1 : index
    %c0_122 = arith.constant 0 : index
    %c0_123 = arith.constant 0 : index
    %356 = vector.load %arg20[%c1_121, %c0_122, %c0_123] : memref<4x1x64xf32, #tpu.memory_space<vmem>>, vector<1x1x64xf32>
    %357 = vector.shape_cast %356 : vector<1x1x64xf32> to vector<1x64xf32>
    %cst_124 = arith.constant dense<0.000000e+00> : vector<12xf32>
    %358 = vector.multi_reduction <add>, %353, %cst_124 [1] : vector<12x64xf32> to vector<12xf32>
    %359 = vector.shape_cast %358 : vector<12xf32> to vector<12x1xf32>
    %cst_125 = arith.constant 6.400000e+01 : f32
    %360 = vector.broadcast %cst_125 : f32 to vector<12x1xf32>
    %361 = arith.divf %359, %360 : vector<12x1xf32>
    %362 = vector.broadcast %361 : vector<12x1xf32> to vector<12x64xf32>
    %363 = arith.subf %353, %362 : vector<12x64xf32>
    %364 = arith.mulf %363, %363 : vector<12x64xf32>
    %cst_126 = arith.constant dense<0.000000e+00> : vector<12xf32>
    %365 = vector.multi_reduction <add>, %364, %cst_126 [1] : vector<12x64xf32> to vector<12xf32>
    %366 = vector.shape_cast %365 : vector<12xf32> to vector<12x1xf32>
    %cst_127 = arith.constant 6.400000e+01 : f32
    %367 = vector.broadcast %cst_127 : f32 to vector<12x1xf32>
    %368 = arith.divf %366, %367 : vector<12x1xf32>
    %369 = vector.broadcast %361 : vector<12x1xf32> to vector<12x64xf32>
    %370 = arith.subf %353, %369 : vector<12x64xf32>
    %cst_128 = arith.constant 9.99999974E-6 : f32
    %371 = vector.broadcast %cst_128 : f32 to vector<12x1xf32>
    %372 = arith.addf %368, %371 : vector<12x1xf32>
    %373 = math.rsqrt %372 : vector<12x1xf32>
    %374 = vector.broadcast %373 : vector<12x1xf32> to vector<12x64xf32>
    %375 = arith.mulf %370, %374 : vector<12x64xf32>
    %376 = vector.broadcast %355 : vector<1x64xf32> to vector<12x64xf32>
    %377 = arith.mulf %375, %376 : vector<12x64xf32>
    %378 = vector.broadcast %357 : vector<1x64xf32> to vector<12x64xf32>
    %379 = arith.addf %377, %378 : vector<12x64xf32>
    %380 = arith.truncf %379 : vector<12x64xf32> to vector<12x64xbf16>
    %c2 = arith.constant 2 : index
    %c0_129 = arith.constant 0 : index
    %c0_130 = arith.constant 0 : index
    %381 = vector.load %arg9[%c2, %c0_129, %c0_130] : memref<4x64x192xbf16, #tpu.memory_space<vmem>>, vector<1x64x192xbf16>
    %382 = vector.shape_cast %381 : vector<1x64x192xbf16> to vector<64x192xbf16>
    %cst_131 = arith.constant dense<0.000000e+00> : vector<12x192xf32>
    %383 = tpu.matmul %380, %382, %cst_131 {dimension_numbers = #tpu.dot_dimension_numbers<[1], [0], [0], [1], [0, 0, 1, 1], [], []>} : vector<12x64xbf16>, vector<64x192xbf16>, vector<12x192xf32> -> vector<12x192xf32>
    %c2_132 = arith.constant 2 : index
    %c0_133 = arith.constant 0 : index
    %c0_134 = arith.constant 0 : index
    %384 = vector.load %arg10[%c2_132, %c0_133, %c0_134] : memref<4x1x192xf32, #tpu.memory_space<vmem>>, vector<1x1x192xf32>
    %385 = vector.shape_cast %384 : vector<1x1x192xf32> to vector<1x192xf32>
    %386 = vector.broadcast %385 : vector<1x192xf32> to vector<12x192xf32>
    %387 = arith.addf %383, %386 : vector<12x192xf32>
    %388 = vector.extract_strided_slice %387 {offsets = [0, 0], sizes = [12, 64], strides = [1, 1]} : vector<12x192xf32> to vector<12x64xf32>
    %389 = vector.extract_strided_slice %388 {offsets = [0, 0], sizes = [12, 8], strides = [1, 1]} : vector<12x64xf32> to vector<12x8xf32>
    %390 = vector.extract_strided_slice %388 {offsets = [0, 8], sizes = [12, 8], strides = [1, 1]} : vector<12x64xf32> to vector<12x8xf32>
    %391 = vector.extract_strided_slice %388 {offsets = [0, 16], sizes = [12, 8], strides = [1, 1]} : vector<12x64xf32> to vector<12x8xf32>
    %392 = vector.extract_strided_slice %388 {offsets = [0, 24], sizes = [12, 8], strides = [1, 1]} : vector<12x64xf32> to vector<12x8xf32>
    %393 = vector.extract_strided_slice %388 {offsets = [0, 32], sizes = [12, 8], strides = [1, 1]} : vector<12x64xf32> to vector<12x8xf32>
    %394 = vector.extract_strided_slice %388 {offsets = [0, 40], sizes = [12, 8], strides = [1, 1]} : vector<12x64xf32> to vector<12x8xf32>
    %395 = vector.extract_strided_slice %388 {offsets = [0, 48], sizes = [12, 8], strides = [1, 1]} : vector<12x64xf32> to vector<12x8xf32>
    %396 = vector.extract_strided_slice %388 {offsets = [0, 56], sizes = [12, 8], strides = [1, 1]} : vector<12x64xf32> to vector<12x8xf32>
    %397 = vector.shape_cast %389 : vector<12x8xf32> to vector<1x12x8xf32>
    %398 = vector.shape_cast %390 : vector<12x8xf32> to vector<1x12x8xf32>
    %399 = vector.shape_cast %391 : vector<12x8xf32> to vector<1x12x8xf32>
    %400 = vector.shape_cast %392 : vector<12x8xf32> to vector<1x12x8xf32>
    %401 = vector.shape_cast %393 : vector<12x8xf32> to vector<1x12x8xf32>
    %402 = vector.shape_cast %394 : vector<12x8xf32> to vector<1x12x8xf32>
    %403 = vector.shape_cast %395 : vector<12x8xf32> to vector<1x12x8xf32>
    %404 = vector.shape_cast %396 : vector<12x8xf32> to vector<1x12x8xf32>
    %405 = tpu.concatenate %397, %398, %399, %400, %401, %402, %403, %404 in 0 : vector<1x12x8xf32>, vector<1x12x8xf32>, vector<1x12x8xf32>, vector<1x12x8xf32>, vector<1x12x8xf32>, vector<1x12x8xf32>, vector<1x12x8xf32>, vector<1x12x8xf32> -> vector<8x12x8xf32>
    %406 = arith.truncf %405 : vector<8x12x8xf32> to vector<8x12x8xbf16>
    %407 = vector.extract_strided_slice %387 {offsets = [0, 64], sizes = [12, 64], strides = [1, 1]} : vector<12x192xf32> to vector<12x64xf32>
    %408 = vector.extract_strided_slice %407 {offsets = [0, 0], sizes = [12, 8], strides = [1, 1]} : vector<12x64xf32> to vector<12x8xf32>
    %409 = vector.extract_strided_slice %407 {offsets = [0, 8], sizes = [12, 8], strides = [1, 1]} : vector<12x64xf32> to vector<12x8xf32>
    %410 = vector.extract_strided_slice %407 {offsets = [0, 16], sizes = [12, 8], strides = [1, 1]} : vector<12x64xf32> to vector<12x8xf32>
    %411 = vector.extract_strided_slice %407 {offsets = [0, 24], sizes = [12, 8], strides = [1, 1]} : vector<12x64xf32> to vector<12x8xf32>
    %412 = vector.extract_strided_slice %407 {offsets = [0, 32], sizes = [12, 8], strides = [1, 1]} : vector<12x64xf32> to vector<12x8xf32>
    %413 = vector.extract_strided_slice %407 {offsets = [0, 40], sizes = [12, 8], strides = [1, 1]} : vector<12x64xf32> to vector<12x8xf32>
    %414 = vector.extract_strided_slice %407 {offsets = [0, 48], sizes = [12, 8], strides = [1, 1]} : vector<12x64xf32> to vector<12x8xf32>
    %415 = vector.extract_strided_slice %407 {offsets = [0, 56], sizes = [12, 8], strides = [1, 1]} : vector<12x64xf32> to vector<12x8xf32>
    %416 = vector.shape_cast %408 : vector<12x8xf32> to vector<1x12x8xf32>
    %417 = vector.shape_cast %409 : vector<12x8xf32> to vector<1x12x8xf32>
    %418 = vector.shape_cast %410 : vector<12x8xf32> to vector<1x12x8xf32>
    %419 = vector.shape_cast %411 : vector<12x8xf32> to vector<1x12x8xf32>
    %420 = vector.shape_cast %412 : vector<12x8xf32> to vector<1x12x8xf32>
    %421 = vector.shape_cast %413 : vector<12x8xf32> to vector<1x12x8xf32>
    %422 = vector.shape_cast %414 : vector<12x8xf32> to vector<1x12x8xf32>
    %423 = vector.shape_cast %415 : vector<12x8xf32> to vector<1x12x8xf32>
    %424 = tpu.concatenate %416, %417, %418, %419, %420, %421, %422, %423 in 0 : vector<1x12x8xf32>, vector<1x12x8xf32>, vector<1x12x8xf32>, vector<1x12x8xf32>, vector<1x12x8xf32>, vector<1x12x8xf32>, vector<1x12x8xf32>, vector<1x12x8xf32> -> vector<8x12x8xf32>
    %425 = arith.truncf %424 : vector<8x12x8xf32> to vector<8x12x8xbf16>
    %426 = vector.extract_strided_slice %387 {offsets = [0, 128], sizes = [12, 64], strides = [1, 1]} : vector<12x192xf32> to vector<12x64xf32>
    %427 = vector.extract_strided_slice %426 {offsets = [0, 0], sizes = [12, 8], strides = [1, 1]} : vector<12x64xf32> to vector<12x8xf32>
    %428 = vector.extract_strided_slice %426 {offsets = [0, 8], sizes = [12, 8], strides = [1, 1]} : vector<12x64xf32> to vector<12x8xf32>
    %429 = vector.extract_strided_slice %426 {offsets = [0, 16], sizes = [12, 8], strides = [1, 1]} : vector<12x64xf32> to vector<12x8xf32>
    %430 = vector.extract_strided_slice %426 {offsets = [0, 24], sizes = [12, 8], strides = [1, 1]} : vector<12x64xf32> to vector<12x8xf32>
    %431 = vector.extract_strided_slice %426 {offsets = [0, 32], sizes = [12, 8], strides = [1, 1]} : vector<12x64xf32> to vector<12x8xf32>
    %432 = vector.extract_strided_slice %426 {offsets = [0, 40], sizes = [12, 8], strides = [1, 1]} : vector<12x64xf32> to vector<12x8xf32>
    %433 = vector.extract_strided_slice %426 {offsets = [0, 48], sizes = [12, 8], strides = [1, 1]} : vector<12x64xf32> to vector<12x8xf32>
    %434 = vector.extract_strided_slice %426 {offsets = [0, 56], sizes = [12, 8], strides = [1, 1]} : vector<12x64xf32> to vector<12x8xf32>
    %435 = vector.shape_cast %427 : vector<12x8xf32> to vector<1x12x8xf32>
    %436 = vector.shape_cast %428 : vector<12x8xf32> to vector<1x12x8xf32>
    %437 = vector.shape_cast %429 : vector<12x8xf32> to vector<1x12x8xf32>
    %438 = vector.shape_cast %430 : vector<12x8xf32> to vector<1x12x8xf32>
    %439 = vector.shape_cast %431 : vector<12x8xf32> to vector<1x12x8xf32>
    %440 = vector.shape_cast %432 : vector<12x8xf32> to vector<1x12x8xf32>
    %441 = vector.shape_cast %433 : vector<12x8xf32> to vector<1x12x8xf32>
    %442 = vector.shape_cast %434 : vector<12x8xf32> to vector<1x12x8xf32>
    %443 = tpu.concatenate %435, %436, %437, %438, %439, %440, %441, %442 in 0 : vector<1x12x8xf32>, vector<1x12x8xf32>, vector<1x12x8xf32>, vector<1x12x8xf32>, vector<1x12x8xf32>, vector<1x12x8xf32>, vector<1x12x8xf32>, vector<1x12x8xf32> -> vector<8x12x8xf32>
    %444 = arith.truncf %443 : vector<8x12x8xf32> to vector<8x12x8xbf16>
    "tpu.trace_start"() <{level = 10 : i32, message = "hqd,hkd->hqk"}> : () -> ()
    %cst_135 = arith.constant dense<0.000000e+00> : vector<8x12x12xf32>
    %445 = tpu.matmul %406, %425, %cst_135 {dimension_numbers = #tpu.dot_dimension_numbers<[2], [2], [1], [1], [0, 0, 0, 1, 1, 1], [0], [0]>} : vector<8x12x8xbf16>, vector<8x12x8xbf16>, vector<8x12x12xf32> -> vector<8x12x12xf32>
    "tpu.trace_stop"() : () -> ()
    %446 = vector.shape_cast %19 : vector<12x12xi1> to vector<1x12x12xi1>
    %cst_136 = arith.constant -1.000000e+09 : f32
    %447 = vector.shape_cast %446 : vector<1x12x12xi1> to vector<1x12x12xi1>
    %448 = vector.broadcast %447 : vector<1x12x12xi1> to vector<8x12x12xi1>
    %449 = vector.broadcast %cst_136 : f32 to vector<8x12x12xf32>
    %450 = arith.select %448, %445, %449 : vector<8x12x12xi1>, vector<8x12x12xf32>
    %cst_137 = arith.constant dense<0xFF800000> : vector<8x12xf32>
    %451 = vector.multi_reduction <maximumf>, %450, %cst_137 [2] : vector<8x12x12xf32> to vector<8x12xf32>
    %452 = vector.shape_cast %451 : vector<8x12xf32> to vector<8x12x1xf32>
    %453 = vector.broadcast %452 : vector<8x12x1xf32> to vector<8x12x12xf32>
    %454 = arith.subf %450, %453 : vector<8x12x12xf32>
    %455 = math.exp %454 : vector<8x12x12xf32>
    %cst_138 = arith.constant dense<0.000000e+00> : vector<8x12xf32>
    %456 = vector.multi_reduction <add>, %455, %cst_138 [2] : vector<8x12x12xf32> to vector<8x12xf32>
    %457 = vector.shape_cast %456 : vector<8x12xf32> to vector<8x12x1xf32>
    %458 = tpu.reciprocal %457 {approx = true} : vector<8x12x1xf32> -> vector<8x12x1xf32>
    %459 = vector.broadcast %458 : vector<8x12x1xf32> to vector<8x12x12xf32>
    %460 = arith.mulf %455, %459 : vector<8x12x12xf32>
    %461 = arith.truncf %460 : vector<8x12x12xf32> to vector<8x12x12xbf16>
    "tpu.trace_start"() <{level = 10 : i32, message = "hqk,hkd->hqd"}> : () -> ()
    %cst_139 = arith.constant dense<0.000000e+00> : vector<8x12x8xf32>
    %462 = tpu.matmul %461, %444, %cst_139 {dimension_numbers = #tpu.dot_dimension_numbers<[2], [1], [1], [2], [0, 0, 0, 1, 1, 2], [0], [0]>} : vector<8x12x12xbf16>, vector<8x12x8xbf16>, vector<8x12x8xf32> -> vector<8x12x8xf32>
    "tpu.trace_stop"() : () -> ()
    %463 = vector.extract_strided_slice %462 {offsets = [0, 0, 0], sizes = [1, 12, 8], strides = [1, 1, 1]} : vector<8x12x8xf32> to vector<1x12x8xf32>
    %464 = vector.shape_cast %463 : vector<1x12x8xf32> to vector<12x8xf32>
    %465 = vector.extract_strided_slice %462 {offsets = [1, 0, 0], sizes = [1, 12, 8], strides = [1, 1, 1]} : vector<8x12x8xf32> to vector<1x12x8xf32>
    %466 = vector.shape_cast %465 : vector<1x12x8xf32> to vector<12x8xf32>
    %467 = vector.extract_strided_slice %462 {offsets = [2, 0, 0], sizes = [1, 12, 8], strides = [1, 1, 1]} : vector<8x12x8xf32> to vector<1x12x8xf32>
    %468 = vector.shape_cast %467 : vector<1x12x8xf32> to vector<12x8xf32>
    %469 = vector.extract_strided_slice %462 {offsets = [3, 0, 0], sizes = [1, 12, 8], strides = [1, 1, 1]} : vector<8x12x8xf32> to vector<1x12x8xf32>
    %470 = vector.shape_cast %469 : vector<1x12x8xf32> to vector<12x8xf32>
    %471 = vector.extract_strided_slice %462 {offsets = [4, 0, 0], sizes = [1, 12, 8], strides = [1, 1, 1]} : vector<8x12x8xf32> to vector<1x12x8xf32>
    %472 = vector.shape_cast %471 : vector<1x12x8xf32> to vector<12x8xf32>
    %473 = vector.extract_strided_slice %462 {offsets = [5, 0, 0], sizes = [1, 12, 8], strides = [1, 1, 1]} : vector<8x12x8xf32> to vector<1x12x8xf32>
    %474 = vector.shape_cast %473 : vector<1x12x8xf32> to vector<12x8xf32>
    %475 = vector.extract_strided_slice %462 {offsets = [6, 0, 0], sizes = [1, 12, 8], strides = [1, 1, 1]} : vector<8x12x8xf32> to vector<1x12x8xf32>
    %476 = vector.shape_cast %475 : vector<1x12x8xf32> to vector<12x8xf32>
    %477 = vector.extract_strided_slice %462 {offsets = [7, 0, 0], sizes = [1, 12, 8], strides = [1, 1, 1]} : vector<8x12x8xf32> to vector<1x12x8xf32>
    %478 = vector.shape_cast %477 : vector<1x12x8xf32> to vector<12x8xf32>
    %479 = tpu.concatenate %464, %466, %468, %470, %472, %474, %476, %478 in 1 : vector<12x8xf32>, vector<12x8xf32>, vector<12x8xf32>, vector<12x8xf32>, vector<12x8xf32>, vector<12x8xf32>, vector<12x8xf32>, vector<12x8xf32> -> vector<12x64xf32>
    %480 = arith.truncf %479 : vector<12x64xf32> to vector<12x64xbf16>
    %c2_140 = arith.constant 2 : index
    %c0_141 = arith.constant 0 : index
    %c0_142 = arith.constant 0 : index
    %481 = vector.load %arg11[%c2_140, %c0_141, %c0_142] : memref<4x64x64xbf16, #tpu.memory_space<vmem>>, vector<1x64x64xbf16>
    %482 = vector.shape_cast %481 : vector<1x64x64xbf16> to vector<64x64xbf16>
    %cst_143 = arith.constant dense<0.000000e+00> : vector<12x64xf32>
    %483 = tpu.matmul %480, %482, %cst_143 {dimension_numbers = #tpu.dot_dimension_numbers<[1], [0], [0], [1], [0, 0, 1, 1], [], []>} : vector<12x64xbf16>, vector<64x64xbf16>, vector<12x64xf32> -> vector<12x64xf32>
    %c2_144 = arith.constant 2 : index
    %c0_145 = arith.constant 0 : index
    %c0_146 = arith.constant 0 : index
    %484 = vector.load %arg12[%c2_144, %c0_145, %c0_146] : memref<4x1x64xf32, #tpu.memory_space<vmem>>, vector<1x1x64xf32>
    %485 = vector.shape_cast %484 : vector<1x1x64xf32> to vector<1x64xf32>
    %486 = vector.broadcast %485 : vector<1x64xf32> to vector<12x64xf32>
    %487 = arith.addf %483, %486 : vector<12x64xf32>
    %488 = arith.addf %379, %487 : vector<12x64xf32>
    %c2_147 = arith.constant 2 : index
    %c0_148 = arith.constant 0 : index
    %c0_149 = arith.constant 0 : index
    %489 = vector.load %arg13[%c2_147, %c0_148, %c0_149] : memref<4x1x64xf32, #tpu.memory_space<vmem>>, vector<1x1x64xf32>
    %490 = vector.shape_cast %489 : vector<1x1x64xf32> to vector<1x64xf32>
    %c2_150 = arith.constant 2 : index
    %c0_151 = arith.constant 0 : index
    %c0_152 = arith.constant 0 : index
    %491 = vector.load %arg14[%c2_150, %c0_151, %c0_152] : memref<4x1x64xf32, #tpu.memory_space<vmem>>, vector<1x1x64xf32>
    %492 = vector.shape_cast %491 : vector<1x1x64xf32> to vector<1x64xf32>
    %cst_153 = arith.constant dense<0.000000e+00> : vector<12xf32>
    %493 = vector.multi_reduction <add>, %488, %cst_153 [1] : vector<12x64xf32> to vector<12xf32>
    %494 = vector.shape_cast %493 : vector<12xf32> to vector<12x1xf32>
    %cst_154 = arith.constant 6.400000e+01 : f32
    %495 = vector.broadcast %cst_154 : f32 to vector<12x1xf32>
    %496 = arith.divf %494, %495 : vector<12x1xf32>
    %497 = vector.broadcast %496 : vector<12x1xf32> to vector<12x64xf32>
    %498 = arith.subf %488, %497 : vector<12x64xf32>
    %499 = arith.mulf %498, %498 : vector<12x64xf32>
    %cst_155 = arith.constant dense<0.000000e+00> : vector<12xf32>
    %500 = vector.multi_reduction <add>, %499, %cst_155 [1] : vector<12x64xf32> to vector<12xf32>
    %501 = vector.shape_cast %500 : vector<12xf32> to vector<12x1xf32>
    %cst_156 = arith.constant 6.400000e+01 : f32
    %502 = vector.broadcast %cst_156 : f32 to vector<12x1xf32>
    %503 = arith.divf %501, %502 : vector<12x1xf32>
    %504 = vector.broadcast %496 : vector<12x1xf32> to vector<12x64xf32>
    %505 = arith.subf %488, %504 : vector<12x64xf32>
    %cst_157 = arith.constant 9.99999974E-6 : f32
    %506 = vector.broadcast %cst_157 : f32 to vector<12x1xf32>
    %507 = arith.addf %503, %506 : vector<12x1xf32>
    %508 = math.rsqrt %507 : vector<12x1xf32>
    %509 = vector.broadcast %508 : vector<12x1xf32> to vector<12x64xf32>
    %510 = arith.mulf %505, %509 : vector<12x64xf32>
    %511 = vector.broadcast %490 : vector<1x64xf32> to vector<12x64xf32>
    %512 = arith.mulf %510, %511 : vector<12x64xf32>
    %513 = vector.broadcast %492 : vector<1x64xf32> to vector<12x64xf32>
    %514 = arith.addf %512, %513 : vector<12x64xf32>
    %515 = arith.truncf %514 : vector<12x64xf32> to vector<12x64xbf16>
    %c2_158 = arith.constant 2 : index
    %c0_159 = arith.constant 0 : index
    %c0_160 = arith.constant 0 : index
    %516 = vector.load %arg15[%c2_158, %c0_159, %c0_160] : memref<4x64x512xbf16, #tpu.memory_space<vmem>>, vector<1x64x512xbf16>
    %517 = vector.shape_cast %516 : vector<1x64x512xbf16> to vector<64x512xbf16>
    %cst_161 = arith.constant dense<0.000000e+00> : vector<12x512xf32>
    %518 = tpu.matmul %515, %517, %cst_161 {dimension_numbers = #tpu.dot_dimension_numbers<[1], [0], [0], [1], [0, 0, 1, 1], [], []>} : vector<12x64xbf16>, vector<64x512xbf16>, vector<12x512xf32> -> vector<12x512xf32>
    %c2_162 = arith.constant 2 : index
    %c0_163 = arith.constant 0 : index
    %c0_164 = arith.constant 0 : index
    %519 = vector.load %arg16[%c2_162, %c0_163, %c0_164] : memref<4x1x512xf32, #tpu.memory_space<vmem>>, vector<1x1x512xf32>
    %520 = vector.shape_cast %519 : vector<1x1x512xf32> to vector<1x512xf32>
    %521 = vector.broadcast %520 : vector<1x512xf32> to vector<12x512xf32>
    %522 = arith.addf %518, %521 : vector<12x512xf32>
    %cst_165 = arith.constant 0.000000e+00 : f32
    %523 = vector.broadcast %cst_165 : f32 to vector<12x512xf32>
    %524 = arith.maximumf %522, %523 : vector<12x512xf32>
    %525 = arith.truncf %524 : vector<12x512xf32> to vector<12x512xbf16>
    %c2_166 = arith.constant 2 : index
    %c0_167 = arith.constant 0 : index
    %c0_168 = arith.constant 0 : index
    %526 = vector.load %arg17[%c2_166, %c0_167, %c0_168] : memref<4x512x64xbf16, #tpu.memory_space<vmem>>, vector<1x512x64xbf16>
    %527 = vector.shape_cast %526 : vector<1x512x64xbf16> to vector<512x64xbf16>
    %cst_169 = arith.constant dense<0.000000e+00> : vector<12x64xf32>
    %528 = tpu.matmul %525, %527, %cst_169 {dimension_numbers = #tpu.dot_dimension_numbers<[1], [0], [0], [1], [0, 0, 1, 1], [], []>} : vector<12x512xbf16>, vector<512x64xbf16>, vector<12x64xf32> -> vector<12x64xf32>
    %c2_170 = arith.constant 2 : index
    %c0_171 = arith.constant 0 : index
    %c0_172 = arith.constant 0 : index
    %529 = vector.load %arg18[%c2_170, %c0_171, %c0_172] : memref<4x1x64xf32, #tpu.memory_space<vmem>>, vector<1x1x64xf32>
    %530 = vector.shape_cast %529 : vector<1x1x64xf32> to vector<1x64xf32>
    %531 = vector.broadcast %530 : vector<1x64xf32> to vector<12x64xf32>
    %532 = arith.addf %528, %531 : vector<12x64xf32>
    %533 = arith.addf %514, %532 : vector<12x64xf32>
    %c2_173 = arith.constant 2 : index
    %c0_174 = arith.constant 0 : index
    %c0_175 = arith.constant 0 : index
    %534 = vector.load %arg19[%c2_173, %c0_174, %c0_175] : memref<4x1x64xf32, #tpu.memory_space<vmem>>, vector<1x1x64xf32>
    %535 = vector.shape_cast %534 : vector<1x1x64xf32> to vector<1x64xf32>
    %c2_176 = arith.constant 2 : index
    %c0_177 = arith.constant 0 : index
    %c0_178 = arith.constant 0 : index
    %536 = vector.load %arg20[%c2_176, %c0_177, %c0_178] : memref<4x1x64xf32, #tpu.memory_space<vmem>>, vector<1x1x64xf32>
    %537 = vector.shape_cast %536 : vector<1x1x64xf32> to vector<1x64xf32>
    %cst_179 = arith.constant dense<0.000000e+00> : vector<12xf32>
    %538 = vector.multi_reduction <add>, %533, %cst_179 [1] : vector<12x64xf32> to vector<12xf32>
    %539 = vector.shape_cast %538 : vector<12xf32> to vector<12x1xf32>
    %cst_180 = arith.constant 6.400000e+01 : f32
    %540 = vector.broadcast %cst_180 : f32 to vector<12x1xf32>
    %541 = arith.divf %539, %540 : vector<12x1xf32>
    %542 = vector.broadcast %541 : vector<12x1xf32> to vector<12x64xf32>
    %543 = arith.subf %533, %542 : vector<12x64xf32>
    %544 = arith.mulf %543, %543 : vector<12x64xf32>
    %cst_181 = arith.constant dense<0.000000e+00> : vector<12xf32>
    %545 = vector.multi_reduction <add>, %544, %cst_181 [1] : vector<12x64xf32> to vector<12xf32>
    %546 = vector.shape_cast %545 : vector<12xf32> to vector<12x1xf32>
    %cst_182 = arith.constant 6.400000e+01 : f32
    %547 = vector.broadcast %cst_182 : f32 to vector<12x1xf32>
    %548 = arith.divf %546, %547 : vector<12x1xf32>
    %549 = vector.broadcast %541 : vector<12x1xf32> to vector<12x64xf32>
    %550 = arith.subf %533, %549 : vector<12x64xf32>
    %cst_183 = arith.constant 9.99999974E-6 : f32
    %551 = vector.broadcast %cst_183 : f32 to vector<12x1xf32>
    %552 = arith.addf %548, %551 : vector<12x1xf32>
    %553 = math.rsqrt %552 : vector<12x1xf32>
    %554 = vector.broadcast %553 : vector<12x1xf32> to vector<12x64xf32>
    %555 = arith.mulf %550, %554 : vector<12x64xf32>
    %556 = vector.broadcast %535 : vector<1x64xf32> to vector<12x64xf32>
    %557 = arith.mulf %555, %556 : vector<12x64xf32>
    %558 = vector.broadcast %537 : vector<1x64xf32> to vector<12x64xf32>
    %559 = arith.addf %557, %558 : vector<12x64xf32>
    %560 = arith.truncf %559 : vector<12x64xf32> to vector<12x64xbf16>
    %c3 = arith.constant 3 : index
    %c0_184 = arith.constant 0 : index
    %c0_185 = arith.constant 0 : index
    %561 = vector.load %arg9[%c3, %c0_184, %c0_185] : memref<4x64x192xbf16, #tpu.memory_space<vmem>>, vector<1x64x192xbf16>
    %562 = vector.shape_cast %561 : vector<1x64x192xbf16> to vector<64x192xbf16>
    %cst_186 = arith.constant dense<0.000000e+00> : vector<12x192xf32>
    %563 = tpu.matmul %560, %562, %cst_186 {dimension_numbers = #tpu.dot_dimension_numbers<[1], [0], [0], [1], [0, 0, 1, 1], [], []>} : vector<12x64xbf16>, vector<64x192xbf16>, vector<12x192xf32> -> vector<12x192xf32>
    %c3_187 = arith.constant 3 : index
    %c0_188 = arith.constant 0 : index
    %c0_189 = arith.constant 0 : index
    %564 = vector.load %arg10[%c3_187, %c0_188, %c0_189] : memref<4x1x192xf32, #tpu.memory_space<vmem>>, vector<1x1x192xf32>
    %565 = vector.shape_cast %564 : vector<1x1x192xf32> to vector<1x192xf32>
    %566 = vector.broadcast %565 : vector<1x192xf32> to vector<12x192xf32>
    %567 = arith.addf %563, %566 : vector<12x192xf32>
    %568 = vector.extract_strided_slice %567 {offsets = [0, 0], sizes = [12, 64], strides = [1, 1]} : vector<12x192xf32> to vector<12x64xf32>
    %569 = vector.extract_strided_slice %568 {offsets = [0, 0], sizes = [12, 8], strides = [1, 1]} : vector<12x64xf32> to vector<12x8xf32>
    %570 = vector.extract_strided_slice %568 {offsets = [0, 8], sizes = [12, 8], strides = [1, 1]} : vector<12x64xf32> to vector<12x8xf32>
    %571 = vector.extract_strided_slice %568 {offsets = [0, 16], sizes = [12, 8], strides = [1, 1]} : vector<12x64xf32> to vector<12x8xf32>
    %572 = vector.extract_strided_slice %568 {offsets = [0, 24], sizes = [12, 8], strides = [1, 1]} : vector<12x64xf32> to vector<12x8xf32>
    %573 = vector.extract_strided_slice %568 {offsets = [0, 32], sizes = [12, 8], strides = [1, 1]} : vector<12x64xf32> to vector<12x8xf32>
    %574 = vector.extract_strided_slice %568 {offsets = [0, 40], sizes = [12, 8], strides = [1, 1]} : vector<12x64xf32> to vector<12x8xf32>
    %575 = vector.extract_strided_slice %568 {offsets = [0, 48], sizes = [12, 8], strides = [1, 1]} : vector<12x64xf32> to vector<12x8xf32>
    %576 = vector.extract_strided_slice %568 {offsets = [0, 56], sizes = [12, 8], strides = [1, 1]} : vector<12x64xf32> to vector<12x8xf32>
    %577 = vector.shape_cast %569 : vector<12x8xf32> to vector<1x12x8xf32>
    %578 = vector.shape_cast %570 : vector<12x8xf32> to vector<1x12x8xf32>
    %579 = vector.shape_cast %571 : vector<12x8xf32> to vector<1x12x8xf32>
    %580 = vector.shape_cast %572 : vector<12x8xf32> to vector<1x12x8xf32>
    %581 = vector.shape_cast %573 : vector<12x8xf32> to vector<1x12x8xf32>
    %582 = vector.shape_cast %574 : vector<12x8xf32> to vector<1x12x8xf32>
    %583 = vector.shape_cast %575 : vector<12x8xf32> to vector<1x12x8xf32>
    %584 = vector.shape_cast %576 : vector<12x8xf32> to vector<1x12x8xf32>
    %585 = tpu.concatenate %577, %578, %579, %580, %581, %582, %583, %584 in 0 : vector<1x12x8xf32>, vector<1x12x8xf32>, vector<1x12x8xf32>, vector<1x12x8xf32>, vector<1x12x8xf32>, vector<1x12x8xf32>, vector<1x12x8xf32>, vector<1x12x8xf32> -> vector<8x12x8xf32>
    %586 = arith.truncf %585 : vector<8x12x8xf32> to vector<8x12x8xbf16>
    %587 = vector.extract_strided_slice %567 {offsets = [0, 64], sizes = [12, 64], strides = [1, 1]} : vector<12x192xf32> to vector<12x64xf32>
    %588 = vector.extract_strided_slice %587 {offsets = [0, 0], sizes = [12, 8], strides = [1, 1]} : vector<12x64xf32> to vector<12x8xf32>
    %589 = vector.extract_strided_slice %587 {offsets = [0, 8], sizes = [12, 8], strides = [1, 1]} : vector<12x64xf32> to vector<12x8xf32>
    %590 = vector.extract_strided_slice %587 {offsets = [0, 16], sizes = [12, 8], strides = [1, 1]} : vector<12x64xf32> to vector<12x8xf32>
    %591 = vector.extract_strided_slice %587 {offsets = [0, 24], sizes = [12, 8], strides = [1, 1]} : vector<12x64xf32> to vector<12x8xf32>
    %592 = vector.extract_strided_slice %587 {offsets = [0, 32], sizes = [12, 8], strides = [1, 1]} : vector<12x64xf32> to vector<12x8xf32>
    %593 = vector.extract_strided_slice %587 {offsets = [0, 40], sizes = [12, 8], strides = [1, 1]} : vector<12x64xf32> to vector<12x8xf32>
    %594 = vector.extract_strided_slice %587 {offsets = [0, 48], sizes = [12, 8], strides = [1, 1]} : vector<12x64xf32> to vector<12x8xf32>
    %595 = vector.extract_strided_slice %587 {offsets = [0, 56], sizes = [12, 8], strides = [1, 1]} : vector<12x64xf32> to vector<12x8xf32>
    %596 = vector.shape_cast %588 : vector<12x8xf32> to vector<1x12x8xf32>
    %597 = vector.shape_cast %589 : vector<12x8xf32> to vector<1x12x8xf32>
    %598 = vector.shape_cast %590 : vector<12x8xf32> to vector<1x12x8xf32>
    %599 = vector.shape_cast %591 : vector<12x8xf32> to vector<1x12x8xf32>
    %600 = vector.shape_cast %592 : vector<12x8xf32> to vector<1x12x8xf32>
    %601 = vector.shape_cast %593 : vector<12x8xf32> to vector<1x12x8xf32>
    %602 = vector.shape_cast %594 : vector<12x8xf32> to vector<1x12x8xf32>
    %603 = vector.shape_cast %595 : vector<12x8xf32> to vector<1x12x8xf32>
    %604 = tpu.concatenate %596, %597, %598, %599, %600, %601, %602, %603 in 0 : vector<1x12x8xf32>, vector<1x12x8xf32>, vector<1x12x8xf32>, vector<1x12x8xf32>, vector<1x12x8xf32>, vector<1x12x8xf32>, vector<1x12x8xf32>, vector<1x12x8xf32> -> vector<8x12x8xf32>
    %605 = arith.truncf %604 : vector<8x12x8xf32> to vector<8x12x8xbf16>
    %606 = vector.extract_strided_slice %567 {offsets = [0, 128], sizes = [12, 64], strides = [1, 1]} : vector<12x192xf32> to vector<12x64xf32>
    %607 = vector.extract_strided_slice %606 {offsets = [0, 0], sizes = [12, 8], strides = [1, 1]} : vector<12x64xf32> to vector<12x8xf32>
    %608 = vector.extract_strided_slice %606 {offsets = [0, 8], sizes = [12, 8], strides = [1, 1]} : vector<12x64xf32> to vector<12x8xf32>
    %609 = vector.extract_strided_slice %606 {offsets = [0, 16], sizes = [12, 8], strides = [1, 1]} : vector<12x64xf32> to vector<12x8xf32>
    %610 = vector.extract_strided_slice %606 {offsets = [0, 24], sizes = [12, 8], strides = [1, 1]} : vector<12x64xf32> to vector<12x8xf32>
    %611 = vector.extract_strided_slice %606 {offsets = [0, 32], sizes = [12, 8], strides = [1, 1]} : vector<12x64xf32> to vector<12x8xf32>
    %612 = vector.extract_strided_slice %606 {offsets = [0, 40], sizes = [12, 8], strides = [1, 1]} : vector<12x64xf32> to vector<12x8xf32>
    %613 = vector.extract_strided_slice %606 {offsets = [0, 48], sizes = [12, 8], strides = [1, 1]} : vector<12x64xf32> to vector<12x8xf32>
    %614 = vector.extract_strided_slice %606 {offsets = [0, 56], sizes = [12, 8], strides = [1, 1]} : vector<12x64xf32> to vector<12x8xf32>
    %615 = vector.shape_cast %607 : vector<12x8xf32> to vector<1x12x8xf32>
    %616 = vector.shape_cast %608 : vector<12x8xf32> to vector<1x12x8xf32>
    %617 = vector.shape_cast %609 : vector<12x8xf32> to vector<1x12x8xf32>
    %618 = vector.shape_cast %610 : vector<12x8xf32> to vector<1x12x8xf32>
    %619 = vector.shape_cast %611 : vector<12x8xf32> to vector<1x12x8xf32>
    %620 = vector.shape_cast %612 : vector<12x8xf32> to vector<1x12x8xf32>
    %621 = vector.shape_cast %613 : vector<12x8xf32> to vector<1x12x8xf32>
    %622 = vector.shape_cast %614 : vector<12x8xf32> to vector<1x12x8xf32>
    %623 = tpu.concatenate %615, %616, %617, %618, %619, %620, %621, %622 in 0 : vector<1x12x8xf32>, vector<1x12x8xf32>, vector<1x12x8xf32>, vector<1x12x8xf32>, vector<1x12x8xf32>, vector<1x12x8xf32>, vector<1x12x8xf32>, vector<1x12x8xf32> -> vector<8x12x8xf32>
    %624 = arith.truncf %623 : vector<8x12x8xf32> to vector<8x12x8xbf16>
    "tpu.trace_start"() <{level = 10 : i32, message = "hqd,hkd->hqk"}> : () -> ()
    %cst_190 = arith.constant dense<0.000000e+00> : vector<8x12x12xf32>
    %625 = tpu.matmul %586, %605, %cst_190 {dimension_numbers = #tpu.dot_dimension_numbers<[2], [2], [1], [1], [0, 0, 0, 1, 1, 1], [0], [0]>} : vector<8x12x8xbf16>, vector<8x12x8xbf16>, vector<8x12x12xf32> -> vector<8x12x12xf32>
    "tpu.trace_stop"() : () -> ()
    %626 = vector.shape_cast %19 : vector<12x12xi1> to vector<1x12x12xi1>
    %cst_191 = arith.constant -1.000000e+09 : f32
    %627 = vector.shape_cast %626 : vector<1x12x12xi1> to vector<1x12x12xi1>
    %628 = vector.broadcast %627 : vector<1x12x12xi1> to vector<8x12x12xi1>
    %629 = vector.broadcast %cst_191 : f32 to vector<8x12x12xf32>
    %630 = arith.select %628, %625, %629 : vector<8x12x12xi1>, vector<8x12x12xf32>
    %cst_192 = arith.constant dense<0xFF800000> : vector<8x12xf32>
    %631 = vector.multi_reduction <maximumf>, %630, %cst_192 [2] : vector<8x12x12xf32> to vector<8x12xf32>
    %632 = vector.shape_cast %631 : vector<8x12xf32> to vector<8x12x1xf32>
    %633 = vector.broadcast %632 : vector<8x12x1xf32> to vector<8x12x12xf32>
    %634 = arith.subf %630, %633 : vector<8x12x12xf32>
    %635 = math.exp %634 : vector<8x12x12xf32>
    %cst_193 = arith.constant dense<0.000000e+00> : vector<8x12xf32>
    %636 = vector.multi_reduction <add>, %635, %cst_193 [2] : vector<8x12x12xf32> to vector<8x12xf32>
    %637 = vector.shape_cast %636 : vector<8x12xf32> to vector<8x12x1xf32>
    %638 = tpu.reciprocal %637 {approx = true} : vector<8x12x1xf32> -> vector<8x12x1xf32>
    %639 = vector.broadcast %638 : vector<8x12x1xf32> to vector<8x12x12xf32>
    %640 = arith.mulf %635, %639 : vector<8x12x12xf32>
    %641 = arith.truncf %640 : vector<8x12x12xf32> to vector<8x12x12xbf16>
    "tpu.trace_start"() <{level = 10 : i32, message = "hqk,hkd->hqd"}> : () -> ()
    %cst_194 = arith.constant dense<0.000000e+00> : vector<8x12x8xf32>
    %642 = tpu.matmul %641, %624, %cst_194 {dimension_numbers = #tpu.dot_dimension_numbers<[2], [1], [1], [2], [0, 0, 0, 1, 1, 2], [0], [0]>} : vector<8x12x12xbf16>, vector<8x12x8xbf16>, vector<8x12x8xf32> -> vector<8x12x8xf32>
    "tpu.trace_stop"() : () -> ()
    %643 = vector.extract_strided_slice %642 {offsets = [0, 0, 0], sizes = [1, 12, 8], strides = [1, 1, 1]} : vector<8x12x8xf32> to vector<1x12x8xf32>
    %644 = vector.shape_cast %643 : vector<1x12x8xf32> to vector<12x8xf32>
    %645 = vector.extract_strided_slice %642 {offsets = [1, 0, 0], sizes = [1, 12, 8], strides = [1, 1, 1]} : vector<8x12x8xf32> to vector<1x12x8xf32>
    %646 = vector.shape_cast %645 : vector<1x12x8xf32> to vector<12x8xf32>
    %647 = vector.extract_strided_slice %642 {offsets = [2, 0, 0], sizes = [1, 12, 8], strides = [1, 1, 1]} : vector<8x12x8xf32> to vector<1x12x8xf32>
    %648 = vector.shape_cast %647 : vector<1x12x8xf32> to vector<12x8xf32>
    %649 = vector.extract_strided_slice %642 {offsets = [3, 0, 0], sizes = [1, 12, 8], strides = [1, 1, 1]} : vector<8x12x8xf32> to vector<1x12x8xf32>
    %650 = vector.shape_cast %649 : vector<1x12x8xf32> to vector<12x8xf32>
    %651 = vector.extract_strided_slice %642 {offsets = [4, 0, 0], sizes = [1, 12, 8], strides = [1, 1, 1]} : vector<8x12x8xf32> to vector<1x12x8xf32>
    %652 = vector.shape_cast %651 : vector<1x12x8xf32> to vector<12x8xf32>
    %653 = vector.extract_strided_slice %642 {offsets = [5, 0, 0], sizes = [1, 12, 8], strides = [1, 1, 1]} : vector<8x12x8xf32> to vector<1x12x8xf32>
    %654 = vector.shape_cast %653 : vector<1x12x8xf32> to vector<12x8xf32>
    %655 = vector.extract_strided_slice %642 {offsets = [6, 0, 0], sizes = [1, 12, 8], strides = [1, 1, 1]} : vector<8x12x8xf32> to vector<1x12x8xf32>
    %656 = vector.shape_cast %655 : vector<1x12x8xf32> to vector<12x8xf32>
    %657 = vector.extract_strided_slice %642 {offsets = [7, 0, 0], sizes = [1, 12, 8], strides = [1, 1, 1]} : vector<8x12x8xf32> to vector<1x12x8xf32>
    %658 = vector.shape_cast %657 : vector<1x12x8xf32> to vector<12x8xf32>
    %659 = tpu.concatenate %644, %646, %648, %650, %652, %654, %656, %658 in 1 : vector<12x8xf32>, vector<12x8xf32>, vector<12x8xf32>, vector<12x8xf32>, vector<12x8xf32>, vector<12x8xf32>, vector<12x8xf32>, vector<12x8xf32> -> vector<12x64xf32>
    %660 = arith.truncf %659 : vector<12x64xf32> to vector<12x64xbf16>
    %c3_195 = arith.constant 3 : index
    %c0_196 = arith.constant 0 : index
    %c0_197 = arith.constant 0 : index
    %661 = vector.load %arg11[%c3_195, %c0_196, %c0_197] : memref<4x64x64xbf16, #tpu.memory_space<vmem>>, vector<1x64x64xbf16>
    %662 = vector.shape_cast %661 : vector<1x64x64xbf16> to vector<64x64xbf16>
    %cst_198 = arith.constant dense<0.000000e+00> : vector<12x64xf32>
    %663 = tpu.matmul %660, %662, %cst_198 {dimension_numbers = #tpu.dot_dimension_numbers<[1], [0], [0], [1], [0, 0, 1, 1], [], []>} : vector<12x64xbf16>, vector<64x64xbf16>, vector<12x64xf32> -> vector<12x64xf32>
    %c3_199 = arith.constant 3 : index
    %c0_200 = arith.constant 0 : index
    %c0_201 = arith.constant 0 : index
    %664 = vector.load %arg12[%c3_199, %c0_200, %c0_201] : memref<4x1x64xf32, #tpu.memory_space<vmem>>, vector<1x1x64xf32>
    %665 = vector.shape_cast %664 : vector<1x1x64xf32> to vector<1x64xf32>
    %666 = vector.broadcast %665 : vector<1x64xf32> to vector<12x64xf32>
    %667 = arith.addf %663, %666 : vector<12x64xf32>
    %668 = arith.addf %559, %667 : vector<12x64xf32>
    %c3_202 = arith.constant 3 : index
    %c0_203 = arith.constant 0 : index
    %c0_204 = arith.constant 0 : index
    %669 = vector.load %arg13[%c3_202, %c0_203, %c0_204] : memref<4x1x64xf32, #tpu.memory_space<vmem>>, vector<1x1x64xf32>
    %670 = vector.shape_cast %669 : vector<1x1x64xf32> to vector<1x64xf32>
    %c3_205 = arith.constant 3 : index
    %c0_206 = arith.constant 0 : index
    %c0_207 = arith.constant 0 : index
    %671 = vector.load %arg14[%c3_205, %c0_206, %c0_207] : memref<4x1x64xf32, #tpu.memory_space<vmem>>, vector<1x1x64xf32>
    %672 = vector.shape_cast %671 : vector<1x1x64xf32> to vector<1x64xf32>
    %cst_208 = arith.constant dense<0.000000e+00> : vector<12xf32>
    %673 = vector.multi_reduction <add>, %668, %cst_208 [1] : vector<12x64xf32> to vector<12xf32>
    %674 = vector.shape_cast %673 : vector<12xf32> to vector<12x1xf32>
    %cst_209 = arith.constant 6.400000e+01 : f32
    %675 = vector.broadcast %cst_209 : f32 to vector<12x1xf32>
    %676 = arith.divf %674, %675 : vector<12x1xf32>
    %677 = vector.broadcast %676 : vector<12x1xf32> to vector<12x64xf32>
    %678 = arith.subf %668, %677 : vector<12x64xf32>
    %679 = arith.mulf %678, %678 : vector<12x64xf32>
    %cst_210 = arith.constant dense<0.000000e+00> : vector<12xf32>
    %680 = vector.multi_reduction <add>, %679, %cst_210 [1] : vector<12x64xf32> to vector<12xf32>
    %681 = vector.shape_cast %680 : vector<12xf32> to vector<12x1xf32>
    %cst_211 = arith.constant 6.400000e+01 : f32
    %682 = vector.broadcast %cst_211 : f32 to vector<12x1xf32>
    %683 = arith.divf %681, %682 : vector<12x1xf32>
    %684 = vector.broadcast %676 : vector<12x1xf32> to vector<12x64xf32>
    %685 = arith.subf %668, %684 : vector<12x64xf32>
    %cst_212 = arith.constant 9.99999974E-6 : f32
    %686 = vector.broadcast %cst_212 : f32 to vector<12x1xf32>
    %687 = arith.addf %683, %686 : vector<12x1xf32>
    %688 = math.rsqrt %687 : vector<12x1xf32>
    %689 = vector.broadcast %688 : vector<12x1xf32> to vector<12x64xf32>
    %690 = arith.mulf %685, %689 : vector<12x64xf32>
    %691 = vector.broadcast %670 : vector<1x64xf32> to vector<12x64xf32>
    %692 = arith.mulf %690, %691 : vector<12x64xf32>
    %693 = vector.broadcast %672 : vector<1x64xf32> to vector<12x64xf32>
    %694 = arith.addf %692, %693 : vector<12x64xf32>
    %695 = arith.truncf %694 : vector<12x64xf32> to vector<12x64xbf16>
    %c3_213 = arith.constant 3 : index
    %c0_214 = arith.constant 0 : index
    %c0_215 = arith.constant 0 : index
    %696 = vector.load %arg15[%c3_213, %c0_214, %c0_215] : memref<4x64x512xbf16, #tpu.memory_space<vmem>>, vector<1x64x512xbf16>
    %697 = vector.shape_cast %696 : vector<1x64x512xbf16> to vector<64x512xbf16>
    %cst_216 = arith.constant dense<0.000000e+00> : vector<12x512xf32>
    %698 = tpu.matmul %695, %697, %cst_216 {dimension_numbers = #tpu.dot_dimension_numbers<[1], [0], [0], [1], [0, 0, 1, 1], [], []>} : vector<12x64xbf16>, vector<64x512xbf16>, vector<12x512xf32> -> vector<12x512xf32>
    %c3_217 = arith.constant 3 : index
    %c0_218 = arith.constant 0 : index
    %c0_219 = arith.constant 0 : index
    %699 = vector.load %arg16[%c3_217, %c0_218, %c0_219] : memref<4x1x512xf32, #tpu.memory_space<vmem>>, vector<1x1x512xf32>
    %700 = vector.shape_cast %699 : vector<1x1x512xf32> to vector<1x512xf32>
    %701 = vector.broadcast %700 : vector<1x512xf32> to vector<12x512xf32>
    %702 = arith.addf %698, %701 : vector<12x512xf32>
    %cst_220 = arith.constant 0.000000e+00 : f32
    %703 = vector.broadcast %cst_220 : f32 to vector<12x512xf32>
    %704 = arith.maximumf %702, %703 : vector<12x512xf32>
    %705 = arith.truncf %704 : vector<12x512xf32> to vector<12x512xbf16>
    %c3_221 = arith.constant 3 : index
    %c0_222 = arith.constant 0 : index
    %c0_223 = arith.constant 0 : index
    %706 = vector.load %arg17[%c3_221, %c0_222, %c0_223] : memref<4x512x64xbf16, #tpu.memory_space<vmem>>, vector<1x512x64xbf16>
    %707 = vector.shape_cast %706 : vector<1x512x64xbf16> to vector<512x64xbf16>
    %cst_224 = arith.constant dense<0.000000e+00> : vector<12x64xf32>
    %708 = tpu.matmul %705, %707, %cst_224 {dimension_numbers = #tpu.dot_dimension_numbers<[1], [0], [0], [1], [0, 0, 1, 1], [], []>} : vector<12x512xbf16>, vector<512x64xbf16>, vector<12x64xf32> -> vector<12x64xf32>
    %c3_225 = arith.constant 3 : index
    %c0_226 = arith.constant 0 : index
    %c0_227 = arith.constant 0 : index
    %709 = vector.load %arg18[%c3_225, %c0_226, %c0_227] : memref<4x1x64xf32, #tpu.memory_space<vmem>>, vector<1x1x64xf32>
    %710 = vector.shape_cast %709 : vector<1x1x64xf32> to vector<1x64xf32>
    %711 = vector.broadcast %710 : vector<1x64xf32> to vector<12x64xf32>
    %712 = arith.addf %708, %711 : vector<12x64xf32>
    %713 = arith.addf %694, %712 : vector<12x64xf32>
    %c3_228 = arith.constant 3 : index
    %c0_229 = arith.constant 0 : index
    %c0_230 = arith.constant 0 : index
    %714 = vector.load %arg19[%c3_228, %c0_229, %c0_230] : memref<4x1x64xf32, #tpu.memory_space<vmem>>, vector<1x1x64xf32>
    %715 = vector.shape_cast %714 : vector<1x1x64xf32> to vector<1x64xf32>
    %c3_231 = arith.constant 3 : index
    %c0_232 = arith.constant 0 : index
    %c0_233 = arith.constant 0 : index
    %716 = vector.load %arg20[%c3_231, %c0_232, %c0_233] : memref<4x1x64xf32, #tpu.memory_space<vmem>>, vector<1x1x64xf32>
    %717 = vector.shape_cast %716 : vector<1x1x64xf32> to vector<1x64xf32>
    %cst_234 = arith.constant dense<0.000000e+00> : vector<12xf32>
    %718 = vector.multi_reduction <add>, %713, %cst_234 [1] : vector<12x64xf32> to vector<12xf32>
    %719 = vector.shape_cast %718 : vector<12xf32> to vector<12x1xf32>
    %cst_235 = arith.constant 6.400000e+01 : f32
    %720 = vector.broadcast %cst_235 : f32 to vector<12x1xf32>
    %721 = arith.divf %719, %720 : vector<12x1xf32>
    %722 = vector.broadcast %721 : vector<12x1xf32> to vector<12x64xf32>
    %723 = arith.subf %713, %722 : vector<12x64xf32>
    %724 = arith.mulf %723, %723 : vector<12x64xf32>
    %cst_236 = arith.constant dense<0.000000e+00> : vector<12xf32>
    %725 = vector.multi_reduction <add>, %724, %cst_236 [1] : vector<12x64xf32> to vector<12xf32>
    %726 = vector.shape_cast %725 : vector<12xf32> to vector<12x1xf32>
    %cst_237 = arith.constant 6.400000e+01 : f32
    %727 = vector.broadcast %cst_237 : f32 to vector<12x1xf32>
    %728 = arith.divf %726, %727 : vector<12x1xf32>
    %729 = vector.broadcast %721 : vector<12x1xf32> to vector<12x64xf32>
    %730 = arith.subf %713, %729 : vector<12x64xf32>
    %cst_238 = arith.constant 9.99999974E-6 : f32
    %731 = vector.broadcast %cst_238 : f32 to vector<12x1xf32>
    %732 = arith.addf %728, %731 : vector<12x1xf32>
    %733 = math.rsqrt %732 : vector<12x1xf32>
    %734 = vector.broadcast %733 : vector<12x1xf32> to vector<12x64xf32>
    %735 = arith.mulf %730, %734 : vector<12x64xf32>
    %736 = vector.broadcast %715 : vector<1x64xf32> to vector<12x64xf32>
    %737 = arith.mulf %735, %736 : vector<12x64xf32>
    %738 = vector.broadcast %717 : vector<1x64xf32> to vector<12x64xf32>
    %739 = arith.addf %737, %738 : vector<12x64xf32>
    %740 = tpu.iota {dimensions = array<i32: 0>} : vector<2x12xi32>
    %741 = vector.broadcast %5 : vector<1x12xi32> to vector<2x12xi32>
    %742 = arith.cmpi eq, %741, %740 : vector<2x12xi32>
    %743 = arith.extui %742 : vector<2x12xi1> to vector<2x12xi32>
    %744 = arith.sitofp %743 : vector<2x12xi32> to vector<2x12xf32>
    %cst_239 = arith.constant dense<0.000000e+00> : vector<2xf32>
    %745 = vector.multi_reduction <add>, %744, %cst_239 [1] : vector<2x12xf32> to vector<2xf32>
    %746 = vector.shape_cast %745 : vector<2xf32> to vector<2x1xf32>
    %cst_240 = arith.constant 1.000000e+00 : f32
    %747 = vector.broadcast %cst_240 : f32 to vector<2x1xf32>
    %748 = arith.maximumf %746, %747 : vector<2x1xf32>
    %749 = vector.broadcast %748 : vector<2x1xf32> to vector<2x12xf32>
    %750 = arith.divf %744, %749 : vector<2x12xf32>
    %cst_241 = arith.constant dense<0.000000e+00> : vector<2x64xf32>
    %751 = tpu.matmul %750, %739, %cst_241 {dimension_numbers = #tpu.dot_dimension_numbers<[1], [0], [0], [1], [0, 0, 1, 1], [], []>} : vector<2x12xf32>, vector<12x64xf32>, vector<2x64xf32> -> vector<2x64xf32>
    %c0_242 = arith.constant 0 : index
    %c0_243 = arith.constant 0 : index
    %752 = vector.load %arg5[%c0_242, %c0_243] : memref<1x1xf32, #tpu.memory_space<vmem>>, vector<1x1xf32>
    %cst_244 = arith.constant 0.000000e+00 : f32
    %753 = vector.broadcast %cst_244 : f32 to vector<1x1xf32>
    %754 = arith.subf %753, %752 : vector<1x1xf32>
    %755 = math.exp %754 : vector<1x1xf32>
    %cst_245 = arith.constant 1.000000e+00 : f32
    %756 = vector.broadcast %cst_245 : f32 to vector<1x1xf32>
    %757 = arith.addf %756, %755 : vector<1x1xf32>
    %cst_246 = arith.constant 1.000000e+00 : f32
    %758 = vector.broadcast %cst_246 : f32 to vector<1x1xf32>
    %759 = arith.divf %758, %757 : vector<1x1xf32>
    %cst_247 = arith.constant 1.000000e+00 : f32
    %760 = vector.broadcast %cst_247 : f32 to vector<1x1xf32>
    %761 = arith.subf %760, %759 : vector<1x1xf32>
    %762 = vector.broadcast %761 : vector<1x1xf32> to vector<2x64xf32>
    %763 = arith.mulf %762, %751 : vector<2x64xf32>
    %764 = vector.broadcast %759 : vector<1x1xf32> to vector<2x64xf32>
    %765 = arith.mulf %764, %13 : vector<2x64xf32>
    %766 = arith.addf %763, %765 : vector<2x64xf32>
    %c0_248 = arith.constant 0 : index
    %c0_249 = arith.constant 0 : index
    %c0_250 = arith.constant 0 : index
    %767 = vector.load %arg21[%c0_248, %c0_249, %c0_250] : memref<1x2x64xf32, #tpu.memory_space<vmem>>, vector<1x2x64xf32>
    %768 = vector.shape_cast %767 : vector<1x2x64xf32> to vector<2x64xf32>
    %769 = vector.shape_cast %766 : vector<2x64xf32> to vector<1x2x64xf32>
    tpu.vector_store %arg21[%c0_248, %c0_249, %c0_250], %769 {strides = array<i32>} : memref<1x2x64xf32, #tpu.memory_space<vmem>>, vector<1x2x64xf32>,
    return
  }
  func.func @transform_0(%arg0: i32) -> (i32, i32, i32) {
    %c0_i32 = arith.constant 0 : i32
    %c0_i32_0 = arith.constant 0 : i32
    %c0_i32_1 = arith.constant 0 : i32
    return %arg0, %c0_i32, %c0_i32_0 : i32, i32, i32
  }
  func.func @transform_1(%arg0: i32) -> (i32, i32, i32) {
    %c0_i32 = arith.constant 0 : i32
    %c0_i32_0 = arith.constant 0 : i32
    %c0_i32_1 = arith.constant 0 : i32
    return %arg0, %c0_i32, %c0_i32_0 : i32, i32, i32
  }
  func.func @transform_2(%arg0: i32) -> (i32, i32, i32) {
    %c0_i32 = arith.constant 0 : i32
    %c0_i32_0 = arith.constant 0 : i32
    %c0_i32_1 = arith.constant 0 : i32
    return %arg0, %c0_i32, %c0_i32_0 : i32, i32, i32
  }
  func.func @transform_3(%arg0: i32) -> (i32, i32, i32) {
    %c0_i32 = arith.constant 0 : i32
    %c0_i32_0 = arith.constant 0 : i32
    %c0_i32_1 = arith.constant 0 : i32
    return %arg0, %c0_i32, %c0_i32_0 : i32, i32, i32
  }
  func.func @transform_4(%arg0: i32) -> (i32, i32) {
    %c0_i32 = arith.constant 0 : i32
    %c0_i32_0 = arith.constant 0 : i32
    %c0_i32_1 = arith.constant 0 : i32
    return %c0_i32, %c0_i32_0 : i32, i32
  }
  func.func @transform_5(%arg0: i32) -> (i32, i32) {
    %c0_i32 = arith.constant 0 : i32
    %c0_i32_0 = arith.constant 0 : i32
    %c0_i32_1 = arith.constant 0 : i32
    return %c0_i32, %c0_i32_0 : i32, i32
  }
  func.func @transform_6(%arg0: i32) -> (i32, i32) {
    %c0_i32 = arith.constant 0 : i32
    %c0_i32_0 = arith.constant 0 : i32
    %c0_i32_1 = arith.constant 0 : i32
    return %c0_i32, %c0_i32_0 : i32, i32
  }
  func.func @transform_7(%arg0: i32) -> (i32, i32) {
    %c0_i32 = arith.constant 0 : i32
    %c0_i32_0 = arith.constant 0 : i32
    %c0_i32_1 = arith.constant 0 : i32
    return %c0_i32, %c0_i32_0 : i32, i32
  }
  func.func @transform_8(%arg0: i32) -> (i32, i32, i32) {
    %c0_i32 = arith.constant 0 : i32
    %c0_i32_0 = arith.constant 0 : i32
    %c0_i32_1 = arith.constant 0 : i32
    %c0_i32_2 = arith.constant 0 : i32
    return %c0_i32, %c0_i32_0, %c0_i32_1 : i32, i32, i32
  }
  func.func @transform_9(%arg0: i32) -> (i32, i32, i32) {
    %c0_i32 = arith.constant 0 : i32
    %c0_i32_0 = arith.constant 0 : i32
    %c0_i32_1 = arith.constant 0 : i32
    %c0_i32_2 = arith.constant 0 : i32
    return %c0_i32, %c0_i32_0, %c0_i32_1 : i32, i32, i32
  }
  func.func @transform_10(%arg0: i32) -> (i32, i32, i32) {
    %c0_i32 = arith.constant 0 : i32
    %c0_i32_0 = arith.constant 0 : i32
    %c0_i32_1 = arith.constant 0 : i32
    %c0_i32_2 = arith.constant 0 : i32
    return %c0_i32, %c0_i32_0, %c0_i32_1 : i32, i32, i32
  }
  func.func @transform_11(%arg0: i32) -> (i32, i32, i32) {
    %c0_i32 = arith.constant 0 : i32
    %c0_i32_0 = arith.constant 0 : i32
    %c0_i32_1 = arith.constant 0 : i32
    %c0_i32_2 = arith.constant 0 : i32
    return %c0_i32, %c0_i32_0, %c0_i32_1 : i32, i32, i32
  }
  func.func @transform_12(%arg0: i32) -> (i32, i32, i32) {
    %c0_i32 = arith.constant 0 : i32
    %c0_i32_0 = arith.constant 0 : i32
    %c0_i32_1 = arith.constant 0 : i32
    %c0_i32_2 = arith.constant 0 : i32
    return %c0_i32, %c0_i32_0, %c0_i32_1 : i32, i32, i32
  }
  func.func @transform_13(%arg0: i32) -> (i32, i32, i32) {
    %c0_i32 = arith.constant 0 : i32
    %c0_i32_0 = arith.constant 0 : i32
    %c0_i32_1 = arith.constant 0 : i32
    %c0_i32_2 = arith.constant 0 : i32
    return %c0_i32, %c0_i32_0, %c0_i32_1 : i32, i32, i32
  }
  func.func @transform_14(%arg0: i32) -> (i32, i32, i32) {
    %c0_i32 = arith.constant 0 : i32
    %c0_i32_0 = arith.constant 0 : i32
    %c0_i32_1 = arith.constant 0 : i32
    %c0_i32_2 = arith.constant 0 : i32
    return %c0_i32, %c0_i32_0, %c0_i32_1 : i32, i32, i32
  }
  func.func @transform_15(%arg0: i32) -> (i32, i32, i32) {
    %c0_i32 = arith.constant 0 : i32
    %c0_i32_0 = arith.constant 0 : i32
    %c0_i32_1 = arith.constant 0 : i32
    %c0_i32_2 = arith.constant 0 : i32
    return %c0_i32, %c0_i32_0, %c0_i32_1 : i32, i32, i32
  }
  func.func @transform_16(%arg0: i32) -> (i32, i32, i32) {
    %c0_i32 = arith.constant 0 : i32
    %c0_i32_0 = arith.constant 0 : i32
    %c0_i32_1 = arith.constant 0 : i32
    %c0_i32_2 = arith.constant 0 : i32
    return %c0_i32, %c0_i32_0, %c0_i32_1 : i32, i32, i32
  }
  func.func @transform_17(%arg0: i32) -> (i32, i32, i32) {
    %c0_i32 = arith.constant 0 : i32
    %c0_i32_0 = arith.constant 0 : i32
    %c0_i32_1 = arith.constant 0 : i32
    %c0_i32_2 = arith.constant 0 : i32
    return %c0_i32, %c0_i32_0, %c0_i32_1 : i32, i32, i32
  }
  func.func @transform_18(%arg0: i32) -> (i32, i32, i32) {
    %c0_i32 = arith.constant 0 : i32
    %c0_i32_0 = arith.constant 0 : i32
    %c0_i32_1 = arith.constant 0 : i32
    %c0_i32_2 = arith.constant 0 : i32
    return %c0_i32, %c0_i32_0, %c0_i32_1 : i32, i32, i32
  }
  func.func @transform_19(%arg0: i32) -> (i32, i32, i32) {
    %c0_i32 = arith.constant 0 : i32
    %c0_i32_0 = arith.constant 0 : i32
    %c0_i32_1 = arith.constant 0 : i32
    %c0_i32_2 = arith.constant 0 : i32
    return %c0_i32, %c0_i32_0, %c0_i32_1 : i32, i32, i32
  }
  func.func @transform_20(%arg0: i32) -> (i32, i32, i32) {
    %c0_i32 = arith.constant 0 : i32
    %c0_i32_0 = arith.constant 0 : i32
    %c0_i32_1 = arith.constant 0 : i32
    return %arg0, %c0_i32, %c0_i32_0 : i32, i32, i32
  }
}

</mosaic_0001>

<llo_original>
// kernel: d1model1_forward.3
$region0: #{d1model1_forward.3}
  #allocation0 [shape = 'u32[]', space=smem, size = 0x4, offset = 0x4, fixed_abs, tag = 'smem constant byte address 0x4 - core index']
  #allocation1 [shape = 'u32[144,128]{1,0:T(1,128)}', space=vmem, size = 0x12000, scoped, tag = 'internal scratch']
  #allocation2 [shape = 'f32[1,1]{1,0:T(1,128)S(1)}', space=vmem, size = 0x200, scoped, tag = 'scoped memory for d1model1_forward.3']
  %s0 = inlined_call_operand.vmem [shape: f32[2,2,64], index: 0, kind: input, shape index: {}]
  %s1 = inlined_call_operand.vmem [shape: bf16[128,64], index: 1, kind: input, shape index: {}]
  %s2 = inlined_call_operand.vmem [shape: f32[1,64], index: 2, kind: input, shape index: {}]
  %s3 = inlined_call_operand.vmem [shape: f32[1,64], index: 3, kind: input, shape index: {}]
  %s4 = inlined_call_operand.vmem [shape: f32[1,64], index: 4, kind: input, shape index: {}]
  %s5 = inlined_call_operand.vmem [shape: f32[64,1], index: 5, kind: input, shape index: {}]
  %s6 = inlined_call_operand.<no memory space> [shape: f32[1,1], index: 6, kind: input, shape index: {}]
  %s7 = inlined_call_operand.vmem [shape: f32[2,1], index: 7, kind: output, shape index: {}]
  %s8 = sld [smem:[#allocation0]]
  $region38: #{d1model1_forward.3} parent=0
    _
  %s10 = ssub.s32 1, %s8
  %s11 = scalar_select 0, %s10, %s8
  %v12 = vstv %s6
  %13 = vst [vmem:[#allocation2] sm:$0x1] %v12
  // Predicated region
  $region2: #{d1model1_forward.3} parent=0 // pred_check
    _
  $region3: #{d1model1_forward.3} parent=0 // pred_check_branch
    %15 = sbr.rel (0) target = $region5
  $region4: #{d1model1_forward.3} parent=0 // pred_region
    _
  $region5: #{d1model1_forward.3} parent=0 // pred_fallthru
    _
  // Predicated region
  $region6: #{d1model1_forward.3} parent=0 // pred_check
    _
  $region7: #{d1model1_forward.3} parent=0 // pred_check_branch
    %17 = sbr.rel (0) target = $region9
  $region8: #{d1model1_forward.3} parent=0 // pred_region
    _
  $region9: #{d1model1_forward.3} parent=0 // pred_fallthru
    _
  // Predicated region
  $region10: #{d1model1_forward.3} parent=0 // pred_check
    _
  $region11: #{d1model1_forward.3} parent=0 // pred_check_branch
    %19 = sbr.rel (0) target = $region13
  $region12: #{d1model1_forward.3} parent=0 // pred_region
    _
  $region13: #{d1model1_forward.3} parent=0 // pred_fallthru
    _
  // Predicated region
  $region14: #{d1model1_forward.3} parent=0 // pred_check
    _
  $region15: #{d1model1_forward.3} parent=0 // pred_check_branch
    %21 = sbr.rel (0) target = $region17
  $region16: #{d1model1_forward.3} parent=0 // pred_region
    _
  $region17: #{d1model1_forward.3} parent=0 // pred_fallthru
    _
  // Predicated region
  $region18: #{d1model1_forward.3} parent=0 // pred_check
    _
  $region19: #{d1model1_forward.3} parent=0 // pred_check_branch
    %23 = sbr.rel (0) target = $region21
  $region20: #{d1model1_forward.3} parent=0 // pred_region
    _
  $region21: #{d1model1_forward.3} parent=0 // pred_fallthru
    _
  // Predicated region
  $region22: #{d1model1_forward.3} parent=0 // pred_check
    _
  $region23: #{d1model1_forward.3} parent=0 // pred_check_branch
    %25 = sbr.rel (0) target = $region25
  $region24: #{d1model1_forward.3} parent=0 // pred_region
    _
  $region25: #{d1model1_forward.3} parent=0 // pred_fallthru
    _
  // Predicated region
  $region26: #{d1model1_forward.3} parent=0 // pred_check
    _
  $region27: #{d1model1_forward.3} parent=0 // pred_check_branch
    %27 = sbr.rel (0) target = $region29
  $region28: #{d1model1_forward.3} parent=0 // pred_region
    _
  $region29: #{d1model1_forward.3} parent=0 // pred_fallthru
    _
  %v29 = vld [vmem:[%s0] sm:$0x3]
  %s30 = scalar_lea.vmem %s0, 2
  %v31 = vld [vmem:[%s30] sm:$0x3]
  %33 = vrot.lane.b32.xlu0 %v31, 64
  %v34 = vpop.permute.xlu0 %33
  %vm36 = vcmask 523264
  %v37 = vsel %vm36, %v29, %v34
  %v38 = vpack.c.bf16 %v37, %v37
  %v39 = vld [vmem:[%s1] sm:$0xf]
  %v40 = vld [vmem:[%s1 + $0x4] sm:$0xf]
  %v41 = vld [vmem:[%s1 + $0x8] sm:$0xf]
  %v42 = vld [vmem:[%s1 + $0xc] sm:$0xf]
  %v43 = vld [vmem:[%s1 + $0x10] sm:$0xf]
  %v44 = vld [vmem:[%s1 + $0x14] sm:$0xf]
  %v45 = vld [vmem:[%s1 + $0x18] sm:$0xf]
  %v46 = vld [vmem:[%s1 + $0x1c] sm:$0xf]
  %v47 = vld [vmem:[%s1 + $0x20] sm:$0xf]
  %v48 = vld [vmem:[%s1 + $0x24] sm:$0xf]
  %v49 = vld [vmem:[%s1 + $0x28] sm:$0xf]
  %v50 = vld [vmem:[%s1 + $0x2c] sm:$0xf]
  %v51 = vld [vmem:[%s1 + $0x30] sm:$0xf]
  %v52 = vld [vmem:[%s1 + $0x34] sm:$0xf]
  %v53 = vld [vmem:[%s1 + $0x38] sm:$0xf]
  %v54 = vld [vmem:[%s1 + $0x3c] sm:$0xf]
  %v55 = vld [vmem:[%s2] sm:$0x1]
  %v57 = vlaneseq
  %v58 = vshrl.u32 %v57, 7
  %v59 = vsub.s32 0, %v58
  %v60 = vrot.slane %v55, %v59
  %v78 = vunpack.c.l.b16 %v39
  %v79 = vunpack.c.l.b16 %v40
  %v80 = vunpack.c.l.b16 %v41
  %v81 = vunpack.c.l.b16 %v42
  %v82 = vunpack.c.l.b16 %v43
  %v83 = vunpack.c.l.b16 %v44
  %v84 = vunpack.c.l.b16 %v45
  %v85 = vunpack.c.l.b16 %v46
  %v86 = vunpack.c.l.b16 %v47
  %v87 = vunpack.c.l.b16 %v48
  %v88 = vunpack.c.l.b16 %v49
  %v89 = vunpack.c.l.b16 %v50
  %v90 = vunpack.c.l.b16 %v51
  %v91 = vunpack.c.l.b16 %v52
  %v92 = vunpack.c.l.b16 %v53
  %v93 = vunpack.c.l.b16 %v54
  %v94 = vpack.c.b16 %v79, %v78
  %v95 = vpack.c.b16 %v81, %v80
  %v96 = vpack.c.b16 %v83, %v82
  %v97 = vpack.c.b16 %v85, %v84
  %v98 = vpack.c.b16 %v87, %v86
  %v99 = vpack.c.b16 %v89, %v88
  %v100 = vpack.c.b16 %v91, %v90
  %v101 = vpack.c.b16 %v93, %v92
  %110 = vmatprep.subr.bf16.mxu0 0
  %111 = vmatpush1.bf16.msra.mxu0 %v94
  %112 = vmatprep.subr.bf16.mxu0 0
  %113 = vmatpush1.bf16.msra.mxu0 %v95
  %114 = vmatprep.subr.bf16.mxu0 0
  %115 = vmatpush1.bf16.msra.mxu0 %v96
  %116 = vmatprep.subr.bf16.mxu0 0
  %117 = vmatpush1.bf16.msra.mxu0 %v97
  %118 = vmatprep.subr.bf16.mxu0 0
  %119 = vmatpush1.bf16.msra.mxu0 %v98
  %120 = vmatprep.subr.bf16.mxu0 0
  %121 = vmatpush1.bf16.msra.mxu0 %v99
  %122 = vmatprep.subr.bf16.mxu0 0
  %123 = vmatpush1.bf16.msra.mxu0 %v100
  %124 = vmatprep.subr.bf16.mxu0 0
  %125 = vmatpush1.bf16.msra.mxu0 %v101
  %126 = vmatprep.subr.bf16.mxu0 0
  %127 = vmatpush1.bf16.msra.mxu0 0
  %128 = vmatprep.subr.bf16.mxu0 0
  %129 = vmatpush1.bf16.msra.mxu0 0
  %130 = vmatprep.subr.bf16.mxu0 0
  %131 = vmatpush1.bf16.msra.mxu0 0
  %132 = vmatprep.subr.bf16.mxu0 0
  %133 = vmatpush1.bf16.msra.mxu0 0
  %134 = vmatprep.subr.bf16.mxu0 0
  %135 = vmatpush1.bf16.msra.mxu0 0
  %136 = vmatprep.subr.bf16.mxu0 0
  %137 = vmatpush1.bf16.msra.mxu0 0
  %138 = vmatprep.subr.bf16.mxu0 0
  %139 = vmatpush1.bf16.msra.mxu0 0
  %140 = vmatprep.subr.bf16.mxu0 0
  %141 = vmatpush1.bf16.msra.mxu0 0
  %142 = vmatprep.mubr.bf16.mxu0 0
  %143 = vmatmul.mubr.bf16.gmra.mrb[0].mxu0 %v38
  %v144 = vpop.f32.mrb[0].mxu0
  %v145 = vadd.f32 %v60, %v144
  %v146 = vpop.f32.mrb[0].mxu0
  %v147 = vpop.f32.mrb[0].mxu0
  %v148 = vpop.f32.mrb[0].mxu0
  %149 = vdwg.mxu0
  %vm150 = vcmask 517120
  %v151 = vsel %vm150, %v145, 0.0
  %v152 = vrot.slane %v151, 4
  %v153 = vadd.f32 %v151, %v152
  %v154 = vrot.slane %v153, 2
  %v155 = vadd.f32 %v153, %v154
  %v156 = vrot.slane %v155, 1
  %v157 = vadd.f32 %v155, %v156
  %v158 = vrcp.pop 2.0
  %v159 = vmul.f32 %v157, %v158
  %v160 = vsub.f32 %v145, %v159
  %v161 = vmul.f32 %v160, %v160
  %v162 = vsel %vm150, %v161, 0.0
  %v163 = vrot.slane %v162, 4
  %v164 = vadd.f32 %v162, %v163
  %v165 = vrot.slane %v164, 2
  %v166 = vadd.f32 %v164, %v165
  %v167 = vrot.slane %v166, 1
  %v168 = vadd.f32 %v166, %v167
  %v169 = vmul.f32 %v168, %v158
  %v170 = vadd.f32 %v169, 1e-05
  %v171 = vrsqrt.pop %v170
  %v172 = vmul.f32 %v160, %v171
  %v173 = vld [vmem:[%s3] sm:$0x1]
  %v175 = vlaneseq
  %v176 = vshrl.u32 %v175, 7
  %v177 = vsub.s32 0, %v176
  %v178 = vrot.slane %v173, %v177
  %v180 = vmul.f32 %v172, %v178
  %v181 = vld [vmem:[%s4] sm:$0x1]
  %v183 = vlaneseq
  %v184 = vshrl.u32 %v183, 7
  %v185 = vsub.s32 0, %v184
  %v186 = vrot.slane %v181, %v185
  %v188 = vadd.f32 %v180, %v186
  %v189 = vmax.f32 %v188, 0.0
  %v190 = vld [vmem:[%s5] sm:$0xff]
  %v191 = vld [vmem:[%s5 + $0x8] sm:$0xff]
  %v192 = vld [vmem:[%s5 + $0x10] sm:$0xff]
  %v193 = vld [vmem:[%s5 + $0x18] sm:$0xff]
  %v194 = vld [vmem:[%s5 + $0x20] sm:$0xff]
  %v195 = vld [vmem:[%s5 + $0x28] sm:$0xff]
  %v196 = vld [vmem:[%s5 + $0x30] sm:$0xff]
  %v197 = vld [vmem:[%s5 + $0x38] sm:$0xff]
  %v198 = vld [vmem:[#allocation2] sm:$0x1]
  %v200 = vlaneseq
  %v201 = vshrl.u32 %v200, 7
  %v202 = vsub.s32 0, %v201
  %v203 = vrot.slane %v198, %v202
  %v206 = vsel %vm36, %v189, 0
  %208 = vmatprep.subr.mxu0 0.0
  %209 = vmatpush1.msra.mxu0 %v190
  %210 = vmatprep.subr.mxu0 0.0
  %211 = vmatpush1.msra.mxu0 %v191
  %212 = vmatprep.subr.mxu0 0.0
  %213 = vmatpush1.msra.mxu0 %v192
  %214 = vmatprep.subr.mxu0 0.0
  %215 = vmatpush1.msra.mxu0 %v193
  %216 = vmatprep.subr.mxu0 0.0
  %217 = vmatpush1.msra.mxu0 %v194
  %218 = vmatprep.subr.mxu0 0.0
  %219 = vmatpush1.msra.mxu0 %v195
  %220 = vmatprep.subr.mxu0 0.0
  %221 = vmatpush1.msra.mxu0 %v196
  %222 = vmatprep.subr.mxu0 0.0
  %223 = vmatpush1.msra.mxu0 %v197
  %224 = vmatprep.subr.mxu0 0.0
  %225 = vmatpush1.msra.mxu0 0.0
  %226 = vmatprep.subr.mxu0 0.0
  %227 = vmatpush1.msra.mxu0 0.0
  %228 = vmatprep.subr.mxu0 0.0
  %229 = vmatpush1.msra.mxu0 0.0
  %230 = vmatprep.subr.mxu0 0.0
  %231 = vmatpush1.msra.mxu0 0.0
  %232 = vmatprep.subr.mxu0 0.0
  %233 = vmatpush1.msra.mxu0 0.0
  %234 = vmatprep.subr.mxu0 0.0
  %235 = vmatpush1.msra.mxu0 0.0
  %236 = vmatprep.subr.mxu0 0.0
  %237 = vmatpush1.msra.mxu0 0.0
  %238 = vmatprep.subr.mxu0 0.0
  %239 = vmatpush1.msra.mxu0 0.0
  %240 = vmatprep.subr.mxu0 0.0
  %241 = vmatpush1.msra.mxu0 0.0
  %242 = vmatprep.subr.mxu0 0.0
  %243 = vmatpush1.msra.mxu0 0.0
  %244 = vmatprep.subr.mxu0 0.0
  %245 = vmatpush1.msra.mxu0 0.0
  %246 = vmatprep.subr.mxu0 0.0
  %247 = vmatpush1.msra.mxu0 0.0
  %248 = vmatprep.subr.mxu0 0.0
  %249 = vmatpush1.msra.mxu0 0.0
  %250 = vmatprep.subr.mxu0 0.0
  %251 = vmatpush1.msra.mxu0 0.0
  %252 = vmatprep.subr.mxu0 0.0
  %253 = vmatpush1.msra.mxu0 0.0
  %254 = vmatprep.subr.mxu0 0.0
  %255 = vmatpush1.msra.mxu0 0.0
  %256 = vmatprep.subr.mxu0 0.0
  %257 = vmatpush1.msra.mxu0 0.0
  %258 = vmatprep.subr.mxu0 0.0
  %259 = vmatpush1.msra.mxu0 0.0
  %260 = vmatprep.subr.mxu0 0.0
  %261 = vmatpush1.msra.mxu0 0.0
  %262 = vmatprep.subr.mxu0 0.0
  %263 = vmatpush1.msra.mxu0 0.0
  %264 = vmatprep.subr.mxu0 0.0
  %265 = vmatpush1.msra.mxu0 0.0
  %266 = vmatprep.subr.mxu0 0.0
  %267 = vmatpush1.msra.mxu0 0.0
  %268 = vmatprep.subr.mxu0 0.0
  %269 = vmatpush1.msra.mxu0 0.0
  %270 = vmatprep.subr.mxu0 0.0
  %271 = vmatpush1.msra.mxu0 0.0
  %272 = vmatprep.mubr.f32.mxu0 0.0
  %273 = vmatmul.mubr.f32.gmra.mrb[0].mxu0 %v206
  %v274 = vpop.f32.mrb[0].mxu0
  %v275 = vadd.f32 %v203, %v274
  %v276 = vpop.f32.mrb[0].mxu0
  %277 = vdwg.mxu0
  %vm278 = vcmask 1024
  %279 = vst.msk [vmem:[%s7] sm:$0x3] %vm278, %v275
  // Predicated region
  $region30: #{d1model1_forward.3} parent=0 // pred_check
    _
  $region31: #{d1model1_forward.3} parent=0 // pred_check_branch
    %281 = sbr.rel (0) target = $region33
  $region32: #{d1model1_forward.3} parent=0 // pred_region
    _
  $region33: #{d1model1_forward.3} parent=0 // pred_fallthru
    _
  // Predicated region
  $region34: #{d1model1_forward.3} parent=0 // pred_check
    _
  $region35: #{d1model1_forward.3} parent=0 // pred_check_branch
    %283 = sbr.rel (0) target = $region37
  $region36: #{d1model1_forward.3} parent=0 // pred_region
    _
  $region37: #{d1model1_forward.3} parent=0 // pred_fallthru
    _

// kernel: d1model1_forward.2
$region0: #{d1model1_forward.2}
  #allocation0 [shape = 'u32[]', space=smem, size = 0x4, offset = 0x4, fixed_abs, tag = 'smem constant byte address 0x4 - core index']
  #allocation1 [shape = 'u32[144,128]{1,0:T(1,128)}', space=vmem, size = 0x12000, scoped, tag = 'internal scratch']
  #allocation2 [shape = 'f32[1,1]{1,0:T(1,128)S(1)}', space=vmem, size = 0x200, scoped, tag = 'scoped memory for d1model1_forward.2']
  %s0 = inlined_call_operand.vmem [shape: f32[2,12,133], index: 0, kind: input, shape index: {}]
  %s1 = inlined_call_operand.vmem [shape: f32[2,2,384], index: 1, kind: input, shape index: {}]
  %s2 = inlined_call_operand.vmem [shape: s32[2,1,12], index: 2, kind: input, shape index: {}]
  %s3 = inlined_call_operand.vmem [shape: s32[2,12,1], index: 3, kind: input, shape index: {}]
  %s4 = inlined_call_operand.<no memory space> [shape: f32[1,1], index: 4, kind: input, shape index: {}]
  %s5 = inlined_call_operand.vmem [shape: bf16[133,64], index: 5, kind: input, shape index: {}]
  %s6 = inlined_call_operand.vmem [shape: bf16[384,64], index: 6, kind: input, shape index: {}]
  %s7 = inlined_call_operand.vmem [shape: f32[1,64], index: 7, kind: input, shape index: {}]
  %s8 = inlined_call_operand.vmem [shape: bf16[4,64,192], index: 8, kind: input, shape index: {}]
  %s9 = inlined_call_operand.vmem [shape: f32[4,1,192], index: 9, kind: input, shape index: {}]
  %s10 = inlined_call_operand.vmem [shape: bf16[4,64,64], index: 10, kind: input, shape index: {}]
  %s11 = inlined_call_operand.vmem [shape: f32[4,1,64], index: 11, kind: input, shape index: {}]
  %s12 = inlined_call_operand.vmem [shape: f32[4,1,64], index: 12, kind: input, shape index: {}]
  %s13 = inlined_call_operand.vmem [shape: f32[4,1,64], index: 13, kind: input, shape index: {}]
  %s14 = inlined_call_operand.vmem [shape: bf16[4,64,512], index: 14, kind: input, shape index: {}]
  %s15 = inlined_call_operand.vmem [shape: f32[4,1,512], index: 15, kind: input, shape index: {}]
  %s16 = inlined_call_operand.vmem [shape: bf16[4,512,64], index: 16, kind: input, shape index: {}]
  %s17 = inlined_call_operand.vmem [shape: f32[4,1,64], index: 17, kind: input, shape index: {}]
  %s18 = inlined_call_operand.vmem [shape: f32[4,1,64], index: 18, kind: input, shape index: {}]
  %s19 = inlined_call_operand.vmem [shape: f32[4,1,64], index: 19, kind: input, shape index: {}]
  %s20 = inlined_call_operand.vmem [shape: f32[2,2,64], index: 20, kind: output, shape index: {}]
  %s21 = sld [smem:[#allocation0]]
  $region113: #{d1model1_forward.2} parent=0
    _
  %s23 = ssub.s32 1, %s21
  %s24 = scalar_select 0, %s23, %s21
  %v25 = vstv %s4
  %26 = vst [vmem:[#allocation2] sm:$0x1] %v25
  loop: start=0, step=1, limit=4
  $region2: #{d1model1_forward.2} parent=0 // loop_pre_header
    _
  $region3: #{d1model1_forward.2} parent=0 // loop_header
    %s28 = sphi 0, %s32
    %p29 = scmp.ge.s32.totalorder %s28, 4
    %s38 = sphi 0, %s40
    %s41 = sphi 0, %s38
    %s42 = sphi 0, %s41
    %s58 = sphi 0, %s42
    %s64 = sphi 0, %s66
    %s67 = sphi 0, %s64
    %s68 = sphi 0, %s67
    %s84 = sphi 0, %s68
    %s90 = sphi 0, %s92
    %s93 = sphi 0, %s90
    %s94 = sphi 0, %s93
    %s110 = sphi 0, %s94
    %s116 = sphi 0, %s118
    %s119 = sphi 0, %s116
    %s120 = sphi 0, %s119
    %s136 = sphi 0, %s120
    %s140 = sphi 0, %s140
    %s142 = sphi 0, %s140
    %s143 = sphi 0, %s142
    %s157 = sphi 0, %s143
    %s161 = sphi 0, %s161
    %s163 = sphi 0, %s161
    %s164 = sphi 0, %s163
    %s178 = sphi 0, %s164
    %s182 = sphi 0, %s182
    %s184 = sphi 0, %s182
    %s185 = sphi 0, %s184
    %s199 = sphi 0, %s185
    %s203 = sphi 0, %s203
    %s205 = sphi 0, %s203
    %s206 = sphi 0, %s205
    %s220 = sphi 0, %s206
    %s224 = sphi 0, %s224
    %s226 = sphi 0, %s224
    %s227 = sphi 0, %s226
    %s241 = sphi 0, %s227
    %s245 = sphi 0, %s245
    %s247 = sphi 0, %s245
    %s248 = sphi 0, %s247
    %s262 = sphi 0, %s248
    %s266 = sphi 0, %s266
    %s268 = sphi 0, %s266
    %s269 = sphi 0, %s268
    %s283 = sphi 0, %s269
    %s287 = sphi 0, %s287
    %s289 = sphi 0, %s287
    %s290 = sphi 0, %s289
    %s304 = sphi 0, %s290
    %s308 = sphi 0, %s308
    %s310 = sphi 0, %s308
    %s311 = sphi 0, %s310
    %s325 = sphi 0, %s311
    %s329 = sphi 0, %s329
    %s331 = sphi 0, %s329
    %s332 = sphi 0, %s331
    %s346 = sphi 0, %s332
    %s350 = sphi 0, %s350
    %s352 = sphi 0, %s350
    %s353 = sphi 0, %s352
    %s367 = sphi 0, %s353
    %s371 = sphi 0, %s371
    %s373 = sphi 0, %s371
    %s374 = sphi 0, %s373
    %s388 = sphi 0, %s374
    %s392 = sphi 0, %s392
    %s394 = sphi 0, %s392
    %s395 = sphi 0, %s394
    %s409 = sphi 0, %s395
    %s413 = sphi 0, %s413
    %s415 = sphi 0, %s413
    %s416 = sphi 0, %s415
    %s430 = sphi 0, %s416
    %s434 = sphi 0, %s434
    %s436 = sphi 0, %s434
    %s437 = sphi 0, %s436
    %s451 = sphi 0, %s437
    %s455 = sphi 0, %s455
    %s457 = sphi 0, %s455
    %s458 = sphi 0, %s457
    %s472 = sphi 0, %s458
    %s478 = sphi 0, %s480
    %s481 = sphi 0, %s478
    %s482 = sphi 0, %s481
    %s498 = sphi 0, %s482
  $region4: #{d1model1_forward.2} parent=0 // loop_header_branch
    %31 = sbr.rel (%p29) target = $region8
  $region5: #{d1model1_forward.2} parent=0 // loop_body
    %s33 = ssub.s32 %s28, 1
    %s34 = ssub.s32 %s28, 2
    %s35 = sadd.s32 %s28, 1
    %s36 = ssub.s32 %s28, %s35
    %p37 = scmp.eq.s32.totalorder %s36, 0
    %s39 = sadd.s32 %s38, 1
    %s40 = scalar_select %p37, %s38, %s39
    %p43 = pneg %p37
    %p44 = scmp.eq.s32.totalorder %s28, 1
    %p45 = por %p43, %p44
    %p46 = scmp.ne.s32.totalorder %s38, %s41
    %p47 = scmp.eq.s32.totalorder %s28, 0
    %p48 = por %p46, %p47
    %p49 = scmp.ne.s32.totalorder %s38, %s41
    %p50 = scmp.eq.s32.totalorder %s33, 1
    %p51 = por %p49, %p50
    %p52 = scmp.ne.s32.totalorder %s41, %s42
    %p53 = scmp.eq.s32.totalorder %s33, 0
    %p54 = por %p52, %p53
    %p55 = scmp.ne.s32.totalorder %s41, %s42
    %p56 = scmp.eq.s32.totalorder %s34, 1
    %p57 = por %p55, %p56
    %p59 = scmp.ne.s32.totalorder %s42, %s58
    %p60 = scmp.eq.s32.totalorder %s34, 0
    %p61 = por %p59, %p60
    %s62 = ssub.s32 %s28, %s35
    %p63 = scmp.eq.s32.totalorder %s62, 0
    %s65 = sadd.s32 %s64, 1
    %s66 = scalar_select %p63, %s64, %s65
    %p69 = pneg %p63
    %p70 = scmp.eq.s32.totalorder %s28, 1
    %p71 = por %p69, %p70
    %p72 = scmp.ne.s32.totalorder %s64, %s67
    %p73 = scmp.eq.s32.totalorder %s28, 0
    %p74 = por %p72, %p73
    %p75 = scmp.ne.s32.totalorder %s64, %s67
    %p76 = scmp.eq.s32.totalorder %s33, 1
    %p77 = por %p75, %p76
    %p78 = scmp.ne.s32.totalorder %s67, %s68
    %p79 = scmp.eq.s32.totalorder %s33, 0
    %p80 = por %p78, %p79
    %p81 = scmp.ne.s32.totalorder %s67, %s68
    %p82 = scmp.eq.s32.totalorder %s34, 1
    %p83 = por %p81, %p82
    %p85 = scmp.ne.s32.totalorder %s68, %s84
    %p86 = scmp.eq.s32.totalorder %s34, 0
    %p87 = por %p85, %p86
    %s88 = ssub.s32 %s28, %s35
    %p89 = scmp.eq.s32.totalorder %s88, 0
    %s91 = sadd.s32 %s90, 1
    %s92 = scalar_select %p89, %s90, %s91
    %p95 = pneg %p89
    %p96 = scmp.eq.s32.totalorder %s28, 1
    %p97 = por %p95, %p96
    %p98 = scmp.ne.s32.totalorder %s90, %s93
    %p99 = scmp.eq.s32.totalorder %s28, 0
    %p100 = por %p98, %p99
    %p101 = scmp.ne.s32.totalorder %s90, %s93
    %p102 = scmp.eq.s32.totalorder %s33, 1
    %p103 = por %p101, %p102
    %p104 = scmp.ne.s32.totalorder %s93, %s94
    %p105 = scmp.eq.s32.totalorder %s33, 0
    %p106 = por %p104, %p105
    %p107 = scmp.ne.s32.totalorder %s93, %s94
    %p108 = scmp.eq.s32.totalorder %s34, 1
    %p109 = por %p107, %p108
    %p111 = scmp.ne.s32.totalorder %s94, %s110
    %p112 = scmp.eq.s32.totalorder %s34, 0
    %p113 = por %p111, %p112
    %s114 = ssub.s32 %s28, %s35
    %p115 = scmp.eq.s32.totalorder %s114, 0
    %s117 = sadd.s32 %s116, 1
    %s118 = scalar_select %p115, %s116, %s117
    %p121 = pneg %p115
    %p122 = scmp.eq.s32.totalorder %s28, 1
    %p123 = por %p121, %p122
    %p124 = scmp.ne.s32.totalorder %s116, %s119
    %p125 = scmp.eq.s32.totalorder %s28, 0
    %p126 = por %p124, %p125
    %p127 = scmp.ne.s32.totalorder %s116, %s119
    %p128 = scmp.eq.s32.totalorder %s33, 1
    %p129 = por %p127, %p128
    %p130 = scmp.ne.s32.totalorder %s119, %s120
    %p131 = scmp.eq.s32.totalorder %s33, 0
    %p132 = por %p130, %p131
    %p133 = scmp.ne.s32.totalorder %s119, %s120
    %p134 = scmp.eq.s32.totalorder %s34, 1
    %p135 = por %p133, %p134
    %p137 = scmp.ne.s32.totalorder %s120, %s136
    %p138 = scmp.eq.s32.totalorder %s34, 0
    %p139 = por %p137, %p138
    %s141 = sadd.s32 %s140, 1
    %p144 = scmp.eq.s32.totalorder %s28, 1
    %p145 = scmp.ne.s32.totalorder %s140, %s142
    %p146 = scmp.eq.s32.totalorder %s28, 0
    %p147 = por %p145, %p146
    %p148 = scmp.ne.s32.totalorder %s140, %s142
    %p149 = scmp.eq.s32.totalorder %s33, 1
    %p150 = por %p148, %p149
    %p151 = scmp.ne.s32.totalorder %s142, %s143
    %p152 = scmp.eq.s32.totalorder %s33, 0
    %p153 = por %p151, %p152
    %p154 = scmp.ne.s32.totalorder %s142, %s143
    %p155 = scmp.eq.s32.totalorder %s34, 1
    %p156 = por %p154, %p155
    %p158 = scmp.ne.s32.totalorder %s143, %s157
    %p159 = scmp.eq.s32.totalorder %s34, 0
    %p160 = por %p158, %p159
    %s162 = sadd.s32 %s161, 1
    %p165 = scmp.eq.s32.totalorder %s28, 1
    %p166 = scmp.ne.s32.totalorder %s161, %s163
    %p167 = scmp.eq.s32.totalorder %s28, 0
    %p168 = por %p166, %p167
    %p169 = scmp.ne.s32.totalorder %s161, %s163
    %p170 = scmp.eq.s32.totalorder %s33, 1
    %p171 = por %p169, %p170
    %p172 = scmp.ne.s32.totalorder %s163, %s164
    %p173 = scmp.eq.s32.totalorder %s33, 0
    %p174 = por %p172, %p173
    %p175 = scmp.ne.s32.totalorder %s163, %s164
    %p176 = scmp.eq.s32.totalorder %s34, 1
    %p177 = por %p175, %p176
    %p179 = scmp.ne.s32.totalorder %s164, %s178
    %p180 = scmp.eq.s32.totalorder %s34, 0
    %p181 = por %p179, %p180
    %s183 = sadd.s32 %s182, 1
    %p186 = scmp.eq.s32.totalorder %s28, 1
    %p187 = scmp.ne.s32.totalorder %s182, %s184
    %p188 = scmp.eq.s32.totalorder %s28, 0
    %p189 = por %p187, %p188
    %p190 = scmp.ne.s32.totalorder %s182, %s184
    %p191 = scmp.eq.s32.totalorder %s33, 1
    %p192 = por %p190, %p191
    %p193 = scmp.ne.s32.totalorder %s184, %s185
    %p194 = scmp.eq.s32.totalorder %s33, 0
    %p195 = por %p193, %p194
    %p196 = scmp.ne.s32.totalorder %s184, %s185
    %p197 = scmp.eq.s32.totalorder %s34, 1
    %p198 = por %p196, %p197
    %p200 = scmp.ne.s32.totalorder %s185, %s199
    %p201 = scmp.eq.s32.totalorder %s34, 0
    %p202 = por %p200, %p201
    %s204 = sadd.s32 %s203, 1
    %p207 = scmp.eq.s32.totalorder %s28, 1
    %p208 = scmp.ne.s32.totalorder %s203, %s205
    %p209 = scmp.eq.s32.totalorder %s28, 0
    %p210 = por %p208, %p209
    %p211 = scmp.ne.s32.totalorder %s203, %s205
    %p212 = scmp.eq.s32.totalorder %s33, 1
    %p213 = por %p211, %p212
    %p214 = scmp.ne.s32.totalorder %s205, %s206
    %p215 = scmp.eq.s32.totalorder %s33, 0
    %p216 = por %p214, %p215
    %p217 = scmp.ne.s32.totalorder %s205, %s206
    %p218 = scmp.eq.s32.totalorder %s34, 1
    %p219 = por %p217, %p218
    %p221 = scmp.ne.s32.totalorder %s206, %s220
    %p222 = scmp.eq.s32.totalorder %s34, 0
    %p223 = por %p221, %p222
    %s225 = sadd.s32 %s224, 1
    %p228 = scmp.eq.s32.totalorder %s28, 1
    %p229 = scmp.ne.s32.totalorder %s224, %s226
    %p230 = scmp.eq.s32.totalorder %s28, 0
    %p231 = por %p229, %p230
    %p232 = scmp.ne.s32.totalorder %s224, %s226
    %p233 = scmp.eq.s32.totalorder %s33, 1
    %p234 = por %p232, %p233
    %p235 = scmp.ne.s32.totalorder %s226, %s227
    %p236 = scmp.eq.s32.totalorder %s33, 0
    %p237 = por %p235, %p236
    %p238 = scmp.ne.s32.totalorder %s226, %s227
    %p239 = scmp.eq.s32.totalorder %s34, 1
    %p240 = por %p238, %p239
    %p242 = scmp.ne.s32.totalorder %s227, %s241
    %p243 = scmp.eq.s32.totalorder %s34, 0
    %p244 = por %p242, %p243
    %s246 = sadd.s32 %s245, 1
    %p249 = scmp.eq.s32.totalorder %s28, 1
    %p250 = scmp.ne.s32.totalorder %s245, %s247
    %p251 = scmp.eq.s32.totalorder %s28, 0
    %p252 = por %p250, %p251
    %p253 = scmp.ne.s32.totalorder %s245, %s247
    %p254 = scmp.eq.s32.totalorder %s33, 1
    %p255 = por %p253, %p254
    %p256 = scmp.ne.s32.totalorder %s247, %s248
    %p257 = scmp.eq.s32.totalorder %s33, 0
    %p258 = por %p256, %p257
    %p259 = scmp.ne.s32.totalorder %s247, %s248
    %p260 = scmp.eq.s32.totalorder %s34, 1
    %p261 = por %p259, %p260
    %p263 = scmp.ne.s32.totalorder %s248, %s262
    %p264 = scmp.eq.s32.totalorder %s34, 0
    %p265 = por %p263, %p264
    %s267 = sadd.s32 %s266, 1
    %p270 = scmp.eq.s32.totalorder %s28, 1
    %p271 = scmp.ne.s32.totalorder %s266, %s268
    %p272 = scmp.eq.s32.totalorder %s28, 0
    %p273 = por %p271, %p272
    %p274 = scmp.ne.s32.totalorder %s266, %s268
    %p275 = scmp.eq.s32.totalorder %s33, 1
    %p276 = por %p274, %p275
    %p277 = scmp.ne.s32.totalorder %s268, %s269
    %p278 = scmp.eq.s32.totalorder %s33, 0
    %p279 = por %p277, %p278
    %p280 = scmp.ne.s32.totalorder %s268, %s269
    %p281 = scmp.eq.s32.totalorder %s34, 1
    %p282 = por %p280, %p281
    %p284 = scmp.ne.s32.totalorder %s269, %s283
    %p285 = scmp.eq.s32.totalorder %s34, 0
    %p286 = por %p284, %p285
    %s288 = sadd.s32 %s287, 1
    %p291 = scmp.eq.s32.totalorder %s28, 1
    %p292 = scmp.ne.s32.totalorder %s287, %s289
    %p293 = scmp.eq.s32.totalorder %s28, 0
    %p294 = por %p292, %p293
    %p295 = scmp.ne.s32.totalorder %s287, %s289
    %p296 = scmp.eq.s32.totalorder %s33, 1
    %p297 = por %p295, %p296
    %p298 = scmp.ne.s32.totalorder %s289, %s290
    %p299 = scmp.eq.s32.totalorder %s33, 0
    %p300 = por %p298, %p299
    %p301 = scmp.ne.s32.totalorder %s289, %s290
    %p302 = scmp.eq.s32.totalorder %s34, 1
    %p303 = por %p301, %p302
    %p305 = scmp.ne.s32.totalorder %s290, %s304
    %p306 = scmp.eq.s32.totalorder %s34, 0
    %p307 = por %p305, %p306
    %s309 = sadd.s32 %s308, 1
    %p312 = scmp.eq.s32.totalorder %s28, 1
    %p313 = scmp.ne.s32.totalorder %s308, %s310
    %p314 = scmp.eq.s32.totalorder %s28, 0
    %p315 = por %p313, %p314
    %p316 = scmp.ne.s32.totalorder %s308, %s310
    %p317 = scmp.eq.s32.totalorder %s33, 1
    %p318 = por %p316, %p317
    %p319 = scmp.ne.s32.totalorder %s310, %s311
    %p320 = scmp.eq.s32.totalorder %s33, 0
    %p321 = por %p319, %p320
    %p322 = scmp.ne.s32.totalorder %s310, %s311
    %p323 = scmp.eq.s32.totalorder %s34, 1
    %p324 = por %p322, %p323
    %p326 = scmp.ne.s32.totalorder %s311, %s325
    %p327 = scmp.eq.s32.totalorder %s34, 0
    %p328 = por %p326, %p327
    %s330 = sadd.s32 %s329, 1
    %p333 = scmp.eq.s32.totalorder %s28, 1
    %p334 = scmp.ne.s32.totalorder %s329, %s331
    %p335 = scmp.eq.s32.totalorder %s28, 0
    %p336 = por %p334, %p335
    %p337 = scmp.ne.s32.totalorder %s329, %s331
    %p338 = scmp.eq.s32.totalorder %s33, 1
    %p339 = por %p337, %p338
    %p340 = scmp.ne.s32.totalorder %s331, %s332
    %p341 = scmp.eq.s32.totalorder %s33, 0
    %p342 = por %p340, %p341
    %p343 = scmp.ne.s32.totalorder %s331, %s332
    %p344 = scmp.eq.s32.totalorder %s34, 1
    %p345 = por %p343, %p344
    %p347 = scmp.ne.s32.totalorder %s332, %s346
    %p348 = scmp.eq.s32.totalorder %s34, 0
    %p349 = por %p347, %p348
    %s351 = sadd.s32 %s350, 1
    %p354 = scmp.eq.s32.totalorder %s28, 1
    %p355 = scmp.ne.s32.totalorder %s350, %s352
    %p356 = scmp.eq.s32.totalorder %s28, 0
    %p357 = por %p355, %p356
    %p358 = scmp.ne.s32.totalorder %s350, %s352
    %p359 = scmp.eq.s32.totalorder %s33, 1
    %p360 = por %p358, %p359
    %p361 = scmp.ne.s32.totalorder %s352, %s353
    %p362 = scmp.eq.s32.totalorder %s33, 0
    %p363 = por %p361, %p362
    %p364 = scmp.ne.s32.totalorder %s352, %s353
    %p365 = scmp.eq.s32.totalorder %s34, 1
    %p366 = por %p364, %p365
    %p368 = scmp.ne.s32.totalorder %s353, %s367
    %p369 = scmp.eq.s32.totalorder %s34, 0
    %p370 = por %p368, %p369
    %s372 = sadd.s32 %s371, 1
    %p375 = scmp.eq.s32.totalorder %s28, 1
    %p376 = scmp.ne.s32.totalorder %s371, %s373
    %p377 = scmp.eq.s32.totalorder %s28, 0
    %p378 = por %p376, %p377
    %p379 = scmp.ne.s32.totalorder %s371, %s373
    %p380 = scmp.eq.s32.totalorder %s33, 1
    %p381 = por %p379, %p380
    %p382 = scmp.ne.s32.totalorder %s373, %s374
    %p383 = scmp.eq.s32.totalorder %s33, 0
    %p384 = por %p382, %p383
    %p385 = scmp.ne.s32.totalorder %s373, %s374
    %p386 = scmp.eq.s32.totalorder %s34, 1
    %p387 = por %p385, %p386
    %p389 = scmp.ne.s32.totalorder %s374, %s388
    %p390 = scmp.eq.s32.totalorder %s34, 0
    %p391 = por %p389, %p390
    %s393 = sadd.s32 %s392, 1
    %p396 = scmp.eq.s32.totalorder %s28, 1
    %p397 = scmp.ne.s32.totalorder %s392, %s394
    %p398 = scmp.eq.s32.totalorder %s28, 0
    %p399 = por %p397, %p398
    %p400 = scmp.ne.s32.totalorder %s392, %s394
    %p401 = scmp.eq.s32.totalorder %s33, 1
    %p402 = por %p400, %p401
    %p403 = scmp.ne.s32.totalorder %s394, %s395
    %p404 = scmp.eq.s32.totalorder %s33, 0
    %p405 = por %p403, %p404
    %p406 = scmp.ne.s32.totalorder %s394, %s395
    %p407 = scmp.eq.s32.totalorder %s34, 1
    %p408 = por %p406, %p407
    %p410 = scmp.ne.s32.totalorder %s395, %s409
    %p411 = scmp.eq.s32.totalorder %s34, 0
    %p412 = por %p410, %p411
    %s414 = sadd.s32 %s413, 1
    %p417 = scmp.eq.s32.totalorder %s28, 1
    %p418 = scmp.ne.s32.totalorder %s413, %s415
    %p419 = scmp.eq.s32.totalorder %s28, 0
    %p420 = por %p418, %p419
    %p421 = scmp.ne.s32.totalorder %s413, %s415
    %p422 = scmp.eq.s32.totalorder %s33, 1
    %p423 = por %p421, %p422
    %p424 = scmp.ne.s32.totalorder %s415, %s416
    %p425 = scmp.eq.s32.totalorder %s33, 0
    %p426 = por %p424, %p425
    %p427 = scmp.ne.s32.totalorder %s415, %s416
    %p428 = scmp.eq.s32.totalorder %s34, 1
    %p429 = por %p427, %p428
    %p431 = scmp.ne.s32.totalorder %s416, %s430
    %p432 = scmp.eq.s32.totalorder %s34, 0
    %p433 = por %p431, %p432
    %s435 = sadd.s32 %s434, 1
    %p438 = scmp.eq.s32.totalorder %s28, 1
    %p439 = scmp.ne.s32.totalorder %s434, %s436
    %p440 = scmp.eq.s32.totalorder %s28, 0
    %p441 = por %p439, %p440
    %p442 = scmp.ne.s32.totalorder %s434, %s436
    %p443 = scmp.eq.s32.totalorder %s33, 1
    %p444 = por %p442, %p443
    %p445 = scmp.ne.s32.totalorder %s436, %s437
    %p446 = scmp.eq.s32.totalorder %s33, 0
    %p447 = por %p445, %p446
    %p448 = scmp.ne.s32.totalorder %s436, %s437
    %p449 = scmp.eq.s32.totalorder %s34, 1
    %p450 = por %p448, %p449
    %p452 = scmp.ne.s32.totalorder %s437, %s451
    %p453 = scmp.eq.s32.totalorder %s34, 0
    %p454 = por %p452, %p453
    %s456 = sadd.s32 %s455, 1
    %p459 = scmp.eq.s32.totalorder %s28, 1
    %p460 = scmp.ne.s32.totalorder %s455, %s457
    %p461 = scmp.eq.s32.totalorder %s28, 0
    %p462 = por %p460, %p461
    %p463 = scmp.ne.s32.totalorder %s455, %s457
    %p464 = scmp.eq.s32.totalorder %s33, 1
    %p465 = por %p463, %p464
    %p466 = scmp.ne.s32.totalorder %s457, %s458
    %p467 = scmp.eq.s32.totalorder %s33, 0
    %p468 = por %p466, %p467
    %p469 = scmp.ne.s32.totalorder %s457, %s458
    %p470 = scmp.eq.s32.totalorder %s34, 1
    %p471 = por %p469, %p470
    %p473 = scmp.ne.s32.totalorder %s458, %s472
    %p474 = scmp.eq.s32.totalorder %s34, 0
    %p475 = por %p473, %p474
    %s476 = ssub.s32 %s28, %s35
    %p477 = scmp.eq.s32.totalorder %s476, 0
    %s479 = sadd.s32 %s478, 1
    %s480 = scalar_select %p477, %s478, %s479
    %p483 = pneg %p477
    %p484 = scmp.eq.s32.totalorder %s28, 1
    %p485 = por %p483, %p484
    %p486 = scmp.ne.s32.totalorder %s478, %s481
    %p487 = scmp.eq.s32.totalorder %s28, 0
    %p488 = por %p486, %p487
    %p489 = scmp.ne.s32.totalorder %s478, %s481
    %p490 = scmp.eq.s32.totalorder %s33, 1
    %p491 = por %p489, %p490
    %p492 = scmp.ne.s32.totalorder %s481, %s482
    %p493 = scmp.eq.s32.totalorder %s33, 0
    %p494 = por %p492, %p493
    %p495 = scmp.ne.s32.totalorder %s481, %s482
    %p496 = scmp.eq.s32.totalorder %s34, 1
    %p497 = por %p495, %p496
    %p499 = scmp.ne.s32.totalorder %s482, %s498
    %p500 = scmp.eq.s32.totalorder %s34, 0
    %p501 = por %p499, %p500
    %p502 = scmp.le.s32.totalorder 1, %s28
    %p503 = scmp.lt.s32.totalorder %s28, 3
    %p504 = pnand %p502, %p503
    %p505 = pneg %p504
    // Predicated region
    $region9: #{d1model1_forward.2} parent=5 // pred_check
      _
    $region10: #{d1model1_forward.2} parent=5 // pred_check_branch
      %507 = sbr.rel (%p504) target = $region12
    $region11: #{d1model1_forward.2} parent=5 // pred_region
      %s508 = ssub.s32 %s28, 1
      // Predicated region
      $region13: #{d1model1_forward.2} parent=11 // pred_check
        %p509 = pneg %p153
      $region14: #{d1model1_forward.2} parent=11 // pred_check_branch
        %511 = sbr.rel (%p509) target = $region16
      $region15: #{d1model1_forward.2} parent=11 // pred_region
        _
      $region16: #{d1model1_forward.2} parent=11 // pred_fallthru
        _
      // Predicated region
      $region17: #{d1model1_forward.2} parent=11 // pred_check
        %p512 = pneg %p174
      $region18: #{d1model1_forward.2} parent=11 // pred_check_branch
        %514 = sbr.rel (%p512) target = $region20
      $region19: #{d1model1_forward.2} parent=11 // pred_region
        _
      $region20: #{d1model1_forward.2} parent=11 // pred_fallthru
        _
      // Predicated region
      $region21: #{d1model1_forward.2} parent=11 // pred_check
        %p515 = pneg %p195
      $region22: #{d1model1_forward.2} parent=11 // pred_check_branch
        %517 = sbr.rel (%p515) target = $region24
      $region23: #{d1model1_forward.2} parent=11 // pred_region
        _
      $region24: #{d1model1_forward.2} parent=11 // pred_fallthru
        _
      // Predicated region
      $region25: #{d1model1_forward.2} parent=11 // pred_check
        %p518 = pneg %p216
      $region26: #{d1model1_forward.2} parent=11 // pred_check_branch
        %520 = sbr.rel (%p518) target = $region28
      $region27: #{d1model1_forward.2} parent=11 // pred_region
        _
      $region28: #{d1model1_forward.2} parent=11 // pred_fallthru
        _
      // Predicated region
      $region29: #{d1model1_forward.2} parent=11 // pred_check
        %p521 = pneg %p237
      $region30: #{d1model1_forward.2} parent=11 // pred_check_branch
        %523 = sbr.rel (%p521) target = $region32
      $region31: #{d1model1_forward.2} parent=11 // pred_region
        _
      $region32: #{d1model1_forward.2} parent=11 // pred_fallthru
        _
      // Predicated region
      $region33: #{d1model1_forward.2} parent=11 // pred_check
        %p524 = pneg %p258
      $region34: #{d1model1_forward.2} parent=11 // pred_check_branch
        %526 = sbr.rel (%p524) target = $region36
      $region35: #{d1model1_forward.2} parent=11 // pred_region
        _
      $region36: #{d1model1_forward.2} parent=11 // pred_fallthru
        _
      // Predicated region
      $region37: #{d1model1_forward.2} parent=11 // pred_check
        %p527 = pneg %p279
      $region38: #{d1model1_forward.2} parent=11 // pred_check_branch
        %529 = sbr.rel (%p527) target = $region40
      $region39: #{d1model1_forward.2} parent=11 // pred_region
        _
      $region40: #{d1model1_forward.2} parent=11 // pred_fallthru
        _
      // Predicated region
      $region41: #{d1model1_forward.2} parent=11 // pred_check
        %p530 = pneg %p300
      $region42: #{d1model1_forward.2} parent=11 // pred_check_branch
        %532 = sbr.rel (%p530) target = $region44
      $region43: #{d1model1_forward.2} parent=11 // pred_region
        _
      $region44: #{d1model1_forward.2} parent=11 // pred_fallthru
        _
      // Predicated region
      $region45: #{d1model1_forward.2} parent=11 // pred_check
        %p533 = pneg %p321
      $region46: #{d1model1_forward.2} parent=11 // pred_check_branch
        %535 = sbr.rel (%p533) target = $region48
      $region47: #{d1model1_forward.2} parent=11 // pred_region
        _
      $region48: #{d1model1_forward.2} parent=11 // pred_fallthru
        _
      // Predicated region
      $region49: #{d1model1_forward.2} parent=11 // pred_check
        %p536 = pneg %p342
      $region50: #{d1model1_forward.2} parent=11 // pred_check_branch
        %538 = sbr.rel (%p536) target = $region52
      $region51: #{d1model1_forward.2} parent=11 // pred_region
        _
      $region52: #{d1model1_forward.2} parent=11 // pred_fallthru
        _
      // Predicated region
      $region53: #{d1model1_forward.2} parent=11 // pred_check
        %p539 = pneg %p363
      $region54: #{d1model1_forward.2} parent=11 // pred_check_branch
        %541 = sbr.rel (%p539) target = $region56
      $region55: #{d1model1_forward.2} parent=11 // pred_region
        _
      $region56: #{d1model1_forward.2} parent=11 // pred_fallthru
        _
      // Predicated region
      $region57: #{d1model1_forward.2} parent=11 // pred_check
        %p542 = pneg %p384
      $region58: #{d1model1_forward.2} parent=11 // pred_check_branch
        %544 = sbr.rel (%p542) target = $region60
      $region59: #{d1model1_forward.2} parent=11 // pred_region
        _
      $region60: #{d1model1_forward.2} parent=11 // pred_fallthru
        _
      // Predicated region
      $region61: #{d1model1_forward.2} parent=11 // pred_check
        %p545 = pneg %p405
      $region62: #{d1model1_forward.2} parent=11 // pred_check_branch
        %547 = sbr.rel (%p545) target = $region64
      $region63: #{d1model1_forward.2} parent=11 // pred_region
        _
      $region64: #{d1model1_forward.2} parent=11 // pred_fallthru
        _
      // Predicated region
      $region65: #{d1model1_forward.2} parent=11 // pred_check
        %p548 = pneg %p426
      $region66: #{d1model1_forward.2} parent=11 // pred_check_branch
        %550 = sbr.rel (%p548) target = $region68
      $region67: #{d1model1_forward.2} parent=11 // pred_region
        _
      $region68: #{d1model1_forward.2} parent=11 // pred_fallthru
        _
      // Predicated region
      $region69: #{d1model1_forward.2} parent=11 // pred_check
        %p551 = pneg %p447
      $region70: #{d1model1_forward.2} parent=11 // pred_check_branch
        %553 = sbr.rel (%p551) target = $region72
      $region71: #{d1model1_forward.2} parent=11 // pred_region
        _
      $region72: #{d1model1_forward.2} parent=11 // pred_fallthru
        _
      // Predicated region
      $region73: #{d1model1_forward.2} parent=11 // pred_check
        %p554 = pneg %p468
      $region74: #{d1model1_forward.2} parent=11 // pred_check_branch
        %556 = sbr.rel (%p554) target = $region76
      $region75: #{d1model1_forward.2} parent=11 // pred_region
        _
      $region76: #{d1model1_forward.2} parent=11 // pred_fallthru
        _
    $region12: #{d1model1_forward.2} parent=5 // pred_fallthru
      _
    %p557 = scmp.lt.s32.totalorder %s28, 2
    // Predicated region
    $region77: #{d1model1_forward.2} parent=5 // pred_check
      %p558 = pneg %p557
    $region78: #{d1model1_forward.2} parent=5 // pred_check_branch
      %560 = sbr.rel (%p558) target = $region80
    $region79: #{d1model1_forward.2} parent=5 // pred_region
      // Predicated region
      $region81: #{d1model1_forward.2} parent=79 // pred_check
        %p561 = pneg %p48
      $region82: #{d1model1_forward.2} parent=79 // pred_check_branch
        %563 = sbr.rel (%p561) target = $region84
      $region83: #{d1model1_forward.2} parent=79 // pred_region
        %p564 = scmp.lt.s32.totalorder %s28, 1
        %s565 = scalar_select %p564, %s28, 1
        %s566 = smul.addr %s565, 4
        %s567 = smul.addr %s566, 8
        %s568 = scalar_lea.vmem %s0, %s567
      $region84: #{d1model1_forward.2} parent=79 // pred_fallthru
        _
      // Predicated region
      $region85: #{d1model1_forward.2} parent=79 // pred_check
        %p569 = pneg %p74
      $region86: #{d1model1_forward.2} parent=79 // pred_check_branch
        %571 = sbr.rel (%p569) target = $region88
      $region87: #{d1model1_forward.2} parent=79 // pred_region
        %p572 = scmp.lt.s32.totalorder %s28, 1
        %s573 = scalar_select %p572, %s28, 1
        %s574 = smul.addr %s573, 3
        %s575 = smul.addr %s574, 2
        %s576 = scalar_lea.vmem %s1, %s575
      $region88: #{d1model1_forward.2} parent=79 // pred_fallthru
        _
      // Predicated region
      $region89: #{d1model1_forward.2} parent=79 // pred_check
        %p577 = pneg %p100
      $region90: #{d1model1_forward.2} parent=79 // pred_check_branch
        %579 = sbr.rel (%p577) target = $region92
      $region91: #{d1model1_forward.2} parent=79 // pred_region
        %p580 = scmp.lt.s32.totalorder %s28, 1
        %s581 = scalar_select %p580, %s28, 1
        %s582 = scalar_lea.vmem %s2, %s581
      $region92: #{d1model1_forward.2} parent=79 // pred_fallthru
        _
      // Predicated region
      $region93: #{d1model1_forward.2} parent=79 // pred_check
        %p583 = pneg %p126
      $region94: #{d1model1_forward.2} parent=79 // pred_check_branch
        %585 = sbr.rel (%p583) target = $region96
      $region95: #{d1model1_forward.2} parent=79 // pred_region
        %p586 = scmp.lt.s32.totalorder %s28, 1
        %s587 = scalar_select %p586, %s28, 1
        %s588 = smul.addr %s587, 2
        %s589 = smul.addr %s588, 8
        %s590 = scalar_lea.vmem %s3, %s589
      $region96: #{d1model1_forward.2} parent=79 // pred_fallthru
        _
    $region80: #{d1model1_forward.2} parent=5 // pred_fallthru
      _
    %p591 = scmp.le.s32.totalorder 1, %s28
    %p592 = scmp.lt.s32.totalorder %s28, 3
    %p593 = pnand %p591, %p592
    %p594 = pneg %p593
    // Predicated region
    $region97: #{d1model1_forward.2} parent=5 // pred_check
      _
    $region98: #{d1model1_forward.2} parent=5 // pred_check_branch
      %596 = sbr.rel (%p593) target = $region100
    $region99: #{d1model1_forward.2} parent=5 // pred_region
      %s597 = ssub.s32 %s28, 1
      %p598 = scmp.lt.s32.totalorder %s33, 1
      %s599 = scalar_select %p598, %s33, 1
      %s600 = smul.addr %s599, 4
      %s601 = smul.addr %s600, 8
      %s602 = scalar_lea.vmem %s0, %s601
      %p603 = pneg %p54
      %p604 = pneg %p51
      %p605 = scmp.lt.s32.totalorder %s33, 1
      %s606 = scalar_select %p605, %s33, 1
      %s607 = smul.addr %s606, 3
      %s608 = smul.addr %s607, 2
      %s609 = scalar_lea.vmem %s1, %s608
      %p610 = pneg %p80
      %p611 = pneg %p77
      %p612 = scmp.lt.s32.totalorder %s33, 1
      %s613 = scalar_select %p612, %s33, 1
      %s614 = scalar_lea.vmem %s2, %s613
      %p615 = pneg %p106
      %p616 = pneg %p103
      %p617 = scmp.lt.s32.totalorder %s33, 1
      %s618 = scalar_select %p617, %s33, 1
      %s619 = smul.addr %s618, 2
      %s620 = smul.addr %s619, 8
      %s621 = scalar_lea.vmem %s3, %s620
      %p622 = pneg %p132
      %p623 = pneg %p129
      %p624 = pneg %p153
      %p625 = pneg %p150
      %p626 = pneg %p174
      %p627 = pneg %p171
      %p628 = pneg %p195
      %p629 = pneg %p192
      %p630 = pneg %p216
      %p631 = pneg %p213
      %p632 = pneg %p237
      %p633 = pneg %p234
      %p634 = pneg %p258
      %p635 = pneg %p255
      %p636 = pneg %p279
      %p637 = pneg %p276
      %p638 = pneg %p300
      %p639 = pneg %p297
      %p640 = pneg %p321
      %p641 = pneg %p318
      %p642 = pneg %p342
      %p643 = pneg %p339
      %p644 = pneg %p363
      %p645 = pneg %p360
      %p646 = pneg %p384
      %p647 = pneg %p381
      %p648 = pneg %p405
      %p649 = pneg %p402
      %p650 = pneg %p426
      %p651 = pneg %p423
      %p652 = pneg %p447
      %p653 = pneg %p444
      %p654 = pneg %p468
      %p655 = pneg %p465
      %p656 = pneg %p494
      %p657 = pneg %p491
      %p658 = scmp.lt.s32.totalorder %s33, 1
      %s659 = scalar_select %p658, %s33, 1
      %s660 = smul.addr %s659, 2
      %s661 = scalar_lea.vmem %s20, %s660
      %p662 = scmp.lt.s32.totalorder %s33, 1
      %s663 = scalar_select %p662, %s33, 1
      %s664 = smul.addr %s663, 4
      %s665 = smul.addr %s664, 8
      %s666 = scalar_lea.vmem %s0, %s665
      %p667 = scmp.lt.s32.totalorder %s33, 1
      %s668 = scalar_select %p667, %s33, 1
      %s669 = smul.addr %s668, 3
      %s670 = smul.addr %s669, 2
      %s671 = scalar_lea.vmem %s1, %s670
      %p672 = scmp.lt.s32.totalorder %s33, 1
      %s673 = scalar_select %p672, %s33, 1
      %s674 = scalar_lea.vmem %s2, %s673
      %p675 = scmp.lt.s32.totalorder %s33, 1
      %s676 = scalar_select %p675, %s33, 1
      %s677 = smul.addr %s676, 2
      %s678 = smul.addr %s677, 8
      %s679 = scalar_lea.vmem %s3, %s678
      %p680 = scmp.lt.s32.totalorder %s33, 1
      %s681 = scalar_select %p680, %s33, 1
      %s682 = smul.addr %s681, 2
      %s683 = scalar_lea.vmem %s20, %s682
      %v685 = vld [vmem:[%s666] sm:$0xff]
      %v686 = vld [vmem:[%s666 + $0x8] sm:$0xff]
      %v687 = vld [vmem:[%s666 + $0x10] sm:$0xf]
      %v688 = vld [vmem:[%s666 + $0x18] sm:$0xf]
      %v689 = vld [vmem:[%s671] sm:$0x3f]
      %v690 = vld [vmem:[%s674] sm:$0x1]
      %v691 = vld [vmem:[%s679] sm:$0xff]
      %v692 = vld [vmem:[%s679 + $0x8] sm:$0xf]
      %v694 = vcombine.high %v689, %v689
      %v696 = vunpack.c.l.s4 1983009808
      %v697 = vunpack.c.0.s8 %v696
      %v698 = vlaneseq
      %v699 = vshrl.u32 %v698, 7
      %v700 = vsub.s32 %v697, %v699
      %v701 = vrot.slane %v689, %v700
      %v703 = vunpack.c.l.s4 1983009808
      %v704 = vunpack.c.0.s8 %v703
      %v705 = vlaneseq
      %v706 = vshrl.u32 %v705, 7
      %v707 = vsub.s32 %v704, %v706
      %v708 = vrot.slane %v694, %v707
      %v709 = vcombine.high %v701, %v701
      %v713 = vpack.c.bf16 %v701, %v701
      %v714 = vpack.c.bf16 %v709, %v709
      %v715 = vpack.c.bf16 %v708, %v708
      %v716 = vld [vmem:[%s6] sm:$0xf]
      %v717 = vld [vmem:[%s6 + $0x4] sm:$0xf]
      %v718 = vld [vmem:[%s6 + $0x8] sm:$0xf]
      %v719 = vld [vmem:[%s6 + $0xc] sm:$0xf]
      %v720 = vld [vmem:[%s6 + $0x10] sm:$0xf]
      %v721 = vld [vmem:[%s6 + $0x14] sm:$0xf]
      %v722 = vld [vmem:[%s6 + $0x18] sm:$0xf]
      %v723 = vld [vmem:[%s6 + $0x1c] sm:$0xf]
      %v724 = vld [vmem:[%s6 + $0x20] sm:$0xf]
      %v725 = vld [vmem:[%s6 + $0x24] sm:$0xf]
      %v726 = vld [vmem:[%s6 + $0x28] sm:$0xf]
      %v727 = vld [vmem:[%s6 + $0x2c] sm:$0xf]
      %v728 = vld [vmem:[%s6 + $0x30] sm:$0xf]
      %v729 = vld [vmem:[%s6 + $0x34] sm:$0xf]
      %v730 = vld [vmem:[%s6 + $0x38] sm:$0xf]
      %v731 = vld [vmem:[%s6 + $0x3c] sm:$0xf]
      %v732 = vld [vmem:[%s6 + $0x40] sm:$0xf]
      %v733 = vld [vmem:[%s6 + $0x44] sm:$0xf]
      %v734 = vld [vmem:[%s6 + $0x48] sm:$0xf]
      %v735 = vld [vmem:[%s6 + $0x4c] sm:$0xf]
      %v736 = vld [vmem:[%s6 + $0x50] sm:$0xf]
      %v737 = vld [vmem:[%s6 + $0x54] sm:$0xf]
      %v738 = vld [vmem:[%s6 + $0x58] sm:$0xf]
      %v739 = vld [vmem:[%s6 + $0x5c] sm:$0xf]
      %v740 = vld [vmem:[%s6 + $0x60] sm:$0xf]
      %v741 = vld [vmem:[%s6 + $0x64] sm:$0xf]
      %v742 = vld [vmem:[%s6 + $0x68] sm:$0xf]
      %v743 = vld [vmem:[%s6 + $0x6c] sm:$0xf]
      %v744 = vld [vmem:[%s6 + $0x70] sm:$0xf]
      %v745 = vld [vmem:[%s6 + $0x74] sm:$0xf]
      %v746 = vld [vmem:[%s6 + $0x78] sm:$0xf]
      %v747 = vld [vmem:[%s6 + $0x7c] sm:$0xf]
      %v748 = vld [vmem:[%s6 + $0x80] sm:$0xf]
      %v749 = vld [vmem:[%s6 + $0x84] sm:$0xf]
      %v750 = vld [vmem:[%s6 + $0x88] sm:$0xf]
      %v751 = vld [vmem:[%s6 + $0x8c] sm:$0xf]
      %v752 = vld [vmem:[%s6 + $0x90] sm:$0xf]
      %v753 = vld [vmem:[%s6 + $0x94] sm:$0xf]
      %v754 = vld [vmem:[%s6 + $0x98] sm:$0xf]
      %v755 = vld [vmem:[%s6 + $0x9c] sm:$0xf]
      %v756 = vld [vmem:[%s6 + $0xa0] sm:$0xf]
      %v757 = vld [vmem:[%s6 + $0xa4] sm:$0xf]
      %v758 = vld [vmem:[%s6 + $0xa8] sm:$0xf]
      %v759 = vld [vmem:[%s6 + $0xac] sm:$0xf]
      %v760 = vld [vmem:[%s6 + $0xb0] sm:$0xf]
      %v761 = vld [vmem:[%s6 + $0xb4] sm:$0xf]
      %v762 = vld [vmem:[%s6 + $0xb8] sm:$0xf]
      %v763 = vld [vmem:[%s6 + $0xbc] sm:$0xf]
      %v764 = vld [vmem:[%s7] sm:$0x1]
      %v766 = vlaneseq
      %v767 = vshrl.u32 %v766, 7
      %v768 = vsub.s32 0, %v767
      %v769 = vrot.slane %v764, %v768
      %v819 = vunpack.c.l.b16 %v716
      %v820 = vunpack.c.l.b16 %v717
      %v821 = vunpack.c.l.b16 %v718
      %v822 = vunpack.c.l.b16 %v719
      %v823 = vunpack.c.l.b16 %v720
      %v824 = vunpack.c.l.b16 %v721
      %v825 = vunpack.c.l.b16 %v722
      %v826 = vunpack.c.l.b16 %v723
      %v827 = vunpack.c.l.b16 %v724
      %v828 = vunpack.c.l.b16 %v725
      %v829 = vunpack.c.l.b16 %v726
      %v830 = vunpack.c.l.b16 %v727
      %v831 = vunpack.c.l.b16 %v728
      %v832 = vunpack.c.l.b16 %v729
      %v833 = vunpack.c.l.b16 %v730
      %v834 = vunpack.c.l.b16 %v731
      %v835 = vunpack.c.l.b16 %v732
      %v836 = vunpack.c.l.b16 %v733
      %v837 = vunpack.c.l.b16 %v734
      %v838 = vunpack.c.l.b16 %v735
      %v839 = vunpack.c.l.b16 %v736
      %v840 = vunpack.c.l.b16 %v737
      %v841 = vunpack.c.l.b16 %v738
      %v842 = vunpack.c.l.b16 %v739
      %v843 = vunpack.c.l.b16 %v740
      %v844 = vunpack.c.l.b16 %v741
      %v845 = vunpack.c.l.b16 %v742
      %v846 = vunpack.c.l.b16 %v743
      %v847 = vunpack.c.l.b16 %v744
      %v848 = vunpack.c.l.b16 %v745
      %v849 = vunpack.c.l.b16 %v746
      %v850 = vunpack.c.l.b16 %v747
      %v851 = vunpack.c.l.b16 %v748
      %v852 = vunpack.c.l.b16 %v749
      %v853 = vunpack.c.l.b16 %v750
      %v854 = vunpack.c.l.b16 %v751
      %v855 = vunpack.c.l.b16 %v752
      %v856 = vunpack.c.l.b16 %v753
      %v857 = vunpack.c.l.b16 %v754
      %v858 = vunpack.c.l.b16 %v755
      %v859 = vunpack.c.l.b16 %v756
      %v860 = vunpack.c.l.b16 %v757
      %v861 = vunpack.c.l.b16 %v758
      %v862 = vunpack.c.l.b16 %v759
      %v863 = vunpack.c.l.b16 %v760
      %v864 = vunpack.c.l.b16 %v761
      %v865 = vunpack.c.l.b16 %v762
      %v866 = vunpack.c.l.b16 %v763
      %v867 = vpack.c.b16 %v820, %v819
      %v868 = vpack.c.b16 %v822, %v821
      %v869 = vpack.c.b16 %v824, %v823
      %v870 = vpack.c.b16 %v826, %v825
      %v871 = vpack.c.b16 %v828, %v827
      %v872 = vpack.c.b16 %v830, %v829
      %v873 = vpack.c.b16 %v832, %v831
      %v874 = vpack.c.b16 %v834, %v833
      %v875 = vpack.c.b16 %v836, %v835
      %v876 = vpack.c.b16 %v838, %v837
      %v877 = vpack.c.b16 %v840, %v839
      %v878 = vpack.c.b16 %v842, %v841
      %v879 = vpack.c.b16 %v844, %v843
      %v880 = vpack.c.b16 %v846, %v845
      %v881 = vpack.c.b16 %v848, %v847
      %v882 = vpack.c.b16 %v850, %v849
      %v883 = vpack.c.b16 %v852, %v851
      %v884 = vpack.c.b16 %v854, %v853
      %v885 = vpack.c.b16 %v856, %v855
      %v886 = vpack.c.b16 %v858, %v857
      %v887 = vpack.c.b16 %v860, %v859
      %v888 = vpack.c.b16 %v862, %v861
      %v889 = vpack.c.b16 %v864, %v863
      %v890 = vpack.c.b16 %v866, %v865
      %915 = vmatprep.subr.bf16.mxu0 0
      %916 = vmatpush1.bf16.msra.mxu0 %v867
      %917 = vmatprep.subr.bf16.mxu0 0
      %918 = vmatpush1.bf16.msra.mxu0 %v868
      %919 = vmatprep.subr.bf16.mxu0 0
      %920 = vmatpush1.bf16.msra.mxu0 %v869
      %921 = vmatprep.subr.bf16.mxu0 0
      %922 = vmatpush1.bf16.msra.mxu0 %v870
      %923 = vmatprep.subr.bf16.mxu0 0
      %924 = vmatpush1.bf16.msra.mxu0 %v871
      %925 = vmatprep.subr.bf16.mxu0 0
      %926 = vmatpush1.bf16.msra.mxu0 %v872
      %927 = vmatprep.subr.bf16.mxu0 0
      %928 = vmatpush1.bf16.msra.mxu0 %v873
      %929 = vmatprep.subr.bf16.mxu0 0
      %930 = vmatpush1.bf16.msra.mxu0 %v874
      %931 = vmatprep.subr.bf16.mxu0 0
      %932 = vmatpush1.bf16.msra.mxu0 %v875
      %933 = vmatprep.subr.bf16.mxu0 0
      %934 = vmatpush1.bf16.msra.mxu0 %v876
      %935 = vmatprep.subr.bf16.mxu0 0
      %936 = vmatpush1.bf16.msra.mxu0 %v877
      %937 = vmatprep.subr.bf16.mxu0 0
      %938 = vmatpush1.bf16.msra.mxu0 %v878
      %939 = vmatprep.subr.bf16.mxu0 0
      %940 = vmatpush1.bf16.msra.mxu0 %v879
      %941 = vmatprep.subr.bf16.mxu0 0
      %942 = vmatpush1.bf16.msra.mxu0 %v880
      %943 = vmatprep.subr.bf16.mxu0 0
      %944 = vmatpush1.bf16.msra.mxu0 %v881
      %945 = vmatprep.subr.bf16.mxu0 0
      %946 = vmatpush1.bf16.msra.mxu0 %v882
      %947 = vmatprep.mubr.bf16.mxu0 %v714
      %948 = vmatmul.mubr.bf16.gmra.mrb[0].mxu0 %v713
      %v949 = vpop.f32.mrb[0].mxu0
      %v950 = vadd.f32 %v769, %v949
      %v951 = vpop.f32.mrb[0].mxu0
      %v952 = vpop.f32.mrb[0].mxu0
      %v953 = vpop.f32.mrb[0].mxu0
      %954 = vdwg.mxu0
      %955 = vmatprep.subr.bf16.mxu0 0
      %956 = vmatpush1.bf16.msra.mxu0 %v883
      %957 = vmatprep.subr.bf16.mxu0 0
      %958 = vmatpush1.bf16.msra.mxu0 %v884
      %959 = vmatprep.subr.bf16.mxu0 0
      %960 = vmatpush1.bf16.msra.mxu0 %v885
      %961 = vmatprep.subr.bf16.mxu0 0
      %962 = vmatpush1.bf16.msra.mxu0 %v886
      %963 = vmatprep.subr.bf16.mxu0 0
      %964 = vmatpush1.bf16.msra.mxu0 %v887
      %965 = vmatprep.subr.bf16.mxu0 0
      %966 = vmatpush1.bf16.msra.mxu0 %v888
      %967 = vmatprep.subr.bf16.mxu0 0
      %968 = vmatpush1.bf16.msra.mxu0 %v889
      %969 = vmatprep.subr.bf16.mxu0 0
      %970 = vmatpush1.bf16.msra.mxu0 %v890
      %971 = vmatprep.subr.bf16.mxu0 0
      %972 = vmatpush1.bf16.msra.mxu0 0
      %973 = vmatprep.subr.bf16.mxu0 0
      %974 = vmatpush1.bf16.msra.mxu0 0
      %975 = vmatprep.subr.bf16.mxu0 0
      %976 = vmatpush1.bf16.msra.mxu0 0
      %977 = vmatprep.subr.bf16.mxu0 0
      %978 = vmatpush1.bf16.msra.mxu0 0
      %979 = vmatprep.subr.bf16.mxu0 0
      %980 = vmatpush1.bf16.msra.mxu0 0
      %981 = vmatprep.subr.bf16.mxu0 0
      %982 = vmatpush1.bf16.msra.mxu0 0
      %983 = vmatprep.subr.bf16.mxu0 0
      %984 = vmatpush1.bf16.msra.mxu0 0
      %985 = vmatprep.subr.bf16.mxu0 0
      %986 = vmatpush1.bf16.msra.mxu0 0
      %987 = vmatprep.mubr.bf16.mxu0 0
      %988 = vmatmul.mubr.bf16.gmra.mrb[0].mxu0 %v715
      %v989 = vpop.f32.mrb[0].mxu0
      %v990 = vadd.f32 %v950, %v989
      %v991 = vpop.f32.mrb[0].mxu0
      %v992 = vpop.f32.mrb[0].mxu0
      %v993 = vpop.f32.mrb[0].mxu0
      %994 = vdwg.mxu0
      %v995 = vpack.c.bf16 %v687, %v685
      %v996 = vpack.c.bf16 %v688, %v686
      %v997 = vld [vmem:[%s5] sm:$0xf]
      %v998 = vld [vmem:[%s5 + $0x4] sm:$0xf]
      %v999 = vld [vmem:[%s5 + $0x8] sm:$0xf]
      %v1000 = vld [vmem:[%s5 + $0xc] sm:$0xf]
      %v1001 = vld [vmem:[%s5 + $0x10] sm:$0xf]
      %v1002 = vld [vmem:[%s5 + $0x14] sm:$0xf]
      %v1003 = vld [vmem:[%s5 + $0x18] sm:$0xf]
      %v1004 = vld [vmem:[%s5 + $0x1c] sm:$0xf]
      %v1005 = vld [vmem:[%s5 + $0x20] sm:$0xf]
      %v1006 = vld [vmem:[%s5 + $0x24] sm:$0xf]
      %v1007 = vld [vmem:[%s5 + $0x28] sm:$0xf]
      %v1008 = vld [vmem:[%s5 + $0x2c] sm:$0xf]
      %v1009 = vld [vmem:[%s5 + $0x30] sm:$0xf]
      %v1010 = vld [vmem:[%s5 + $0x34] sm:$0xf]
      %v1011 = vld [vmem:[%s5 + $0x38] sm:$0xf]
      %v1012 = vld [vmem:[%s5 + $0x3c] sm:$0xf]
      %v1013 = vld [vmem:[%s5 + $0x40] sm:$0x7]
      %v1031 = vunpack.c.l.b16 %v997
      %v1032 = vunpack.c.l.b16 %v998
      %v1033 = vunpack.c.l.b16 %v999
      %v1034 = vunpack.c.l.b16 %v1000
      %v1035 = vunpack.c.l.b16 %v1001
      %v1036 = vunpack.c.l.b16 %v1002
      %v1037 = vunpack.c.l.b16 %v1003
      %v1038 = vunpack.c.l.b16 %v1004
      %v1039 = vunpack.c.l.b16 %v1005
      %v1040 = vunpack.c.l.b16 %v1006
      %v1041 = vunpack.c.l.b16 %v1007
      %v1042 = vunpack.c.l.b16 %v1008
      %v1043 = vunpack.c.l.b16 %v1009
      %v1044 = vunpack.c.l.b16 %v1010
      %v1045 = vunpack.c.l.b16 %v1011
      %v1046 = vunpack.c.l.b16 %v1012
      %v1047 = vunpack.c.l.b16 %v1013
      %v1048 = vpack.c.b16 %v1032, %v1031
      %v1049 = vpack.c.b16 %v1034, %v1033
      %v1050 = vpack.c.b16 %v1036, %v1035
      %v1051 = vpack.c.b16 %v1038, %v1037
      %v1052 = vpack.c.b16 %v1040, %v1039
      %v1053 = vpack.c.b16 %v1042, %v1041
      %v1054 = vpack.c.b16 %v1044, %v1043
      %v1055 = vpack.c.b16 %v1046, %v1045
      %v1056 = vpack.c.b16 %v1047, %v1047
      %vm1065 = vcmask 39936
      %v1067 = vsel %vm1065, %v996, 0
      %vm1069 = vcmask 1041408
      %vm1070 = vcmask 1042432
      %v1071 = vsel %vm1069, 4294967295, 65535
      %v1072 = vsel %vm1070, %v1071, 0
      %v1074 = vand.u32 %v1056, %v1072
      %1076 = vmatprep.subr.bf16.mxu0 0
      %1077 = vmatpush1.bf16.msra.mxu0 %v1048
      %1078 = vmatprep.subr.bf16.mxu0 0
      %1079 = vmatpush1.bf16.msra.mxu0 %v1049
      %1080 = vmatprep.subr.bf16.mxu0 0
      %1081 = vmatpush1.bf16.msra.mxu0 %v1050
      %1082 = vmatprep.subr.bf16.mxu0 0
      %1083 = vmatpush1.bf16.msra.mxu0 %v1051
      %1084 = vmatprep.subr.bf16.mxu0 0
      %1085 = vmatpush1.bf16.msra.mxu0 %v1052
      %1086 = vmatprep.subr.bf16.mxu0 0
      %1087 = vmatpush1.bf16.msra.mxu0 %v1053
      %1088 = vmatprep.subr.bf16.mxu0 0
      %1089 = vmatpush1.bf16.msra.mxu0 %v1054
      %1090 = vmatprep.subr.bf16.mxu0 0
      %1091 = vmatpush1.bf16.msra.mxu0 %v1055
      %1092 = vmatprep.subr.bf16.mxu0 0
      %1093 = vmatpush1.bf16.msra.mxu0 %v1074
      %1094 = vmatprep.subr.bf16.mxu0 0
      %1095 = vmatpush1.bf16.msra.mxu0 0
      %1096 = vmatprep.subr.bf16.mxu0 0
      %1097 = vmatpush1.bf16.msra.mxu0 0
      %1098 = vmatprep.subr.bf16.mxu0 0
      %1099 = vmatpush1.bf16.msra.mxu0 0
      %1100 = vmatprep.subr.bf16.mxu0 0
      %1101 = vmatpush1.bf16.msra.mxu0 0
      %1102 = vmatprep.subr.bf16.mxu0 0
      %1103 = vmatpush1.bf16.msra.mxu0 0
      %1104 = vmatprep.subr.bf16.mxu0 0
      %1105 = vmatpush1.bf16.msra.mxu0 0
      %1106 = vmatprep.subr.bf16.mxu0 0
      %1107 = vmatpush1.bf16.msra.mxu0 0
      %1108 = vmatprep.mubr.bf16.mxu0 %v1067
      %1109 = vmatmul.mubr.bf16.gmra.mrb[0].mxu0 %v995
      %v1110 = vpop.f32.mrb[0].mxu0
      %v1111 = vadd.f32 0.0, %v1110
      %v1112 = vpop.f32.mrb[0].mxu0
      %v1113 = vpop.f32.mrb[0].mxu0
      %v1114 = vadd.f32 0.0, %v1113
      %v1115 = vpop.f32.mrb[0].mxu0
      %1116 = vdwg.mxu0
      %v1117 = vlaneseq
      %v1118 = vshrl.u32 %v1117, 7
      %v1119 = vsub.s32 0, %v1118
      %v1120 = vrot.slane %v690, %v1119
      %1121 = vset.pattern.permute.xlu0 0
      %1122 = vperm.xlu0 %1121, %v691
      %v1123 = vpop.permute.xlu0 %1122
      %1124 = vset.pattern.permute.xlu0 0
      %1125 = vperm.xlu0 %1124, %v692
      %v1126 = vpop.permute.xlu0 %1125
      %vm1127 = vcmp.eq.s32.totalorder %v1120, %v1123
      %vm1128 = vcmp.eq.s32.totalorder %v1120, %v1126
      %v1129 = vpack.c.bf16 %v1114, %v1111
      %v1130 = vld [vmem:[%s8] sm:$0xff]
      %v1131 = vld [vmem:[%s8 + $0x8] sm:$0xff]
      %v1132 = vld [vmem:[%s8 + $0x10] sm:$0xff]
      %v1133 = vld [vmem:[%s8 + $0x18] sm:$0xff]
      %v1134 = vld [vmem:[%s8 + $0x20] sm:$0xff]
      %v1135 = vld [vmem:[%s8 + $0x28] sm:$0xff]
      %v1136 = vld [vmem:[%s8 + $0x30] sm:$0xff]
      %v1137 = vld [vmem:[%s8 + $0x38] sm:$0xff]
      %v1138 = vld [vmem:[%s9] sm:$0x3]
      %v1140 = vlaneseq
      %v1141 = vshrl.u32 %v1140, 7
      %v1142 = vsub.s32 0, %v1141
      %v1143 = vrot.slane %v1138, %v1142
      %v1144 = vlaneseq
      %v1145 = vshrl.u32 %v1144, 7
      %v1146 = vsub.s32 1, %v1145
      %v1147 = vrot.slane %v1138, %v1146
      %v1158 = vunpack.c.l.b16 %v1130
      %v1159 = vunpack.c.h.b16 %v1130
      %v1160 = vunpack.c.l.b16 %v1131
      %v1161 = vunpack.c.h.b16 %v1131
      %v1162 = vunpack.c.l.b16 %v1132
      %v1163 = vunpack.c.h.b16 %v1132
      %v1164 = vunpack.c.l.b16 %v1133
      %v1165 = vunpack.c.h.b16 %v1133
      %v1166 = vunpack.c.l.b16 %v1134
      %v1167 = vunpack.c.h.b16 %v1134
      %v1168 = vunpack.c.l.b16 %v1135
      %v1169 = vunpack.c.h.b16 %v1135
      %v1170 = vunpack.c.l.b16 %v1136
      %v1171 = vunpack.c.h.b16 %v1136
      %v1172 = vunpack.c.l.b16 %v1137
      %v1173 = vunpack.c.h.b16 %v1137
      %v1174 = vpack.c.b16 %v1160, %v1158
      %v1175 = vpack.c.b16 %v1161, %v1159
      %v1176 = vpack.c.b16 %v1164, %v1162
      %v1177 = vpack.c.b16 %v1165, %v1163
      %v1178 = vpack.c.b16 %v1168, %v1166
      %v1179 = vpack.c.b16 %v1169, %v1167
      %v1180 = vpack.c.b16 %v1172, %v1170
      %v1181 = vpack.c.b16 %v1173, %v1171
      %vm1190 = vcmask 523264
      %v1192 = vsel %vm1190, %v1129, 0
      %1194 = vmatprep.subr.bf16.mxu0 %v1175
      %1195 = vmatpush1.bf16.msra.mxu0 %v1174
      %1196 = vmatprep.subr.bf16.mxu0 %v1177
      %1197 = vmatpush1.bf16.msra.mxu0 %v1176
      %1198 = vmatprep.subr.bf16.mxu0 %v1179
      %1199 = vmatpush1.bf16.msra.mxu0 %v1178
      %1200 = vmatprep.subr.bf16.mxu0 %v1181
      %1201 = vmatpush1.bf16.msra.mxu0 %v1180
      %1202 = vmatprep.subr.bf16.mxu0 0
      %1203 = vmatpush1.bf16.msra.mxu0 0
      %1204 = vmatprep.subr.bf16.mxu0 0
      %1205 = vmatpush1.bf16.msra.mxu0 0
      %1206 = vmatprep.subr.bf16.mxu0 0
      %1207 = vmatpush1.bf16.msra.mxu0 0
      %1208 = vmatprep.subr.bf16.mxu0 0
      %1209 = vmatpush1.bf16.msra.mxu0 0
      %1210 = vmatprep.subr.bf16.mxu0 0
      %1211 = vmatpush1.bf16.msra.mxu0 0
      %1212 = vmatprep.subr.bf16.mxu0 0
      %1213 = vmatpush1.bf16.msra.mxu0 0
      %1214 = vmatprep.subr.bf16.mxu0 0
      %1215 = vmatpush1.bf16.msra.mxu0 0
      %1216 = vmatprep.subr.bf16.mxu0 0
      %1217 = vmatpush1.bf16.msra.mxu0 0
      %1218 = vmatprep.subr.bf16.mxu0 0
      %1219 = vmatpush1.bf16.msra.mxu0 0
      %1220 = vmatprep.subr.bf16.mxu0 0
      %1221 = vmatpush1.bf16.msra.mxu0 0
      %1222 = vmatprep.subr.bf16.mxu0 0
      %1223 = vmatpush1.bf16.msra.mxu0 0
      %1224 = vmatprep.subr.bf16.mxu0 0
      %1225 = vmatpush1.bf16.msra.mxu0 0
      %1226 = vmatprep.mubr.bf16.mxu0 0
      %1227 = vmatmul.mubr.bf16.gmra.mrb[0].mxu0 %v1192
      %v1228 = vpop.f32.mrb[0].mxu0
      %v1229 = vadd.f32 %v1143, %v1228
      %v1230 = vpop.f32.mrb[0].mxu0
      %v1231 = vadd.f32 %v1147, %v1230
      %v1232 = vpop.f32.mrb[0].mxu0
      %v1233 = vadd.f32 %v1143, %v1232
      %v1234 = vpop.f32.mrb[0].mxu0
      %v1235 = vadd.f32 %v1147, %v1234
      %1236 = vdwg.mxu0
      %1239 = vrot.lane.b32.xlu0 %v1229, 120
      %v1240 = vpop.permute.xlu0 %1239
      %1241 = vrot.lane.b32.xlu0 %v1233, 120
      %v1242 = vpop.permute.xlu0 %1241
      %1245 = vrot.lane.b32.xlu0 %v1229, 112
      %v1246 = vpop.permute.xlu0 %1245
      %1247 = vrot.lane.b32.xlu0 %v1233, 112
      %v1248 = vpop.permute.xlu0 %1247
      %1251 = vrot.lane.b32.xlu0 %v1229, 104
      %v1252 = vpop.permute.xlu0 %1251
      %1253 = vrot.lane.b32.xlu0 %v1233, 104
      %v1254 = vpop.permute.xlu0 %1253
      %1257 = vrot.lane.b32.xlu0 %v1229, 96
      %v1258 = vpop.permute.xlu0 %1257
      %1259 = vrot.lane.b32.xlu0 %v1233, 96
      %v1260 = vpop.permute.xlu0 %1259
      %1263 = vrot.lane.b32.xlu0 %v1229, 88
      %v1264 = vpop.permute.xlu0 %1263
      %1265 = vrot.lane.b32.xlu0 %v1233, 88
      %v1266 = vpop.permute.xlu0 %1265
      %1269 = vrot.lane.b32.xlu0 %v1229, 80
      %v1270 = vpop.permute.xlu0 %1269
      %1271 = vrot.lane.b32.xlu0 %v1233, 80
      %v1272 = vpop.permute.xlu0 %1271
      %1275 = vrot.lane.b32.xlu0 %v1229, 72
      %v1276 = vpop.permute.xlu0 %1275
      %1277 = vrot.lane.b32.xlu0 %v1233, 72
      %v1278 = vpop.permute.xlu0 %1277
      %v1281 = vpack.c.bf16 %v1233, %v1229
      %v1282 = vpack.c.bf16 %v1242, %v1240
      %v1283 = vpack.c.bf16 %v1248, %v1246
      %v1284 = vpack.c.bf16 %v1254, %v1252
      %v1285 = vpack.c.bf16 %v1260, %v1258
      %v1286 = vpack.c.bf16 %v1266, %v1264
      %v1287 = vpack.c.bf16 %v1272, %v1270
      %v1288 = vpack.c.bf16 %v1278, %v1276
      %1291 = vrot.lane.b32.xlu0 %v1231, 120
      %v1292 = vpop.permute.xlu0 %1291
      %1293 = vrot.lane.b32.xlu0 %v1235, 120
      %v1294 = vpop.permute.xlu0 %1293
      %1297 = vrot.lane.b32.xlu0 %v1231, 112
      %v1298 = vpop.permute.xlu0 %1297
      %1299 = vrot.lane.b32.xlu0 %v1235, 112
      %v1300 = vpop.permute.xlu0 %1299
      %1303 = vrot.lane.b32.xlu0 %v1231, 104
      %v1304 = vpop.permute.xlu0 %1303
      %1305 = vrot.lane.b32.xlu0 %v1235, 104
      %v1306 = vpop.permute.xlu0 %1305
      %1309 = vrot.lane.b32.xlu0 %v1231, 96
      %v1310 = vpop.permute.xlu0 %1309
      %1311 = vrot.lane.b32.xlu0 %v1235, 96
      %v1312 = vpop.permute.xlu0 %1311
      %1315 = vrot.lane.b32.xlu0 %v1231, 88
      %v1316 = vpop.permute.xlu0 %1315
      %1317 = vrot.lane.b32.xlu0 %v1235, 88
      %v1318 = vpop.permute.xlu0 %1317
      %1321 = vrot.lane.b32.xlu0 %v1231, 80
      %v1322 = vpop.permute.xlu0 %1321
      %1323 = vrot.lane.b32.xlu0 %v1235, 80
      %v1324 = vpop.permute.xlu0 %1323
      %1327 = vrot.lane.b32.xlu0 %v1231, 72
      %v1328 = vpop.permute.xlu0 %1327
      %1329 = vrot.lane.b32.xlu0 %v1235, 72
      %v1330 = vpop.permute.xlu0 %1329
      %v1333 = vpack.c.bf16 %v1235, %v1231
      %v1334 = vpack.c.bf16 %v1294, %v1292
      %v1335 = vpack.c.bf16 %v1300, %v1298
      %v1336 = vpack.c.bf16 %v1306, %v1304
      %v1337 = vpack.c.bf16 %v1312, %v1310
      %v1338 = vpack.c.bf16 %v1318, %v1316
      %v1339 = vpack.c.bf16 %v1324, %v1322
      %v1340 = vpack.c.bf16 %v1330, %v1328
      %1342 = vrot.lane.b32.xlu0 %v1281, 64
      %v1343 = vpop.permute.xlu0 %1342
      %vm1344 = vcmask 64512
      %v1346 = vsel %vm1344, %v1281, 0
      %v1349 = vsel %vm1344, %v1343, 0
      %1351 = vmatprep.subr.bf16.mxu0 0
      %1352 = vmatpush1.bf16.xpose.msra.mxu0 %v1349
      %1353 = vmatprep.subr.bf16.mxu0 0
      %1354 = vmatpush1.bf16.xpose.msra.mxu0 0
      %1355 = vmatprep.subr.bf16.mxu0 0
      %1356 = vmatpush1.bf16.xpose.msra.mxu0 0
      %1357 = vmatprep.subr.bf16.mxu0 0
      %1358 = vmatpush1.bf16.xpose.msra.mxu0 0
      %1359 = vmatprep.subr.bf16.mxu0 0
      %1360 = vmatpush1.bf16.xpose.msra.mxu0 0
      %1361 = vmatprep.subr.bf16.mxu0 0
      %1362 = vmatpush1.bf16.xpose.msra.mxu0 0
      %1363 = vmatprep.subr.bf16.mxu0 0
      %1364 = vmatpush1.bf16.xpose.msra.mxu0 0
      %1365 = vmatprep.subr.bf16.mxu0 0
      %1366 = vmatpush1.bf16.xpose.msra.mxu0 0
      %1367 = vmatprep.subr.bf16.mxu0 0
      %1368 = vmatpush1.bf16.xpose.msra.mxu0 0
      %1369 = vmatprep.subr.bf16.mxu0 0
      %1370 = vmatpush1.bf16.xpose.msra.mxu0 0
      %1371 = vmatprep.subr.bf16.mxu0 0
      %1372 = vmatpush1.bf16.xpose.msra.mxu0 0
      %1373 = vmatprep.subr.bf16.mxu0 0
      %1374 = vmatpush1.bf16.xpose.msra.mxu0 0
      %1375 = vmatprep.subr.bf16.mxu0 0
      %1376 = vmatpush1.bf16.xpose.msra.mxu0 0
      %1377 = vmatprep.subr.bf16.mxu0 0
      %1378 = vmatpush1.bf16.xpose.msra.mxu0 0
      %1379 = vmatprep.subr.bf16.mxu0 0
      %1380 = vmatpush1.bf16.xpose.msra.mxu0 0
      %1381 = vmatprep.subr.bf16.mxu0 0
      %1382 = vmatpush1.bf16.xpose.msra.mxu0 0
      %1383 = vmatprep.mubr.bf16.mxu0 0
      %1384 = vmatmul.mubr.bf16.gmra.mrb[0].mxu0 %v1346
      %v1385 = vpop.f32.mrb[0].mxu0
      %v1386 = vadd.f32 0.0, %v1385
      %v1387 = vpop.f32.mrb[0].mxu0
      %v1388 = vpop.f32.mrb[0].mxu0
      %v1389 = vadd.f32 0.0, %v1388
      %v1390 = vpop.f32.mrb[0].mxu0
      %1391 = vdwg.mxu0
      %1393 = vrot.lane.b32.xlu0 %v1282, 64
      %v1394 = vpop.permute.xlu0 %1393
      %v1396 = vsel %vm1344, %v1282, 0
      %v1399 = vsel %vm1344, %v1394, 0
      %1401 = vmatprep.subr.bf16.mxu0 0
      %1402 = vmatpush1.bf16.xpose.msra.mxu0 %v1399
      %1403 = vmatprep.subr.bf16.mxu0 0
      %1404 = vmatpush1.bf16.xpose.msra.mxu0 0
      %1405 = vmatprep.subr.bf16.mxu0 0
      %1406 = vmatpush1.bf16.xpose.msra.mxu0 0
      %1407 = vmatprep.subr.bf16.mxu0 0
      %1408 = vmatpush1.bf16.xpose.msra.mxu0 0
      %1409 = vmatprep.subr.bf16.mxu0 0
      %1410 = vmatpush1.bf16.xpose.msra.mxu0 0
      %1411 = vmatprep.subr.bf16.mxu0 0
      %1412 = vmatpush1.bf16.xpose.msra.mxu0 0
      %1413 = vmatprep.subr.bf16.mxu0 0
      %1414 = vmatpush1.bf16.xpose.msra.mxu0 0
      %1415 = vmatprep.subr.bf16.mxu0 0
      %1416 = vmatpush1.bf16.xpose.msra.mxu0 0
      %1417 = vmatprep.subr.bf16.mxu0 0
      %1418 = vmatpush1.bf16.xpose.msra.mxu0 0
      %1419 = vmatprep.subr.bf16.mxu0 0
      %1420 = vmatpush1.bf16.xpose.msra.mxu0 0
      %1421 = vmatprep.subr.bf16.mxu0 0
      %1422 = vmatpush1.bf16.xpose.msra.mxu0 0
      %1423 = vmatprep.subr.bf16.mxu0 0
      %1424 = vmatpush1.bf16.xpose.msra.mxu0 0
      %1425 = vmatprep.subr.bf16.mxu0 0
      %1426 = vmatpush1.bf16.xpose.msra.mxu0 0
      %1427 = vmatprep.subr.bf16.mxu0 0
      %1428 = vmatpush1.bf16.xpose.msra.mxu0 0
      %1429 = vmatprep.subr.bf16.mxu0 0
      %1430 = vmatpush1.bf16.xpose.msra.mxu0 0
      %1431 = vmatprep.subr.bf16.mxu0 0
      %1432 = vmatpush1.bf16.xpose.msra.mxu0 0
      %1433 = vmatprep.mubr.bf16.mxu0 0
      %1434 = vmatmul.mubr.bf16.gmra.mrb[0].mxu0 %v1396
      %v1435 = vpop.f32.mrb[0].mxu0
      %v1436 = vadd.f32 0.0, %v1435
      %v1437 = vpop.f32.mrb[0].mxu0
      %v1438 = vpop.f32.mrb[0].mxu0
      %v1439 = vadd.f32 0.0, %v1438
      %v1440 = vpop.f32.mrb[0].mxu0
      %1441 = vdwg.mxu0
      %1443 = vrot.lane.b32.xlu0 %v1283, 64
      %v1444 = vpop.permute.xlu0 %1443
      %v1446 = vsel %vm1344, %v1283, 0
      %v1449 = vsel %vm1344, %v1444, 0
      %1451 = vmatprep.subr.bf16.mxu0 0
      %1452 = vmatpush1.bf16.xpose.msra.mxu0 %v1449
      %1453 = vmatprep.subr.bf16.mxu0 0
      %1454 = vmatpush1.bf16.xpose.msra.mxu0 0
      %1455 = vmatprep.subr.bf16.mxu0 0
      %1456 = vmatpush1.bf16.xpose.msra.mxu0 0
      %1457 = vmatprep.subr.bf16.mxu0 0
      %1458 = vmatpush1.bf16.xpose.msra.mxu0 0
      %1459 = vmatprep.subr.bf16.mxu0 0
      %1460 = vmatpush1.bf16.xpose.msra.mxu0 0
      %1461 = vmatprep.subr.bf16.mxu0 0
      %1462 = vmatpush1.bf16.xpose.msra.mxu0 0
      %1463 = vmatprep.subr.bf16.mxu0 0
      %1464 = vmatpush1.bf16.xpose.msra.mxu0 0
      %1465 = vmatprep.subr.bf16.mxu0 0
      %1466 = vmatpush1.bf16.xpose.msra.mxu0 0
      %1467 = vmatprep.subr.bf16.mxu0 0
      %1468 = vmatpush1.bf16.xpose.msra.mxu0 0
      %1469 = vmatprep.subr.bf16.mxu0 0
      %1470 = vmatpush1.bf16.xpose.msra.mxu0 0
      %1471 = vmatprep.subr.bf16.mxu0 0
      %1472 = vmatpush1.bf16.xpose.msra.mxu0 0
      %1473 = vmatprep.subr.bf16.mxu0 0
      %1474 = vmatpush1.bf16.xpose.msra.mxu0 0
      %1475 = vmatprep.subr.bf16.mxu0 0
      %1476 = vmatpush1.bf16.xpose.msra.mxu0 0
      %1477 = vmatprep.subr.bf16.mxu0 0
      %1478 = vmatpush1.bf16.xpose.msra.mxu0 0
      %1479 = vmatprep.subr.bf16.mxu0 0
      %1480 = vmatpush1.bf16.xpose.msra.mxu0 0
      %1481 = vmatprep.subr.bf16.mxu0 0
      %1482 = vmatpush1.bf16.xpose.msra.mxu0 0
      %1483 = vmatprep.mubr.bf16.mxu0 0
      %1484 = vmatmul.mubr.bf16.gmra.mrb[0].mxu0 %v1446
      %v1485 = vpop.f32.mrb[0].mxu0
      %v1486 = vadd.f32 0.0, %v1485
      %v1487 = vpop.f32.mrb[0].mxu0
      %v1488 = vpop.f32.mrb[0].mxu0
      %v1489 = vadd.f32 0.0, %v1488
      %v1490 = vpop.f32.mrb[0].mxu0
      %1491 = vdwg.mxu0
      %1493 = vrot.lane.b32.xlu0 %v1284, 64
      %v1494 = vpop.permute.xlu0 %1493
      %v1496 = vsel %vm1344, %v1284, 0
      %v1499 = vsel %vm1344, %v1494, 0
      %1501 = vmatprep.subr.bf16.mxu0 0
      %1502 = vmatpush1.bf16.xpose.msra.mxu0 %v1499
      %1503 = vmatprep.subr.bf16.mxu0 0
      %1504 = vmatpush1.bf16.xpose.msra.mxu0 0
      %1505 = vmatprep.subr.bf16.mxu0 0
      %1506 = vmatpush1.bf16.xpose.msra.mxu0 0
      %1507 = vmatprep.subr.bf16.mxu0 0
      %1508 = vmatpush1.bf16.xpose.msra.mxu0 0
      %1509 = vmatprep.subr.bf16.mxu0 0
      %1510 = vmatpush1.bf16.xpose.msra.mxu0 0
      %1511 = vmatprep.subr.bf16.mxu0 0
      %1512 = vmatpush1.bf16.xpose.msra.mxu0 0
      %1513 = vmatprep.subr.bf16.mxu0 0
      %1514 = vmatpush1.bf16.xpose.msra.mxu0 0
      %1515 = vmatprep.subr.bf16.mxu0 0
      %1516 = vmatpush1.bf16.xpose.msra.mxu0 0
      %1517 = vmatprep.subr.bf16.mxu0 0
      %1518 = vmatpush1.bf16.xpose.msra.mxu0 0
      %1519 = vmatprep.subr.bf16.mxu0 0
      %1520 = vmatpush1.bf16.xpose.msra.mxu0 0
      %1521 = vmatprep.subr.bf16.mxu0 0
      %1522 = vmatpush1.bf16.xpose.msra.mxu0 0
      %1523 = vmatprep.subr.bf16.mxu0 0
      %1524 = vmatpush1.bf16.xpose.msra.mxu0 0
      %1525 = vmatprep.subr.bf16.mxu0 0
      %1526 = vmatpush1.bf16.xpose.msra.mxu0 0
      %1527 = vmatprep.subr.bf16.mxu0 0
      %1528 = vmatpush1.bf16.xpose.msra.mxu0 0
      %1529 = vmatprep.subr.bf16.mxu0 0
      %1530 = vmatpush1.bf16.xpose.msra.mxu0 0
      %1531 = vmatprep.subr.bf16.mxu0 0
      %1532 = vmatpush1.bf16.xpose.msra.mxu0 0
      %1533 = vmatprep.mubr.bf16.mxu0 0
      %1534 = vmatmul.mubr.bf16.gmra.mrb[0].mxu0 %v1496
      %v1535 = vpop.f32.mrb[0].mxu0
      %v1536 = vadd.f32 0.0, %v1535
      %v1537 = vpop.f32.mrb[0].mxu0
      %v1538 = vpop.f32.mrb[0].mxu0
      %v1539 = vadd.f32 0.0, %v1538
      %v1540 = vpop.f32.mrb[0].mxu0
      %1541 = vdwg.mxu0
      %1543 = vrot.lane.b32.xlu0 %v1285, 64
      %v1544 = vpop.permute.xlu0 %1543
      %v1546 = vsel %vm1344, %v1285, 0
      %v1549 = vsel %vm1344, %v1544, 0
      %1551 = vmatprep.subr.bf16.mxu0 0
      %1552 = vmatpush1.bf16.xpose.msra.mxu0 %v1549
      %1553 = vmatprep.subr.bf16.mxu0 0
      %1554 = vmatpush1.bf16.xpose.msra.mxu0 0
      %1555 = vmatprep.subr.bf16.mxu0 0
      %1556 = vmatpush1.bf16.xpose.msra.mxu0 0
      %1557 = vmatprep.subr.bf16.mxu0 0
      %1558 = vmatpush1.bf16.xpose.msra.mxu0 0
      %1559 = vmatprep.subr.bf16.mxu0 0
      %1560 = vmatpush1.bf16.xpose.msra.mxu0 0
      %1561 = vmatprep.subr.bf16.mxu0 0
      %1562 = vmatpush1.bf16.xpose.msra.mxu0 0
      %1563 = vmatprep.subr.bf16.mxu0 0
      %1564 = vmatpush1.bf16.xpose.msra.mxu0 0
      %1565 = vmatprep.subr.bf16.mxu0 0
      %1566 = vmatpush1.bf16.xpose.msra.mxu0 0
      %1567 = vmatprep.subr.bf16.mxu0 0
      %1568 = vmatpush1.bf16.xpose.msra.mxu0 0
      %1569 = vmatprep.subr.bf16.mxu0 0
      %1570 = vmatpush1.bf16.xpose.msra.mxu0 0
      %1571 = vmatprep.subr.bf16.mxu0 0
      %1572 = vmatpush1.bf16.xpose.msra.mxu0 0
      %1573 = vmatprep.subr.bf16.mxu0 0
      %1574 = vmatpush1.bf16.xpose.msra.mxu0 0
      %1575 = vmatprep.subr.bf16.mxu0 0
      %1576 = vmatpush1.bf16.xpose.msra.mxu0 0
      %1577 = vmatprep.subr.bf16.mxu0 0
      %1578 = vmatpush1.bf16.xpose.msra.mxu0 0
      %1579 = vmatprep.subr.bf16.mxu0 0
      %1580 = vmatpush1.bf16.xpose.msra.mxu0 0
      %1581 = vmatprep.subr.bf16.mxu0 0
      %1582 = vmatpush1.bf16.xpose.msra.mxu0 0
      %1583 = vmatprep.mubr.bf16.mxu0 0
      %1584 = vmatmul.mubr.bf16.gmra.mrb[0].mxu0 %v1546
      %v1585 = vpop.f32.mrb[0].mxu0
      %v1586 = vadd.f32 0.0, %v1585
      %v1587 = vpop.f32.mrb[0].mxu0
      %v1588 = vpop.f32.mrb[0].mxu0
      %v1589 = vadd.f32 0.0, %v1588
      %v1590 = vpop.f32.mrb[0].mxu0
      %1591 = vdwg.mxu0
      %1593 = vrot.lane.b32.xlu0 %v1286, 64
      %v1594 = vpop.permute.xlu0 %1593
      %v1596 = vsel %vm1344, %v1286, 0
      %v1599 = vsel %vm1344, %v1594, 0
      %1601 = vmatprep.subr.bf16.mxu0 0
      %1602 = vmatpush1.bf16.xpose.msra.mxu0 %v1599
      %1603 = vmatprep.subr.bf16.mxu0 0
      %1604 = vmatpush1.bf16.xpose.msra.mxu0 0
      %1605 = vmatprep.subr.bf16.mxu0 0
      %1606 = vmatpush1.bf16.xpose.msra.mxu0 0
      %1607 = vmatprep.subr.bf16.mxu0 0
      %1608 = vmatpush1.bf16.xpose.msra.mxu0 0
      %1609 = vmatprep.subr.bf16.mxu0 0
      %1610 = vmatpush1.bf16.xpose.msra.mxu0 0
      %1611 = vmatprep.subr.bf16.mxu0 0
      %1612 = vmatpush1.bf16.xpose.msra.mxu0 0
      %1613 = vmatprep.subr.bf16.mxu0 0
      %1614 = vmatpush1.bf16.xpose.msra.mxu0 0
      %1615 = vmatprep.subr.bf16.mxu0 0
      %1616 = vmatpush1.bf16.xpose.msra.mxu0 0
      %1617 = vmatprep.subr.bf16.mxu0 0
      %1618 = vmatpush1.bf16.xpose.msra.mxu0 0
      %1619 = vmatprep.subr.bf16.mxu0 0
      %1620 = vmatpush1.bf16.xpose.msra.mxu0 0
      %1621 = vmatprep.subr.bf16.mxu0 0
      %1622 = vmatpush1.bf16.xpose.msra.mxu0 0
      %1623 = vmatprep.subr.bf16.mxu0 0
      %1624 = vmatpush1.bf16.xpose.msra.mxu0 0
      %1625 = vmatprep.subr.bf16.mxu0 0
      %1626 = vmatpush1.bf16.xpose.msra.mxu0 0
      %1627 = vmatprep.subr.bf16.mxu0 0
      %1628 = vmatpush1.bf16.xpose.msra.mxu0 0
      %1629 = vmatprep.subr.bf16.mxu0 0
      %1630 = vmatpush1.bf16.xpose.msra.mxu0 0
      %1631 = vmatprep.subr.bf16.mxu0 0
      %1632 = vmatpush1.bf16.xpose.msra.mxu0 0
      %1633 = vmatprep.mubr.bf16.mxu0 0
      %1634 = vmatmul.mubr.bf16.gmra.mrb[0].mxu0 %v1596
      %v1635 = vpop.f32.mrb[0].mxu0
      %v1636 = vadd.f32 0.0, %v1635
      %v1637 = vpop.f32.mrb[0].mxu0
      %v1638 = vpop.f32.mrb[0].mxu0
      %v1639 = vadd.f32 0.0, %v1638
      %v1640 = vpop.f32.mrb[0].mxu0
      %1641 = vdwg.mxu0
      %1643 = vrot.lane.b32.xlu0 %v1287, 64
      %v1644 = vpop.permute.xlu0 %1643
      %v1646 = vsel %vm1344, %v1287, 0
      %v1649 = vsel %vm1344, %v1644, 0
      %1651 = vmatprep.subr.bf16.mxu0 0
      %1652 = vmatpush1.bf16.xpose.msra.mxu0 %v1649
      %1653 = vmatprep.subr.bf16.mxu0 0
      %1654 = vmatpush1.bf16.xpose.msra.mxu0 0
      %1655 = vmatprep.subr.bf16.mxu0 0
      %1656 = vmatpush1.bf16.xpose.msra.mxu0 0
      %1657 = vmatprep.subr.bf16.mxu0 0
      %1658 = vmatpush1.bf16.xpose.msra.mxu0 0
      %1659 = vmatprep.subr.bf16.mxu0 0
      %1660 = vmatpush1.bf16.xpose.msra.mxu0 0
      %1661 = vmatprep.subr.bf16.mxu0 0
      %1662 = vmatpush1.bf16.xpose.msra.mxu0 0
      %1663 = vmatprep.subr.bf16.mxu0 0
      %1664 = vmatpush1.bf16.xpose.msra.mxu0 0
      %1665 = vmatprep.subr.bf16.mxu0 0
      %1666 = vmatpush1.bf16.xpose.msra.mxu0 0
      %1667 = vmatprep.subr.bf16.mxu0 0
      %1668 = vmatpush1.bf16.xpose.msra.mxu0 0
      %1669 = vmatprep.subr.bf16.mxu0 0
      %1670 = vmatpush1.bf16.xpose.msra.mxu0 0
      %1671 = vmatprep.subr.bf16.mxu0 0
      %1672 = vmatpush1.bf16.xpose.msra.mxu0 0
      %1673 = vmatprep.subr.bf16.mxu0 0
      %1674 = vmatpush1.bf16.xpose.msra.mxu0 0
      %1675 = vmatprep.subr.bf16.mxu0 0
      %1676 = vmatpush1.bf16.xpose.msra.mxu0 0
      %1677 = vmatprep.subr.bf16.mxu0 0
      %1678 = vmatpush1.bf16.xpose.msra.mxu0 0
      %1679 = vmatprep.subr.bf16.mxu0 0
      %1680 = vmatpush1.bf16.xpose.msra.mxu0 0
      %1681 = vmatprep.subr.bf16.mxu0 0
      %1682 = vmatpush1.bf16.xpose.msra.mxu0 0
      %1683 = vmatprep.mubr.bf16.mxu0 0
      %1684 = vmatmul.mubr.bf16.gmra.mrb[0].mxu0 %v1646
      %v1685 = vpop.f32.mrb[0].mxu0
      %v1686 = vadd.f32 0.0, %v1685
      %v1687 = vpop.f32.mrb[0].mxu0
      %v1688 = vpop.f32.mrb[0].mxu0
      %v1689 = vadd.f32 0.0, %v1688
      %v1690 = vpop.f32.mrb[0].mxu0
      %1691 = vdwg.mxu0
      %1693 = vrot.lane.b32.xlu0 %v1288, 64
      %v1694 = vpop.permute.xlu0 %1693
      %v1696 = vsel %vm1344, %v1288, 0
      %v1699 = vsel %vm1344, %v1694, 0
      %1701 = vmatprep.subr.bf16.mxu0 0
      %1702 = vmatpush1.bf16.xpose.msra.mxu0 %v1699
      %1703 = vmatprep.subr.bf16.mxu0 0
      %1704 = vmatpush1.bf16.xpose.msra.mxu0 0
      %1705 = vmatprep.subr.bf16.mxu0 0
      %1706 = vmatpush1.bf16.xpose.msra.mxu0 0
      %1707 = vmatprep.subr.bf16.mxu0 0
      %1708 = vmatpush1.bf16.xpose.msra.mxu0 0
      %1709 = vmatprep.subr.bf16.mxu0 0
      %1710 = vmatpush1.bf16.xpose.msra.mxu0 0
      %1711 = vmatprep.subr.bf16.mxu0 0
      %1712 = vmatpush1.bf16.xpose.msra.mxu0 0
      %1713 = vmatprep.subr.bf16.mxu0 0
      %1714 = vmatpush1.bf16.xpose.msra.mxu0 0
      %1715 = vmatprep.subr.bf16.mxu0 0
      %1716 = vmatpush1.bf16.xpose.msra.mxu0 0
      %1717 = vmatprep.subr.bf16.mxu0 0
      %1718 = vmatpush1.bf16.xpose.msra.mxu0 0
      %1719 = vmatprep.subr.bf16.mxu0 0
      %1720 = vmatpush1.bf16.xpose.msra.mxu0 0
      %1721 = vmatprep.subr.bf16.mxu0 0
      %1722 = vmatpush1.bf16.xpose.msra.mxu0 0
      %1723 = vmatprep.subr.bf16.mxu0 0
      %1724 = vmatpush1.bf16.xpose.msra.mxu0 0
      %1725 = vmatprep.subr.bf16.mxu0 0
      %1726 = vmatpush1.bf16.xpose.msra.mxu0 0
      %1727 = vmatprep.subr.bf16.mxu0 0
      %1728 = vmatpush1.bf16.xpose.msra.mxu0 0
      %1729 = vmatprep.subr.bf16.mxu0 0
      %1730 = vmatpush1.bf16.xpose.msra.mxu0 0
      %1731 = vmatprep.subr.bf16.mxu0 0
      %1732 = vmatpush1.bf16.xpose.msra.mxu0 0
      %1733 = vmatprep.mubr.bf16.mxu0 0
      %1734 = vmatmul.mubr.bf16.gmra.mrb[0].mxu0 %v1696
      %v1735 = vpop.f32.mrb[0].mxu0
      %v1736 = vadd.f32 0.0, %v1735
      %v1737 = vpop.f32.mrb[0].mxu0
      %v1738 = vpop.f32.mrb[0].mxu0
      %v1739 = vadd.f32 0.0, %v1738
      %v1740 = vpop.f32.mrb[0].mxu0
      %1741 = vdwg.mxu0
      %v1742 = vsel %vm1127, 1, 0
      %v1743 = vsel %vm1128, 1, 0
      %vm1744 = vcmp.eq.s32.totalorder %v1742, 1
      %vm1745 = vcmp.eq.s32.totalorder %v1743, 1
      %v1746 = vsel %vm1744, %v1386, -1e+09
      %v1747 = vsel %vm1745, %v1389, -1e+09
      %v1748 = vsel %vm1744, %v1436, -1e+09
      %v1749 = vsel %vm1745, %v1439, -1e+09
      %v1750 = vsel %vm1744, %v1486, -1e+09
      %v1751 = vsel %vm1745, %v1489, -1e+09
      %v1752 = vsel %vm1744, %v1536, -1e+09
      %v1753 = vsel %vm1745, %v1539, -1e+09
      %v1754 = vsel %vm1744, %v1586, -1e+09
      %v1755 = vsel %vm1745, %v1589, -1e+09
      %v1756 = vsel %vm1744, %v1636, -1e+09
      %v1757 = vsel %vm1745, %v1639, -1e+09
      %v1758 = vsel %vm1744, %v1686, -1e+09
      %v1759 = vsel %vm1745, %v1689, -1e+09
      %v1760 = vsel %vm1744, %v1736, -1e+09
      %v1761 = vsel %vm1745, %v1739, -1e+09
      %vm1762 = vcmask 97280
      %v1763 = vsel %vm1762, %v1746, -inf
      %1764 = vmax.xlane.f32.xlu0 %v1763
      %v1765 = vpop.xlane.xlu0 %1764
      %vm1766 = vcmask 93184
      %v1767 = vsel %vm1766, %v1747, -inf
      %1768 = vmax.xlane.f32.xlu0 %v1767
      %v1769 = vpop.xlane.xlu0 %1768
      %v1770 = vsel %vm1762, %v1748, -inf
      %1771 = vmax.xlane.f32.xlu0 %v1770
      %v1772 = vpop.xlane.xlu0 %1771
      %v1773 = vsel %vm1766, %v1749, -inf
      %1774 = vmax.xlane.f32.xlu0 %v1773
      %v1775 = vpop.xlane.xlu0 %1774
      %v1776 = vsel %vm1762, %v1750, -inf
      %1777 = vmax.xlane.f32.xlu0 %v1776
      %v1778 = vpop.xlane.xlu0 %1777
      %v1779 = vsel %vm1766, %v1751, -inf
      %1780 = vmax.xlane.f32.xlu0 %v1779
      %v1781 = vpop.xlane.xlu0 %1780
      %v1782 = vsel %vm1762, %v1752, -inf
      %1783 = vmax.xlane.f32.xlu0 %v1782
      %v1784 = vpop.xlane.xlu0 %1783
      %v1785 = vsel %vm1766, %v1753, -inf
      %1786 = vmax.xlane.f32.xlu0 %v1785
      %v1787 = vpop.xlane.xlu0 %1786
      %v1788 = vsel %vm1762, %v1754, -inf
      %1789 = vmax.xlane.f32.xlu0 %v1788
      %v1790 = vpop.xlane.xlu0 %1789
      %v1791 = vsel %vm1766, %v1755, -inf
      %1792 = vmax.xlane.f32.xlu0 %v1791
      %v1793 = vpop.xlane.xlu0 %1792
      %v1794 = vsel %vm1762, %v1756, -inf
      %1795 = vmax.xlane.f32.xlu0 %v1794
      %v1796 = vpop.xlane.xlu0 %1795
      %v1797 = vsel %vm1766, %v1757, -inf
      %1798 = vmax.xlane.f32.xlu0 %v1797
      %v1799 = vpop.xlane.xlu0 %1798
      %v1800 = vsel %vm1762, %v1758, -inf
      %1801 = vmax.xlane.f32.xlu0 %v1800
      %v1802 = vpop.xlane.xlu0 %1801
      %v1803 = vsel %vm1766, %v1759, -inf
      %1804 = vmax.xlane.f32.xlu0 %v1803
      %v1805 = vpop.xlane.xlu0 %1804
      %v1806 = vsel %vm1762, %v1760, -inf
      %1807 = vmax.xlane.f32.xlu0 %v1806
      %v1808 = vpop.xlane.xlu0 %1807
      %v1809 = vsel %vm1766, %v1761, -inf
      %1810 = vmax.xlane.f32.xlu0 %v1809
      %v1811 = vpop.xlane.xlu0 %1810
      %v1812 = vsub.f32 %v1746, %v1765
      %v1813 = vsub.f32 %v1747, %v1769
      %v1814 = vsub.f32 %v1748, %v1772
      %v1815 = vsub.f32 %v1749, %v1775
      %v1816 = vsub.f32 %v1750, %v1778
      %v1817 = vsub.f32 %v1751, %v1781
      %v1818 = vsub.f32 %v1752, %v1784
      %v1819 = vsub.f32 %v1753, %v1787
      %v1820 = vsub.f32 %v1754, %v1790
      %v1821 = vsub.f32 %v1755, %v1793
      %v1822 = vsub.f32 %v1756, %v1796
      %v1823 = vsub.f32 %v1757, %v1799
      %v1824 = vsub.f32 %v1758, %v1802
      %v1825 = vsub.f32 %v1759, %v1805
      %v1826 = vsub.f32 %v1760, %v1808
      %v1827 = vsub.f32 %v1761, %v1811
      %v1828 = vmul.f32 %v1812, 1.442695
      %v1829 = vpow.pop %v1828
      %v1830 = vmul.f32 %v1813, 1.442695
      %v1831 = vpow.pop %v1830
      %v1832 = vmul.f32 %v1814, 1.442695
      %v1833 = vpow.pop %v1832
      %v1834 = vmul.f32 %v1815, 1.442695
      %v1835 = vpow.pop %v1834
      %v1836 = vmul.f32 %v1816, 1.442695
      %v1837 = vpow.pop %v1836
      %v1838 = vmul.f32 %v1817, 1.442695
      %v1839 = vpow.pop %v1838
      %v1840 = vmul.f32 %v1818, 1.442695
      %v1841 = vpow.pop %v1840
      %v1842 = vmul.f32 %v1819, 1.442695
      %v1843 = vpow.pop %v1842
      %v1844 = vmul.f32 %v1820, 1.442695
      %v1845 = vpow.pop %v1844
      %v1846 = vmul.f32 %v1821, 1.442695
      %v1847 = vpow.pop %v1846
      %v1848 = vmul.f32 %v1822, 1.442695
      %v1849 = vpow.pop %v1848
      %v1850 = vmul.f32 %v1823, 1.442695
      %v1851 = vpow.pop %v1850
      %v1852 = vmul.f32 %v1824, 1.442695
      %v1853 = vpow.pop %v1852
      %v1854 = vmul.f32 %v1825, 1.442695
      %v1855 = vpow.pop %v1854
      %v1856 = vmul.f32 %v1826, 1.442695
      %v1857 = vpow.pop %v1856
      %v1858 = vmul.f32 %v1827, 1.442695
      %v1859 = vpow.pop %v1858
      %v1860 = vsel %vm1762, %v1829, 0.0
      %1861 = vadd.xlane.f32.xlu0 %v1860
      %v1862 = vpop.xlane.xlu0 %1861
      %v1863 = vsel %vm1766, %v1831, 0.0
      %1864 = vadd.xlane.f32.xlu0 %v1863
      %v1865 = vpop.xlane.xlu0 %1864
      %v1866 = vsel %vm1762, %v1833, 0.0
      %1867 = vadd.xlane.f32.xlu0 %v1866
      %v1868 = vpop.xlane.xlu0 %1867
      %v1869 = vsel %vm1766, %v1835, 0.0
      %1870 = vadd.xlane.f32.xlu0 %v1869
      %v1871 = vpop.xlane.xlu0 %1870
      %v1872 = vsel %vm1762, %v1837, 0.0
      %1873 = vadd.xlane.f32.xlu0 %v1872
      %v1874 = vpop.xlane.xlu0 %1873
      %v1875 = vsel %vm1766, %v1839, 0.0
      %1876 = vadd.xlane.f32.xlu0 %v1875
      %v1877 = vpop.xlane.xlu0 %1876
      %v1878 = vsel %vm1762, %v1841, 0.0
      %1879 = vadd.xlane.f32.xlu0 %v1878
      %v1880 = vpop.xlane.xlu0 %1879
      %v1881 = vsel %vm1766, %v1843, 0.0
      %1882 = vadd.xlane.f32.xlu0 %v1881
      %v1883 = vpop.xlane.xlu0 %1882
      %v1884 = vsel %vm1762, %v1845, 0.0
      %1885 = vadd.xlane.f32.xlu0 %v1884
      %v1886 = vpop.xlane.xlu0 %1885
      %v1887 = vsel %vm1766, %v1847, 0.0
      %1888 = vadd.xlane.f32.xlu0 %v1887
      %v1889 = vpop.xlane.xlu0 %1888
      %v1890 = vsel %vm1762, %v1849, 0.0
      %1891 = vadd.xlane.f32.xlu0 %v1890
      %v1892 = vpop.xlane.xlu0 %1891
      %v1893 = vsel %vm1766, %v1851, 0.0
      %1894 = vadd.xlane.f32.xlu0 %v1893
      %v1895 = vpop.xlane.xlu0 %1894
      %v1896 = vsel %vm1762, %v1853, 0.0
      %1897 = vadd.xlane.f32.xlu0 %v1896
      %v1898 = vpop.xlane.xlu0 %1897
      %v1899 = vsel %vm1766, %v1855, 0.0
      %1900 = vadd.xlane.f32.xlu0 %v1899
      %v1901 = vpop.xlane.xlu0 %1900
      %v1902 = vsel %vm1762, %v1857, 0.0
      %1903 = vadd.xlane.f32.xlu0 %v1902
      %v1904 = vpop.xlane.xlu0 %1903
      %v1905 = vsel %vm1766, %v1859, 0.0
      %1906 = vadd.xlane.f32.xlu0 %v1905
      %v1907 = vpop.xlane.xlu0 %1906
      %v1908 = vrcp.pop %v1862
      %v1909 = vrcp.pop %v1865
      %v1910 = vrcp.pop %v1868
      %v1911 = vrcp.pop %v1871
      %v1912 = vrcp.pop %v1874
      %v1913 = vrcp.pop %v1877
      %v1914 = vrcp.pop %v1880
      %v1915 = vrcp.pop %v1883
      %v1916 = vrcp.pop %v1886
      %v1917 = vrcp.pop %v1889
      %v1918 = vrcp.pop %v1892
      %v1919 = vrcp.pop %v1895
      %v1920 = vrcp.pop %v1898
      %v1921 = vrcp.pop %v1901
      %v1922 = vrcp.pop %v1904
      %v1923 = vrcp.pop %v1907
      %v1924 = vmul.f32 %v1829, %v1908
      %v1925 = vmul.f32 %v1831, %v1909
      %v1926 = vmul.f32 %v1833, %v1910
      %v1927 = vmul.f32 %v1835, %v1911
      %v1928 = vmul.f32 %v1837, %v1912
      %v1929 = vmul.f32 %v1839, %v1913
      %v1930 = vmul.f32 %v1841, %v1914
      %v1931 = vmul.f32 %v1843, %v1915
      %v1932 = vmul.f32 %v1845, %v1916
      %v1933 = vmul.f32 %v1847, %v1917
      %v1934 = vmul.f32 %v1849, %v1918
      %v1935 = vmul.f32 %v1851, %v1919
      %v1936 = vmul.f32 %v1853, %v1920
      %v1937 = vmul.f32 %v1855, %v1921
      %v1938 = vmul.f32 %v1857, %v1922
      %v1939 = vmul.f32 %v1859, %v1923
      %v1940 = vpack.c.bf16 %v1925, %v1924
      %v1941 = vpack.c.bf16 %v1927, %v1926
      %v1942 = vpack.c.bf16 %v1929, %v1928
      %v1943 = vpack.c.bf16 %v1931, %v1930
      %v1944 = vpack.c.bf16 %v1933, %v1932
      %v1945 = vpack.c.bf16 %v1935, %v1934
      %v1946 = vpack.c.bf16 %v1937, %v1936
      %v1947 = vpack.c.bf16 %v1939, %v1938
      %v1949 = vsel %vm1762, %v1940, 0
      %vm1951 = vcmask 1045504
      %v1953 = vsel %vm1951, %v1333, 0
      %1955 = vmatprep.subr.bf16.mxu0 0
      %1956 = vmatpush1.bf16.msra.mxu0 %v1953
      %1957 = vmatprep.subr.bf16.mxu0 0
      %1958 = vmatpush1.bf16.msra.mxu0 0
      %1959 = vmatprep.subr.bf16.mxu0 0
      %1960 = vmatpush1.bf16.msra.mxu0 0
      %1961 = vmatprep.subr.bf16.mxu0 0
      %1962 = vmatpush1.bf16.msra.mxu0 0
      %1963 = vmatprep.subr.bf16.mxu0 0
      %1964 = vmatpush1.bf16.msra.mxu0 0
      %1965 = vmatprep.subr.bf16.mxu0 0
      %1966 = vmatpush1.bf16.msra.mxu0 0
      %1967 = vmatprep.subr.bf16.mxu0 0
      %1968 = vmatpush1.bf16.msra.mxu0 0
      %1969 = vmatprep.subr.bf16.mxu0 0
      %1970 = vmatpush1.bf16.msra.mxu0 0
      %1971 = vmatprep.subr.bf16.mxu0 0
      %1972 = vmatpush1.bf16.msra.mxu0 0
      %1973 = vmatprep.subr.bf16.mxu0 0
      %1974 = vmatpush1.bf16.msra.mxu0 0
      %1975 = vmatprep.subr.bf16.mxu0 0
      %1976 = vmatpush1.bf16.msra.mxu0 0
      %1977 = vmatprep.subr.bf16.mxu0 0
      %1978 = vmatpush1.bf16.msra.mxu0 0
      %1979 = vmatprep.subr.bf16.mxu0 0
      %1980 = vmatpush1.bf16.msra.mxu0 0
      %1981 = vmatprep.subr.bf16.mxu0 0
      %1982 = vmatpush1.bf16.msra.mxu0 0
      %1983 = vmatprep.subr.bf16.mxu0 0
      %1984 = vmatpush1.bf16.msra.mxu0 0
      %1985 = vmatprep.subr.bf16.mxu0 0
      %1986 = vmatpush1.bf16.msra.mxu0 0
      %1987 = vmatprep.mubr.bf16.mxu0 0
      %1988 = vmatmul.mubr.bf16.gmra.mrb[0].mxu0 %v1949
      %v1989 = vpop.f32.mrb[0].mxu0
      %v1990 = vadd.f32 0.0, %v1989
      %v1991 = vpop.f32.mrb[0].mxu0
      %v1992 = vpop.f32.mrb[0].mxu0
      %v1993 = vadd.f32 0.0, %v1992
      %v1994 = vpop.f32.mrb[0].mxu0
      %1995 = vdwg.mxu0
      %v1997 = vsel %vm1762, %v1941, 0
      %v2000 = vsel %vm1951, %v1334, 0
      %2002 = vmatprep.subr.bf16.mxu0 0
      %2003 = vmatpush1.bf16.msra.mxu0 %v2000
      %2004 = vmatprep.subr.bf16.mxu0 0
      %2005 = vmatpush1.bf16.msra.mxu0 0
      %2006 = vmatprep.subr.bf16.mxu0 0
      %2007 = vmatpush1.bf16.msra.mxu0 0
      %2008 = vmatprep.subr.bf16.mxu0 0
      %2009 = vmatpush1.bf16.msra.mxu0 0
      %2010 = vmatprep.subr.bf16.mxu0 0
      %2011 = vmatpush1.bf16.msra.mxu0 0
      %2012 = vmatprep.subr.bf16.mxu0 0
      %2013 = vmatpush1.bf16.msra.mxu0 0
      %2014 = vmatprep.subr.bf16.mxu0 0
      %2015 = vmatpush1.bf16.msra.mxu0 0
      %2016 = vmatprep.subr.bf16.mxu0 0
      %2017 = vmatpush1.bf16.msra.mxu0 0
      %2018 = vmatprep.subr.bf16.mxu0 0
      %2019 = vmatpush1.bf16.msra.mxu0 0
      %2020 = vmatprep.subr.bf16.mxu0 0
      %2021 = vmatpush1.bf16.msra.mxu0 0
      %2022 = vmatprep.subr.bf16.mxu0 0
      %2023 = vmatpush1.bf16.msra.mxu0 0
      %2024 = vmatprep.subr.bf16.mxu0 0
      %2025 = vmatpush1.bf16.msra.mxu0 0
      %2026 = vmatprep.subr.bf16.mxu0 0
      %2027 = vmatpush1.bf16.msra.mxu0 0
      %2028 = vmatprep.subr.bf16.mxu0 0
      %2029 = vmatpush1.bf16.msra.mxu0 0
      %2030 = vmatprep.subr.bf16.mxu0 0
      %2031 = vmatpush1.bf16.msra.mxu0 0
      %2032 = vmatprep.subr.bf16.mxu0 0
      %2033 = vmatpush1.bf16.msra.mxu0 0
      %2034 = vmatprep.mubr.bf16.mxu0 0
      %2035 = vmatmul.mubr.bf16.gmra.mrb[0].mxu0 %v1997
      %v2036 = vpop.f32.mrb[0].mxu0
      %v2037 = vadd.f32 0.0, %v2036
      %v2038 = vpop.f32.mrb[0].mxu0
      %v2039 = vpop.f32.mrb[0].mxu0
      %v2040 = vadd.f32 0.0, %v2039
      %v2041 = vpop.f32.mrb[0].mxu0
      %2042 = vdwg.mxu0
      %v2044 = vsel %vm1762, %v1942, 0
      %v2047 = vsel %vm1951, %v1335, 0
      %2049 = vmatprep.subr.bf16.mxu0 0
      %2050 = vmatpush1.bf16.msra.mxu0 %v2047
      %2051 = vmatprep.subr.bf16.mxu0 0
      %2052 = vmatpush1.bf16.msra.mxu0 0
      %2053 = vmatprep.subr.bf16.mxu0 0
      %2054 = vmatpush1.bf16.msra.mxu0 0
      %2055 = vmatprep.subr.bf16.mxu0 0
      %2056 = vmatpush1.bf16.msra.mxu0 0
      %2057 = vmatprep.subr.bf16.mxu0 0
      %2058 = vmatpush1.bf16.msra.mxu0 0
      %2059 = vmatprep.subr.bf16.mxu0 0
      %2060 = vmatpush1.bf16.msra.mxu0 0
      %2061 = vmatprep.subr.bf16.mxu0 0
      %2062 = vmatpush1.bf16.msra.mxu0 0
      %2063 = vmatprep.subr.bf16.mxu0 0
      %2064 = vmatpush1.bf16.msra.mxu0 0
      %2065 = vmatprep.subr.bf16.mxu0 0
      %2066 = vmatpush1.bf16.msra.mxu0 0
      %2067 = vmatprep.subr.bf16.mxu0 0
      %2068 = vmatpush1.bf16.msra.mxu0 0
      %2069 = vmatprep.subr.bf16.mxu0 0
      %2070 = vmatpush1.bf16.msra.mxu0 0
      %2071 = vmatprep.subr.bf16.mxu0 0
      %2072 = vmatpush1.bf16.msra.mxu0 0
      %2073 = vmatprep.subr.bf16.mxu0 0
      %2074 = vmatpush1.bf16.msra.mxu0 0
      %2075 = vmatprep.subr.bf16.mxu0 0
      %2076 = vmatpush1.bf16.msra.mxu0 0
      %2077 = vmatprep.subr.bf16.mxu0 0
      %2078 = vmatpush1.bf16.msra.mxu0 0
      %2079 = vmatprep.subr.bf16.mxu0 0
      %2080 = vmatpush1.bf16.msra.mxu0 0
      %2081 = vmatprep.mubr.bf16.mxu0 0
      %2082 = vmatmul.mubr.bf16.gmra.mrb[0].mxu0 %v2044
      %v2083 = vpop.f32.mrb[0].mxu0
      %v2084 = vadd.f32 0.0, %v2083
      %v2085 = vpop.f32.mrb[0].mxu0
      %v2086 = vpop.f32.mrb[0].mxu0
      %v2087 = vadd.f32 0.0, %v2086
      %v2088 = vpop.f32.mrb[0].mxu0
      %2089 = vdwg.mxu0
      %v2091 = vsel %vm1762, %v1943, 0
      %v2094 = vsel %vm1951, %v1336, 0
      %2096 = vmatprep.subr.bf16.mxu0 0
      %2097 = vmatpush1.bf16.msra.mxu0 %v2094
      %2098 = vmatprep.subr.bf16.mxu0 0
      %2099 = vmatpush1.bf16.msra.mxu0 0
      %2100 = vmatprep.subr.bf16.mxu0 0
      %2101 = vmatpush1.bf16.msra.mxu0 0
      %2102 = vmatprep.subr.bf16.mxu0 0
      %2103 = vmatpush1.bf16.msra.mxu0 0
      %2104 = vmatprep.subr.bf16.mxu0 0
      %2105 = vmatpush1.bf16.msra.mxu0 0
      %2106 = vmatprep.subr.bf16.mxu0 0
      %2107 = vmatpush1.bf16.msra.mxu0 0
      %2108 = vmatprep.subr.bf16.mxu0 0
      %2109 = vmatpush1.bf16.msra.mxu0 0
      %2110 = vmatprep.subr.bf16.mxu0 0
      %2111 = vmatpush1.bf16.msra.mxu0 0
      %2112 = vmatprep.subr.bf16.mxu0 0
      %2113 = vmatpush1.bf16.msra.mxu0 0
      %2114 = vmatprep.subr.bf16.mxu0 0
      %2115 = vmatpush1.bf16.msra.mxu0 0
      %2116 = vmatprep.subr.bf16.mxu0 0
      %2117 = vmatpush1.bf16.msra.mxu0 0
      %2118 = vmatprep.subr.bf16.mxu0 0
      %2119 = vmatpush1.bf16.msra.mxu0 0
      %2120 = vmatprep.subr.bf16.mxu0 0
      %2121 = vmatpush1.bf16.msra.mxu0 0
      %2122 = vmatprep.subr.bf16.mxu0 0
      %2123 = vmatpush1.bf16.msra.mxu0 0
      %2124 = vmatprep.subr.bf16.mxu0 0
      %2125 = vmatpush1.bf16.msra.mxu0 0
      %2126 = vmatprep.subr.bf16.mxu0 0
      %2127 = vmatpush1.bf16.msra.mxu0 0
      %2128 = vmatprep.mubr.bf16.mxu0 0
      %2129 = vmatmul.mubr.bf16.gmra.mrb[0].mxu0 %v2091
      %v2130 = vpop.f32.mrb[0].mxu0
      %v2131 = vadd.f32 0.0, %v2130
      %v2132 = vpop.f32.mrb[0].mxu0
      %v2133 = vpop.f32.mrb[0].mxu0
      %v2134 = vadd.f32 0.0, %v2133
      %v2135 = vpop.f32.mrb[0].mxu0
      %2136 = vdwg.mxu0
      %v2138 = vsel %vm1762, %v1944, 0
      %v2141 = vsel %vm1951, %v1337, 0
      %2143 = vmatprep.subr.bf16.mxu0 0
      %2144 = vmatpush1.bf16.msra.mxu0 %v2141
      %2145 = vmatprep.subr.bf16.mxu0 0
      %2146 = vmatpush1.bf16.msra.mxu0 0
      %2147 = vmatprep.subr.bf16.mxu0 0
      %2148 = vmatpush1.bf16.msra.mxu0 0
      %2149 = vmatprep.subr.bf16.mxu0 0
      %2150 = vmatpush1.bf16.msra.mxu0 0
      %2151 = vmatprep.subr.bf16.mxu0 0
      %2152 = vmatpush1.bf16.msra.mxu0 0
      %2153 = vmatprep.subr.bf16.mxu0 0
      %2154 = vmatpush1.bf16.msra.mxu0 0
      %2155 = vmatprep.subr.bf16.mxu0 0
      %2156 = vmatpush1.bf16.msra.mxu0 0
      %2157 = vmatprep.subr.bf16.mxu0 0
      %2158 = vmatpush1.bf16.msra.mxu0 0
      %2159 = vmatprep.subr.bf16.mxu0 0
      %2160 = vmatpush1.bf16.msra.mxu0 0
      %2161 = vmatprep.subr.bf16.mxu0 0
      %2162 = vmatpush1.bf16.msra.mxu0 0
      %2163 = vmatprep.subr.bf16.mxu0 0
      %2164 = vmatpush1.bf16.msra.mxu0 0
      %2165 = vmatprep.subr.bf16.mxu0 0
      %2166 = vmatpush1.bf16.msra.mxu0 0
      %2167 = vmatprep.subr.bf16.mxu0 0
      %2168 = vmatpush1.bf16.msra.mxu0 0
      %2169 = vmatprep.subr.bf16.mxu0 0
      %2170 = vmatpush1.bf16.msra.mxu0 0
      %2171 = vmatprep.subr.bf16.mxu0 0
      %2172 = vmatpush1.bf16.msra.mxu0 0
      %2173 = vmatprep.subr.bf16.mxu0 0
      %2174 = vmatpush1.bf16.msra.mxu0 0
      %2175 = vmatprep.mubr.bf16.mxu0 0
      %2176 = vmatmul.mubr.bf16.gmra.mrb[0].mxu0 %v2138
      %v2177 = vpop.f32.mrb[0].mxu0
      %v2178 = vadd.f32 0.0, %v2177
      %v2179 = vpop.f32.mrb[0].mxu0
      %v2180 = vpop.f32.mrb[0].mxu0
      %v2181 = vadd.f32 0.0, %v2180
      %v2182 = vpop.f32.mrb[0].mxu0
      %2183 = vdwg.mxu0
      %v2185 = vsel %vm1762, %v1945, 0
      %v2188 = vsel %vm1951, %v1338, 0
      %2190 = vmatprep.subr.bf16.mxu0 0
      %2191 = vmatpush1.bf16.msra.mxu0 %v2188
      %2192 = vmatprep.subr.bf16.mxu0 0
      %2193 = vmatpush1.bf16.msra.mxu0 0
      %2194 = vmatprep.subr.bf16.mxu0 0
      %2195 = vmatpush1.bf16.msra.mxu0 0
      %2196 = vmatprep.subr.bf16.mxu0 0
      %2197 = vmatpush1.bf16.msra.mxu0 0
      %2198 = vmatprep.subr.bf16.mxu0 0
      %2199 = vmatpush1.bf16.msra.mxu0 0
      %2200 = vmatprep.subr.bf16.mxu0 0
      %2201 = vmatpush1.bf16.msra.mxu0 0
      %2202 = vmatprep.subr.bf16.mxu0 0
      %2203 = vmatpush1.bf16.msra.mxu0 0
      %2204 = vmatprep.subr.bf16.mxu0 0
      %2205 = vmatpush1.bf16.msra.mxu0 0
      %2206 = vmatprep.subr.bf16.mxu0 0
      %2207 = vmatpush1.bf16.msra.mxu0 0
      %2208 = vmatprep.subr.bf16.mxu0 0
      %2209 = vmatpush1.bf16.msra.mxu0 0
      %2210 = vmatprep.subr.bf16.mxu0 0
      %2211 = vmatpush1.bf16.msra.mxu0 0
      %2212 = vmatprep.subr.bf16.mxu0 0
      %2213 = vmatpush1.bf16.msra.mxu0 0
      %2214 = vmatprep.subr.bf16.mxu0 0
      %2215 = vmatpush1.bf16.msra.mxu0 0
      %2216 = vmatprep.subr.bf16.mxu0 0
      %2217 = vmatpush1.bf16.msra.mxu0 0
      %2218 = vmatprep.subr.bf16.mxu0 0
      %2219 = vmatpush1.bf16.msra.mxu0 0
      %2220 = vmatprep.subr.bf16.mxu0 0
      %2221 = vmatpush1.bf16.msra.mxu0 0
      %2222 = vmatprep.mubr.bf16.mxu0 0
      %2223 = vmatmul.mubr.bf16.gmra.mrb[0].mxu0 %v2185
      %v2224 = vpop.f32.mrb[0].mxu0
      %v2225 = vadd.f32 0.0, %v2224
      %v2226 = vpop.f32.mrb[0].mxu0
      %v2227 = vpop.f32.mrb[0].mxu0
      %v2228 = vadd.f32 0.0, %v2227
      %v2229 = vpop.f32.mrb[0].mxu0
      %2230 = vdwg.mxu0
      %v2232 = vsel %vm1762, %v1946, 0
      %v2235 = vsel %vm1951, %v1339, 0
      %2237 = vmatprep.subr.bf16.mxu0 0
      %2238 = vmatpush1.bf16.msra.mxu0 %v2235
      %2239 = vmatprep.subr.bf16.mxu0 0
      %2240 = vmatpush1.bf16.msra.mxu0 0
      %2241 = vmatprep.subr.bf16.mxu0 0
      %2242 = vmatpush1.bf16.msra.mxu0 0
      %2243 = vmatprep.subr.bf16.mxu0 0
      %2244 = vmatpush1.bf16.msra.mxu0 0
      %2245 = vmatprep.subr.bf16.mxu0 0
      %2246 = vmatpush1.bf16.msra.mxu0 0
      %2247 = vmatprep.subr.bf16.mxu0 0
      %2248 = vmatpush1.bf16.msra.mxu0 0
      %2249 = vmatprep.subr.bf16.mxu0 0
      %2250 = vmatpush1.bf16.msra.mxu0 0
      %2251 = vmatprep.subr.bf16.mxu0 0
      %2252 = vmatpush1.bf16.msra.mxu0 0
      %2253 = vmatprep.subr.bf16.mxu0 0
      %2254 = vmatpush1.bf16.msra.mxu0 0
      %2255 = vmatprep.subr.bf16.mxu0 0
      %2256 = vmatpush1.bf16.msra.mxu0 0
      %2257 = vmatprep.subr.bf16.mxu0 0
      %2258 = vmatpush1.bf16.msra.mxu0 0
      %2259 = vmatprep.subr.bf16.mxu0 0
      %2260 = vmatpush1.bf16.msra.mxu0 0
      %2261 = vmatprep.subr.bf16.mxu0 0
      %2262 = vmatpush1.bf16.msra.mxu0 0
      %2263 = vmatprep.subr.bf16.mxu0 0
      %2264 = vmatpush1.bf16.msra.mxu0 0
      %2265 = vmatprep.subr.bf16.mxu0 0
      %2266 = vmatpush1.bf16.msra.mxu0 0
      %2267 = vmatprep.subr.bf16.mxu0 0
      %2268 = vmatpush1.bf16.msra.mxu0 0
      %2269 = vmatprep.mubr.bf16.mxu0 0
      %2270 = vmatmul.mubr.bf16.gmra.mrb[0].mxu0 %v2232
      %v2271 = vpop.f32.mrb[0].mxu0
      %v2272 = vadd.f32 0.0, %v2271
      %v2273 = vpop.f32.mrb[0].mxu0
      %v2274 = vpop.f32.mrb[0].mxu0
      %v2275 = vadd.f32 0.0, %v2274
      %v2276 = vpop.f32.mrb[0].mxu0
      %2277 = vdwg.mxu0
      %v2279 = vsel %vm1762, %v1947, 0
      %v2282 = vsel %vm1951, %v1340, 0
      %2284 = vmatprep.subr.bf16.mxu0 0
      %2285 = vmatpush1.bf16.msra.mxu0 %v2282
      %2286 = vmatprep.subr.bf16.mxu0 0
      %2287 = vmatpush1.bf16.msra.mxu0 0
      %2288 = vmatprep.subr.bf16.mxu0 0
      %2289 = vmatpush1.bf16.msra.mxu0 0
      %2290 = vmatprep.subr.bf16.mxu0 0
      %2291 = vmatpush1.bf16.msra.mxu0 0
      %2292 = vmatprep.subr.bf16.mxu0 0
      %2293 = vmatpush1.bf16.msra.mxu0 0
      %2294 = vmatprep.subr.bf16.mxu0 0
      %2295 = vmatpush1.bf16.msra.mxu0 0
      %2296 = vmatprep.subr.bf16.mxu0 0
      %2297 = vmatpush1.bf16.msra.mxu0 0
      %2298 = vmatprep.subr.bf16.mxu0 0
      %2299 = vmatpush1.bf16.msra.mxu0 0
      %2300 = vmatprep.subr.bf16.mxu0 0
      %2301 = vmatpush1.bf16.msra.mxu0 0
      %2302 = vmatprep.subr.bf16.mxu0 0
      %2303 = vmatpush1.bf16.msra.mxu0 0
      %2304 = vmatprep.subr.bf16.mxu0 0
      %2305 = vmatpush1.bf16.msra.mxu0 0
      %2306 = vmatprep.subr.bf16.mxu0 0
      %2307 = vmatpush1.bf16.msra.mxu0 0
      %2308 = vmatprep.subr.bf16.mxu0 0
      %2309 = vmatpush1.bf16.msra.mxu0 0
      %2310 = vmatprep.subr.bf16.mxu0 0
      %2311 = vmatpush1.bf16.msra.mxu0 0
      %2312 = vmatprep.subr.bf16.mxu0 0
      %2313 = vmatpush1.bf16.msra.mxu0 0
      %2314 = vmatprep.subr.bf16.mxu0 0
      %2315 = vmatpush1.bf16.msra.mxu0 0
      %2316 = vmatprep.mubr.bf16.mxu0 0
      %2317 = vmatmul.mubr.bf16.gmra.mrb[0].mxu0 %v2279
      %v2318 = vpop.f32.mrb[0].mxu0
      %v2319 = vadd.f32 0.0, %v2318
      %v2320 = vpop.f32.mrb[0].mxu0
      %v2321 = vpop.f32.mrb[0].mxu0
      %v2322 = vadd.f32 0.0, %v2321
      %v2323 = vpop.f32.mrb[0].mxu0
      %2324 = vdwg.mxu0
      %2327 = vrot.lane.b32.xlu0 %v2037, 8
      %v2328 = vpop.permute.xlu0 %2327
      %2329 = vrot.lane.b32.xlu0 %v2040, 8
      %v2330 = vpop.permute.xlu0 %2329
      %2335 = vrot.lane.b32.xlu0 %v2084, 16
      %v2336 = vpop.permute.xlu0 %2335
      %2337 = vrot.lane.b32.xlu0 %v2087, 16
      %v2338 = vpop.permute.xlu0 %2337
      %2343 = vrot.lane.b32.xlu0 %v2131, 24
      %v2344 = vpop.permute.xlu0 %2343
      %2345 = vrot.lane.b32.xlu0 %v2134, 24
      %v2346 = vpop.permute.xlu0 %2345
      %2351 = vrot.lane.b32.xlu0 %v2178, 32
      %v2352 = vpop.permute.xlu0 %2351
      %2353 = vrot.lane.b32.xlu0 %v2181, 32
      %v2354 = vpop.permute.xlu0 %2353
      %2359 = vrot.lane.b32.xlu0 %v2225, 40
      %v2360 = vpop.permute.xlu0 %2359
      %2361 = vrot.lane.b32.xlu0 %v2228, 40
      %v2362 = vpop.permute.xlu0 %2361
      %2367 = vrot.lane.b32.xlu0 %v2272, 48
      %v2368 = vpop.permute.xlu0 %2367
      %2369 = vrot.lane.b32.xlu0 %v2275, 48
      %v2370 = vpop.permute.xlu0 %2369
      %2375 = vrot.lane.b32.xlu0 %v2319, 56
      %v2376 = vpop.permute.xlu0 %2375
      %2377 = vrot.lane.b32.xlu0 %v2322, 56
      %v2378 = vpop.permute.xlu0 %2377
      %v2381 = vsel %vm1344, %v1990, %v2328
      %v2382 = vsel %vm1344, %v1993, %v2330
      %vm2383 = vcmask 130048
      %v2384 = vsel %vm2383, %v2381, %v2336
      %v2385 = vsel %vm2383, %v2382, %v2338
      %vm2386 = vcmask 195584
      %v2387 = vsel %vm2386, %v2384, %v2344
      %v2388 = vsel %vm2386, %v2385, %v2346
      %vm2389 = vcmask 261120
      %v2390 = vsel %vm2389, %v2387, %v2352
      %v2391 = vsel %vm2389, %v2388, %v2354
      %vm2392 = vcmask 326656
      %v2393 = vsel %vm2392, %v2390, %v2360
      %v2394 = vsel %vm2392, %v2391, %v2362
      %vm2395 = vcmask 392192
      %v2396 = vsel %vm2395, %v2393, %v2368
      %v2397 = vsel %vm2395, %v2394, %v2370
      %vm2398 = vcmask 457728
      %v2399 = vsel %vm2398, %v2396, %v2376
      %v2400 = vsel %vm2398, %v2397, %v2378
      %v2401 = vpack.c.bf16 %v2400, %v2399
      %v2402 = vld [vmem:[%s10] sm:$0xf]
      %v2403 = vld [vmem:[%s10 + $0x4] sm:$0xf]
      %v2404 = vld [vmem:[%s10 + $0x8] sm:$0xf]
      %v2405 = vld [vmem:[%s10 + $0xc] sm:$0xf]
      %v2406 = vld [vmem:[%s10 + $0x10] sm:$0xf]
      %v2407 = vld [vmem:[%s10 + $0x14] sm:$0xf]
      %v2408 = vld [vmem:[%s10 + $0x18] sm:$0xf]
      %v2409 = vld [vmem:[%s10 + $0x1c] sm:$0xf]
      %v2410 = vld [vmem:[%s11] sm:$0x1]
      %v2412 = vlaneseq
      %v2413 = vshrl.u32 %v2412, 7
      %v2414 = vsub.s32 0, %v2413
      %v2415 = vrot.slane %v2410, %v2414
      %v2425 = vunpack.c.l.b16 %v2402
      %v2426 = vunpack.c.l.b16 %v2403
      %v2427 = vunpack.c.l.b16 %v2404
      %v2428 = vunpack.c.l.b16 %v2405
      %v2429 = vunpack.c.l.b16 %v2406
      %v2430 = vunpack.c.l.b16 %v2407
      %v2431 = vunpack.c.l.b16 %v2408
      %v2432 = vunpack.c.l.b16 %v2409
      %v2433 = vpack.c.b16 %v2426, %v2425
      %v2434 = vpack.c.b16 %v2428, %v2427
      %v2435 = vpack.c.b16 %v2430, %v2429
      %v2436 = vpack.c.b16 %v2432, %v2431
      %v2442 = vsel %vm1190, %v2401, 0
      %2444 = vmatprep.subr.bf16.mxu0 0
      %2445 = vmatpush1.bf16.msra.mxu0 %v2433
      %2446 = vmatprep.subr.bf16.mxu0 0
      %2447 = vmatpush1.bf16.msra.mxu0 %v2434
      %2448 = vmatprep.subr.bf16.mxu0 0
      %2449 = vmatpush1.bf16.msra.mxu0 %v2435
      %2450 = vmatprep.subr.bf16.mxu0 0
      %2451 = vmatpush1.bf16.msra.mxu0 %v2436
      %2452 = vmatprep.subr.bf16.mxu0 0
      %2453 = vmatpush1.bf16.msra.mxu0 0
      %2454 = vmatprep.subr.bf16.mxu0 0
      %2455 = vmatpush1.bf16.msra.mxu0 0
      %2456 = vmatprep.subr.bf16.mxu0 0
      %2457 = vmatpush1.bf16.msra.mxu0 0
      %2458 = vmatprep.subr.bf16.mxu0 0
      %2459 = vmatpush1.bf16.msra.mxu0 0
      %2460 = vmatprep.subr.bf16.mxu0 0
      %2461 = vmatpush1.bf16.msra.mxu0 0
      %2462 = vmatprep.subr.bf16.mxu0 0
      %2463 = vmatpush1.bf16.msra.mxu0 0
      %2464 = vmatprep.subr.bf16.mxu0 0
      %2465 = vmatpush1.bf16.msra.mxu0 0
      %2466 = vmatprep.subr.bf16.mxu0 0
      %2467 = vmatpush1.bf16.msra.mxu0 0
      %2468 = vmatprep.subr.bf16.mxu0 0
      %2469 = vmatpush1.bf16.msra.mxu0 0
      %2470 = vmatprep.subr.bf16.mxu0 0
      %2471 = vmatpush1.bf16.msra.mxu0 0
      %2472 = vmatprep.subr.bf16.mxu0 0
      %2473 = vmatpush1.bf16.msra.mxu0 0
      %2474 = vmatprep.subr.bf16.mxu0 0
      %2475 = vmatpush1.bf16.msra.mxu0 0
      %2476 = vmatprep.mubr.bf16.mxu0 0
      %2477 = vmatmul.mubr.bf16.gmra.mrb[0].mxu0 %v2442
      %v2478 = vpop.f32.mrb[0].mxu0
      %v2479 = vadd.f32 %v2415, %v2478
      %v2480 = vpop.f32.mrb[0].mxu0
      %v2481 = vpop.f32.mrb[0].mxu0
      %v2482 = vadd.f32 %v2415, %v2481
      %v2483 = vpop.f32.mrb[0].mxu0
      %2484 = vdwg.mxu0
      %v2485 = vadd.f32 %v1111, %v2479
      %v2486 = vadd.f32 %v1114, %v2482
      %v2487 = vld [vmem:[%s12] sm:$0x1]
      %v2488 = vld [vmem:[%s13] sm:$0x1]
      %v2489 = vsel %vm1190, %v2485, 0.0
      %2490 = vadd.xlane.f32.xlu0 %v2489
      %v2491 = vpop.xlane.xlu0 %2490
      %vm2492 = vcmask 519168
      %v2493 = vsel %vm2492, %v2486, 0.0
      %2494 = vadd.xlane.f32.xlu0 %v2493
      %v2495 = vpop.xlane.xlu0 %2494
      %v2496 = vrcp.pop 64.0
      %v2497 = vmul.f32 %v2491, %v2496
      %v2498 = vmul.f32 %v2495, %v2496
      %v2499 = vsub.f32 %v2485, %v2497
      %v2500 = vsub.f32 %v2486, %v2498
      %v2501 = vmul.f32 %v2499, %v2499
      %v2502 = vmul.f32 %v2500, %v2500
      %v2503 = vsel %vm1190, %v2501, 0.0
      %2504 = vadd.xlane.f32.xlu0 %v2503
      %v2505 = vpop.xlane.xlu0 %2504
      %v2506 = vsel %vm2492, %v2502, 0.0
      %2507 = vadd.xlane.f32.xlu0 %v2506
      %v2508 = vpop.xlane.xlu0 %2507
      %v2509 = vmul.f32 %v2505, %v2496
      %v2510 = vmul.f32 %v2508, %v2496
      %v2511 = vadd.f32 %v2509, 1e-05
      %v2512 = vadd.f32 %v2510, 1e-05
      %v2513 = vrsqrt.pop %v2511
      %v2514 = vrsqrt.pop %v2512
      %v2515 = vmul.f32 %v2499, %v2513
      %v2516 = vmul.f32 %v2500, %v2514
      %v2518 = vlaneseq
      %v2519 = vshrl.u32 %v2518, 7
      %v2520 = vsub.s32 0, %v2519
      %v2521 = vrot.slane %v2487, %v2520
      %v2523 = vmul.f32 %v2515, %v2521
      %v2524 = vmul.f32 %v2516, %v2521
      %v2526 = vlaneseq
      %v2527 = vshrl.u32 %v2526, 7
      %v2528 = vsub.s32 0, %v2527
      %v2529 = vrot.slane %v2488, %v2528
      %v2531 = vadd.f32 %v2523, %v2529
      %v2532 = vadd.f32 %v2524, %v2529
      %v2533 = vpack.c.bf16 %v2532, %v2531
      %v2534 = vld [vmem:[%s14] sm:$0xff]
      %v2535 = vld [vmem:[%s14 + $0x8] sm:$0xff]
      %v2536 = vld [vmem:[%s14 + $0x10] sm:$0xff]
      %v2537 = vld [vmem:[%s14 + $0x18] sm:$0xff]
      %v2538 = vld [vmem:[%s14 + $0x20] sm:$0xff]
      %v2539 = vld [vmem:[%s14 + $0x28] sm:$0xff]
      %v2540 = vld [vmem:[%s14 + $0x30] sm:$0xff]
      %v2541 = vld [vmem:[%s14 + $0x38] sm:$0xff]
      %v2542 = vld [vmem:[%s14 + $0x40] sm:$0xff]
      %v2543 = vld [vmem:[%s14 + $0x48] sm:$0xff]
      %v2544 = vld [vmem:[%s14 + $0x50] sm:$0xff]
      %v2545 = vld [vmem:[%s14 + $0x58] sm:$0xff]
      %v2546 = vld [vmem:[%s14 + $0x60] sm:$0xff]
      %v2547 = vld [vmem:[%s14 + $0x68] sm:$0xff]
      %v2548 = vld [vmem:[%s14 + $0x70] sm:$0xff]
      %v2549 = vld [vmem:[%s14 + $0x78] sm:$0xff]
      %v2550 = vld [vmem:[%s15] sm:$0xf]
      %v2552 = vlaneseq
      %v2553 = vshrl.u32 %v2552, 7
      %v2554 = vsub.s32 0, %v2553
      %v2555 = vrot.slane %v2550, %v2554
      %v2556 = vlaneseq
      %v2557 = vshrl.u32 %v2556, 7
      %v2558 = vsub.s32 1, %v2557
      %v2559 = vrot.slane %v2550, %v2558
      %v2560 = vlaneseq
      %v2561 = vshrl.u32 %v2560, 7
      %v2562 = vsub.s32 2, %v2561
      %v2563 = vrot.slane %v2550, %v2562
      %v2564 = vlaneseq
      %v2565 = vshrl.u32 %v2564, 7
      %v2566 = vsub.s32 3, %v2565
      %v2567 = vrot.slane %v2550, %v2566
      %v2588 = vunpack.c.l.b16 %v2534
      %v2589 = vunpack.c.h.b16 %v2534
      %v2590 = vunpack.c.l.b16 %v2535
      %v2591 = vunpack.c.h.b16 %v2535
      %v2592 = vunpack.c.l.b16 %v2536
      %v2593 = vunpack.c.h.b16 %v2536
      %v2594 = vunpack.c.l.b16 %v2537
      %v2595 = vunpack.c.h.b16 %v2537
      %v2596 = vunpack.c.l.b16 %v2538
      %v2597 = vunpack.c.h.b16 %v2538
      %v2598 = vunpack.c.l.b16 %v2539
      %v2599 = vunpack.c.h.b16 %v2539
      %v2600 = vunpack.c.l.b16 %v2540
      %v2601 = vunpack.c.h.b16 %v2540
      %v2602 = vunpack.c.l.b16 %v2541
      %v2603 = vunpack.c.h.b16 %v2541
      %v2604 = vunpack.c.l.b16 %v2542
      %v2605 = vunpack.c.h.b16 %v2542
      %v2606 = vunpack.c.l.b16 %v2543
      %v2607 = vunpack.c.h.b16 %v2543
      %v2608 = vunpack.c.l.b16 %v2544
      %v2609 = vunpack.c.h.b16 %v2544
      %v2610 = vunpack.c.l.b16 %v2545
      %v2611 = vunpack.c.h.b16 %v2545
      %v2612 = vunpack.c.l.b16 %v2546
      %v2613 = vunpack.c.h.b16 %v2546
      %v2614 = vunpack.c.l.b16 %v2547
      %v2615 = vunpack.c.h.b16 %v2547
      %v2616 = vunpack.c.l.b16 %v2548
      %v2617 = vunpack.c.h.b16 %v2548
      %v2618 = vunpack.c.l.b16 %v2549
      %v2619 = vunpack.c.h.b16 %v2549
      %v2620 = vpack.c.b16 %v2592, %v2588
      %v2621 = vpack.c.b16 %v2593, %v2589
      %v2622 = vpack.c.b16 %v2594, %v2590
      %v2623 = vpack.c.b16 %v2595, %v2591
      %v2624 = vpack.c.b16 %v2600, %v2596
      %v2625 = vpack.c.b16 %v2601, %v2597
      %v2626 = vpack.c.b16 %v2602, %v2598
      %v2627 = vpack.c.b16 %v2603, %v2599
      %v2628 = vpack.c.b16 %v2608, %v2604
      %v2629 = vpack.c.b16 %v2609, %v2605
      %v2630 = vpack.c.b16 %v2610, %v2606
      %v2631 = vpack.c.b16 %v2611, %v2607
      %v2632 = vpack.c.b16 %v2616, %v2612
      %v2633 = vpack.c.b16 %v2617, %v2613
      %v2634 = vpack.c.b16 %v2618, %v2614
      %v2635 = vpack.c.b16 %v2619, %v2615
      %v2653 = vsel %vm1190, %v2533, 0
      %2655 = vmatprep.subr.bf16.mxu0 %v2621
      %2656 = vmatpush1.bf16.msra.mxu0 %v2620
      %2657 = vmatprep.subr.bf16.mxu0 %v2625
      %2658 = vmatpush1.bf16.msra.mxu0 %v2624
      %2659 = vmatprep.subr.bf16.mxu0 %v2629
      %2660 = vmatpush1.bf16.msra.mxu0 %v2628
      %2661 = vmatprep.subr.bf16.mxu0 %v2633
      %2662 = vmatpush1.bf16.msra.mxu0 %v2632
      %2663 = vmatprep.subr.bf16.mxu0 0
      %2664 = vmatpush1.bf16.msra.mxu0 0
      %2665 = vmatprep.subr.bf16.mxu0 0
      %2666 = vmatpush1.bf16.msra.mxu0 0
      %2667 = vmatprep.subr.bf16.mxu0 0
      %2668 = vmatpush1.bf16.msra.mxu0 0
      %2669 = vmatprep.subr.bf16.mxu0 0
      %2670 = vmatpush1.bf16.msra.mxu0 0
      %2671 = vmatprep.subr.bf16.mxu0 0
      %2672 = vmatpush1.bf16.msra.mxu0 0
      %2673 = vmatprep.subr.bf16.mxu0 0
      %2674 = vmatpush1.bf16.msra.mxu0 0
      %2675 = vmatprep.subr.bf16.mxu0 0
      %2676 = vmatpush1.bf16.msra.mxu0 0
      %2677 = vmatprep.subr.bf16.mxu0 0
      %2678 = vmatpush1.bf16.msra.mxu0 0
      %2679 = vmatprep.subr.bf16.mxu0 0
      %2680 = vmatpush1.bf16.msra.mxu0 0
      %2681 = vmatprep.subr.bf16.mxu0 0
      %2682 = vmatpush1.bf16.msra.mxu0 0
      %2683 = vmatprep.subr.bf16.mxu0 0
      %2684 = vmatpush1.bf16.msra.mxu0 0
      %2685 = vmatprep.subr.bf16.mxu0 0
      %2686 = vmatpush1.bf16.msra.mxu0 0
      %2687 = vmatprep.mubr.bf16.mxu0 0
      %2688 = vmatmul.mubr.bf16.gmra.mrb[0].mxu0 %v2653
      %v2689 = vpop.f32.mrb[0].mxu0
      %v2690 = vadd.f32 %v2555, %v2689
      %v2691 = vpop.f32.mrb[0].mxu0
      %v2692 = vadd.f32 %v2559, %v2691
      %v2693 = vpop.f32.mrb[0].mxu0
      %v2694 = vadd.f32 %v2555, %v2693
      %v2695 = vpop.f32.mrb[0].mxu0
      %v2696 = vadd.f32 %v2559, %v2695
      %2697 = vdwg.mxu0
      %2698 = vmatprep.subr.bf16.mxu0 %v2623
      %2699 = vmatpush1.bf16.msra.mxu0 %v2622
      %2700 = vmatprep.subr.bf16.mxu0 %v2627
      %2701 = vmatpush1.bf16.msra.mxu0 %v2626
      %2702 = vmatprep.subr.bf16.mxu0 %v2631
      %2703 = vmatpush1.bf16.msra.mxu0 %v2630
      %2704 = vmatprep.subr.bf16.mxu0 %v2635
      %2705 = vmatpush1.bf16.msra.mxu0 %v2634
      %2706 = vmatprep.subr.bf16.mxu0 0
      %2707 = vmatpush1.bf16.msra.mxu0 0
      %2708 = vmatprep.subr.bf16.mxu0 0
      %2709 = vmatpush1.bf16.msra.mxu0 0
      %2710 = vmatprep.subr.bf16.mxu0 0
      %2711 = vmatpush1.bf16.msra.mxu0 0
      %2712 = vmatprep.subr.bf16.mxu0 0
      %2713 = vmatpush1.bf16.msra.mxu0 0
      %2714 = vmatprep.subr.bf16.mxu0 0
      %2715 = vmatpush1.bf16.msra.mxu0 0
      %2716 = vmatprep.subr.bf16.mxu0 0
      %2717 = vmatpush1.bf16.msra.mxu0 0
      %2718 = vmatprep.subr.bf16.mxu0 0
      %2719 = vmatpush1.bf16.msra.mxu0 0
      %2720 = vmatprep.subr.bf16.mxu0 0
      %2721 = vmatpush1.bf16.msra.mxu0 0
      %2722 = vmatprep.subr.bf16.mxu0 0
      %2723 = vmatpush1.bf16.msra.mxu0 0
      %2724 = vmatprep.subr.bf16.mxu0 0
      %2725 = vmatpush1.bf16.msra.mxu0 0
      %2726 = vmatprep.subr.bf16.mxu0 0
      %2727 = vmatpush1.bf16.msra.mxu0 0
      %2728 = vmatprep.subr.bf16.mxu0 0
      %2729 = vmatpush1.bf16.msra.mxu0 0
      %2730 = vmatprep.mubr.bf16.mxu0 0
      %2731 = vmatmul.mubr.bf16.gmra.mrb[0].mxu0 %v2653
      %v2732 = vpop.f32.mrb[0].mxu0
      %v2733 = vadd.f32 %v2563, %v2732
      %v2734 = vpop.f32.mrb[0].mxu0
      %v2735 = vadd.f32 %v2567, %v2734
      %v2736 = vpop.f32.mrb[0].mxu0
      %v2737 = vadd.f32 %v2563, %v2736
      %v2738 = vpop.f32.mrb[0].mxu0
      %v2739 = vadd.f32 %v2567, %v2738
      %2740 = vdwg.mxu0
      %v2741 = vmax.f32 %v2690, 0.0
      %v2742 = vmax.f32 %v2692, 0.0
      %v2743 = vmax.f32 %v2733, 0.0
      %v2744 = vmax.f32 %v2735, 0.0
      %v2745 = vmax.f32 %v2694, 0.0
      %v2746 = vmax.f32 %v2696, 0.0
      %v2747 = vmax.f32 %v2737, 0.0
      %v2748 = vmax.f32 %v2739, 0.0
      %v2749 = vpack.c.bf16 %v2745, %v2741
      %v2750 = vpack.c.bf16 %v2746, %v2742
      %v2751 = vpack.c.bf16 %v2747, %v2743
      %v2752 = vpack.c.bf16 %v2748, %v2744
      %v2753 = vld [vmem:[%s16] sm:$0xf]
      %v2754 = vld [vmem:[%s16 + $0x4] sm:$0xf]
      %v2755 = vld [vmem:[%s16 + $0x8] sm:$0xf]
      %v2756 = vld [vmem:[%s16 + $0xc] sm:$0xf]
      %v2757 = vld [vmem:[%s16 + $0x10] sm:$0xf]
      %v2758 = vld [vmem:[%s16 + $0x14] sm:$0xf]
      %v2759 = vld [vmem:[%s16 + $0x18] sm:$0xf]
      %v2760 = vld [vmem:[%s16 + $0x1c] sm:$0xf]
      %v2761 = vld [vmem:[%s16 + $0x20] sm:$0xf]
      %v2762 = vld [vmem:[%s16 + $0x24] sm:$0xf]
      %v2763 = vld [vmem:[%s16 + $0x28] sm:$0xf]
      %v2764 = vld [vmem:[%s16 + $0x2c] sm:$0xf]
      %v2765 = vld [vmem:[%s16 + $0x30] sm:$0xf]
      %v2766 = vld [vmem:[%s16 + $0x34] sm:$0xf]
      %v2767 = vld [vmem:[%s16 + $0x38] sm:$0xf]
      %v2768 = vld [vmem:[%s16 + $0x3c] sm:$0xf]
      %v2769 = vld [vmem:[%s16 + $0x40] sm:$0xf]
      %v2770 = vld [vmem:[%s16 + $0x44] sm:$0xf]
      %v2771 = vld [vmem:[%s16 + $0x48] sm:$0xf]
      %v2772 = vld [vmem:[%s16 + $0x4c] sm:$0xf]
      %v2773 = vld [vmem:[%s16 + $0x50] sm:$0xf]
      %v2774 = vld [vmem:[%s16 + $0x54] sm:$0xf]
      %v2775 = vld [vmem:[%s16 + $0x58] sm:$0xf]
      %v2776 = vld [vmem:[%s16 + $0x5c] sm:$0xf]
      %v2777 = vld [vmem:[%s16 + $0x60] sm:$0xf]
      %v2778 = vld [vmem:[%s16 + $0x64] sm:$0xf]
      %v2779 = vld [vmem:[%s16 + $0x68] sm:$0xf]
      %v2780 = vld [vmem:[%s16 + $0x6c] sm:$0xf]
      %v2781 = vld [vmem:[%s16 + $0x70] sm:$0xf]
      %v2782 = vld [vmem:[%s16 + $0x74] sm:$0xf]
      %v2783 = vld [vmem:[%s16 + $0x78] sm:$0xf]
      %v2784 = vld [vmem:[%s16 + $0x7c] sm:$0xf]
      %v2785 = vld [vmem:[%s16 + $0x80] sm:$0xf]
      %v2786 = vld [vmem:[%s16 + $0x84] sm:$0xf]
      %v2787 = vld [vmem:[%s16 + $0x88] sm:$0xf]
      %v2788 = vld [vmem:[%s16 + $0x8c] sm:$0xf]
      %v2789 = vld [vmem:[%s16 + $0x90] sm:$0xf]
      %v2790 = vld [vmem:[%s16 + $0x94] sm:$0xf]
      %v2791 = vld [vmem:[%s16 + $0x98] sm:$0xf]
      %v2792 = vld [vmem:[%s16 + $0x9c] sm:$0xf]
      %v2793 = vld [vmem:[%s16 + $0xa0] sm:$0xf]
      %v2794 = vld [vmem:[%s16 + $0xa4] sm:$0xf]
      %v2795 = vld [vmem:[%s16 + $0xa8] sm:$0xf]
      %v2796 = vld [vmem:[%s16 + $0xac] sm:$0xf]
      %v2797 = vld [vmem:[%s16 + $0xb0] sm:$0xf]
      %v2798 = vld [vmem:[%s16 + $0xb4] sm:$0xf]
      %v2799 = vld [vmem:[%s16 + $0xb8] sm:$0xf]
      %v2800 = vld [vmem:[%s16 + $0xbc] sm:$0xf]
      %v2801 = vld [vmem:[%s16 + $0xc0] sm:$0xf]
      %v2802 = vld [vmem:[%s16 + $0xc4] sm:$0xf]
      %v2803 = vld [vmem:[%s16 + $0xc8] sm:$0xf]
      %v2804 = vld [vmem:[%s16 + $0xcc] sm:$0xf]
      %v2805 = vld [vmem:[%s16 + $0xd0] sm:$0xf]
      %v2806 = vld [vmem:[%s16 + $0xd4] sm:$0xf]
      %v2807 = vld [vmem:[%s16 + $0xd8] sm:$0xf]
      %v2808 = vld [vmem:[%s16 + $0xdc] sm:$0xf]
      %v2809 = vld [vmem:[%s16 + $0xe0] sm:$0xf]
      %v2810 = vld [vmem:[%s16 + $0xe4] sm:$0xf]
      %v2811 = vld [vmem:[%s16 + $0xe8] sm:$0xf]
      %v2812 = vld [vmem:[%s16 + $0xec] sm:$0xf]
      %v2813 = vld [vmem:[%s16 + $0xf0] sm:$0xf]
      %v2814 = vld [vmem:[%s16 + $0xf4] sm:$0xf]
      %v2815 = vld [vmem:[%s16 + $0xf8] sm:$0xf]
      %v2816 = vld [vmem:[%s16 + $0xfc] sm:$0xf]
      %v2817 = vld [vmem:[%s17] sm:$0x1]
      %v2819 = vlaneseq
      %v2820 = vshrl.u32 %v2819, 7
      %v2821 = vsub.s32 0, %v2820
      %v2822 = vrot.slane %v2817, %v2821
      %v2888 = vunpack.c.l.b16 %v2753
      %v2889 = vunpack.c.l.b16 %v2754
      %v2890 = vunpack.c.l.b16 %v2755
      %v2891 = vunpack.c.l.b16 %v2756
      %v2892 = vunpack.c.l.b16 %v2757
      %v2893 = vunpack.c.l.b16 %v2758
      %v2894 = vunpack.c.l.b16 %v2759
      %v2895 = vunpack.c.l.b16 %v2760
      %v2896 = vunpack.c.l.b16 %v2761
      %v2897 = vunpack.c.l.b16 %v2762
      %v2898 = vunpack.c.l.b16 %v2763
      %v2899 = vunpack.c.l.b16 %v2764
      %v2900 = vunpack.c.l.b16 %v2765
      %v2901 = vunpack.c.l.b16 %v2766
      %v2902 = vunpack.c.l.b16 %v2767
      %v2903 = vunpack.c.l.b16 %v2768
      %v2904 = vunpack.c.l.b16 %v2769
      %v2905 = vunpack.c.l.b16 %v2770
      %v2906 = vunpack.c.l.b16 %v2771
      %v2907 = vunpack.c.l.b16 %v2772
      %v2908 = vunpack.c.l.b16 %v2773
      %v2909 = vunpack.c.l.b16 %v2774
      %v2910 = vunpack.c.l.b16 %v2775
      %v2911 = vunpack.c.l.b16 %v2776
      %v2912 = vunpack.c.l.b16 %v2777
      %v2913 = vunpack.c.l.b16 %v2778
      %v2914 = vunpack.c.l.b16 %v2779
      %v2915 = vunpack.c.l.b16 %v2780
      %v2916 = vunpack.c.l.b16 %v2781
      %v2917 = vunpack.c.l.b16 %v2782
      %v2918 = vunpack.c.l.b16 %v2783
      %v2919 = vunpack.c.l.b16 %v2784
      %v2920 = vunpack.c.l.b16 %v2785
      %v2921 = vunpack.c.l.b16 %v2786
      %v2922 = vunpack.c.l.b16 %v2787
      %v2923 = vunpack.c.l.b16 %v2788
      %v2924 = vunpack.c.l.b16 %v2789
      %v2925 = vunpack.c.l.b16 %v2790
      %v2926 = vunpack.c.l.b16 %v2791
      %v2927 = vunpack.c.l.b16 %v2792
      %v2928 = vunpack.c.l.b16 %v2793
      %v2929 = vunpack.c.l.b16 %v2794
      %v2930 = vunpack.c.l.b16 %v2795
      %v2931 = vunpack.c.l.b16 %v2796
      %v2932 = vunpack.c.l.b16 %v2797
      %v2933 = vunpack.c.l.b16 %v2798
      %v2934 = vunpack.c.l.b16 %v2799
      %v2935 = vunpack.c.l.b16 %v2800
      %v2936 = vunpack.c.l.b16 %v2801
      %v2937 = vunpack.c.l.b16 %v2802
      %v2938 = vunpack.c.l.b16 %v2803
      %v2939 = vunpack.c.l.b16 %v2804
      %v2940 = vunpack.c.l.b16 %v2805
      %v2941 = vunpack.c.l.b16 %v2806
      %v2942 = vunpack.c.l.b16 %v2807
      %v2943 = vunpack.c.l.b16 %v2808
      %v2944 = vunpack.c.l.b16 %v2809
      %v2945 = vunpack.c.l.b16 %v2810
      %v2946 = vunpack.c.l.b16 %v2811
      %v2947 = vunpack.c.l.b16 %v2812
      %v2948 = vunpack.c.l.b16 %v2813
      %v2949 = vunpack.c.l.b16 %v2814
      %v2950 = vunpack.c.l.b16 %v2815
      %v2951 = vunpack.c.l.b16 %v2816
      %v2952 = vpack.c.b16 %v2889, %v2888
      %v2953 = vpack.c.b16 %v2891, %v2890
      %v2954 = vpack.c.b16 %v2893, %v2892
      %v2955 = vpack.c.b16 %v2895, %v2894
      %v2956 = vpack.c.b16 %v2897, %v2896
      %v2957 = vpack.c.b16 %v2899, %v2898
      %v2958 = vpack.c.b16 %v2901, %v2900
      %v2959 = vpack.c.b16 %v2903, %v2902
      %v2960 = vpack.c.b16 %v2905, %v2904
      %v2961 = vpack.c.b16 %v2907, %v2906
      %v2962 = vpack.c.b16 %v2909, %v2908
      %v2963 = vpack.c.b16 %v2911, %v2910
      %v2964 = vpack.c.b16 %v2913, %v2912
      %v2965 = vpack.c.b16 %v2915, %v2914
      %v2966 = vpack.c.b16 %v2917, %v2916
      %v2967 = vpack.c.b16 %v2919, %v2918
      %v2968 = vpack.c.b16 %v2921, %v2920
      %v2969 = vpack.c.b16 %v2923, %v2922
      %v2970 = vpack.c.b16 %v2925, %v2924
      %v2971 = vpack.c.b16 %v2927, %v2926
      %v2972 = vpack.c.b16 %v2929, %v2928
      %v2973 = vpack.c.b16 %v2931, %v2930
      %v2974 = vpack.c.b16 %v2933, %v2932
      %v2975 = vpack.c.b16 %v2935, %v2934
      %v2976 = vpack.c.b16 %v2937, %v2936
      %v2977 = vpack.c.b16 %v2939, %v2938
      %v2978 = vpack.c.b16 %v2941, %v2940
      %v2979 = vpack.c.b16 %v2943, %v2942
      %v2980 = vpack.c.b16 %v2945, %v2944
      %v2981 = vpack.c.b16 %v2947, %v2946
      %v2982 = vpack.c.b16 %v2949, %v2948
      %v2983 = vpack.c.b16 %v2951, %v2950
      %3016 = vmatprep.subr.bf16.mxu0 0
      %3017 = vmatpush1.bf16.msra.mxu0 %v2952
      %3018 = vmatprep.subr.bf16.mxu0 0
      %3019 = vmatpush1.bf16.msra.mxu0 %v2953
      %3020 = vmatprep.subr.bf16.mxu0 0
      %3021 = vmatpush1.bf16.msra.mxu0 %v2954
      %3022 = vmatprep.subr.bf16.mxu0 0
      %3023 = vmatpush1.bf16.msra.mxu0 %v2955
      %3024 = vmatprep.subr.bf16.mxu0 0
      %3025 = vmatpush1.bf16.msra.mxu0 %v2956
      %3026 = vmatprep.subr.bf16.mxu0 0
      %3027 = vmatpush1.bf16.msra.mxu0 %v2957
      %3028 = vmatprep.subr.bf16.mxu0 0
      %3029 = vmatpush1.bf16.msra.mxu0 %v2958
      %3030 = vmatprep.subr.bf16.mxu0 0
      %3031 = vmatpush1.bf16.msra.mxu0 %v2959
      %3032 = vmatprep.subr.bf16.mxu0 0
      %3033 = vmatpush1.bf16.msra.mxu0 %v2960
      %3034 = vmatprep.subr.bf16.mxu0 0
      %3035 = vmatpush1.bf16.msra.mxu0 %v2961
      %3036 = vmatprep.subr.bf16.mxu0 0
      %3037 = vmatpush1.bf16.msra.mxu0 %v2962
      %3038 = vmatprep.subr.bf16.mxu0 0
      %3039 = vmatpush1.bf16.msra.mxu0 %v2963
      %3040 = vmatprep.subr.bf16.mxu0 0
      %3041 = vmatpush1.bf16.msra.mxu0 %v2964
      %3042 = vmatprep.subr.bf16.mxu0 0
      %3043 = vmatpush1.bf16.msra.mxu0 %v2965
      %3044 = vmatprep.subr.bf16.mxu0 0
      %3045 = vmatpush1.bf16.msra.mxu0 %v2966
      %3046 = vmatprep.subr.bf16.mxu0 0
      %3047 = vmatpush1.bf16.msra.mxu0 %v2967
      %3048 = vmatprep.mubr.bf16.mxu0 %v2750
      %3049 = vmatmul.mubr.bf16.gmra.mrb[0].mxu0 %v2749
      %v3050 = vpop.f32.mrb[0].mxu0
      %v3051 = vadd.f32 %v2822, %v3050
      %v3052 = vpop.f32.mrb[0].mxu0
      %v3053 = vpop.f32.mrb[0].mxu0
      %v3054 = vadd.f32 %v2822, %v3053
      %v3055 = vpop.f32.mrb[0].mxu0
      %3056 = vdwg.mxu0
      %3057 = vmatprep.subr.bf16.mxu0 0
      %3058 = vmatpush1.bf16.msra.mxu0 %v2968
      %3059 = vmatprep.subr.bf16.mxu0 0
      %3060 = vmatpush1.bf16.msra.mxu0 %v2969
      %3061 = vmatprep.subr.bf16.mxu0 0
      %3062 = vmatpush1.bf16.msra.mxu0 %v2970
      %3063 = vmatprep.subr.bf16.mxu0 0
      %3064 = vmatpush1.bf16.msra.mxu0 %v2971
      %3065 = vmatprep.subr.bf16.mxu0 0
      %3066 = vmatpush1.bf16.msra.mxu0 %v2972
      %3067 = vmatprep.subr.bf16.mxu0 0
      %3068 = vmatpush1.bf16.msra.mxu0 %v2973
      %3069 = vmatprep.subr.bf16.mxu0 0
      %3070 = vmatpush1.bf16.msra.mxu0 %v2974
      %3071 = vmatprep.subr.bf16.mxu0 0
      %3072 = vmatpush1.bf16.msra.mxu0 %v2975
      %3073 = vmatprep.subr.bf16.mxu0 0
      %3074 = vmatpush1.bf16.msra.mxu0 %v2976
      %3075 = vmatprep.subr.bf16.mxu0 0
      %3076 = vmatpush1.bf16.msra.mxu0 %v2977
      %3077 = vmatprep.subr.bf16.mxu0 0
      %3078 = vmatpush1.bf16.msra.mxu0 %v2978
      %3079 = vmatprep.subr.bf16.mxu0 0
      %3080 = vmatpush1.bf16.msra.mxu0 %v2979
      %3081 = vmatprep.subr.bf16.mxu0 0
      %3082 = vmatpush1.bf16.msra.mxu0 %v2980
      %3083 = vmatprep.subr.bf16.mxu0 0
      %3084 = vmatpush1.bf16.msra.mxu0 %v2981
      %3085 = vmatprep.subr.bf16.mxu0 0
      %3086 = vmatpush1.bf16.msra.mxu0 %v2982
      %3087 = vmatprep.subr.bf16.mxu0 0
      %3088 = vmatpush1.bf16.msra.mxu0 %v2983
      %3089 = vmatprep.mubr.bf16.mxu0 %v2752
      %3090 = vmatmul.mubr.bf16.gmra.mrb[0].mxu0 %v2751
      %v3091 = vpop.f32.mrb[0].mxu0
      %v3092 = vadd.f32 %v3051, %v3091
      %v3093 = vpop.f32.mrb[0].mxu0
      %v3094 = vpop.f32.mrb[0].mxu0
      %v3095 = vadd.f32 %v3054, %v3094
      %v3096 = vpop.f32.mrb[0].mxu0
      %3097 = vdwg.mxu0
      %v3098 = vadd.f32 %v2531, %v3092
      %v3099 = vadd.f32 %v2532, %v3095
      %v3100 = vld [vmem:[%s18] sm:$0x1]
      %v3101 = vld [vmem:[%s19] sm:$0x1]
      %v3102 = vsel %vm1190, %v3098, 0.0
      %3103 = vadd.xlane.f32.xlu0 %v3102
      %v3104 = vpop.xlane.xlu0 %3103
      %v3105 = vsel %vm2492, %v3099, 0.0
      %3106 = vadd.xlane.f32.xlu0 %v3105
      %v3107 = vpop.xlane.xlu0 %3106
      %v3108 = vmul.f32 %v3104, %v2496
      %v3109 = vmul.f32 %v3107, %v2496
      %v3110 = vsub.f32 %v3098, %v3108
      %v3111 = vsub.f32 %v3099, %v3109
      %v3112 = vmul.f32 %v3110, %v3110
      %v3113 = vmul.f32 %v3111, %v3111
      %v3114 = vsel %vm1190, %v3112, 0.0
      %3115 = vadd.xlane.f32.xlu0 %v3114
      %v3116 = vpop.xlane.xlu0 %3115
      %v3117 = vsel %vm2492, %v3113, 0.0
      %3118 = vadd.xlane.f32.xlu0 %v3117
      %v3119 = vpop.xlane.xlu0 %3118
      %v3120 = vmul.f32 %v3116, %v2496
      %v3121 = vmul.f32 %v3119, %v2496
      %v3122 = vadd.f32 %v3120, 1e-05
      %v3123 = vadd.f32 %v3121, 1e-05
      %v3124 = vrsqrt.pop %v3122
      %v3125 = vrsqrt.pop %v3123
      %v3126 = vmul.f32 %v3110, %v3124
      %v3127 = vmul.f32 %v3111, %v3125
      %v3129 = vlaneseq
      %v3130 = vshrl.u32 %v3129, 7
      %v3131 = vsub.s32 0, %v3130
      %v3132 = vrot.slane %v3100, %v3131
      %v3134 = vmul.f32 %v3126, %v3132
      %v3135 = vmul.f32 %v3127, %v3132
      %v3137 = vlaneseq
      %v3138 = vshrl.u32 %v3137, 7
      %v3139 = vsub.s32 0, %v3138
      %v3140 = vrot.slane %v3101, %v3139
      %v3142 = vadd.f32 %v3134, %v3140
      %v3143 = vadd.f32 %v3135, %v3140
      %v3144 = vpack.c.bf16 %v3143, %v3142
      %s3145 = scalar_lea.vmem %s8, 64
      %v3146 = vld [vmem:[%s3145] sm:$0xff]
      %v3147 = vld [vmem:[%s3145 + $0x8] sm:$0xff]
      %v3148 = vld [vmem:[%s3145 + $0x10] sm:$0xff]
      %v3149 = vld [vmem:[%s3145 + $0x18] sm:$0xff]
      %v3150 = vld [vmem:[%s3145 + $0x20] sm:$0xff]
      %v3151 = vld [vmem:[%s3145 + $0x28] sm:$0xff]
      %v3152 = vld [vmem:[%s3145 + $0x30] sm:$0xff]
      %v3153 = vld [vmem:[%s3145 + $0x38] sm:$0xff]
      %s3154 = scalar_lea.vmem %s9, 2
      %v3155 = vld [vmem:[%s3154] sm:$0x3]
      %v3157 = vlaneseq
      %v3158 = vshrl.u32 %v3157, 7
      %v3159 = vsub.s32 0, %v3158
      %v3160 = vrot.slane %v3155, %v3159
      %v3161 = vlaneseq
      %v3162 = vshrl.u32 %v3161, 7
      %v3163 = vsub.s32 1, %v3162
      %v3164 = vrot.slane %v3155, %v3163
      %v3175 = vunpack.c.l.b16 %v3146
      %v3176 = vunpack.c.h.b16 %v3146
      %v3177 = vunpack.c.l.b16 %v3147
      %v3178 = vunpack.c.h.b16 %v3147
      %v3179 = vunpack.c.l.b16 %v3148
      %v3180 = vunpack.c.h.b16 %v3148
      %v3181 = vunpack.c.l.b16 %v3149
      %v3182 = vunpack.c.h.b16 %v3149
      %v3183 = vunpack.c.l.b16 %v3150
      %v3184 = vunpack.c.h.b16 %v3150
      %v3185 = vunpack.c.l.b16 %v3151
      %v3186 = vunpack.c.h.b16 %v3151
      %v3187 = vunpack.c.l.b16 %v3152
      %v3188 = vunpack.c.h.b16 %v3152
      %v3189 = vunpack.c.l.b16 %v3153
      %v3190 = vunpack.c.h.b16 %v3153
      %v3191 = vpack.c.b16 %v3177, %v3175
      %v3192 = vpack.c.b16 %v3178, %v3176
      %v3193 = vpack.c.b16 %v3181, %v3179
      %v3194 = vpack.c.b16 %v3182, %v3180
      %v3195 = vpack.c.b16 %v3185, %v3183
      %v3196 = vpack.c.b16 %v3186, %v3184
      %v3197 = vpack.c.b16 %v3189, %v3187
      %v3198 = vpack.c.b16 %v3190, %v3188
      %v3208 = vsel %vm1190, %v3144, 0
      %3210 = vmatprep.subr.bf16.mxu0 %v3192
      %3211 = vmatpush1.bf16.msra.mxu0 %v3191
      %3212 = vmatprep.subr.bf16.mxu0 %v3194
      %3213 = vmatpush1.bf16.msra.mxu0 %v3193
      %3214 = vmatprep.subr.bf16.mxu0 %v3196
      %3215 = vmatpush1.bf16.msra.mxu0 %v3195
      %3216 = vmatprep.subr.bf16.mxu0 %v3198
      %3217 = vmatpush1.bf16.msra.mxu0 %v3197
      %3218 = vmatprep.subr.bf16.mxu0 0
      %3219 = vmatpush1.bf16.msra.mxu0 0
      %3220 = vmatprep.subr.bf16.mxu0 0
      %3221 = vmatpush1.bf16.msra.mxu0 0
      %3222 = vmatprep.subr.bf16.mxu0 0
      %3223 = vmatpush1.bf16.msra.mxu0 0
      %3224 = vmatprep.subr.bf16.mxu0 0
      %3225 = vmatpush1.bf16.msra.mxu0 0
      %3226 = vmatprep.subr.bf16.mxu0 0
      %3227 = vmatpush1.bf16.msra.mxu0 0
      %3228 = vmatprep.subr.bf16.mxu0 0
      %3229 = vmatpush1.bf16.msra.mxu0 0
      %3230 = vmatprep.subr.bf16.mxu0 0
      %3231 = vmatpush1.bf16.msra.mxu0 0
      %3232 = vmatprep.subr.bf16.mxu0 0
      %3233 = vmatpush1.bf16.msra.mxu0 0
      %3234 = vmatprep.subr.bf16.mxu0 0
      %3235 = vmatpush1.bf16.msra.mxu0 0
      %3236 = vmatprep.subr.bf16.mxu0 0
      %3237 = vmatpush1.bf16.msra.mxu0 0
      %3238 = vmatprep.subr.bf16.mxu0 0
      %3239 = vmatpush1.bf16.msra.mxu0 0
      %3240 = vmatprep.subr.bf16.mxu0 0
      %3241 = vmatpush1.bf16.msra.mxu0 0
      %3242 = vmatprep.mubr.bf16.mxu0 0
      %3243 = vmatmul.mubr.bf16.gmra.mrb[0].mxu0 %v3208
      %v3244 = vpop.f32.mrb[0].mxu0
      %v3245 = vadd.f32 %v3160, %v3244
      %v3246 = vpop.f32.mrb[0].mxu0
      %v3247 = vadd.f32 %v3164, %v3246
      %v3248 = vpop.f32.mrb[0].mxu0
      %v3249 = vadd.f32 %v3160, %v3248
      %v3250 = vpop.f32.mrb[0].mxu0
      %v3251 = vadd.f32 %v3164, %v3250
      %3252 = vdwg.mxu0
      %3255 = vrot.lane.b32.xlu0 %v3245, 120
      %v3256 = vpop.permute.xlu0 %3255
      %3257 = vrot.lane.b32.xlu0 %v3249, 120
      %v3258 = vpop.permute.xlu0 %3257
      %3261 = vrot.lane.b32.xlu0 %v3245, 112
      %v3262 = vpop.permute.xlu0 %3261
      %3263 = vrot.lane.b32.xlu0 %v3249, 112
      %v3264 = vpop.permute.xlu0 %3263
      %3267 = vrot.lane.b32.xlu0 %v3245, 104
      %v3268 = vpop.permute.xlu0 %3267
      %3269 = vrot.lane.b32.xlu0 %v3249, 104
      %v3270 = vpop.permute.xlu0 %3269
      %3273 = vrot.lane.b32.xlu0 %v3245, 96
      %v3274 = vpop.permute.xlu0 %3273
      %3275 = vrot.lane.b32.xlu0 %v3249, 96
      %v3276 = vpop.permute.xlu0 %3275
      %3279 = vrot.lane.b32.xlu0 %v3245, 88
      %v3280 = vpop.permute.xlu0 %3279
      %3281 = vrot.lane.b32.xlu0 %v3249, 88
      %v3282 = vpop.permute.xlu0 %3281
      %3285 = vrot.lane.b32.xlu0 %v3245, 80
      %v3286 = vpop.permute.xlu0 %3285
      %3287 = vrot.lane.b32.xlu0 %v3249, 80
      %v3288 = vpop.permute.xlu0 %3287
      %3291 = vrot.lane.b32.xlu0 %v3245, 72
      %v3292 = vpop.permute.xlu0 %3291
      %3293 = vrot.lane.b32.xlu0 %v3249, 72
      %v3294 = vpop.permute.xlu0 %3293
      %v3297 = vpack.c.bf16 %v3249, %v3245
      %v3298 = vpack.c.bf16 %v3258, %v3256
      %v3299 = vpack.c.bf16 %v3264, %v3262
      %v3300 = vpack.c.bf16 %v3270, %v3268
      %v3301 = vpack.c.bf16 %v3276, %v3274
      %v3302 = vpack.c.bf16 %v3282, %v3280
      %v3303 = vpack.c.bf16 %v3288, %v3286
      %v3304 = vpack.c.bf16 %v3294, %v3292
      %3307 = vrot.lane.b32.xlu0 %v3247, 120
      %v3308 = vpop.permute.xlu0 %3307
      %3309 = vrot.lane.b32.xlu0 %v3251, 120
      %v3310 = vpop.permute.xlu0 %3309
      %3313 = vrot.lane.b32.xlu0 %v3247, 112
      %v3314 = vpop.permute.xlu0 %3313
      %3315 = vrot.lane.b32.xlu0 %v3251, 112
      %v3316 = vpop.permute.xlu0 %3315
      %3319 = vrot.lane.b32.xlu0 %v3247, 104
      %v3320 = vpop.permute.xlu0 %3319
      %3321 = vrot.lane.b32.xlu0 %v3251, 104
      %v3322 = vpop.permute.xlu0 %3321
      %3325 = vrot.lane.b32.xlu0 %v3247, 96
      %v3326 = vpop.permute.xlu0 %3325
      %3327 = vrot.lane.b32.xlu0 %v3251, 96
      %v3328 = vpop.permute.xlu0 %3327
      %3331 = vrot.lane.b32.xlu0 %v3247, 88
      %v3332 = vpop.permute.xlu0 %3331
      %3333 = vrot.lane.b32.xlu0 %v3251, 88
      %v3334 = vpop.permute.xlu0 %3333
      %3337 = vrot.lane.b32.xlu0 %v3247, 80
      %v3338 = vpop.permute.xlu0 %3337
      %3339 = vrot.lane.b32.xlu0 %v3251, 80
      %v3340 = vpop.permute.xlu0 %3339
      %3343 = vrot.lane.b32.xlu0 %v3247, 72
      %v3344 = vpop.permute.xlu0 %3343
      %3345 = vrot.lane.b32.xlu0 %v3251, 72
      %v3346 = vpop.permute.xlu0 %3345
      %v3349 = vpack.c.bf16 %v3251, %v3247
      %v3350 = vpack.c.bf16 %v3310, %v3308
      %v3351 = vpack.c.bf16 %v3316, %v3314
      %v3352 = vpack.c.bf16 %v3322, %v3320
      %v3353 = vpack.c.bf16 %v3328, %v3326
      %v3354 = vpack.c.bf16 %v3334, %v3332
      %v3355 = vpack.c.bf16 %v3340, %v3338
      %v3356 = vpack.c.bf16 %v3346, %v3344
      %3358 = vrot.lane.b32.xlu0 %v3297, 64
      %v3359 = vpop.permute.xlu0 %3358
      %v3361 = vsel %vm1344, %v3297, 0
      %v3364 = vsel %vm1344, %v3359, 0
      %3366 = vmatprep.subr.bf16.mxu0 0
      %3367 = vmatpush1.bf16.xpose.msra.mxu0 %v3364
      %3368 = vmatprep.subr.bf16.mxu0 0
      %3369 = vmatpush1.bf16.xpose.msra.mxu0 0
      %3370 = vmatprep.subr.bf16.mxu0 0
      %3371 = vmatpush1.bf16.xpose.msra.mxu0 0
      %3372 = vmatprep.subr.bf16.mxu0 0
      %3373 = vmatpush1.bf16.xpose.msra.mxu0 0
      %3374 = vmatprep.subr.bf16.mxu0 0
      %3375 = vmatpush1.bf16.xpose.msra.mxu0 0
      %3376 = vmatprep.subr.bf16.mxu0 0
      %3377 = vmatpush1.bf16.xpose.msra.mxu0 0
      %3378 = vmatprep.subr.bf16.mxu0 0
      %3379 = vmatpush1.bf16.xpose.msra.mxu0 0
      %3380 = vmatprep.subr.bf16.mxu0 0
      %3381 = vmatpush1.bf16.xpose.msra.mxu0 0
      %3382 = vmatprep.subr.bf16.mxu0 0
      %3383 = vmatpush1.bf16.xpose.msra.mxu0 0
      %3384 = vmatprep.subr.bf16.mxu0 0
      %3385 = vmatpush1.bf16.xpose.msra.mxu0 0
      %3386 = vmatprep.subr.bf16.mxu0 0
      %3387 = vmatpush1.bf16.xpose.msra.mxu0 0
      %3388 = vmatprep.subr.bf16.mxu0 0
      %3389 = vmatpush1.bf16.xpose.msra.mxu0 0
      %3390 = vmatprep.subr.bf16.mxu0 0
      %3391 = vmatpush1.bf16.xpose.msra.mxu0 0
      %3392 = vmatprep.subr.bf16.mxu0 0
      %3393 = vmatpush1.bf16.xpose.msra.mxu0 0
      %3394 = vmatprep.subr.bf16.mxu0 0
      %3395 = vmatpush1.bf16.xpose.msra.mxu0 0
      %3396 = vmatprep.subr.bf16.mxu0 0
      %3397 = vmatpush1.bf16.xpose.msra.mxu0 0
      %3398 = vmatprep.mubr.bf16.mxu0 0
      %3399 = vmatmul.mubr.bf16.gmra.mrb[0].mxu0 %v3361
      %v3400 = vpop.f32.mrb[0].mxu0
      %v3401 = vadd.f32 0.0, %v3400
      %v3402 = vpop.f32.mrb[0].mxu0
      %v3403 = vpop.f32.mrb[0].mxu0
      %v3404 = vadd.f32 0.0, %v3403
      %v3405 = vpop.f32.mrb[0].mxu0
      %3406 = vdwg.mxu0
      %3408 = vrot.lane.b32.xlu0 %v3298, 64
      %v3409 = vpop.permute.xlu0 %3408
      %v3411 = vsel %vm1344, %v3298, 0
      %v3414 = vsel %vm1344, %v3409, 0
      %3416 = vmatprep.subr.bf16.mxu0 0
      %3417 = vmatpush1.bf16.xpose.msra.mxu0 %v3414
      %3418 = vmatprep.subr.bf16.mxu0 0
      %3419 = vmatpush1.bf16.xpose.msra.mxu0 0
      %3420 = vmatprep.subr.bf16.mxu0 0
      %3421 = vmatpush1.bf16.xpose.msra.mxu0 0
      %3422 = vmatprep.subr.bf16.mxu0 0
      %3423 = vmatpush1.bf16.xpose.msra.mxu0 0
      %3424 = vmatprep.subr.bf16.mxu0 0
      %3425 = vmatpush1.bf16.xpose.msra.mxu0 0
      %3426 = vmatprep.subr.bf16.mxu0 0
      %3427 = vmatpush1.bf16.xpose.msra.mxu0 0
      %3428 = vmatprep.subr.bf16.mxu0 0
      %3429 = vmatpush1.bf16.xpose.msra.mxu0 0
      %3430 = vmatprep.subr.bf16.mxu0 0
      %3431 = vmatpush1.bf16.xpose.msra.mxu0 0
      %3432 = vmatprep.subr.bf16.mxu0 0
      %3433 = vmatpush1.bf16.xpose.msra.mxu0 0
      %3434 = vmatprep.subr.bf16.mxu0 0
      %3435 = vmatpush1.bf16.xpose.msra.mxu0 0
      %3436 = vmatprep.subr.bf16.mxu0 0
      %3437 = vmatpush1.bf16.xpose.msra.mxu0 0
      %3438 = vmatprep.subr.bf16.mxu0 0
      %3439 = vmatpush1.bf16.xpose.msra.mxu0 0
      %3440 = vmatprep.subr.bf16.mxu0 0
      %3441 = vmatpush1.bf16.xpose.msra.mxu0 0
      %3442 = vmatprep.subr.bf16.mxu0 0
      %3443 = vmatpush1.bf16.xpose.msra.mxu0 0
      %3444 = vmatprep.subr.bf16.mxu0 0
      %3445 = vmatpush1.bf16.xpose.msra.mxu0 0
      %3446 = vmatprep.subr.bf16.mxu0 0
      %3447 = vmatpush1.bf16.xpose.msra.mxu0 0
      %3448 = vmatprep.mubr.bf16.mxu0 0
      %3449 = vmatmul.mubr.bf16.gmra.mrb[0].mxu0 %v3411
      %v3450 = vpop.f32.mrb[0].mxu0
      %v3451 = vadd.f32 0.0, %v3450
      %v3452 = vpop.f32.mrb[0].mxu0
      %v3453 = vpop.f32.mrb[0].mxu0
      %v3454 = vadd.f32 0.0, %v3453
      %v3455 = vpop.f32.mrb[0].mxu0
      %3456 = vdwg.mxu0
      %3458 = vrot.lane.b32.xlu0 %v3299, 64
      %v3459 = vpop.permute.xlu0 %3458
      %v3461 = vsel %vm1344, %v3299, 0
      %v3464 = vsel %vm1344, %v3459, 0
      %3466 = vmatprep.subr.bf16.mxu0 0
      %3467 = vmatpush1.bf16.xpose.msra.mxu0 %v3464
      %3468 = vmatprep.subr.bf16.mxu0 0
      %3469 = vmatpush1.bf16.xpose.msra.mxu0 0
      %3470 = vmatprep.subr.bf16.mxu0 0
      %3471 = vmatpush1.bf16.xpose.msra.mxu0 0
      %3472 = vmatprep.subr.bf16.mxu0 0
      %3473 = vmatpush1.bf16.xpose.msra.mxu0 0
      %3474 = vmatprep.subr.bf16.mxu0 0
      %3475 = vmatpush1.bf16.xpose.msra.mxu0 0
      %3476 = vmatprep.subr.bf16.mxu0 0
      %3477 = vmatpush1.bf16.xpose.msra.mxu0 0
      %3478 = vmatprep.subr.bf16.mxu0 0
      %3479 = vmatpush1.bf16.xpose.msra.mxu0 0
      %3480 = vmatprep.subr.bf16.mxu0 0
      %3481 = vmatpush1.bf16.xpose.msra.mxu0 0
      %3482 = vmatprep.subr.bf16.mxu0 0
      %3483 = vmatpush1.bf16.xpose.msra.mxu0 0
      %3484 = vmatprep.subr.bf16.mxu0 0
      %3485 = vmatpush1.bf16.xpose.msra.mxu0 0
      %3486 = vmatprep.subr.bf16.mxu0 0
      %3487 = vmatpush1.bf16.xpose.msra.mxu0 0
      %3488 = vmatprep.subr.bf16.mxu0 0
      %3489 = vmatpush1.bf16.xpose.msra.mxu0 0
      %3490 = vmatprep.subr.bf16.mxu0 0
      %3491 = vmatpush1.bf16.xpose.msra.mxu0 0
      %3492 = vmatprep.subr.bf16.mxu0 0
      %3493 = vmatpush1.bf16.xpose.msra.mxu0 0
      %3494 = vmatprep.subr.bf16.mxu0 0
      %3495 = vmatpush1.bf16.xpose.msra.mxu0 0
      %3496 = vmatprep.subr.bf16.mxu0 0
      %3497 = vmatpush1.bf16.xpose.msra.mxu0 0
      %3498 = vmatprep.mubr.bf16.mxu0 0
      %3499 = vmatmul.mubr.bf16.gmra.mrb[0].mxu0 %v3461
      %v3500 = vpop.f32.mrb[0].mxu0
      %v3501 = vadd.f32 0.0, %v3500
      %v3502 = vpop.f32.mrb[0].mxu0
      %v3503 = vpop.f32.mrb[0].mxu0
      %v3504 = vadd.f32 0.0, %v3503
      %v3505 = vpop.f32.mrb[0].mxu0
      %3506 = vdwg.mxu0
      %3508 = vrot.lane.b32.xlu0 %v3300, 64
      %v3509 = vpop.permute.xlu0 %3508
      %v3511 = vsel %vm1344, %v3300, 0
      %v3514 = vsel %vm1344, %v3509, 0
      %3516 = vmatprep.subr.bf16.mxu0 0
      %3517 = vmatpush1.bf16.xpose.msra.mxu0 %v3514
      %3518 = vmatprep.subr.bf16.mxu0 0
      %3519 = vmatpush1.bf16.xpose.msra.mxu0 0
      %3520 = vmatprep.subr.bf16.mxu0 0
      %3521 = vmatpush1.bf16.xpose.msra.mxu0 0
      %3522 = vmatprep.subr.bf16.mxu0 0
      %3523 = vmatpush1.bf16.xpose.msra.mxu0 0
      %3524 = vmatprep.subr.bf16.mxu0 0
      %3525 = vmatpush1.bf16.xpose.msra.mxu0 0
      %3526 = vmatprep.subr.bf16.mxu0 0
      %3527 = vmatpush1.bf16.xpose.msra.mxu0 0
      %3528 = vmatprep.subr.bf16.mxu0 0
      %3529 = vmatpush1.bf16.xpose.msra.mxu0 0
      %3530 = vmatprep.subr.bf16.mxu0 0
      %3531 = vmatpush1.bf16.xpose.msra.mxu0 0
      %3532 = vmatprep.subr.bf16.mxu0 0
      %3533 = vmatpush1.bf16.xpose.msra.mxu0 0
      %3534 = vmatprep.subr.bf16.mxu0 0
      %3535 = vmatpush1.bf16.xpose.msra.mxu0 0
      %3536 = vmatprep.subr.bf16.mxu0 0
      %3537 = vmatpush1.bf16.xpose.msra.mxu0 0
      %3538 = vmatprep.subr.bf16.mxu0 0
      %3539 = vmatpush1.bf16.xpose.msra.mxu0 0
      %3540 = vmatprep.subr.bf16.mxu0 0
      %3541 = vmatpush1.bf16.xpose.msra.mxu0 0
      %3542 = vmatprep.subr.bf16.mxu0 0
      %3543 = vmatpush1.bf16.xpose.msra.mxu0 0
      %3544 = vmatprep.subr.bf16.mxu0 0
      %3545 = vmatpush1.bf16.xpose.msra.mxu0 0
      %3546 = vmatprep.subr.bf16.mxu0 0
      %3547 = vmatpush1.bf16.xpose.msra.mxu0 0
      %3548 = vmatprep.mubr.bf16.mxu0 0
      %3549 = vmatmul.mubr.bf16.gmra.mrb[0].mxu0 %v3511
      %v3550 = vpop.f32.mrb[0].mxu0
      %v3551 = vadd.f32 0.0, %v3550
      %v3552 = vpop.f32.mrb[0].mxu0
      %v3553 = vpop.f32.mrb[0].mxu0
      %v3554 = vadd.f32 0.0, %v3553
      %v3555 = vpop.f32.mrb[0].mxu0
      %3556 = vdwg.mxu0
      %3558 = vrot.lane.b32.xlu0 %v3301, 64
      %v3559 = vpop.permute.xlu0 %3558
      %v3561 = vsel %vm1344, %v3301, 0
      %v3564 = vsel %vm1344, %v3559, 0
      %3566 = vmatprep.subr.bf16.mxu0 0
      %3567 = vmatpush1.bf16.xpose.msra.mxu0 %v3564
      %3568 = vmatprep.subr.bf16.mxu0 0
      %3569 = vmatpush1.bf16.xpose.msra.mxu0 0
      %3570 = vmatprep.subr.bf16.mxu0 0
      %3571 = vmatpush1.bf16.xpose.msra.mxu0 0
      %3572 = vmatprep.subr.bf16.mxu0 0
      %3573 = vmatpush1.bf16.xpose.msra.mxu0 0
      %3574 = vmatprep.subr.bf16.mxu0 0
      %3575 = vmatpush1.bf16.xpose.msra.mxu0 0
      %3576 = vmatprep.subr.bf16.mxu0 0
      %3577 = vmatpush1.bf16.xpose.msra.mxu0 0
      %3578 = vmatprep.subr.bf16.mxu0 0
      %3579 = vmatpush1.bf16.xpose.msra.mxu0 0
      %3580 = vmatprep.subr.bf16.mxu0 0
      %3581 = vmatpush1.bf16.xpose.msra.mxu0 0
      %3582 = vmatprep.subr.bf16.mxu0 0
      %3583 = vmatpush1.bf16.xpose.msra.mxu0 0
      %3584 = vmatprep.subr.bf16.mxu0 0
      %3585 = vmatpush1.bf16.xpose.msra.mxu0 0
      %3586 = vmatprep.subr.bf16.mxu0 0
      %3587 = vmatpush1.bf16.xpose.msra.mxu0 0
      %3588 = vmatprep.subr.bf16.mxu0 0
      %3589 = vmatpush1.bf16.xpose.msra.mxu0 0
      %3590 = vmatprep.subr.bf16.mxu0 0
      %3591 = vmatpush1.bf16.xpose.msra.mxu0 0
      %3592 = vmatprep.subr.bf16.mxu0 0
      %3593 = vmatpush1.bf16.xpose.msra.mxu0 0
      %3594 = vmatprep.subr.bf16.mxu0 0
      %3595 = vmatpush1.bf16.xpose.msra.mxu0 0
      %3596 = vmatprep.subr.bf16.mxu0 0
      %3597 = vmatpush1.bf16.xpose.msra.mxu0 0
      %3598 = vmatprep.mubr.bf16.mxu0 0
      %3599 = vmatmul.mubr.bf16.gmra.mrb[0].mxu0 %v3561
      %v3600 = vpop.f32.mrb[0].mxu0
      %v3601 = vadd.f32 0.0, %v3600
      %v3602 = vpop.f32.mrb[0].mxu0
      %v3603 = vpop.f32.mrb[0].mxu0
      %v3604 = vadd.f32 0.0, %v3603
      %v3605 = vpop.f32.mrb[0].mxu0
      %3606 = vdwg.mxu0
      %3608 = vrot.lane.b32.xlu0 %v3302, 64
      %v3609 = vpop.permute.xlu0 %3608
      %v3611 = vsel %vm1344, %v3302, 0
      %v3614 = vsel %vm1344, %v3609, 0
      %3616 = vmatprep.subr.bf16.mxu0 0
      %3617 = vmatpush1.bf16.xpose.msra.mxu0 %v3614
      %3618 = vmatprep.subr.bf16.mxu0 0
      %3619 = vmatpush1.bf16.xpose.msra.mxu0 0
      %3620 = vmatprep.subr.bf16.mxu0 0
      %3621 = vmatpush1.bf16.xpose.msra.mxu0 0
      %3622 = vmatprep.subr.bf16.mxu0 0
      %3623 = vmatpush1.bf16.xpose.msra.mxu0 0
      %3624 = vmatprep.subr.bf16.mxu0 0
      %3625 = vmatpush1.bf16.xpose.msra.mxu0 0
      %3626 = vmatprep.subr.bf16.mxu0 0
      %3627 = vmatpush1.bf16.xpose.msra.mxu0 0
      %3628 = vmatprep.subr.bf16.mxu0 0
      %3629 = vmatpush1.bf16.xpose.msra.mxu0 0
      %3630 = vmatprep.subr.bf16.mxu0 0
      %3631 = vmatpush1.bf16.xpose.msra.mxu0 0
      %3632 = vmatprep.subr.bf16.mxu0 0
      %3633 = vmatpush1.bf16.xpose.msra.mxu0 0
      %3634 = vmatprep.subr.bf16.mxu0 0
      %3635 = vmatpush1.bf16.xpose.msra.mxu0 0
      %3636 = vmatprep.subr.bf16.mxu0 0
      %3637 = vmatpush1.bf16.xpose.msra.mxu0 0
      %3638 = vmatprep.subr.bf16.mxu0 0
      %3639 = vmatpush1.bf16.xpose.msra.mxu0 0
      %3640 = vmatprep.subr.bf16.mxu0 0
      %3641 = vmatpush1.bf16.xpose.msra.mxu0 0
      %3642 = vmatprep.subr.bf16.mxu0 0
      %3643 = vmatpush1.bf16.xpose.msra.mxu0 0
      %3644 = vmatprep.subr.bf16.mxu0 0
      %3645 = vmatpush1.bf16.xpose.msra.mxu0 0
      %3646 = vmatprep.subr.bf16.mxu0 0
      %3647 = vmatpush1.bf16.xpose.msra.mxu0 0
      %3648 = vmatprep.mubr.bf16.mxu0 0
      %3649 = vmatmul.mubr.bf16.gmra.mrb[0].mxu0 %v3611
      %v3650 = vpop.f32.mrb[0].mxu0
      %v3651 = vadd.f32 0.0, %v3650
      %v3652 = vpop.f32.mrb[0].mxu0
      %v3653 = vpop.f32.mrb[0].mxu0
      %v3654 = vadd.f32 0.0, %v3653
      %v3655 = vpop.f32.mrb[0].mxu0
      %3656 = vdwg.mxu0
      %3658 = vrot.lane.b32.xlu0 %v3303, 64
      %v3659 = vpop.permute.xlu0 %3658
      %v3661 = vsel %vm1344, %v3303, 0
      %v3664 = vsel %vm1344, %v3659, 0
      %3666 = vmatprep.subr.bf16.mxu0 0
      %3667 = vmatpush1.bf16.xpose.msra.mxu0 %v3664
      %3668 = vmatprep.subr.bf16.mxu0 0
      %3669 = vmatpush1.bf16.xpose.msra.mxu0 0
      %3670 = vmatprep.subr.bf16.mxu0 0
      %3671 = vmatpush1.bf16.xpose.msra.mxu0 0
      %3672 = vmatprep.subr.bf16.mxu0 0
      %3673 = vmatpush1.bf16.xpose.msra.mxu0 0
      %3674 = vmatprep.subr.bf16.mxu0 0
      %3675 = vmatpush1.bf16.xpose.msra.mxu0 0
      %3676 = vmatprep.subr.bf16.mxu0 0
      %3677 = vmatpush1.bf16.xpose.msra.mxu0 0
      %3678 = vmatprep.subr.bf16.mxu0 0
      %3679 = vmatpush1.bf16.xpose.msra.mxu0 0
      %3680 = vmatprep.subr.bf16.mxu0 0
      %3681 = vmatpush1.bf16.xpose.msra.mxu0 0
      %3682 = vmatprep.subr.bf16.mxu0 0
      %3683 = vmatpush1.bf16.xpose.msra.mxu0 0
      %3684 = vmatprep.subr.bf16.mxu0 0
      %3685 = vmatpush1.bf16.xpose.msra.mxu0 0
      %3686 = vmatprep.subr.bf16.mxu0 0
      %3687 = vmatpush1.bf16.xpose.msra.mxu0 0
      %3688 = vmatprep.subr.bf16.mxu0 0
      %3689 = vmatpush1.bf16.xpose.msra.mxu0 0
      %3690 = vmatprep.subr.bf16.mxu0 0
      %3691 = vmatpush1.bf16.xpose.msra.mxu0 0
      %3692 = vmatprep.subr.bf16.mxu0 0
      %3693 = vmatpush1.bf16.xpose.msra.mxu0 0
      %3694 = vmatprep.subr.bf16.mxu0 0
      %3695 = vmatpush1.bf16.xpose.msra.mxu0 0
      %3696 = vmatprep.subr.bf16.mxu0 0
      %3697 = vmatpush1.bf16.xpose.msra.mxu0 0
      %3698 = vmatprep.mubr.bf16.mxu0 0
      %3699 = vmatmul.mubr.bf16.gmra.mrb[0].mxu0 %v3661
      %v3700 = vpop.f32.mrb[0].mxu0
      %v3701 = vadd.f32 0.0, %v3700
      %v3702 = vpop.f32.mrb[0].mxu0
      %v3703 = vpop.f32.mrb[0].mxu0
      %v3704 = vadd.f32 0.0, %v3703
      %v3705 = vpop.f32.mrb[0].mxu0
      %3706 = vdwg.mxu0
      %3708 = vrot.lane.b32.xlu0 %v3304, 64
      %v3709 = vpop.permute.xlu0 %3708
      %v3711 = vsel %vm1344, %v3304, 0
      %v3714 = vsel %vm1344, %v3709, 0
      %3716 = vmatprep.subr.bf16.mxu0 0
      %3717 = vmatpush1.bf16.xpose.msra.mxu0 %v3714
      %3718 = vmatprep.subr.bf16.mxu0 0
      %3719 = vmatpush1.bf16.xpose.msra.mxu0 0
      %3720 = vmatprep.subr.bf16.mxu0 0
      %3721 = vmatpush1.bf16.xpose.msra.mxu0 0
      %3722 = vmatprep.subr.bf16.mxu0 0
      %3723 = vmatpush1.bf16.xpose.msra.mxu0 0
      %3724 = vmatprep.subr.bf16.mxu0 0
      %3725 = vmatpush1.bf16.xpose.msra.mxu0 0
      %3726 = vmatprep.subr.bf16.mxu0 0
      %3727 = vmatpush1.bf16.xpose.msra.mxu0 0
      %3728 = vmatprep.subr.bf16.mxu0 0
      %3729 = vmatpush1.bf16.xpose.msra.mxu0 0
      %3730 = vmatprep.subr.bf16.mxu0 0
      %3731 = vmatpush1.bf16.xpose.msra.mxu0 0
      %3732 = vmatprep.subr.bf16.mxu0 0
      %3733 = vmatpush1.bf16.xpose.msra.mxu0 0
      %3734 = vmatprep.subr.bf16.mxu0 0
      %3735 = vmatpush1.bf16.xpose.msra.mxu0 0
      %3736 = vmatprep.subr.bf16.mxu0 0
      %3737 = vmatpush1.bf16.xpose.msra.mxu0 0
      %3738 = vmatprep.subr.bf16.mxu0 0
      %3739 = vmatpush1.bf16.xpose.msra.mxu0 0
      %3740 = vmatprep.subr.bf16.mxu0 0
      %3741 = vmatpush1.bf16.xpose.msra.mxu0 0
      %3742 = vmatprep.subr.bf16.mxu0 0
      %3743 = vmatpush1.bf16.xpose.msra.mxu0 0
      %3744 = vmatprep.subr.bf16.mxu0 0
      %3745 = vmatpush1.bf16.xpose.msra.mxu0 0
      %3746 = vmatprep.subr.bf16.mxu0 0
      %3747 = vmatpush1.bf16.xpose.msra.mxu0 0
      %3748 = vmatprep.mubr.bf16.mxu0 0
      %3749 = vmatmul.mubr.bf16.gmra.mrb[0].mxu0 %v3711
      %v3750 = vpop.f32.mrb[0].mxu0
      %v3751 = vadd.f32 0.0, %v3750
      %v3752 = vpop.f32.mrb[0].mxu0
      %v3753 = vpop.f32.mrb[0].mxu0
      %v3754 = vadd.f32 0.0, %v3753
      %v3755 = vpop.f32.mrb[0].mxu0
      %3756 = vdwg.mxu0
      %v3757 = vsel %vm1744, %v3401, -1e+09
      %v3758 = vsel %vm1745, %v3404, -1e+09
      %v3759 = vsel %vm1744, %v3451, -1e+09
      %v3760 = vsel %vm1745, %v3454, -1e+09
      %v3761 = vsel %vm1744, %v3501, -1e+09
      %v3762 = vsel %vm1745, %v3504, -1e+09
      %v3763 = vsel %vm1744, %v3551, -1e+09
      %v3764 = vsel %vm1745, %v3554, -1e+09
      %v3765 = vsel %vm1744, %v3601, -1e+09
      %v3766 = vsel %vm1745, %v3604, -1e+09
      %v3767 = vsel %vm1744, %v3651, -1e+09
      %v3768 = vsel %vm1745, %v3654, -1e+09
      %v3769 = vsel %vm1744, %v3701, -1e+09
      %v3770 = vsel %vm1745, %v3704, -1e+09
      %v3771 = vsel %vm1744, %v3751, -1e+09
      %v3772 = vsel %vm1745, %v3754, -1e+09
      %v3773 = vsel %vm1762, %v3757, -inf
      %3774 = vmax.xlane.f32.xlu0 %v3773
      %v3775 = vpop.xlane.xlu0 %3774
      %v3776 = vsel %vm1766, %v3758, -inf
      %3777 = vmax.xlane.f32.xlu0 %v3776
      %v3778 = vpop.xlane.xlu0 %3777
      %v3779 = vsel %vm1762, %v3759, -inf
      %3780 = vmax.xlane.f32.xlu0 %v3779
      %v3781 = vpop.xlane.xlu0 %3780
      %v3782 = vsel %vm1766, %v3760, -inf
      %3783 = vmax.xlane.f32.xlu0 %v3782
      %v3784 = vpop.xlane.xlu0 %3783
      %v3785 = vsel %vm1762, %v3761, -inf
      %3786 = vmax.xlane.f32.xlu0 %v3785
      %v3787 = vpop.xlane.xlu0 %3786
      %v3788 = vsel %vm1766, %v3762, -inf
      %3789 = vmax.xlane.f32.xlu0 %v3788
      %v3790 = vpop.xlane.xlu0 %3789
      %v3791 = vsel %vm1762, %v3763, -inf
      %3792 = vmax.xlane.f32.xlu0 %v3791
      %v3793 = vpop.xlane.xlu0 %3792
      %v3794 = vsel %vm1766, %v3764, -inf
      %3795 = vmax.xlane.f32.xlu0 %v3794
      %v3796 = vpop.xlane.xlu0 %3795
      %v3797 = vsel %vm1762, %v3765, -inf
      %3798 = vmax.xlane.f32.xlu0 %v3797
      %v3799 = vpop.xlane.xlu0 %3798
      %v3800 = vsel %vm1766, %v3766, -inf
      %3801 = vmax.xlane.f32.xlu0 %v3800
      %v3802 = vpop.xlane.xlu0 %3801
      %v3803 = vsel %vm1762, %v3767, -inf
      %3804 = vmax.xlane.f32.xlu0 %v3803
      %v3805 = vpop.xlane.xlu0 %3804
      %v3806 = vsel %vm1766, %v3768, -inf
      %3807 = vmax.xlane.f32.xlu0 %v3806
      %v3808 = vpop.xlane.xlu0 %3807
      %v3809 = vsel %vm1762, %v3769, -inf
      %3810 = vmax.xlane.f32.xlu0 %v3809
      %v3811 = vpop.xlane.xlu0 %3810
      %v3812 = vsel %vm1766, %v3770, -inf
      %3813 = vmax.xlane.f32.xlu0 %v3812
      %v3814 = vpop.xlane.xlu0 %3813
      %v3815 = vsel %vm1762, %v3771, -inf
      %3816 = vmax.xlane.f32.xlu0 %v3815
      %v3817 = vpop.xlane.xlu0 %3816
      %v3818 = vsel %vm1766, %v3772, -inf
      %3819 = vmax.xlane.f32.xlu0 %v3818
      %v3820 = vpop.xlane.xlu0 %3819
      %v3821 = vsub.f32 %v3757, %v3775
      %v3822 = vsub.f32 %v3758, %v3778
      %v3823 = vsub.f32 %v3759, %v3781
      %v3824 = vsub.f32 %v3760, %v3784
      %v3825 = vsub.f32 %v3761, %v3787
      %v3826 = vsub.f32 %v3762, %v3790
      %v3827 = vsub.f32 %v3763, %v3793
      %v3828 = vsub.f32 %v3764, %v3796
      %v3829 = vsub.f32 %v3765, %v3799
      %v3830 = vsub.f32 %v3766, %v3802
      %v3831 = vsub.f32 %v3767, %v3805
      %v3832 = vsub.f32 %v3768, %v3808
      %v3833 = vsub.f32 %v3769, %v3811
      %v3834 = vsub.f32 %v3770, %v3814
      %v3835 = vsub.f32 %v3771, %v3817
      %v3836 = vsub.f32 %v3772, %v3820
      %v3837 = vmul.f32 %v3821, 1.442695
      %v3838 = vpow.pop %v3837
      %v3839 = vmul.f32 %v3822, 1.442695
      %v3840 = vpow.pop %v3839
      %v3841 = vmul.f32 %v3823, 1.442695
      %v3842 = vpow.pop %v3841
      %v3843 = vmul.f32 %v3824, 1.442695
      %v3844 = vpow.pop %v3843
      %v3845 = vmul.f32 %v3825, 1.442695
      %v3846 = vpow.pop %v3845
      %v3847 = vmul.f32 %v3826, 1.442695
      %v3848 = vpow.pop %v3847
      %v3849 = vmul.f32 %v3827, 1.442695
      %v3850 = vpow.pop %v3849
      %v3851 = vmul.f32 %v3828, 1.442695
      %v3852 = vpow.pop %v3851
      %v3853 = vmul.f32 %v3829, 1.442695
      %v3854 = vpow.pop %v3853
      %v3855 = vmul.f32 %v3830, 1.442695
      %v3856 = vpow.pop %v3855
      %v3857 = vmul.f32 %v3831, 1.442695
      %v3858 = vpow.pop %v3857
      %v3859 = vmul.f32 %v3832, 1.442695
      %v3860 = vpow.pop %v3859
      %v3861 = vmul.f32 %v3833, 1.442695
      %v3862 = vpow.pop %v3861
      %v3863 = vmul.f32 %v3834, 1.442695
      %v3864 = vpow.pop %v3863
      %v3865 = vmul.f32 %v3835, 1.442695
      %v3866 = vpow.pop %v3865
      %v3867 = vmul.f32 %v3836, 1.442695
      %v3868 = vpow.pop %v3867
      %v3869 = vsel %vm1762, %v3838, 0.0
      %3870 = vadd.xlane.f32.xlu0 %v3869
      %v3871 = vpop.xlane.xlu0 %3870
      %v3872 = vsel %vm1766, %v3840, 0.0
      %3873 = vadd.xlane.f32.xlu0 %v3872
      %v3874 = vpop.xlane.xlu0 %3873
      %v3875 = vsel %vm1762, %v3842, 0.0
      %3876 = vadd.xlane.f32.xlu0 %v3875
      %v3877 = vpop.xlane.xlu0 %3876
      %v3878 = vsel %vm1766, %v3844, 0.0
      %3879 = vadd.xlane.f32.xlu0 %v3878
      %v3880 = vpop.xlane.xlu0 %3879
      %v3881 = vsel %vm1762, %v3846, 0.0
      %3882 = vadd.xlane.f32.xlu0 %v3881
      %v3883 = vpop.xlane.xlu0 %3882
      %v3884 = vsel %vm1766, %v3848, 0.0
      %3885 = vadd.xlane.f32.xlu0 %v3884
      %v3886 = vpop.xlane.xlu0 %3885
      %v3887 = vsel %vm1762, %v3850, 0.0
      %3888 = vadd.xlane.f32.xlu0 %v3887
      %v3889 = vpop.xlane.xlu0 %3888
      %v3890 = vsel %vm1766, %v3852, 0.0
      %3891 = vadd.xlane.f32.xlu0 %v3890
      %v3892 = vpop.xlane.xlu0 %3891
      %v3893 = vsel %vm1762, %v3854, 0.0
      %3894 = vadd.xlane.f32.xlu0 %v3893
      %v3895 = vpop.xlane.xlu0 %3894
      %v3896 = vsel %vm1766, %v3856, 0.0
      %3897 = vadd.xlane.f32.xlu0 %v3896
      %v3898 = vpop.xlane.xlu0 %3897
      %v3899 = vsel %vm1762, %v3858, 0.0
      %3900 = vadd.xlane.f32.xlu0 %v3899
      %v3901 = vpop.xlane.xlu0 %3900
      %v3902 = vsel %vm1766, %v3860, 0.0
      %3903 = vadd.xlane.f32.xlu0 %v3902
      %v3904 = vpop.xlane.xlu0 %3903
      %v3905 = vsel %vm1762, %v3862, 0.0
      %3906 = vadd.xlane.f32.xlu0 %v3905
      %v3907 = vpop.xlane.xlu0 %3906
      %v3908 = vsel %vm1766, %v3864, 0.0
      %3909 = vadd.xlane.f32.xlu0 %v3908
      %v3910 = vpop.xlane.xlu0 %3909
      %v3911 = vsel %vm1762, %v3866, 0.0
      %3912 = vadd.xlane.f32.xlu0 %v3911
      %v3913 = vpop.xlane.xlu0 %3912
      %v3914 = vsel %vm1766, %v3868, 0.0
      %3915 = vadd.xlane.f32.xlu0 %v3914
      %v3916 = vpop.xlane.xlu0 %3915
      %v3917 = vrcp.pop %v3871
      %v3918 = vrcp.pop %v3874
      %v3919 = vrcp.pop %v3877
      %v3920 = vrcp.pop %v3880
      %v3921 = vrcp.pop %v3883
      %v3922 = vrcp.pop %v3886
      %v3923 = vrcp.pop %v3889
      %v3924 = vrcp.pop %v3892
      %v3925 = vrcp.pop %v3895
      %v3926 = vrcp.pop %v3898
      %v3927 = vrcp.pop %v3901
      %v3928 = vrcp.pop %v3904
      %v3929 = vrcp.pop %v3907
      %v3930 = vrcp.pop %v3910
      %v3931 = vrcp.pop %v3913
      %v3932 = vrcp.pop %v3916
      %v3933 = vmul.f32 %v3838, %v3917
      %v3934 = vmul.f32 %v3840, %v3918
      %v3935 = vmul.f32 %v3842, %v3919
      %v3936 = vmul.f32 %v3844, %v3920
      %v3937 = vmul.f32 %v3846, %v3921
      %v3938 = vmul.f32 %v3848, %v3922
      %v3939 = vmul.f32 %v3850, %v3923
      %v3940 = vmul.f32 %v3852, %v3924
      %v3941 = vmul.f32 %v3854, %v3925
      %v3942 = vmul.f32 %v3856, %v3926
      %v3943 = vmul.f32 %v3858, %v3927
      %v3944 = vmul.f32 %v3860, %v3928
      %v3945 = vmul.f32 %v3862, %v3929
      %v3946 = vmul.f32 %v3864, %v3930
      %v3947 = vmul.f32 %v3866, %v3931
      %v3948 = vmul.f32 %v3868, %v3932
      %v3949 = vpack.c.bf16 %v3934, %v3933
      %v3950 = vpack.c.bf16 %v3936, %v3935
      %v3951 = vpack.c.bf16 %v3938, %v3937
      %v3952 = vpack.c.bf16 %v3940, %v3939
      %v3953 = vpack.c.bf16 %v3942, %v3941
      %v3954 = vpack.c.bf16 %v3944, %v3943
      %v3955 = vpack.c.bf16 %v3946, %v3945
      %v3956 = vpack.c.bf16 %v3948, %v3947
      %v3958 = vsel %vm1762, %v3949, 0
      %v3961 = vsel %vm1951, %v3349, 0
      %3963 = vmatprep.subr.bf16.mxu0 0
      %3964 = vmatpush1.bf16.msra.mxu0 %v3961
      %3965 = vmatprep.subr.bf16.mxu0 0
      %3966 = vmatpush1.bf16.msra.mxu0 0
      %3967 = vmatprep.subr.bf16.mxu0 0
      %3968 = vmatpush1.bf16.msra.mxu0 0
      %3969 = vmatprep.subr.bf16.mxu0 0
      %3970 = vmatpush1.bf16.msra.mxu0 0
      %3971 = vmatprep.subr.bf16.mxu0 0
      %3972 = vmatpush1.bf16.msra.mxu0 0
      %3973 = vmatprep.subr.bf16.mxu0 0
      %3974 = vmatpush1.bf16.msra.mxu0 0
      %3975 = vmatprep.subr.bf16.mxu0 0
      %3976 = vmatpush1.bf16.msra.mxu0 0
      %3977 = vmatprep.subr.bf16.mxu0 0
      %3978 = vmatpush1.bf16.msra.mxu0 0
      %3979 = vmatprep.subr.bf16.mxu0 0
      %3980 = vmatpush1.bf16.msra.mxu0 0
      %3981 = vmatprep.subr.bf16.mxu0 0
      %3982 = vmatpush1.bf16.msra.mxu0 0
      %3983 = vmatprep.subr.bf16.mxu0 0
      %3984 = vmatpush1.bf16.msra.mxu0 0
      %3985 = vmatprep.subr.bf16.mxu0 0
      %3986 = vmatpush1.bf16.msra.mxu0 0
      %3987 = vmatprep.subr.bf16.mxu0 0
      %3988 = vmatpush1.bf16.msra.mxu0 0
      %3989 = vmatprep.subr.bf16.mxu0 0
      %3990 = vmatpush1.bf16.msra.mxu0 0
      %3991 = vmatprep.subr.bf16.mxu0 0
      %3992 = vmatpush1.bf16.msra.mxu0 0
      %3993 = vmatprep.subr.bf16.mxu0 0
      %3994 = vmatpush1.bf16.msra.mxu0 0
      %3995 = vmatprep.mubr.bf16.mxu0 0
      %3996 = vmatmul.mubr.bf16.gmra.mrb[0].mxu0 %v3958
      %v3997 = vpop.f32.mrb[0].mxu0
      %v3998 = vadd.f32 0.0, %v3997
      %v3999 = vpop.f32.mrb[0].mxu0
      %v4000 = vpop.f32.mrb[0].mxu0
      %v4001 = vadd.f32 0.0, %v4000
      %v4002 = vpop.f32.mrb[0].mxu0
      %4003 = vdwg.mxu0
      %v4005 = vsel %vm1762, %v3950, 0
      %v4008 = vsel %vm1951, %v3350, 0
      %4010 = vmatprep.subr.bf16.mxu0 0
      %4011 = vmatpush1.bf16.msra.mxu0 %v4008
      %4012 = vmatprep.subr.bf16.mxu0 0
      %4013 = vmatpush1.bf16.msra.mxu0 0
      %4014 = vmatprep.subr.bf16.mxu0 0
      %4015 = vmatpush1.bf16.msra.mxu0 0
      %4016 = vmatprep.subr.bf16.mxu0 0
      %4017 = vmatpush1.bf16.msra.mxu0 0
      %4018 = vmatprep.subr.bf16.mxu0 0
      %4019 = vmatpush1.bf16.msra.mxu0 0
      %4020 = vmatprep.subr.bf16.mxu0 0
      %4021 = vmatpush1.bf16.msra.mxu0 0
      %4022 = vmatprep.subr.bf16.mxu0 0
      %4023 = vmatpush1.bf16.msra.mxu0 0
      %4024 = vmatprep.subr.bf16.mxu0 0
      %4025 = vmatpush1.bf16.msra.mxu0 0
      %4026 = vmatprep.subr.bf16.mxu0 0
      %4027 = vmatpush1.bf16.msra.mxu0 0
      %4028 = vmatprep.subr.bf16.mxu0 0
      %4029 = vmatpush1.bf16.msra.mxu0 0
      %4030 = vmatprep.subr.bf16.mxu0 0
      %4031 = vmatpush1.bf16.msra.mxu0 0
      %4032 = vmatprep.subr.bf16.mxu0 0
      %4033 = vmatpush1.bf16.msra.mxu0 0
      %4034 = vmatprep.subr.bf16.mxu0 0
      %4035 = vmatpush1.bf16.msra.mxu0 0
      %4036 = vmatprep.subr.bf16.mxu0 0
      %4037 = vmatpush1.bf16.msra.mxu0 0
      %4038 = vmatprep.subr.bf16.mxu0 0
      %4039 = vmatpush1.bf16.msra.mxu0 0
      %4040 = vmatprep.subr.bf16.mxu0 0
      %4041 = vmatpush1.bf16.msra.mxu0 0
      %4042 = vmatprep.mubr.bf16.mxu0 0
      %4043 = vmatmul.mubr.bf16.gmra.mrb[0].mxu0 %v4005
      %v4044 = vpop.f32.mrb[0].mxu0
      %v4045 = vadd.f32 0.0, %v4044
      %v4046 = vpop.f32.mrb[0].mxu0
      %v4047 = vpop.f32.mrb[0].mxu0
      %v4048 = vadd.f32 0.0, %v4047
      %v4049 = vpop.f32.mrb[0].mxu0
      %4050 = vdwg.mxu0
      %v4052 = vsel %vm1762, %v3951, 0
      %v4055 = vsel %vm1951, %v3351, 0
      %4057 = vmatprep.subr.bf16.mxu0 0
      %4058 = vmatpush1.bf16.msra.mxu0 %v4055
      %4059 = vmatprep.subr.bf16.mxu0 0
      %4060 = vmatpush1.bf16.msra.mxu0 0
      %4061 = vmatprep.subr.bf16.mxu0 0
      %4062 = vmatpush1.bf16.msra.mxu0 0
      %4063 = vmatprep.subr.bf16.mxu0 0
      %4064 = vmatpush1.bf16.msra.mxu0 0
      %4065 = vmatprep.subr.bf16.mxu0 0
      %4066 = vmatpush1.bf16.msra.mxu0 0
      %4067 = vmatprep.subr.bf16.mxu0 0
      %4068 = vmatpush1.bf16.msra.mxu0 0
      %4069 = vmatprep.subr.bf16.mxu0 0
      %4070 = vmatpush1.bf16.msra.mxu0 0
      %4071 = vmatprep.subr.bf16.mxu0 0
      %4072 = vmatpush1.bf16.msra.mxu0 0
      %4073 = vmatprep.subr.bf16.mxu0 0
      %4074 = vmatpush1.bf16.msra.mxu0 0
      %4075 = vmatprep.subr.bf16.mxu0 0
      %4076 = vmatpush1.bf16.msra.mxu0 0
      %4077 = vmatprep.subr.bf16.mxu0 0
      %4078 = vmatpush1.bf16.msra.mxu0 0
      %4079 = vmatprep.subr.bf16.mxu0 0
      %4080 = vmatpush1.bf16.msra.mxu0 0
      %4081 = vmatprep.subr.bf16.mxu0 0
      %4082 = vmatpush1.bf16.msra.mxu0 0
      %4083 = vmatprep.subr.bf16.mxu0 0
      %4084 = vmatpush1.bf16.msra.mxu0 0
      %4085 = vmatprep.subr.bf16.mxu0 0
      %4086 = vmatpush1.bf16.msra.mxu0 0
      %4087 = vmatprep.subr.bf16.mxu0 0
      %4088 = vmatpush1.bf16.msra.mxu0 0
      %4089 = vmatprep.mubr.bf16.mxu0 0
      %4090 = vmatmul.mubr.bf16.gmra.mrb[0].mxu0 %v4052
      %v4091 = vpop.f32.mrb[0].mxu0
      %v4092 = vadd.f32 0.0, %v4091
      %v4093 = vpop.f32.mrb[0].mxu0
      %v4094 = vpop.f32.mrb[0].mxu0
      %v4095 = vadd.f32 0.0, %v4094
      %v4096 = vpop.f32.mrb[0].mxu0
      %4097 = vdwg.mxu0
      %v4099 = vsel %vm1762, %v3952, 0
      %v4102 = vsel %vm1951, %v3352, 0
      %4104 = vmatprep.subr.bf16.mxu0 0
      %4105 = vmatpush1.bf16.msra.mxu0 %v4102
      %4106 = vmatprep.subr.bf16.mxu0 0
      %4107 = vmatpush1.bf16.msra.mxu0 0
      %4108 = vmatprep.subr.bf16.mxu0 0
      %4109 = vmatpush1.bf16.msra.mxu0 0
      %4110 = vmatprep.subr.bf16.mxu0 0
      %4111 = vmatpush1.bf16.msra.mxu0 0
      %4112 = vmatprep.subr.bf16.mxu0 0
      %4113 = vmatpush1.bf16.msra.mxu0 0
      %4114 = vmatprep.subr.bf16.mxu0 0
      %4115 = vmatpush1.bf16.msra.mxu0 0
      %4116 = vmatprep.subr.bf16.mxu0 0
      %4117 = vmatpush1.bf16.msra.mxu0 0
      %4118 = vmatprep.subr.bf16.mxu0 0
      %4119 = vmatpush1.bf16.msra.mxu0 0
      %4120 = vmatprep.subr.bf16.mxu0 0
      %4121 = vmatpush1.bf16.msra.mxu0 0
      %4122 = vmatprep.subr.bf16.mxu0 0
      %4123 = vmatpush1.bf16.msra.mxu0 0
      %4124 = vmatprep.subr.bf16.mxu0 0
      %4125 = vmatpush1.bf16.msra.mxu0 0
      %4126 = vmatprep.subr.bf16.mxu0 0
      %4127 = vmatpush1.bf16.msra.mxu0 0
      %4128 = vmatprep.subr.bf16.mxu0 0
      %4129 = vmatpush1.bf16.msra.mxu0 0
      %4130 = vmatprep.subr.bf16.mxu0 0
      %4131 = vmatpush1.bf16.msra.mxu0 0
      %4132 = vmatprep.subr.bf16.mxu0 0
      %4133 = vmatpush1.bf16.msra.mxu0 0
      %4134 = vmatprep.subr.bf16.mxu0 0
      %4135 = vmatpush1.bf16.msra.mxu0 0
      %4136 = vmatprep.mubr.bf16.mxu0 0
      %4137 = vmatmul.mubr.bf16.gmra.mrb[0].mxu0 %v4099
      %v4138 = vpop.f32.mrb[0].mxu0
      %v4139 = vadd.f32 0.0, %v4138
      %v4140 = vpop.f32.mrb[0].mxu0
      %v4141 = vpop.f32.mrb[0].mxu0
      %v4142 = vadd.f32 0.0, %v4141
      %v4143 = vpop.f32.mrb[0].mxu0
      %4144 = vdwg.mxu0
      %v4146 = vsel %vm1762, %v3953, 0
      %v4149 = vsel %vm1951, %v3353, 0
      %4151 = vmatprep.subr.bf16.mxu0 0
      %4152 = vmatpush1.bf16.msra.mxu0 %v4149
      %4153 = vmatprep.subr.bf16.mxu0 0
      %4154 = vmatpush1.bf16.msra.mxu0 0
      %4155 = vmatprep.subr.bf16.mxu0 0
      %4156 = vmatpush1.bf16.msra.mxu0 0
      %4157 = vmatprep.subr.bf16.mxu0 0
      %4158 = vmatpush1.bf16.msra.mxu0 0
      %4159 = vmatprep.subr.bf16.mxu0 0
      %4160 = vmatpush1.bf16.msra.mxu0 0
      %4161 = vmatprep.subr.bf16.mxu0 0
      %4162 = vmatpush1.bf16.msra.mxu0 0
      %4163 = vmatprep.subr.bf16.mxu0 0
      %4164 = vmatpush1.bf16.msra.mxu0 0
      %4165 = vmatprep.subr.bf16.mxu0 0
      %4166 = vmatpush1.bf16.msra.mxu0 0
      %4167 = vmatprep.subr.bf16.mxu0 0
      %4168 = vmatpush1.bf16.msra.mxu0 0
      %4169 = vmatprep.subr.bf16.mxu0 0
      %4170 = vmatpush1.bf16.msra.mxu0 0
      %4171 = vmatprep.subr.bf16.mxu0 0
      %4172 = vmatpush1.bf16.msra.mxu0 0
      %4173 = vmatprep.subr.bf16.mxu0 0
      %4174 = vmatpush1.bf16.msra.mxu0 0
      %4175 = vmatprep.subr.bf16.mxu0 0
      %4176 = vmatpush1.bf16.msra.mxu0 0
      %4177 = vmatprep.subr.bf16.mxu0 0
      %4178 = vmatpush1.bf16.msra.mxu0 0
      %4179 = vmatprep.subr.bf16.mxu0 0
      %4180 = vmatpush1.bf16.msra.mxu0 0
      %4181 = vmatprep.subr.bf16.mxu0 0
      %4182 = vmatpush1.bf16.msra.mxu0 0
      %4183 = vmatprep.mubr.bf16.mxu0 0
      %4184 = vmatmul.mubr.bf16.gmra.mrb[0].mxu0 %v4146
      %v4185 = vpop.f32.mrb[0].mxu0
      %v4186 = vadd.f32 0.0, %v4185
      %v4187 = vpop.f32.mrb[0].mxu0
      %v4188 = vpop.f32.mrb[0].mxu0
      %v4189 = vadd.f32 0.0, %v4188
      %v4190 = vpop.f32.mrb[0].mxu0
      %4191 = vdwg.mxu0
      %v4193 = vsel %vm1762, %v3954, 0
      %v4196 = vsel %vm1951, %v3354, 0
      %4198 = vmatprep.subr.bf16.mxu0 0
      %4199 = vmatpush1.bf16.msra.mxu0 %v4196
      %4200 = vmatprep.subr.bf16.mxu0 0
      %4201 = vmatpush1.bf16.msra.mxu0 0
      %4202 = vmatprep.subr.bf16.mxu0 0
      %4203 = vmatpush1.bf16.msra.mxu0 0
      %4204 = vmatprep.subr.bf16.mxu0 0
      %4205 = vmatpush1.bf16.msra.mxu0 0
      %4206 = vmatprep.subr.bf16.mxu0 0
      %4207 = vmatpush1.bf16.msra.mxu0 0
      %4208 = vmatprep.subr.bf16.mxu0 0
      %4209 = vmatpush1.bf16.msra.mxu0 0
      %4210 = vmatprep.subr.bf16.mxu0 0
      %4211 = vmatpush1.bf16.msra.mxu0 0
      %4212 = vmatprep.subr.bf16.mxu0 0
      %4213 = vmatpush1.bf16.msra.mxu0 0
      %4214 = vmatprep.subr.bf16.mxu0 0
      %4215 = vmatpush1.bf16.msra.mxu0 0
      %4216 = vmatprep.subr.bf16.mxu0 0
      %4217 = vmatpush1.bf16.msra.mxu0 0
      %4218 = vmatprep.subr.bf16.mxu0 0
      %4219 = vmatpush1.bf16.msra.mxu0 0
      %4220 = vmatprep.subr.bf16.mxu0 0
      %4221 = vmatpush1.bf16.msra.mxu0 0
      %4222 = vmatprep.subr.bf16.mxu0 0
      %4223 = vmatpush1.bf16.msra.mxu0 0
      %4224 = vmatprep.subr.bf16.mxu0 0
      %4225 = vmatpush1.bf16.msra.mxu0 0
      %4226 = vmatprep.subr.bf16.mxu0 0
      %4227 = vmatpush1.bf16.msra.mxu0 0
      %4228 = vmatprep.subr.bf16.mxu0 0
      %4229 = vmatpush1.bf16.msra.mxu0 0
      %4230 = vmatprep.mubr.bf16.mxu0 0
      %4231 = vmatmul.mubr.bf16.gmra.mrb[0].mxu0 %v4193
      %v4232 = vpop.f32.mrb[0].mxu0
      %v4233 = vadd.f32 0.0, %v4232
      %v4234 = vpop.f32.mrb[0].mxu0
      %v4235 = vpop.f32.mrb[0].mxu0
      %v4236 = vadd.f32 0.0, %v4235
      %v4237 = vpop.f32.mrb[0].mxu0
      %4238 = vdwg.mxu0
      %v4240 = vsel %vm1762, %v3955, 0
      %v4243 = vsel %vm1951, %v3355, 0
      %4245 = vmatprep.subr.bf16.mxu0 0
      %4246 = vmatpush1.bf16.msra.mxu0 %v4243
      %4247 = vmatprep.subr.bf16.mxu0 0
      %4248 = vmatpush1.bf16.msra.mxu0 0
      %4249 = vmatprep.subr.bf16.mxu0 0
      %4250 = vmatpush1.bf16.msra.mxu0 0
      %4251 = vmatprep.subr.bf16.mxu0 0
      %4252 = vmatpush1.bf16.msra.mxu0 0
      %4253 = vmatprep.subr.bf16.mxu0 0
      %4254 = vmatpush1.bf16.msra.mxu0 0
      %4255 = vmatprep.subr.bf16.mxu0 0
      %4256 = vmatpush1.bf16.msra.mxu0 0
      %4257 = vmatprep.subr.bf16.mxu0 0
      %4258 = vmatpush1.bf16.msra.mxu0 0
      %4259 = vmatprep.subr.bf16.mxu0 0
      %4260 = vmatpush1.bf16.msra.mxu0 0
      %4261 = vmatprep.subr.bf16.mxu0 0
      %4262 = vmatpush1.bf16.msra.mxu0 0
      %4263 = vmatprep.subr.bf16.mxu0 0
      %4264 = vmatpush1.bf16.msra.mxu0 0
      %4265 = vmatprep.subr.bf16.mxu0 0
      %4266 = vmatpush1.bf16.msra.mxu0 0
      %4267 = vmatprep.subr.bf16.mxu0 0
      %4268 = vmatpush1.bf16.msra.mxu0 0
      %4269 = vmatprep.subr.bf16.mxu0 0
      %4270 = vmatpush1.bf16.msra.mxu0 0
      %4271 = vmatprep.subr.bf16.mxu0 0
      %4272 = vmatpush1.bf16.msra.mxu0 0
      %4273 = vmatprep.subr.bf16.mxu0 0
      %4274 = vmatpush1.bf16.msra.mxu0 0
      %4275 = vmatprep.subr.bf16.mxu0 0
      %4276 = vmatpush1.bf16.msra.mxu0 0
      %4277 = vmatprep.mubr.bf16.mxu0 0
      %4278 = vmatmul.mubr.bf16.gmra.mrb[0].mxu0 %v4240
      %v4279 = vpop.f32.mrb[0].mxu0
      %v4280 = vadd.f32 0.0, %v4279
      %v4281 = vpop.f32.mrb[0].mxu0
      %v4282 = vpop.f32.mrb[0].mxu0
      %v4283 = vadd.f32 0.0, %v4282
      %v4284 = vpop.f32.mrb[0].mxu0
      %4285 = vdwg.mxu0
      %v4287 = vsel %vm1762, %v3956, 0
      %v4290 = vsel %vm1951, %v3356, 0
      %4292 = vmatprep.subr.bf16.mxu0 0
      %4293 = vmatpush1.bf16.msra.mxu0 %v4290
      %4294 = vmatprep.subr.bf16.mxu0 0
      %4295 = vmatpush1.bf16.msra.mxu0 0
      %4296 = vmatprep.subr.bf16.mxu0 0
      %4297 = vmatpush1.bf16.msra.mxu0 0
      %4298 = vmatprep.subr.bf16.mxu0 0
      %4299 = vmatpush1.bf16.msra.mxu0 0
      %4300 = vmatprep.subr.bf16.mxu0 0
      %4301 = vmatpush1.bf16.msra.mxu0 0
      %4302 = vmatprep.subr.bf16.mxu0 0
      %4303 = vmatpush1.bf16.msra.mxu0 0
      %4304 = vmatprep.subr.bf16.mxu0 0
      %4305 = vmatpush1.bf16.msra.mxu0 0
      %4306 = vmatprep.subr.bf16.mxu0 0
      %4307 = vmatpush1.bf16.msra.mxu0 0
      %4308 = vmatprep.subr.bf16.mxu0 0
      %4309 = vmatpush1.bf16.msra.mxu0 0
      %4310 = vmatprep.subr.bf16.mxu0 0
      %4311 = vmatpush1.bf16.msra.mxu0 0
      %4312 = vmatprep.subr.bf16.mxu0 0
      %4313 = vmatpush1.bf16.msra.mxu0 0
      %4314 = vmatprep.subr.bf16.mxu0 0
      %4315 = vmatpush1.bf16.msra.mxu0 0
      %4316 = vmatprep.subr.bf16.mxu0 0
      %4317 = vmatpush1.bf16.msra.mxu0 0
      %4318 = vmatprep.subr.bf16.mxu0 0
      %4319 = vmatpush1.bf16.msra.mxu0 0
      %4320 = vmatprep.subr.bf16.mxu0 0
      %4321 = vmatpush1.bf16.msra.mxu0 0
      %4322 = vmatprep.subr.bf16.mxu0 0
      %4323 = vmatpush1.bf16.msra.mxu0 0
      %4324 = vmatprep.mubr.bf16.mxu0 0
      %4325 = vmatmul.mubr.bf16.gmra.mrb[0].mxu0 %v4287
      %v4326 = vpop.f32.mrb[0].mxu0
      %v4327 = vadd.f32 0.0, %v4326
      %v4328 = vpop.f32.mrb[0].mxu0
      %v4329 = vpop.f32.mrb[0].mxu0
      %v4330 = vadd.f32 0.0, %v4329
      %v4331 = vpop.f32.mrb[0].mxu0
      %4332 = vdwg.mxu0
      %4335 = vrot.lane.b32.xlu0 %v4045, 8
      %v4336 = vpop.permute.xlu0 %4335
      %4337 = vrot.lane.b32.xlu0 %v4048, 8
      %v4338 = vpop.permute.xlu0 %4337
      %4343 = vrot.lane.b32.xlu0 %v4092, 16
      %v4344 = vpop.permute.xlu0 %4343
      %4345 = vrot.lane.b32.xlu0 %v4095, 16
      %v4346 = vpop.permute.xlu0 %4345
      %4351 = vrot.lane.b32.xlu0 %v4139, 24
      %v4352 = vpop.permute.xlu0 %4351
      %4353 = vrot.lane.b32.xlu0 %v4142, 24
      %v4354 = vpop.permute.xlu0 %4353
      %4359 = vrot.lane.b32.xlu0 %v4186, 32
      %v4360 = vpop.permute.xlu0 %4359
      %4361 = vrot.lane.b32.xlu0 %v4189, 32
      %v4362 = vpop.permute.xlu0 %4361
      %4367 = vrot.lane.b32.xlu0 %v4233, 40
      %v4368 = vpop.permute.xlu0 %4367
      %4369 = vrot.lane.b32.xlu0 %v4236, 40
      %v4370 = vpop.permute.xlu0 %4369
      %4375 = vrot.lane.b32.xlu0 %v4280, 48
      %v4376 = vpop.permute.xlu0 %4375
      %4377 = vrot.lane.b32.xlu0 %v4283, 48
      %v4378 = vpop.permute.xlu0 %4377
      %4383 = vrot.lane.b32.xlu0 %v4327, 56
      %v4384 = vpop.permute.xlu0 %4383
      %4385 = vrot.lane.b32.xlu0 %v4330, 56
      %v4386 = vpop.permute.xlu0 %4385
      %v4389 = vsel %vm1344, %v3998, %v4336
      %v4390 = vsel %vm1344, %v4001, %v4338
      %v4391 = vsel %vm2383, %v4389, %v4344
      %v4392 = vsel %vm2383, %v4390, %v4346
      %v4393 = vsel %vm2386, %v4391, %v4352
      %v4394 = vsel %vm2386, %v4392, %v4354
      %v4395 = vsel %vm2389, %v4393, %v4360
      %v4396 = vsel %vm2389, %v4394, %v4362
      %v4397 = vsel %vm2392, %v4395, %v4368
      %v4398 = vsel %vm2392, %v4396, %v4370
      %v4399 = vsel %vm2395, %v4397, %v4376
      %v4400 = vsel %vm2395, %v4398, %v4378
      %v4401 = vsel %vm2398, %v4399, %v4384
      %v4402 = vsel %vm2398, %v4400, %v4386
      %v4403 = vpack.c.bf16 %v4402, %v4401
      %s4404 = scalar_lea.vmem %s10, 32
      %v4405 = vld [vmem:[%s4404] sm:$0xf]
      %v4406 = vld [vmem:[%s4404 + $0x4] sm:$0xf]
      %v4407 = vld [vmem:[%s4404 + $0x8] sm:$0xf]
      %v4408 = vld [vmem:[%s4404 + $0xc] sm:$0xf]
      %v4409 = vld [vmem:[%s4404 + $0x10] sm:$0xf]
      %v4410 = vld [vmem:[%s4404 + $0x14] sm:$0xf]
      %v4411 = vld [vmem:[%s4404 + $0x18] sm:$0xf]
      %v4412 = vld [vmem:[%s4404 + $0x1c] sm:$0xf]
      %s4413 = scalar_lea.vmem %s11, 1
      %v4414 = vld [vmem:[%s4413] sm:$0x1]
      %v4416 = vlaneseq
      %v4417 = vshrl.u32 %v4416, 7
      %v4418 = vsub.s32 0, %v4417
      %v4419 = vrot.slane %v4414, %v4418
      %v4429 = vunpack.c.l.b16 %v4405
      %v4430 = vunpack.c.l.b16 %v4406
      %v4431 = vunpack.c.l.b16 %v4407
      %v4432 = vunpack.c.l.b16 %v4408
      %v4433 = vunpack.c.l.b16 %v4409
      %v4434 = vunpack.c.l.b16 %v4410
      %v4435 = vunpack.c.l.b16 %v4411
      %v4436 = vunpack.c.l.b16 %v4412
      %v4437 = vpack.c.b16 %v4430, %v4429
      %v4438 = vpack.c.b16 %v4432, %v4431
      %v4439 = vpack.c.b16 %v4434, %v4433
      %v4440 = vpack.c.b16 %v4436, %v4435
      %v4446 = vsel %vm1190, %v4403, 0
      %4448 = vmatprep.subr.bf16.mxu0 0
      %4449 = vmatpush1.bf16.msra.mxu0 %v4437
      %4450 = vmatprep.subr.bf16.mxu0 0
      %4451 = vmatpush1.bf16.msra.mxu0 %v4438
      %4452 = vmatprep.subr.bf16.mxu0 0
      %4453 = vmatpush1.bf16.msra.mxu0 %v4439
      %4454 = vmatprep.subr.bf16.mxu0 0
      %4455 = vmatpush1.bf16.msra.mxu0 %v4440
      %4456 = vmatprep.subr.bf16.mxu0 0
      %4457 = vmatpush1.bf16.msra.mxu0 0
      %4458 = vmatprep.subr.bf16.mxu0 0
      %4459 = vmatpush1.bf16.msra.mxu0 0
      %4460 = vmatprep.subr.bf16.mxu0 0
      %4461 = vmatpush1.bf16.msra.mxu0 0
      %4462 = vmatprep.subr.bf16.mxu0 0
      %4463 = vmatpush1.bf16.msra.mxu0 0
      %4464 = vmatprep.subr.bf16.mxu0 0
      %4465 = vmatpush1.bf16.msra.mxu0 0
      %4466 = vmatprep.subr.bf16.mxu0 0
      %4467 = vmatpush1.bf16.msra.mxu0 0
      %4468 = vmatprep.subr.bf16.mxu0 0
      %4469 = vmatpush1.bf16.msra.mxu0 0
      %4470 = vmatprep.subr.bf16.mxu0 0
      %4471 = vmatpush1.bf16.msra.mxu0 0
      %4472 = vmatprep.subr.bf16.mxu0 0
      %4473 = vmatpush1.bf16.msra.mxu0 0
      %4474 = vmatprep.subr.bf16.mxu0 0
      %4475 = vmatpush1.bf16.msra.mxu0 0
      %4476 = vmatprep.subr.bf16.mxu0 0
      %4477 = vmatpush1.bf16.msra.mxu0 0
      %4478 = vmatprep.subr.bf16.mxu0 0
      %4479 = vmatpush1.bf16.msra.mxu0 0
      %4480 = vmatprep.mubr.bf16.mxu0 0
      %4481 = vmatmul.mubr.bf16.gmra.mrb[0].mxu0 %v4446
      %v4482 = vpop.f32.mrb[0].mxu0
      %v4483 = vadd.f32 %v4419, %v4482
      %v4484 = vpop.f32.mrb[0].mxu0
      %v4485 = vpop.f32.mrb[0].mxu0
      %v4486 = vadd.f32 %v4419, %v4485
      %v4487 = vpop.f32.mrb[0].mxu0
      %4488 = vdwg.mxu0
      %v4489 = vadd.f32 %v3142, %v4483
      %v4490 = vadd.f32 %v3143, %v4486
      %s4491 = scalar_lea.vmem %s12, 1
      %v4492 = vld [vmem:[%s4491] sm:$0x1]
      %s4493 = scalar_lea.vmem %s13, 1
      %v4494 = vld [vmem:[%s4493] sm:$0x1]
      %v4495 = vsel %vm1190, %v4489, 0.0
      %4496 = vadd.xlane.f32.xlu0 %v4495
      %v4497 = vpop.xlane.xlu0 %4496
      %v4498 = vsel %vm2492, %v4490, 0.0
      %4499 = vadd.xlane.f32.xlu0 %v4498
      %v4500 = vpop.xlane.xlu0 %4499
      %v4501 = vmul.f32 %v4497, %v2496
      %v4502 = vmul.f32 %v4500, %v2496
      %v4503 = vsub.f32 %v4489, %v4501
      %v4504 = vsub.f32 %v4490, %v4502
      %v4505 = vmul.f32 %v4503, %v4503
      %v4506 = vmul.f32 %v4504, %v4504
      %v4507 = vsel %vm1190, %v4505, 0.0
      %4508 = vadd.xlane.f32.xlu0 %v4507
      %v4509 = vpop.xlane.xlu0 %4508
      %v4510 = vsel %vm2492, %v4506, 0.0
      %4511 = vadd.xlane.f32.xlu0 %v4510
      %v4512 = vpop.xlane.xlu0 %4511
      %v4513 = vmul.f32 %v4509, %v2496
      %v4514 = vmul.f32 %v4512, %v2496
      %v4515 = vadd.f32 %v4513, 1e-05
      %v4516 = vadd.f32 %v4514, 1e-05
      %v4517 = vrsqrt.pop %v4515
      %v4518 = vrsqrt.pop %v4516
      %v4519 = vmul.f32 %v4503, %v4517
      %v4520 = vmul.f32 %v4504, %v4518
      %v4522 = vlaneseq
      %v4523 = vshrl.u32 %v4522, 7
      %v4524 = vsub.s32 0, %v4523
      %v4525 = vrot.slane %v4492, %v4524
      %v4527 = vmul.f32 %v4519, %v4525
      %v4528 = vmul.f32 %v4520, %v4525
      %v4530 = vlaneseq
      %v4531 = vshrl.u32 %v4530, 7
      %v4532 = vsub.s32 0, %v4531
      %v4533 = vrot.slane %v4494, %v4532
      %v4535 = vadd.f32 %v4527, %v4533
      %v4536 = vadd.f32 %v4528, %v4533
      %v4537 = vpack.c.bf16 %v4536, %v4535
      %s4538 = scalar_lea.vmem %s14, 128
      %v4539 = vld [vmem:[%s4538] sm:$0xff]
      %v4540 = vld [vmem:[%s4538 + $0x8] sm:$0xff]
      %v4541 = vld [vmem:[%s4538 + $0x10] sm:$0xff]
      %v4542 = vld [vmem:[%s4538 + $0x18] sm:$0xff]
      %v4543 = vld [vmem:[%s4538 + $0x20] sm:$0xff]
      %v4544 = vld [vmem:[%s4538 + $0x28] sm:$0xff]
      %v4545 = vld [vmem:[%s4538 + $0x30] sm:$0xff]
      %v4546 = vld [vmem:[%s4538 + $0x38] sm:$0xff]
      %v4547 = vld [vmem:[%s4538 + $0x40] sm:$0xff]
      %v4548 = vld [vmem:[%s4538 + $0x48] sm:$0xff]
      %v4549 = vld [vmem:[%s4538 + $0x50] sm:$0xff]
      %v4550 = vld [vmem:[%s4538 + $0x58] sm:$0xff]
      %v4551 = vld [vmem:[%s4538 + $0x60] sm:$0xff]
      %v4552 = vld [vmem:[%s4538 + $0x68] sm:$0xff]
      %v4553 = vld [vmem:[%s4538 + $0x70] sm:$0xff]
      %v4554 = vld [vmem:[%s4538 + $0x78] sm:$0xff]
      %s4555 = scalar_lea.vmem %s15, 4
      %v4556 = vld [vmem:[%s4555] sm:$0xf]
      %v4558 = vlaneseq
      %v4559 = vshrl.u32 %v4558, 7
      %v4560 = vsub.s32 0, %v4559
      %v4561 = vrot.slane %v4556, %v4560
      %v4562 = vlaneseq
      %v4563 = vshrl.u32 %v4562, 7
      %v4564 = vsub.s32 1, %v4563
      %v4565 = vrot.slane %v4556, %v4564
      %v4566 = vlaneseq
      %v4567 = vshrl.u32 %v4566, 7
      %v4568 = vsub.s32 2, %v4567
      %v4569 = vrot.slane %v4556, %v4568
      %v4570 = vlaneseq
      %v4571 = vshrl.u32 %v4570, 7
      %v4572 = vsub.s32 3, %v4571
      %v4573 = vrot.slane %v4556, %v4572
      %v4594 = vunpack.c.l.b16 %v4539
      %v4595 = vunpack.c.h.b16 %v4539
      %v4596 = vunpack.c.l.b16 %v4540
      %v4597 = vunpack.c.h.b16 %v4540
      %v4598 = vunpack.c.l.b16 %v4541
      %v4599 = vunpack.c.h.b16 %v4541
      %v4600 = vunpack.c.l.b16 %v4542
      %v4601 = vunpack.c.h.b16 %v4542
      %v4602 = vunpack.c.l.b16 %v4543
      %v4603 = vunpack.c.h.b16 %v4543
      %v4604 = vunpack.c.l.b16 %v4544
      %v4605 = vunpack.c.h.b16 %v4544
      %v4606 = vunpack.c.l.b16 %v4545
      %v4607 = vunpack.c.h.b16 %v4545
      %v4608 = vunpack.c.l.b16 %v4546
      %v4609 = vunpack.c.h.b16 %v4546
      %v4610 = vunpack.c.l.b16 %v4547
      %v4611 = vunpack.c.h.b16 %v4547
      %v4612 = vunpack.c.l.b16 %v4548
      %v4613 = vunpack.c.h.b16 %v4548
      %v4614 = vunpack.c.l.b16 %v4549
      %v4615 = vunpack.c.h.b16 %v4549
      %v4616 = vunpack.c.l.b16 %v4550
      %v4617 = vunpack.c.h.b16 %v4550
      %v4618 = vunpack.c.l.b16 %v4551
      %v4619 = vunpack.c.h.b16 %v4551
      %v4620 = vunpack.c.l.b16 %v4552
      %v4621 = vunpack.c.h.b16 %v4552
      %v4622 = vunpack.c.l.b16 %v4553
      %v4623 = vunpack.c.h.b16 %v4553
      %v4624 = vunpack.c.l.b16 %v4554
      %v4625 = vunpack.c.h.b16 %v4554
      %v4626 = vpack.c.b16 %v4598, %v4594
      %v4627 = vpack.c.b16 %v4599, %v4595
      %v4628 = vpack.c.b16 %v4600, %v4596
      %v4629 = vpack.c.b16 %v4601, %v4597
      %v4630 = vpack.c.b16 %v4606, %v4602
      %v4631 = vpack.c.b16 %v4607, %v4603
      %v4632 = vpack.c.b16 %v4608, %v4604
      %v4633 = vpack.c.b16 %v4609, %v4605
      %v4634 = vpack.c.b16 %v4614, %v4610
      %v4635 = vpack.c.b16 %v4615, %v4611
      %v4636 = vpack.c.b16 %v4616, %v4612
      %v4637 = vpack.c.b16 %v4617, %v4613
      %v4638 = vpack.c.b16 %v4622, %v4618
      %v4639 = vpack.c.b16 %v4623, %v4619
      %v4640 = vpack.c.b16 %v4624, %v4620
      %v4641 = vpack.c.b16 %v4625, %v4621
      %v4659 = vsel %vm1190, %v4537, 0
      %4661 = vmatprep.subr.bf16.mxu0 %v4627
      %4662 = vmatpush1.bf16.msra.mxu0 %v4626
      %4663 = vmatprep.subr.bf16.mxu0 %v4631
      %4664 = vmatpush1.bf16.msra.mxu0 %v4630
      %4665 = vmatprep.subr.bf16.mxu0 %v4635
      %4666 = vmatpush1.bf16.msra.mxu0 %v4634
      %4667 = vmatprep.subr.bf16.mxu0 %v4639
      %4668 = vmatpush1.bf16.msra.mxu0 %v4638
      %4669 = vmatprep.subr.bf16.mxu0 0
      %4670 = vmatpush1.bf16.msra.mxu0 0
      %4671 = vmatprep.subr.bf16.mxu0 0
      %4672 = vmatpush1.bf16.msra.mxu0 0
      %4673 = vmatprep.subr.bf16.mxu0 0
      %4674 = vmatpush1.bf16.msra.mxu0 0
      %4675 = vmatprep.subr.bf16.mxu0 0
      %4676 = vmatpush1.bf16.msra.mxu0 0
      %4677 = vmatprep.subr.bf16.mxu0 0
      %4678 = vmatpush1.bf16.msra.mxu0 0
      %4679 = vmatprep.subr.bf16.mxu0 0
      %4680 = vmatpush1.bf16.msra.mxu0 0
      %4681 = vmatprep.subr.bf16.mxu0 0
      %4682 = vmatpush1.bf16.msra.mxu0 0
      %4683 = vmatprep.subr.bf16.mxu0 0
      %4684 = vmatpush1.bf16.msra.mxu0 0
      %4685 = vmatprep.subr.bf16.mxu0 0
      %4686 = vmatpush1.bf16.msra.mxu0 0
      %4687 = vmatprep.subr.bf16.mxu0 0
      %4688 = vmatpush1.bf16.msra.mxu0 0
      %4689 = vmatprep.subr.bf16.mxu0 0
      %4690 = vmatpush1.bf16.msra.mxu0 0
      %4691 = vmatprep.subr.bf16.mxu0 0
      %4692 = vmatpush1.bf16.msra.mxu0 0
      %4693 = vmatprep.mubr.bf16.mxu0 0
      %4694 = vmatmul.mubr.bf16.gmra.mrb[0].mxu0 %v4659
      %v4695 = vpop.f32.mrb[0].mxu0
      %v4696 = vadd.f32 %v4561, %v4695
      %v4697 = vpop.f32.mrb[0].mxu0
      %v4698 = vadd.f32 %v4565, %v4697
      %v4699 = vpop.f32.mrb[0].mxu0
      %v4700 = vadd.f32 %v4561, %v4699
      %v4701 = vpop.f32.mrb[0].mxu0
      %v4702 = vadd.f32 %v4565, %v4701
      %4703 = vdwg.mxu0
      %4704 = vmatprep.subr.bf16.mxu0 %v4629
      %4705 = vmatpush1.bf16.msra.mxu0 %v4628
      %4706 = vmatprep.subr.bf16.mxu0 %v4633
      %4707 = vmatpush1.bf16.msra.mxu0 %v4632
      %4708 = vmatprep.subr.bf16.mxu0 %v4637
      %4709 = vmatpush1.bf16.msra.mxu0 %v4636
      %4710 = vmatprep.subr.bf16.mxu0 %v4641
      %4711 = vmatpush1.bf16.msra.mxu0 %v4640
      %4712 = vmatprep.subr.bf16.mxu0 0
      %4713 = vmatpush1.bf16.msra.mxu0 0
      %4714 = vmatprep.subr.bf16.mxu0 0
      %4715 = vmatpush1.bf16.msra.mxu0 0
      %4716 = vmatprep.subr.bf16.mxu0 0
      %4717 = vmatpush1.bf16.msra.mxu0 0
      %4718 = vmatprep.subr.bf16.mxu0 0
      %4719 = vmatpush1.bf16.msra.mxu0 0
      %4720 = vmatprep.subr.bf16.mxu0 0
      %4721 = vmatpush1.bf16.msra.mxu0 0
      %4722 = vmatprep.subr.bf16.mxu0 0
      %4723 = vmatpush1.bf16.msra.mxu0 0
      %4724 = vmatprep.subr.bf16.mxu0 0
      %4725 = vmatpush1.bf16.msra.mxu0 0
      %4726 = vmatprep.subr.bf16.mxu0 0
      %4727 = vmatpush1.bf16.msra.mxu0 0
      %4728 = vmatprep.subr.bf16.mxu0 0
      %4729 = vmatpush1.bf16.msra.mxu0 0
      %4730 = vmatprep.subr.bf16.mxu0 0
      %4731 = vmatpush1.bf16.msra.mxu0 0
      %4732 = vmatprep.subr.bf16.mxu0 0
      %4733 = vmatpush1.bf16.msra.mxu0 0
      %4734 = vmatprep.subr.bf16.mxu0 0
      %4735 = vmatpush1.bf16.msra.mxu0 0
      %4736 = vmatprep.mubr.bf16.mxu0 0
      %4737 = vmatmul.mubr.bf16.gmra.mrb[0].mxu0 %v4659
      %v4738 = vpop.f32.mrb[0].mxu0
      %v4739 = vadd.f32 %v4569, %v4738
      %v4740 = vpop.f32.mrb[0].mxu0
      %v4741 = vadd.f32 %v4573, %v4740
      %v4742 = vpop.f32.mrb[0].mxu0
      %v4743 = vadd.f32 %v4569, %v4742
      %v4744 = vpop.f32.mrb[0].mxu0
      %v4745 = vadd.f32 %v4573, %v4744
      %4746 = vdwg.mxu0
      %v4747 = vmax.f32 %v4696, 0.0
      %v4748 = vmax.f32 %v4698, 0.0
      %v4749 = vmax.f32 %v4739, 0.0
      %v4750 = vmax.f32 %v4741, 0.0
      %v4751 = vmax.f32 %v4700, 0.0
      %v4752 = vmax.f32 %v4702, 0.0
      %v4753 = vmax.f32 %v4743, 0.0
      %v4754 = vmax.f32 %v4745, 0.0
      %v4755 = vpack.c.bf16 %v4751, %v4747
      %v4756 = vpack.c.bf16 %v4752, %v4748
      %v4757 = vpack.c.bf16 %v4753, %v4749
      %v4758 = vpack.c.bf16 %v4754, %v4750
      %s4759 = scalar_lea.vmem %s16, 256
      %v4760 = vld [vmem:[%s4759] sm:$0xf]
      %v4761 = vld [vmem:[%s4759 + $0x4] sm:$0xf]
      %v4762 = vld [vmem:[%s4759 + $0x8] sm:$0xf]
      %v4763 = vld [vmem:[%s4759 + $0xc] sm:$0xf]
      %v4764 = vld [vmem:[%s4759 + $0x10] sm:$0xf]
      %v4765 = vld [vmem:[%s4759 + $0x14] sm:$0xf]
      %v4766 = vld [vmem:[%s4759 + $0x18] sm:$0xf]
      %v4767 = vld [vmem:[%s4759 + $0x1c] sm:$0xf]
      %v4768 = vld [vmem:[%s4759 + $0x20] sm:$0xf]
      %v4769 = vld [vmem:[%s4759 + $0x24] sm:$0xf]
      %v4770 = vld [vmem:[%s4759 + $0x28] sm:$0xf]
      %v4771 = vld [vmem:[%s4759 + $0x2c] sm:$0xf]
      %v4772 = vld [vmem:[%s4759 + $0x30] sm:$0xf]
      %v4773 = vld [vmem:[%s4759 + $0x34] sm:$0xf]
      %v4774 = vld [vmem:[%s4759 + $0x38] sm:$0xf]
      %v4775 = vld [vmem:[%s4759 + $0x3c] sm:$0xf]
      %v4776 = vld [vmem:[%s4759 + $0x40] sm:$0xf]
      %v4777 = vld [vmem:[%s4759 + $0x44] sm:$0xf]
      %v4778 = vld [vmem:[%s4759 + $0x48] sm:$0xf]
      %v4779 = vld [vmem:[%s4759 + $0x4c] sm:$0xf]
      %v4780 = vld [vmem:[%s4759 + $0x50] sm:$0xf]
      %v4781 = vld [vmem:[%s4759 + $0x54] sm:$0xf]
      %v4782 = vld [vmem:[%s4759 + $0x58] sm:$0xf]
      %v4783 = vld [vmem:[%s4759 + $0x5c] sm:$0xf]
      %v4784 = vld [vmem:[%s4759 + $0x60] sm:$0xf]
      %v4785 = vld [vmem:[%s4759 + $0x64] sm:$0xf]
      %v4786 = vld [vmem:[%s4759 + $0x68] sm:$0xf]
      %v4787 = vld [vmem:[%s4759 + $0x6c] sm:$0xf]
      %v4788 = vld [vmem:[%s4759 + $0x70] sm:$0xf]
      %v4789 = vld [vmem:[%s4759 + $0x74] sm:$0xf]
      %v4790 = vld [vmem:[%s4759 + $0x78] sm:$0xf]
      %v4791 = vld [vmem:[%s4759 + $0x7c] sm:$0xf]
      %v4792 = vld [vmem:[%s4759 + $0x80] sm:$0xf]
      %v4793 = vld [vmem:[%s4759 + $0x84] sm:$0xf]
      %v4794 = vld [vmem:[%s4759 + $0x88] sm:$0xf]
      %v4795 = vld [vmem:[%s4759 + $0x8c] sm:$0xf]
      %v4796 = vld [vmem:[%s4759 + $0x90] sm:$0xf]
      %v4797 = vld [vmem:[%s4759 + $0x94] sm:$0xf]
      %v4798 = vld [vmem:[%s4759 + $0x98] sm:$0xf]
      %v4799 = vld [vmem:[%s4759 + $0x9c] sm:$0xf]
      %v4800 = vld [vmem:[%s4759 + $0xa0] sm:$0xf]
      %v4801 = vld [vmem:[%s4759 + $0xa4] sm:$0xf]
      %v4802 = vld [vmem:[%s4759 + $0xa8] sm:$0xf]
      %v4803 = vld [vmem:[%s4759 + $0xac] sm:$0xf]
      %v4804 = vld [vmem:[%s4759 + $0xb0] sm:$0xf]
      %v4805 = vld [vmem:[%s4759 + $0xb4] sm:$0xf]
      %v4806 = vld [vmem:[%s4759 + $0xb8] sm:$0xf]
      %v4807 = vld [vmem:[%s4759 + $0xbc] sm:$0xf]
      %v4808 = vld [vmem:[%s4759 + $0xc0] sm:$0xf]
      %v4809 = vld [vmem:[%s4759 + $0xc4] sm:$0xf]
      %v4810 = vld [vmem:[%s4759 + $0xc8] sm:$0xf]
      %v4811 = vld [vmem:[%s4759 + $0xcc] sm:$0xf]
      %v4812 = vld [vmem:[%s4759 + $0xd0] sm:$0xf]
      %v4813 = vld [vmem:[%s4759 + $0xd4] sm:$0xf]
      %v4814 = vld [vmem:[%s4759 + $0xd8] sm:$0xf]
      %v4815 = vld [vmem:[%s4759 + $0xdc] sm:$0xf]
      %v4816 = vld [vmem:[%s4759 + $0xe0] sm:$0xf]
      %v4817 = vld [vmem:[%s4759 + $0xe4] sm:$0xf]
      %v4818 = vld [vmem:[%s4759 + $0xe8] sm:$0xf]
      %v4819 = vld [vmem:[%s4759 + $0xec] sm:$0xf]
      %v4820 = vld [vmem:[%s4759 + $0xf0] sm:$0xf]
      %v4821 = vld [vmem:[%s4759 + $0xf4] sm:$0xf]
      %v4822 = vld [vmem:[%s4759 + $0xf8] sm:$0xf]
      %v4823 = vld [vmem:[%s4759 + $0xfc] sm:$0xf]
      %s4824 = scalar_lea.vmem %s17, 1
      %v4825 = vld [vmem:[%s4824] sm:$0x1]
      %v4827 = vlaneseq
      %v4828 = vshrl.u32 %v4827, 7
      %v4829 = vsub.s32 0, %v4828
      %v4830 = vrot.slane %v4825, %v4829
      %v4896 = vunpack.c.l.b16 %v4760
      %v4897 = vunpack.c.l.b16 %v4761
      %v4898 = vunpack.c.l.b16 %v4762
      %v4899 = vunpack.c.l.b16 %v4763
      %v4900 = vunpack.c.l.b16 %v4764
      %v4901 = vunpack.c.l.b16 %v4765
      %v4902 = vunpack.c.l.b16 %v4766
      %v4903 = vunpack.c.l.b16 %v4767
      %v4904 = vunpack.c.l.b16 %v4768
      %v4905 = vunpack.c.l.b16 %v4769
      %v4906 = vunpack.c.l.b16 %v4770
      %v4907 = vunpack.c.l.b16 %v4771
      %v4908 = vunpack.c.l.b16 %v4772
      %v4909 = vunpack.c.l.b16 %v4773
      %v4910 = vunpack.c.l.b16 %v4774
      %v4911 = vunpack.c.l.b16 %v4775
      %v4912 = vunpack.c.l.b16 %v4776
      %v4913 = vunpack.c.l.b16 %v4777
      %v4914 = vunpack.c.l.b16 %v4778
      %v4915 = vunpack.c.l.b16 %v4779
      %v4916 = vunpack.c.l.b16 %v4780
      %v4917 = vunpack.c.l.b16 %v4781
      %v4918 = vunpack.c.l.b16 %v4782
      %v4919 = vunpack.c.l.b16 %v4783
      %v4920 = vunpack.c.l.b16 %v4784
      %v4921 = vunpack.c.l.b16 %v4785
      %v4922 = vunpack.c.l.b16 %v4786
      %v4923 = vunpack.c.l.b16 %v4787
      %v4924 = vunpack.c.l.b16 %v4788
      %v4925 = vunpack.c.l.b16 %v4789
      %v4926 = vunpack.c.l.b16 %v4790
      %v4927 = vunpack.c.l.b16 %v4791
      %v4928 = vunpack.c.l.b16 %v4792
      %v4929 = vunpack.c.l.b16 %v4793
      %v4930 = vunpack.c.l.b16 %v4794
      %v4931 = vunpack.c.l.b16 %v4795
      %v4932 = vunpack.c.l.b16 %v4796
      %v4933 = vunpack.c.l.b16 %v4797
      %v4934 = vunpack.c.l.b16 %v4798
      %v4935 = vunpack.c.l.b16 %v4799
      %v4936 = vunpack.c.l.b16 %v4800
      %v4937 = vunpack.c.l.b16 %v4801
      %v4938 = vunpack.c.l.b16 %v4802
      %v4939 = vunpack.c.l.b16 %v4803
      %v4940 = vunpack.c.l.b16 %v4804
      %v4941 = vunpack.c.l.b16 %v4805
      %v4942 = vunpack.c.l.b16 %v4806
      %v4943 = vunpack.c.l.b16 %v4807
      %v4944 = vunpack.c.l.b16 %v4808
      %v4945 = vunpack.c.l.b16 %v4809
      %v4946 = vunpack.c.l.b16 %v4810
      %v4947 = vunpack.c.l.b16 %v4811
      %v4948 = vunpack.c.l.b16 %v4812
      %v4949 = vunpack.c.l.b16 %v4813
      %v4950 = vunpack.c.l.b16 %v4814
      %v4951 = vunpack.c.l.b16 %v4815
      %v4952 = vunpack.c.l.b16 %v4816
      %v4953 = vunpack.c.l.b16 %v4817
      %v4954 = vunpack.c.l.b16 %v4818
      %v4955 = vunpack.c.l.b16 %v4819
      %v4956 = vunpack.c.l.b16 %v4820
      %v4957 = vunpack.c.l.b16 %v4821
      %v4958 = vunpack.c.l.b16 %v4822
      %v4959 = vunpack.c.l.b16 %v4823
      %v4960 = vpack.c.b16 %v4897, %v4896
      %v4961 = vpack.c.b16 %v4899, %v4898
      %v4962 = vpack.c.b16 %v4901, %v4900
      %v4963 = vpack.c.b16 %v4903, %v4902
      %v4964 = vpack.c.b16 %v4905, %v4904
      %v4965 = vpack.c.b16 %v4907, %v4906
      %v4966 = vpack.c.b16 %v4909, %v4908
      %v4967 = vpack.c.b16 %v4911, %v4910
      %v4968 = vpack.c.b16 %v4913, %v4912
      %v4969 = vpack.c.b16 %v4915, %v4914
      %v4970 = vpack.c.b16 %v4917, %v4916
      %v4971 = vpack.c.b16 %v4919, %v4918
      %v4972 = vpack.c.b16 %v4921, %v4920
      %v4973 = vpack.c.b16 %v4923, %v4922
      %v4974 = vpack.c.b16 %v4925, %v4924
      %v4975 = vpack.c.b16 %v4927, %v4926
      %v4976 = vpack.c.b16 %v4929, %v4928
      %v4977 = vpack.c.b16 %v4931, %v4930
      %v4978 = vpack.c.b16 %v4933, %v4932
      %v4979 = vpack.c.b16 %v4935, %v4934
      %v4980 = vpack.c.b16 %v4937, %v4936
      %v4981 = vpack.c.b16 %v4939, %v4938
      %v4982 = vpack.c.b16 %v4941, %v4940
      %v4983 = vpack.c.b16 %v4943, %v4942
      %v4984 = vpack.c.b16 %v4945, %v4944
      %v4985 = vpack.c.b16 %v4947, %v4946
      %v4986 = vpack.c.b16 %v4949, %v4948
      %v4987 = vpack.c.b16 %v4951, %v4950
      %v4988 = vpack.c.b16 %v4953, %v4952
      %v4989 = vpack.c.b16 %v4955, %v4954
      %v4990 = vpack.c.b16 %v4957, %v4956
      %v4991 = vpack.c.b16 %v4959, %v4958
      %5024 = vmatprep.subr.bf16.mxu0 0
      %5025 = vmatpush1.bf16.msra.mxu0 %v4960
      %5026 = vmatprep.subr.bf16.mxu0 0
      %5027 = vmatpush1.bf16.msra.mxu0 %v4961
      %5028 = vmatprep.subr.bf16.mxu0 0
      %5029 = vmatpush1.bf16.msra.mxu0 %v4962
      %5030 = vmatprep.subr.bf16.mxu0 0
      %5031 = vmatpush1.bf16.msra.mxu0 %v4963
      %5032 = vmatprep.subr.bf16.mxu0 0
      %5033 = vmatpush1.bf16.msra.mxu0 %v4964
      %5034 = vmatprep.subr.bf16.mxu0 0
      %5035 = vmatpush1.bf16.msra.mxu0 %v4965
      %5036 = vmatprep.subr.bf16.mxu0 0
      %5037 = vmatpush1.bf16.msra.mxu0 %v4966
      %5038 = vmatprep.subr.bf16.mxu0 0
      %5039 = vmatpush1.bf16.msra.mxu0 %v4967
      %5040 = vmatprep.subr.bf16.mxu0 0
      %5041 = vmatpush1.bf16.msra.mxu0 %v4968
      %5042 = vmatprep.subr.bf16.mxu0 0
      %5043 = vmatpush1.bf16.msra.mxu0 %v4969
      %5044 = vmatprep.subr.bf16.mxu0 0
      %5045 = vmatpush1.bf16.msra.mxu0 %v4970
      %5046 = vmatprep.subr.bf16.mxu0 0
      %5047 = vmatpush1.bf16.msra.mxu0 %v4971
      %5048 = vmatprep.subr.bf16.mxu0 0
      %5049 = vmatpush1.bf16.msra.mxu0 %v4972
      %5050 = vmatprep.subr.bf16.mxu0 0
      %5051 = vmatpush1.bf16.msra.mxu0 %v4973
      %5052 = vmatprep.subr.bf16.mxu0 0
      %5053 = vmatpush1.bf16.msra.mxu0 %v4974
      %5054 = vmatprep.subr.bf16.mxu0 0
      %5055 = vmatpush1.bf16.msra.mxu0 %v4975
      %5056 = vmatprep.mubr.bf16.mxu0 %v4756
      %5057 = vmatmul.mubr.bf16.gmra.mrb[0].mxu0 %v4755
      %v5058 = vpop.f32.mrb[0].mxu0
      %v5059 = vadd.f32 %v4830, %v5058
      %v5060 = vpop.f32.mrb[0].mxu0
      %v5061 = vpop.f32.mrb[0].mxu0
      %v5062 = vadd.f32 %v4830, %v5061
      %v5063 = vpop.f32.mrb[0].mxu0
      %5064 = vdwg.mxu0
      %5065 = vmatprep.subr.bf16.mxu0 0
      %5066 = vmatpush1.bf16.msra.mxu0 %v4976
      %5067 = vmatprep.subr.bf16.mxu0 0
      %5068 = vmatpush1.bf16.msra.mxu0 %v4977
      %5069 = vmatprep.subr.bf16.mxu0 0
      %5070 = vmatpush1.bf16.msra.mxu0 %v4978
      %5071 = vmatprep.subr.bf16.mxu0 0
      %5072 = vmatpush1.bf16.msra.mxu0 %v4979
      %5073 = vmatprep.subr.bf16.mxu0 0
      %5074 = vmatpush1.bf16.msra.mxu0 %v4980
      %5075 = vmatprep.subr.bf16.mxu0 0
      %5076 = vmatpush1.bf16.msra.mxu0 %v4981
      %5077 = vmatprep.subr.bf16.mxu0 0
      %5078 = vmatpush1.bf16.msra.mxu0 %v4982
      %5079 = vmatprep.subr.bf16.mxu0 0
      %5080 = vmatpush1.bf16.msra.mxu0 %v4983
      %5081 = vmatprep.subr.bf16.mxu0 0
      %5082 = vmatpush1.bf16.msra.mxu0 %v4984
      %5083 = vmatprep.subr.bf16.mxu0 0
      %5084 = vmatpush1.bf16.msra.mxu0 %v4985
      %5085 = vmatprep.subr.bf16.mxu0 0
      %5086 = vmatpush1.bf16.msra.mxu0 %v4986
      %5087 = vmatprep.subr.bf16.mxu0 0
      %5088 = vmatpush1.bf16.msra.mxu0 %v4987
      %5089 = vmatprep.subr.bf16.mxu0 0
      %5090 = vmatpush1.bf16.msra.mxu0 %v4988
      %5091 = vmatprep.subr.bf16.mxu0 0
      %5092 = vmatpush1.bf16.msra.mxu0 %v4989
      %5093 = vmatprep.subr.bf16.mxu0 0
      %5094 = vmatpush1.bf16.msra.mxu0 %v4990
      %5095 = vmatprep.subr.bf16.mxu0 0
      %5096 = vmatpush1.bf16.msra.mxu0 %v4991
      %5097 = vmatprep.mubr.bf16.mxu0 %v4758
      %5098 = vmatmul.mubr.bf16.gmra.mrb[0].mxu0 %v4757
      %v5099 = vpop.f32.mrb[0].mxu0
      %v5100 = vadd.f32 %v5059, %v5099
      %v5101 = vpop.f32.mrb[0].mxu0
      %v5102 = vpop.f32.mrb[0].mxu0
      %v5103 = vadd.f32 %v5062, %v5102
      %v5104 = vpop.f32.mrb[0].mxu0
      %5105 = vdwg.mxu0
      %v5106 = vadd.f32 %v4535, %v5100
      %v5107 = vadd.f32 %v4536, %v5103
      %s5108 = scalar_lea.vmem %s18, 1
      %v5109 = vld [vmem:[%s5108] sm:$0x1]
      %s5110 = scalar_lea.vmem %s19, 1
      %v5111 = vld [vmem:[%s5110] sm:$0x1]
      %v5112 = vsel %vm1190, %v5106, 0.0
      %5113 = vadd.xlane.f32.xlu0 %v5112
      %v5114 = vpop.xlane.xlu0 %5113
      %v5115 = vsel %vm2492, %v5107, 0.0
      %5116 = vadd.xlane.f32.xlu0 %v5115
      %v5117 = vpop.xlane.xlu0 %5116
      %v5118 = vmul.f32 %v5114, %v2496
      %v5119 = vmul.f32 %v5117, %v2496
      %v5120 = vsub.f32 %v5106, %v5118
      %v5121 = vsub.f32 %v5107, %v5119
      %v5122 = vmul.f32 %v5120, %v5120
      %v5123 = vmul.f32 %v5121, %v5121
      %v5124 = vsel %vm1190, %v5122, 0.0
      %5125 = vadd.xlane.f32.xlu0 %v5124
      %v5126 = vpop.xlane.xlu0 %5125
      %v5127 = vsel %vm2492, %v5123, 0.0
      %5128 = vadd.xlane.f32.xlu0 %v5127
      %v5129 = vpop.xlane.xlu0 %5128
      %v5130 = vmul.f32 %v5126, %v2496
      %v5131 = vmul.f32 %v5129, %v2496
      %v5132 = vadd.f32 %v5130, 1e-05
      %v5133 = vadd.f32 %v5131, 1e-05
      %v5134 = vrsqrt.pop %v5132
      %v5135 = vrsqrt.pop %v5133
      %v5136 = vmul.f32 %v5120, %v5134
      %v5137 = vmul.f32 %v5121, %v5135
      %v5139 = vlaneseq
      %v5140 = vshrl.u32 %v5139, 7
      %v5141 = vsub.s32 0, %v5140
      %v5142 = vrot.slane %v5109, %v5141
      %v5144 = vmul.f32 %v5136, %v5142
      %v5145 = vmul.f32 %v5137, %v5142
      %v5147 = vlaneseq
      %v5148 = vshrl.u32 %v5147, 7
      %v5149 = vsub.s32 0, %v5148
      %v5150 = vrot.slane %v5111, %v5149
      %v5152 = vadd.f32 %v5144, %v5150
      %v5153 = vadd.f32 %v5145, %v5150
      %v5154 = vpack.c.bf16 %v5153, %v5152
      %s5155 = scalar_lea.vmem %s8, 128
      %v5156 = vld [vmem:[%s5155] sm:$0xff]
      %v5157 = vld [vmem:[%s5155 + $0x8] sm:$0xff]
      %v5158 = vld [vmem:[%s5155 + $0x10] sm:$0xff]
      %v5159 = vld [vmem:[%s5155 + $0x18] sm:$0xff]
      %v5160 = vld [vmem:[%s5155 + $0x20] sm:$0xff]
      %v5161 = vld [vmem:[%s5155 + $0x28] sm:$0xff]
      %v5162 = vld [vmem:[%s5155 + $0x30] sm:$0xff]
      %v5163 = vld [vmem:[%s5155 + $0x38] sm:$0xff]
      %s5164 = scalar_lea.vmem %s9, 4
      %v5165 = vld [vmem:[%s5164] sm:$0x3]
      %v5167 = vlaneseq
      %v5168 = vshrl.u32 %v5167, 7
      %v5169 = vsub.s32 0, %v5168
      %v5170 = vrot.slane %v5165, %v5169
      %v5171 = vlaneseq
      %v5172 = vshrl.u32 %v5171, 7
      %v5173 = vsub.s32 1, %v5172
      %v5174 = vrot.slane %v5165, %v5173
      %v5185 = vunpack.c.l.b16 %v5156
      %v5186 = vunpack.c.h.b16 %v5156
      %v5187 = vunpack.c.l.b16 %v5157
      %v5188 = vunpack.c.h.b16 %v5157
      %v5189 = vunpack.c.l.b16 %v5158
      %v5190 = vunpack.c.h.b16 %v5158
      %v5191 = vunpack.c.l.b16 %v5159
      %v5192 = vunpack.c.h.b16 %v5159
      %v5193 = vunpack.c.l.b16 %v5160
      %v5194 = vunpack.c.h.b16 %v5160
      %v5195 = vunpack.c.l.b16 %v5161
      %v5196 = vunpack.c.h.b16 %v5161
      %v5197 = vunpack.c.l.b16 %v5162
      %v5198 = vunpack.c.h.b16 %v5162
      %v5199 = vunpack.c.l.b16 %v5163
      %v5200 = vunpack.c.h.b16 %v5163
      %v5201 = vpack.c.b16 %v5187, %v5185
      %v5202 = vpack.c.b16 %v5188, %v5186
      %v5203 = vpack.c.b16 %v5191, %v5189
      %v5204 = vpack.c.b16 %v5192, %v5190
      %v5205 = vpack.c.b16 %v5195, %v5193
      %v5206 = vpack.c.b16 %v5196, %v5194
      %v5207 = vpack.c.b16 %v5199, %v5197
      %v5208 = vpack.c.b16 %v5200, %v5198
      %v5218 = vsel %vm1190, %v5154, 0
      %5220 = vmatprep.subr.bf16.mxu0 %v5202
      %5221 = vmatpush1.bf16.msra.mxu0 %v5201
      %5222 = vmatprep.subr.bf16.mxu0 %v5204
      %5223 = vmatpush1.bf16.msra.mxu0 %v5203
      %5224 = vmatprep.subr.bf16.mxu0 %v5206
      %5225 = vmatpush1.bf16.msra.mxu0 %v5205
      %5226 = vmatprep.subr.bf16.mxu0 %v5208
      %5227 = vmatpush1.bf16.msra.mxu0 %v5207
      %5228 = vmatprep.subr.bf16.mxu0 0
      %5229 = vmatpush1.bf16.msra.mxu0 0
      %5230 = vmatprep.subr.bf16.mxu0 0
      %5231 = vmatpush1.bf16.msra.mxu0 0
      %5232 = vmatprep.subr.bf16.mxu0 0
      %5233 = vmatpush1.bf16.msra.mxu0 0
      %5234 = vmatprep.subr.bf16.mxu0 0
      %5235 = vmatpush1.bf16.msra.mxu0 0
      %5236 = vmatprep.subr.bf16.mxu0 0
      %5237 = vmatpush1.bf16.msra.mxu0 0
      %5238 = vmatprep.subr.bf16.mxu0 0
      %5239 = vmatpush1.bf16.msra.mxu0 0
      %5240 = vmatprep.subr.bf16.mxu0 0
      %5241 = vmatpush1.bf16.msra.mxu0 0
      %5242 = vmatprep.subr.bf16.mxu0 0
      %5243 = vmatpush1.bf16.msra.mxu0 0
      %5244 = vmatprep.subr.bf16.mxu0 0
      %5245 = vmatpush1.bf16.msra.mxu0 0
      %5246 = vmatprep.subr.bf16.mxu0 0
      %5247 = vmatpush1.bf16.msra.mxu0 0
      %5248 = vmatprep.subr.bf16.mxu0 0
      %5249 = vmatpush1.bf16.msra.mxu0 0
      %5250 = vmatprep.subr.bf16.mxu0 0
      %5251 = vmatpush1.bf16.msra.mxu0 0
      %5252 = vmatprep.mubr.bf16.mxu0 0
      %5253 = vmatmul.mubr.bf16.gmra.mrb[0].mxu0 %v5218
      %v5254 = vpop.f32.mrb[0].mxu0
      %v5255 = vadd.f32 %v5170, %v5254
      %v5256 = vpop.f32.mrb[0].mxu0
      %v5257 = vadd.f32 %v5174, %v5256
      %v5258 = vpop.f32.mrb[0].mxu0
      %v5259 = vadd.f32 %v5170, %v5258
      %v5260 = vpop.f32.mrb[0].mxu0
      %v5261 = vadd.f32 %v5174, %v5260
      %5262 = vdwg.mxu0
      %5265 = vrot.lane.b32.xlu0 %v5255, 120
      %v5266 = vpop.permute.xlu0 %5265
      %5267 = vrot.lane.b32.xlu0 %v5259, 120
      %v5268 = vpop.permute.xlu0 %5267
      %5271 = vrot.lane.b32.xlu0 %v5255, 112
      %v5272 = vpop.permute.xlu0 %5271
      %5273 = vrot.lane.b32.xlu0 %v5259, 112
      %v5274 = vpop.permute.xlu0 %5273
      %5277 = vrot.lane.b32.xlu0 %v5255, 104
      %v5278 = vpop.permute.xlu0 %5277
      %5279 = vrot.lane.b32.xlu0 %v5259, 104
      %v5280 = vpop.permute.xlu0 %5279
      %5283 = vrot.lane.b32.xlu0 %v5255, 96
      %v5284 = vpop.permute.xlu0 %5283
      %5285 = vrot.lane.b32.xlu0 %v5259, 96
      %v5286 = vpop.permute.xlu0 %5285
      %5289 = vrot.lane.b32.xlu0 %v5255, 88
      %v5290 = vpop.permute.xlu0 %5289
      %5291 = vrot.lane.b32.xlu0 %v5259, 88
      %v5292 = vpop.permute.xlu0 %5291
      %5295 = vrot.lane.b32.xlu0 %v5255, 80
      %v5296 = vpop.permute.xlu0 %5295
      %5297 = vrot.lane.b32.xlu0 %v5259, 80
      %v5298 = vpop.permute.xlu0 %5297
      %5301 = vrot.lane.b32.xlu0 %v5255, 72
      %v5302 = vpop.permute.xlu0 %5301
      %5303 = vrot.lane.b32.xlu0 %v5259, 72
      %v5304 = vpop.permute.xlu0 %5303
      %v5307 = vpack.c.bf16 %v5259, %v5255
      %v5308 = vpack.c.bf16 %v5268, %v5266
      %v5309 = vpack.c.bf16 %v5274, %v5272
      %v5310 = vpack.c.bf16 %v5280, %v5278
      %v5311 = vpack.c.bf16 %v5286, %v5284
      %v5312 = vpack.c.bf16 %v5292, %v5290
      %v5313 = vpack.c.bf16 %v5298, %v5296
      %v5314 = vpack.c.bf16 %v5304, %v5302
      %5317 = vrot.lane.b32.xlu0 %v5257, 120
      %v5318 = vpop.permute.xlu0 %5317
      %5319 = vrot.lane.b32.xlu0 %v5261, 120
      %v5320 = vpop.permute.xlu0 %5319
      %5323 = vrot.lane.b32.xlu0 %v5257, 112
      %v5324 = vpop.permute.xlu0 %5323
      %5325 = vrot.lane.b32.xlu0 %v5261, 112
      %v5326 = vpop.permute.xlu0 %5325
      %5329 = vrot.lane.b32.xlu0 %v5257, 104
      %v5330 = vpop.permute.xlu0 %5329
      %5331 = vrot.lane.b32.xlu0 %v5261, 104
      %v5332 = vpop.permute.xlu0 %5331
      %5335 = vrot.lane.b32.xlu0 %v5257, 96
      %v5336 = vpop.permute.xlu0 %5335
      %5337 = vrot.lane.b32.xlu0 %v5261, 96
      %v5338 = vpop.permute.xlu0 %5337
      %5341 = vrot.lane.b32.xlu0 %v5257, 88
      %v5342 = vpop.permute.xlu0 %5341
      %5343 = vrot.lane.b32.xlu0 %v5261, 88
      %v5344 = vpop.permute.xlu0 %5343
      %5347 = vrot.lane.b32.xlu0 %v5257, 80
      %v5348 = vpop.permute.xlu0 %5347
      %5349 = vrot.lane.b32.xlu0 %v5261, 80
      %v5350 = vpop.permute.xlu0 %5349
      %5353 = vrot.lane.b32.xlu0 %v5257, 72
      %v5354 = vpop.permute.xlu0 %5353
      %5355 = vrot.lane.b32.xlu0 %v5261, 72
      %v5356 = vpop.permute.xlu0 %5355
      %v5359 = vpack.c.bf16 %v5261, %v5257
      %v5360 = vpack.c.bf16 %v5320, %v5318
      %v5361 = vpack.c.bf16 %v5326, %v5324
      %v5362 = vpack.c.bf16 %v5332, %v5330
      %v5363 = vpack.c.bf16 %v5338, %v5336
      %v5364 = vpack.c.bf16 %v5344, %v5342
      %v5365 = vpack.c.bf16 %v5350, %v5348
      %v5366 = vpack.c.bf16 %v5356, %v5354
      %5368 = vrot.lane.b32.xlu0 %v5307, 64
      %v5369 = vpop.permute.xlu0 %5368
      %v5371 = vsel %vm1344, %v5307, 0
      %v5374 = vsel %vm1344, %v5369, 0
      %5376 = vmatprep.subr.bf16.mxu0 0
      %5377 = vmatpush1.bf16.xpose.msra.mxu0 %v5374
      %5378 = vmatprep.subr.bf16.mxu0 0
      %5379 = vmatpush1.bf16.xpose.msra.mxu0 0
      %5380 = vmatprep.subr.bf16.mxu0 0
      %5381 = vmatpush1.bf16.xpose.msra.mxu0 0
      %5382 = vmatprep.subr.bf16.mxu0 0
      %5383 = vmatpush1.bf16.xpose.msra.mxu0 0
      %5384 = vmatprep.subr.bf16.mxu0 0
      %5385 = vmatpush1.bf16.xpose.msra.mxu0 0
      %5386 = vmatprep.subr.bf16.mxu0 0
      %5387 = vmatpush1.bf16.xpose.msra.mxu0 0
      %5388 = vmatprep.subr.bf16.mxu0 0
      %5389 = vmatpush1.bf16.xpose.msra.mxu0 0
      %5390 = vmatprep.subr.bf16.mxu0 0
      %5391 = vmatpush1.bf16.xpose.msra.mxu0 0
      %5392 = vmatprep.subr.bf16.mxu0 0
      %5393 = vmatpush1.bf16.xpose.msra.mxu0 0
      %5394 = vmatprep.subr.bf16.mxu0 0
      %5395 = vmatpush1.bf16.xpose.msra.mxu0 0
      %5396 = vmatprep.subr.bf16.mxu0 0
      %5397 = vmatpush1.bf16.xpose.msra.mxu0 0
      %5398 = vmatprep.subr.bf16.mxu0 0
      %5399 = vmatpush1.bf16.xpose.msra.mxu0 0
      %5400 = vmatprep.subr.bf16.mxu0 0
      %5401 = vmatpush1.bf16.xpose.msra.mxu0 0
      %5402 = vmatprep.subr.bf16.mxu0 0
      %5403 = vmatpush1.bf16.xpose.msra.mxu0 0
      %5404 = vmatprep.subr.bf16.mxu0 0
      %5405 = vmatpush1.bf16.xpose.msra.mxu0 0
      %5406 = vmatprep.subr.bf16.mxu0 0
      %5407 = vmatpush1.bf16.xpose.msra.mxu0 0
      %5408 = vmatprep.mubr.bf16.mxu0 0
      %5409 = vmatmul.mubr.bf16.gmra.mrb[0].mxu0 %v5371
      %v5410 = vpop.f32.mrb[0].mxu0
      %v5411 = vadd.f32 0.0, %v5410
      %v5412 = vpop.f32.mrb[0].mxu0
      %v5413 = vpop.f32.mrb[0].mxu0
      %v5414 = vadd.f32 0.0, %v5413
      %v5415 = vpop.f32.mrb[0].mxu0
      %5416 = vdwg.mxu0
      %5418 = vrot.lane.b32.xlu0 %v5308, 64
      %v5419 = vpop.permute.xlu0 %5418
      %v5421 = vsel %vm1344, %v5308, 0
      %v5424 = vsel %vm1344, %v5419, 0
      %5426 = vmatprep.subr.bf16.mxu0 0
      %5427 = vmatpush1.bf16.xpose.msra.mxu0 %v5424
      %5428 = vmatprep.subr.bf16.mxu0 0
      %5429 = vmatpush1.bf16.xpose.msra.mxu0 0
      %5430 = vmatprep.subr.bf16.mxu0 0
      %5431 = vmatpush1.bf16.xpose.msra.mxu0 0
      %5432 = vmatprep.subr.bf16.mxu0 0
      %5433 = vmatpush1.bf16.xpose.msra.mxu0 0
      %5434 = vmatprep.subr.bf16.mxu0 0
      %5435 = vmatpush1.bf16.xpose.msra.mxu0 0
      %5436 = vmatprep.subr.bf16.mxu0 0
      %5437 = vmatpush1.bf16.xpose.msra.mxu0 0
      %5438 = vmatprep.subr.bf16.mxu0 0
      %5439 = vmatpush1.bf16.xpose.msra.mxu0 0
      %5440 = vmatprep.subr.bf16.mxu0 0
      %5441 = vmatpush1.bf16.xpose.msra.mxu0 0
      %5442 = vmatprep.subr.bf16.mxu0 0
      %5443 = vmatpush1.bf16.xpose.msra.mxu0 0
      %5444 = vmatprep.subr.bf16.mxu0 0
      %5445 = vmatpush1.bf16.xpose.msra.mxu0 0
      %5446 = vmatprep.subr.bf16.mxu0 0
      %5447 = vmatpush1.bf16.xpose.msra.mxu0 0
      %5448 = vmatprep.subr.bf16.mxu0 0
      %5449 = vmatpush1.bf16.xpose.msra.mxu0 0
      %5450 = vmatprep.subr.bf16.mxu0 0
      %5451 = vmatpush1.bf16.xpose.msra.mxu0 0
      %5452 = vmatprep.subr.bf16.mxu0 0
      %5453 = vmatpush1.bf16.xpose.msra.mxu0 0
      %5454 = vmatprep.subr.bf16.mxu0 0
      %5455 = vmatpush1.bf16.xpose.msra.mxu0 0
      %5456 = vmatprep.subr.bf16.mxu0 0
      %5457 = vmatpush1.bf16.xpose.msra.mxu0 0
      %5458 = vmatprep.mubr.bf16.mxu0 0
      %5459 = vmatmul.mubr.bf16.gmra.mrb[0].mxu0 %v5421
      %v5460 = vpop.f32.mrb[0].mxu0
      %v5461 = vadd.f32 0.0, %v5460
      %v5462 = vpop.f32.mrb[0].mxu0
      %v5463 = vpop.f32.mrb[0].mxu0
      %v5464 = vadd.f32 0.0, %v5463
      %v5465 = vpop.f32.mrb[0].mxu0
      %5466 = vdwg.mxu0
      %5468 = vrot.lane.b32.xlu0 %v5309, 64
      %v5469 = vpop.permute.xlu0 %5468
      %v5471 = vsel %vm1344, %v5309, 0
      %v5474 = vsel %vm1344, %v5469, 0
      %5476 = vmatprep.subr.bf16.mxu0 0
      %5477 = vmatpush1.bf16.xpose.msra.mxu0 %v5474
      %5478 = vmatprep.subr.bf16.mxu0 0
      %5479 = vmatpush1.bf16.xpose.msra.mxu0 0
      %5480 = vmatprep.subr.bf16.mxu0 0
      %5481 = vmatpush1.bf16.xpose.msra.mxu0 0
      %5482 = vmatprep.subr.bf16.mxu0 0
      %5483 = vmatpush1.bf16.xpose.msra.mxu0 0
      %5484 = vmatprep.subr.bf16.mxu0 0
      %5485 = vmatpush1.bf16.xpose.msra.mxu0 0
      %5486 = vmatprep.subr.bf16.mxu0 0
      %5487 = vmatpush1.bf16.xpose.msra.mxu0 0
      %5488 = vmatprep.subr.bf16.mxu0 0
      %5489 = vmatpush1.bf16.xpose.msra.mxu0 0
      %5490 = vmatprep.subr.bf16.mxu0 0
      %5491 = vmatpush1.bf16.xpose.msra.mxu0 0
      %5492 = vmatprep.subr.bf16.mxu0 0
      %5493 = vmatpush1.bf16.xpose.msra.mxu0 0
      %5494 = vmatprep.subr.bf16.mxu0 0
      %5495 = vmatpush1.bf16.xpose.msra.mxu0 0
      %5496 = vmatprep.subr.bf16.mxu0 0
      %5497 = vmatpush1.bf16.xpose.msra.mxu0 0
      %5498 = vmatprep.subr.bf16.mxu0 0
      %5499 = vmatpush1.bf16.xpose.msra.mxu0 0
      %5500 = vmatprep.subr.bf16.mxu0 0
      %5501 = vmatpush1.bf16.xpose.msra.mxu0 0
      %5502 = vmatprep.subr.bf16.mxu0 0
      %5503 = vmatpush1.bf16.xpose.msra.mxu0 0
      %5504 = vmatprep.subr.bf16.mxu0 0
      %5505 = vmatpush1.bf16.xpose.msra.mxu0 0
      %5506 = vmatprep.subr.bf16.mxu0 0
      %5507 = vmatpush1.bf16.xpose.msra.mxu0 0
      %5508 = vmatprep.mubr.bf16.mxu0 0
      %5509 = vmatmul.mubr.bf16.gmra.mrb[0].mxu0 %v5471
      %v5510 = vpop.f32.mrb[0].mxu0
      %v5511 = vadd.f32 0.0, %v5510
      %v5512 = vpop.f32.mrb[0].mxu0
      %v5513 = vpop.f32.mrb[0].mxu0
      %v5514 = vadd.f32 0.0, %v5513
      %v5515 = vpop.f32.mrb[0].mxu0
      %5516 = vdwg.mxu0
      %5518 = vrot.lane.b32.xlu0 %v5310, 64
      %v5519 = vpop.permute.xlu0 %5518
      %v5521 = vsel %vm1344, %v5310, 0
      %v5524 = vsel %vm1344, %v5519, 0
      %5526 = vmatprep.subr.bf16.mxu0 0
      %5527 = vmatpush1.bf16.xpose.msra.mxu0 %v5524
      %5528 = vmatprep.subr.bf16.mxu0 0
      %5529 = vmatpush1.bf16.xpose.msra.mxu0 0
      %5530 = vmatprep.subr.bf16.mxu0 0
      %5531 = vmatpush1.bf16.xpose.msra.mxu0 0
      %5532 = vmatprep.subr.bf16.mxu0 0
      %5533 = vmatpush1.bf16.xpose.msra.mxu0 0
      %5534 = vmatprep.subr.bf16.mxu0 0
      %5535 = vmatpush1.bf16.xpose.msra.mxu0 0
      %5536 = vmatprep.subr.bf16.mxu0 0
      %5537 = vmatpush1.bf16.xpose.msra.mxu0 0
      %5538 = vmatprep.subr.bf16.mxu0 0
      %5539 = vmatpush1.bf16.xpose.msra.mxu0 0
      %5540 = vmatprep.subr.bf16.mxu0 0
      %5541 = vmatpush1.bf16.xpose.msra.mxu0 0
      %5542 = vmatprep.subr.bf16.mxu0 0
      %5543 = vmatpush1.bf16.xpose.msra.mxu0 0
      %5544 = vmatprep.subr.bf16.mxu0 0
      %5545 = vmatpush1.bf16.xpose.msra.mxu0 0
      %5546 = vmatprep.subr.bf16.mxu0 0
      %5547 = vmatpush1.bf16.xpose.msra.mxu0 0
      %5548 = vmatprep.subr.bf16.mxu0 0
      %5549 = vmatpush1.bf16.xpose.msra.mxu0 0
      %5550 = vmatprep.subr.bf16.mxu0 0
      %5551 = vmatpush1.bf16.xpose.msra.mxu0 0
      %5552 = vmatprep.subr.bf16.mxu0 0
      %5553 = vmatpush1.bf16.xpose.msra.mxu0 0
      %5554 = vmatprep.subr.bf16.mxu0 0
      %5555 = vmatpush1.bf16.xpose.msra.mxu0 0
      %5556 = vmatprep.subr.bf16.mxu0 0
      %5557 = vmatpush1.bf16.xpose.msra.mxu0 0
      %5558 = vmatprep.mubr.bf16.mxu0 0
      %5559 = vmatmul.mubr.bf16.gmra.mrb[0].mxu0 %v5521
      %v5560 = vpop.f32.mrb[0].mxu0
      %v5561 = vadd.f32 0.0, %v5560
      %v5562 = vpop.f32.mrb[0].mxu0
      %v5563 = vpop.f32.mrb[0].mxu0
      %v5564 = vadd.f32 0.0, %v5563
      %v5565 = vpop.f32.mrb[0].mxu0
      %5566 = vdwg.mxu0
      %5568 = vrot.lane.b32.xlu0 %v5311, 64
      %v5569 = vpop.permute.xlu0 %5568
      %v5571 = vsel %vm1344, %v5311, 0
      %v5574 = vsel %vm1344, %v5569, 0
      %5576 = vmatprep.subr.bf16.mxu0 0
      %5577 = vmatpush1.bf16.xpose.msra.mxu0 %v5574
      %5578 = vmatprep.subr.bf16.mxu0 0
      %5579 = vmatpush1.bf16.xpose.msra.mxu0 0
      %5580 = vmatprep.subr.bf16.mxu0 0
      %5581 = vmatpush1.bf16.xpose.msra.mxu0 0
      %5582 = vmatprep.subr.bf16.mxu0 0
      %5583 = vmatpush1.bf16.xpose.msra.mxu0 0
      %5584 = vmatprep.subr.bf16.mxu0 0
      %5585 = vmatpush1.bf16.xpose.msra.mxu0 0
      %5586 = vmatprep.subr.bf16.mxu0 0
      %5587 = vmatpush1.bf16.xpose.msra.mxu0 0
      %5588 = vmatprep.subr.bf16.mxu0 0
      %5589 = vmatpush1.bf16.xpose.msra.mxu0 0
      %5590 = vmatprep.subr.bf16.mxu0 0
      %5591 = vmatpush1.bf16.xpose.msra.mxu0 0
      %5592 = vmatprep.subr.bf16.mxu0 0
      %5593 = vmatpush1.bf16.xpose.msra.mxu0 0
      %5594 = vmatprep.subr.bf16.mxu0 0
      %5595 = vmatpush1.bf16.xpose.msra.mxu0 0
      %5596 = vmatprep.subr.bf16.mxu0 0
      %5597 = vmatpush1.bf16.xpose.msra.mxu0 0
      %5598 = vmatprep.subr.bf16.mxu0 0
      %5599 = vmatpush1.bf16.xpose.msra.mxu0 0
      %5600 = vmatprep.subr.bf16.mxu0 0
      %5601 = vmatpush1.bf16.xpose.msra.mxu0 0
      %5602 = vmatprep.subr.bf16.mxu0 0
      %5603 = vmatpush1.bf16.xpose.msra.mxu0 0
      %5604 = vmatprep.subr.bf16.mxu0 0
      %5605 = vmatpush1.bf16.xpose.msra.mxu0 0
      %5606 = vmatprep.subr.bf16.mxu0 0
      %5607 = vmatpush1.bf16.xpose.msra.mxu0 0
      %5608 = vmatprep.mubr.bf16.mxu0 0
      %5609 = vmatmul.mubr.bf16.gmra.mrb[0].mxu0 %v5571
      %v5610 = vpop.f32.mrb[0].mxu0
      %v5611 = vadd.f32 0.0, %v5610
      %v5612 = vpop.f32.mrb[0].mxu0
      %v5613 = vpop.f32.mrb[0].mxu0
      %v5614 = vadd.f32 0.0, %v5613
      %v5615 = vpop.f32.mrb[0].mxu0
      %5616 = vdwg.mxu0
      %5618 = vrot.lane.b32.xlu0 %v5312, 64
      %v5619 = vpop.permute.xlu0 %5618
      %v5621 = vsel %vm1344, %v5312, 0
      %v5624 = vsel %vm1344, %v5619, 0
      %5626 = vmatprep.subr.bf16.mxu0 0
      %5627 = vmatpush1.bf16.xpose.msra.mxu0 %v5624
      %5628 = vmatprep.subr.bf16.mxu0 0
      %5629 = vmatpush1.bf16.xpose.msra.mxu0 0
      %5630 = vmatprep.subr.bf16.mxu0 0
      %5631 = vmatpush1.bf16.xpose.msra.mxu0 0
      %5632 = vmatprep.subr.bf16.mxu0 0
      %5633 = vmatpush1.bf16.xpose.msra.mxu0 0
      %5634 = vmatprep.subr.bf16.mxu0 0
      %5635 = vmatpush1.bf16.xpose.msra.mxu0 0
      %5636 = vmatprep.subr.bf16.mxu0 0
      %5637 = vmatpush1.bf16.xpose.msra.mxu0 0
      %5638 = vmatprep.subr.bf16.mxu0 0
      %5639 = vmatpush1.bf16.xpose.msra.mxu0 0
      %5640 = vmatprep.subr.bf16.mxu0 0
      %5641 = vmatpush1.bf16.xpose.msra.mxu0 0
      %5642 = vmatprep.subr.bf16.mxu0 0
      %5643 = vmatpush1.bf16.xpose.msra.mxu0 0
      %5644 = vmatprep.subr.bf16.mxu0 0
      %5645 = vmatpush1.bf16.xpose.msra.mxu0 0
      %5646 = vmatprep.subr.bf16.mxu0 0
      %5647 = vmatpush1.bf16.xpose.msra.mxu0 0
      %5648 = vmatprep.subr.bf16.mxu0 0
      %5649 = vmatpush1.bf16.xpose.msra.mxu0 0
      %5650 = vmatprep.subr.bf16.mxu0 0
      %5651 = vmatpush1.bf16.xpose.msra.mxu0 0
      %5652 = vmatprep.subr.bf16.mxu0 0
      %5653 = vmatpush1.bf16.xpose.msra.mxu0 0
      %5654 = vmatprep.subr.bf16.mxu0 0
      %5655 = vmatpush1.bf16.xpose.msra.mxu0 0
      %5656 = vmatprep.subr.bf16.mxu0 0
      %5657 = vmatpush1.bf16.xpose.msra.mxu0 0
      %5658 = vmatprep.mubr.bf16.mxu0 0
      %5659 = vmatmul.mubr.bf16.gmra.mrb[0].mxu0 %v5621
      %v5660 = vpop.f32.mrb[0].mxu0
      %v5661 = vadd.f32 0.0, %v5660
      %v5662 = vpop.f32.mrb[0].mxu0
      %v5663 = vpop.f32.mrb[0].mxu0
      %v5664 = vadd.f32 0.0, %v5663
      %v5665 = vpop.f32.mrb[0].mxu0
      %5666 = vdwg.mxu0
      %5668 = vrot.lane.b32.xlu0 %v5313, 64
      %v5669 = vpop.permute.xlu0 %5668
      %v5671 = vsel %vm1344, %v5313, 0
      %v5674 = vsel %vm1344, %v5669, 0
      %5676 = vmatprep.subr.bf16.mxu0 0
      %5677 = vmatpush1.bf16.xpose.msra.mxu0 %v5674
      %5678 = vmatprep.subr.bf16.mxu0 0
      %5679 = vmatpush1.bf16.xpose.msra.mxu0 0
      %5680 = vmatprep.subr.bf16.mxu0 0
      %5681 = vmatpush1.bf16.xpose.msra.mxu0 0
      %5682 = vmatprep.subr.bf16.mxu0 0
      %5683 = vmatpush1.bf16.xpose.msra.mxu0 0
      %5684 = vmatprep.subr.bf16.mxu0 0
      %5685 = vmatpush1.bf16.xpose.msra.mxu0 0
      %5686 = vmatprep.subr.bf16.mxu0 0
      %5687 = vmatpush1.bf16.xpose.msra.mxu0 0
      %5688 = vmatprep.subr.bf16.mxu0 0
      %5689 = vmatpush1.bf16.xpose.msra.mxu0 0
      %5690 = vmatprep.subr.bf16.mxu0 0
      %5691 = vmatpush1.bf16.xpose.msra.mxu0 0
      %5692 = vmatprep.subr.bf16.mxu0 0
      %5693 = vmatpush1.bf16.xpose.msra.mxu0 0
      %5694 = vmatprep.subr.bf16.mxu0 0
      %5695 = vmatpush1.bf16.xpose.msra.mxu0 0
      %5696 = vmatprep.subr.bf16.mxu0 0
      %5697 = vmatpush1.bf16.xpose.msra.mxu0 0
      %5698 = vmatprep.subr.bf16.mxu0 0
      %5699 = vmatpush1.bf16.xpose.msra.mxu0 0
      %5700 = vmatprep.subr.bf16.mxu0 0
      %5701 = vmatpush1.bf16.xpose.msra.mxu0 0
      %5702 = vmatprep.subr.bf16.mxu0 0
      %5703 = vmatpush1.bf16.xpose.msra.mxu0 0
      %5704 = vmatprep.subr.bf16.mxu0 0
      %5705 = vmatpush1.bf16.xpose.msra.mxu0 0
      %5706 = vmatprep.subr.bf16.mxu0 0
      %5707 = vmatpush1.bf16.xpose.msra.mxu0 0
      %5708 = vmatprep.mubr.bf16.mxu0 0
      %5709 = vmatmul.mubr.bf16.gmra.mrb[0].mxu0 %v5671
      %v5710 = vpop.f32.mrb[0].mxu0
      %v5711 = vadd.f32 0.0, %v5710
      %v5712 = vpop.f32.mrb[0].mxu0
      %v5713 = vpop.f32.mrb[0].mxu0
      %v5714 = vadd.f32 0.0, %v5713
      %v5715 = vpop.f32.mrb[0].mxu0
      %5716 = vdwg.mxu0
      %5718 = vrot.lane.b32.xlu0 %v5314, 64
      %v5719 = vpop.permute.xlu0 %5718
      %v5721 = vsel %vm1344, %v5314, 0
      %v5724 = vsel %vm1344, %v5719, 0
      %5726 = vmatprep.subr.bf16.mxu0 0
      %5727 = vmatpush1.bf16.xpose.msra.mxu0 %v5724
      %5728 = vmatprep.subr.bf16.mxu0 0
      %5729 = vmatpush1.bf16.xpose.msra.mxu0 0
      %5730 = vmatprep.subr.bf16.mxu0 0
      %5731 = vmatpush1.bf16.xpose.msra.mxu0 0
      %5732 = vmatprep.subr.bf16.mxu0 0
      %5733 = vmatpush1.bf16.xpose.msra.mxu0 0
      %5734 = vmatprep.subr.bf16.mxu0 0
      %5735 = vmatpush1.bf16.xpose.msra.mxu0 0
      %5736 = vmatprep.subr.bf16.mxu0 0
      %5737 = vmatpush1.bf16.xpose.msra.mxu0 0
      %5738 = vmatprep.subr.bf16.mxu0 0
      %5739 = vmatpush1.bf16.xpose.msra.mxu0 0
      %5740 = vmatprep.subr.bf16.mxu0 0
      %5741 = vmatpush1.bf16.xpose.msra.mxu0 0
      %5742 = vmatprep.subr.bf16.mxu0 0
      %5743 = vmatpush1.bf16.xpose.msra.mxu0 0
      %5744 = vmatprep.subr.bf16.mxu0 0
      %5745 = vmatpush1.bf16.xpose.msra.mxu0 0
      %5746 = vmatprep.subr.bf16.mxu0 0
      %5747 = vmatpush1.bf16.xpose.msra.mxu0 0
      %5748 = vmatprep.subr.bf16.mxu0 0
      %5749 = vmatpush1.bf16.xpose.msra.mxu0 0
      %5750 = vmatprep.subr.bf16.mxu0 0
      %5751 = vmatpush1.bf16.xpose.msra.mxu0 0
      %5752 = vmatprep.subr.bf16.mxu0 0
      %5753 = vmatpush1.bf16.xpose.msra.mxu0 0
      %5754 = vmatprep.subr.bf16.mxu0 0
      %5755 = vmatpush1.bf16.xpose.msra.mxu0 0
      %5756 = vmatprep.subr.bf16.mxu0 0
      %5757 = vmatpush1.bf16.xpose.msra.mxu0 0
      %5758 = vmatprep.mubr.bf16.mxu0 0
      %5759 = vmatmul.mubr.bf16.gmra.mrb[0].mxu0 %v5721
      %v5760 = vpop.f32.mrb[0].mxu0
      %v5761 = vadd.f32 0.0, %v5760
      %v5762 = vpop.f32.mrb[0].mxu0
      %v5763 = vpop.f32.mrb[0].mxu0
      %v5764 = vadd.f32 0.0, %v5763
      %v5765 = vpop.f32.mrb[0].mxu0
      %5766 = vdwg.mxu0
      %v5767 = vsel %vm1744, %v5411, -1e+09
      %v5768 = vsel %vm1745, %v5414, -1e+09
      %v5769 = vsel %vm1744, %v5461, -1e+09
      %v5770 = vsel %vm1745, %v5464, -1e+09
      %v5771 = vsel %vm1744, %v5511, -1e+09
      %v5772 = vsel %vm1745, %v5514, -1e+09
      %v5773 = vsel %vm1744, %v5561, -1e+09
      %v5774 = vsel %vm1745, %v5564, -1e+09
      %v5775 = vsel %vm1744, %v5611, -1e+09
      %v5776 = vsel %vm1745, %v5614, -1e+09
      %v5777 = vsel %vm1744, %v5661, -1e+09
      %v5778 = vsel %vm1745, %v5664, -1e+09
      %v5779 = vsel %vm1744, %v5711, -1e+09
      %v5780 = vsel %vm1745, %v5714, -1e+09
      %v5781 = vsel %vm1744, %v5761, -1e+09
      %v5782 = vsel %vm1745, %v5764, -1e+09
      %v5783 = vsel %vm1762, %v5767, -inf
      %5784 = vmax.xlane.f32.xlu0 %v5783
      %v5785 = vpop.xlane.xlu0 %5784
      %v5786 = vsel %vm1766, %v5768, -inf
      %5787 = vmax.xlane.f32.xlu0 %v5786
      %v5788 = vpop.xlane.xlu0 %5787
      %v5789 = vsel %vm1762, %v5769, -inf
      %5790 = vmax.xlane.f32.xlu0 %v5789
      %v5791 = vpop.xlane.xlu0 %5790
      %v5792 = vsel %vm1766, %v5770, -inf
      %5793 = vmax.xlane.f32.xlu0 %v5792
      %v5794 = vpop.xlane.xlu0 %5793
      %v5795 = vsel %vm1762, %v5771, -inf
      %5796 = vmax.xlane.f32.xlu0 %v5795
      %v5797 = vpop.xlane.xlu0 %5796
      %v5798 = vsel %vm1766, %v5772, -inf
      %5799 = vmax.xlane.f32.xlu0 %v5798
      %v5800 = vpop.xlane.xlu0 %5799
      %v5801 = vsel %vm1762, %v5773, -inf
      %5802 = vmax.xlane.f32.xlu0 %v5801
      %v5803 = vpop.xlane.xlu0 %5802
      %v5804 = vsel %vm1766, %v5774, -inf
      %5805 = vmax.xlane.f32.xlu0 %v5804
      %v5806 = vpop.xlane.xlu0 %5805
      %v5807 = vsel %vm1762, %v5775, -inf
      %5808 = vmax.xlane.f32.xlu0 %v5807
      %v5809 = vpop.xlane.xlu0 %5808
      %v5810 = vsel %vm1766, %v5776, -inf
      %5811 = vmax.xlane.f32.xlu0 %v5810
      %v5812 = vpop.xlane.xlu0 %5811
      %v5813 = vsel %vm1762, %v5777, -inf
      %5814 = vmax.xlane.f32.xlu0 %v5813
      %v5815 = vpop.xlane.xlu0 %5814
      %v5816 = vsel %vm1766, %v5778, -inf
      %5817 = vmax.xlane.f32.xlu0 %v5816
      %v5818 = vpop.xlane.xlu0 %5817
      %v5819 = vsel %vm1762, %v5779, -inf
      %5820 = vmax.xlane.f32.xlu0 %v5819
      %v5821 = vpop.xlane.xlu0 %5820
      %v5822 = vsel %vm1766, %v5780, -inf
      %5823 = vmax.xlane.f32.xlu0 %v5822
      %v5824 = vpop.xlane.xlu0 %5823
      %v5825 = vsel %vm1762, %v5781, -inf
      %5826 = vmax.xlane.f32.xlu0 %v5825
      %v5827 = vpop.xlane.xlu0 %5826
      %v5828 = vsel %vm1766, %v5782, -inf
      %5829 = vmax.xlane.f32.xlu0 %v5828
      %v5830 = vpop.xlane.xlu0 %5829
      %v5831 = vsub.f32 %v5767, %v5785
      %v5832 = vsub.f32 %v5768, %v5788
      %v5833 = vsub.f32 %v5769, %v5791
      %v5834 = vsub.f32 %v5770, %v5794
      %v5835 = vsub.f32 %v5771, %v5797
      %v5836 = vsub.f32 %v5772, %v5800
      %v5837 = vsub.f32 %v5773, %v5803
      %v5838 = vsub.f32 %v5774, %v5806
      %v5839 = vsub.f32 %v5775, %v5809
      %v5840 = vsub.f32 %v5776, %v5812
      %v5841 = vsub.f32 %v5777, %v5815
      %v5842 = vsub.f32 %v5778, %v5818
      %v5843 = vsub.f32 %v5779, %v5821
      %v5844 = vsub.f32 %v5780, %v5824
      %v5845 = vsub.f32 %v5781, %v5827
      %v5846 = vsub.f32 %v5782, %v5830
      %v5847 = vmul.f32 %v5831, 1.442695
      %v5848 = vpow.pop %v5847
      %v5849 = vmul.f32 %v5832, 1.442695
      %v5850 = vpow.pop %v5849
      %v5851 = vmul.f32 %v5833, 1.442695
      %v5852 = vpow.pop %v5851
      %v5853 = vmul.f32 %v5834, 1.442695
      %v5854 = vpow.pop %v5853
      %v5855 = vmul.f32 %v5835, 1.442695
      %v5856 = vpow.pop %v5855
      %v5857 = vmul.f32 %v5836, 1.442695
      %v5858 = vpow.pop %v5857
      %v5859 = vmul.f32 %v5837, 1.442695
      %v5860 = vpow.pop %v5859
      %v5861 = vmul.f32 %v5838, 1.442695
      %v5862 = vpow.pop %v5861
      %v5863 = vmul.f32 %v5839, 1.442695
      %v5864 = vpow.pop %v5863
      %v5865 = vmul.f32 %v5840, 1.442695
      %v5866 = vpow.pop %v5865
      %v5867 = vmul.f32 %v5841, 1.442695
      %v5868 = vpow.pop %v5867
      %v5869 = vmul.f32 %v5842, 1.442695
      %v5870 = vpow.pop %v5869
      %v5871 = vmul.f32 %v5843, 1.442695
      %v5872 = vpow.pop %v5871
      %v5873 = vmul.f32 %v5844, 1.442695
      %v5874 = vpow.pop %v5873
      %v5875 = vmul.f32 %v5845, 1.442695
      %v5876 = vpow.pop %v5875
      %v5877 = vmul.f32 %v5846, 1.442695
      %v5878 = vpow.pop %v5877
      %v5879 = vsel %vm1762, %v5848, 0.0
      %5880 = vadd.xlane.f32.xlu0 %v5879
      %v5881 = vpop.xlane.xlu0 %5880
      %v5882 = vsel %vm1766, %v5850, 0.0
      %5883 = vadd.xlane.f32.xlu0 %v5882
      %v5884 = vpop.xlane.xlu0 %5883
      %v5885 = vsel %vm1762, %v5852, 0.0
      %5886 = vadd.xlane.f32.xlu0 %v5885
      %v5887 = vpop.xlane.xlu0 %5886
      %v5888 = vsel %vm1766, %v5854, 0.0
      %5889 = vadd.xlane.f32.xlu0 %v5888
      %v5890 = vpop.xlane.xlu0 %5889
      %v5891 = vsel %vm1762, %v5856, 0.0
      %5892 = vadd.xlane.f32.xlu0 %v5891
      %v5893 = vpop.xlane.xlu0 %5892
      %v5894 = vsel %vm1766, %v5858, 0.0
      %5895 = vadd.xlane.f32.xlu0 %v5894
      %v5896 = vpop.xlane.xlu0 %5895
      %v5897 = vsel %vm1762, %v5860, 0.0
      %5898 = vadd.xlane.f32.xlu0 %v5897
      %v5899 = vpop.xlane.xlu0 %5898
      %v5900 = vsel %vm1766, %v5862, 0.0
      %5901 = vadd.xlane.f32.xlu0 %v5900
      %v5902 = vpop.xlane.xlu0 %5901
      %v5903 = vsel %vm1762, %v5864, 0.0
      %5904 = vadd.xlane.f32.xlu0 %v5903
      %v5905 = vpop.xlane.xlu0 %5904
      %v5906 = vsel %vm1766, %v5866, 0.0
      %5907 = vadd.xlane.f32.xlu0 %v5906
      %v5908 = vpop.xlane.xlu0 %5907
      %v5909 = vsel %vm1762, %v5868, 0.0
      %5910 = vadd.xlane.f32.xlu0 %v5909
      %v5911 = vpop.xlane.xlu0 %5910
      %v5912 = vsel %vm1766, %v5870, 0.0
      %5913 = vadd.xlane.f32.xlu0 %v5912
      %v5914 = vpop.xlane.xlu0 %5913
      %v5915 = vsel %vm1762, %v5872, 0.0
      %5916 = vadd.xlane.f32.xlu0 %v5915
      %v5917 = vpop.xlane.xlu0 %5916
      %v5918 = vsel %vm1766, %v5874, 0.0
      %5919 = vadd.xlane.f32.xlu0 %v5918
      %v5920 = vpop.xlane.xlu0 %5919
      %v5921 = vsel %vm1762, %v5876, 0.0
      %5922 = vadd.xlane.f32.xlu0 %v5921
      %v5923 = vpop.xlane.xlu0 %5922
      %v5924 = vsel %vm1766, %v5878, 0.0
      %5925 = vadd.xlane.f32.xlu0 %v5924
      %v5926 = vpop.xlane.xlu0 %5925
      %v5927 = vrcp.pop %v5881
      %v5928 = vrcp.pop %v5884
      %v5929 = vrcp.pop %v5887
      %v5930 = vrcp.pop %v5890
      %v5931 = vrcp.pop %v5893
      %v5932 = vrcp.pop %v5896
      %v5933 = vrcp.pop %v5899
      %v5934 = vrcp.pop %v5902
      %v5935 = vrcp.pop %v5905
      %v5936 = vrcp.pop %v5908
      %v5937 = vrcp.pop %v5911
      %v5938 = vrcp.pop %v5914
      %v5939 = vrcp.pop %v5917
      %v5940 = vrcp.pop %v5920
      %v5941 = vrcp.pop %v5923
      %v5942 = vrcp.pop %v5926
      %v5943 = vmul.f32 %v5848, %v5927
      %v5944 = vmul.f32 %v5850, %v5928
      %v5945 = vmul.f32 %v5852, %v5929
      %v5946 = vmul.f32 %v5854, %v5930
      %v5947 = vmul.f32 %v5856, %v5931
      %v5948 = vmul.f32 %v5858, %v5932
      %v5949 = vmul.f32 %v5860, %v5933
      %v5950 = vmul.f32 %v5862, %v5934
      %v5951 = vmul.f32 %v5864, %v5935
      %v5952 = vmul.f32 %v5866, %v5936
      %v5953 = vmul.f32 %v5868, %v5937
      %v5954 = vmul.f32 %v5870, %v5938
      %v5955 = vmul.f32 %v5872, %v5939
      %v5956 = vmul.f32 %v5874, %v5940
      %v5957 = vmul.f32 %v5876, %v5941
      %v5958 = vmul.f32 %v5878, %v5942
      %v5959 = vpack.c.bf16 %v5944, %v5943
      %v5960 = vpack.c.bf16 %v5946, %v5945
      %v5961 = vpack.c.bf16 %v5948, %v5947
      %v5962 = vpack.c.bf16 %v5950, %v5949
      %v5963 = vpack.c.bf16 %v5952, %v5951
      %v5964 = vpack.c.bf16 %v5954, %v5953
      %v5965 = vpack.c.bf16 %v5956, %v5955
      %v5966 = vpack.c.bf16 %v5958, %v5957
      %v5968 = vsel %vm1762, %v5959, 0
      %v5971 = vsel %vm1951, %v5359, 0
      %5973 = vmatprep.subr.bf16.mxu0 0
      %5974 = vmatpush1.bf16.msra.mxu0 %v5971
      %5975 = vmatprep.subr.bf16.mxu0 0
      %5976 = vmatpush1.bf16.msra.mxu0 0
      %5977 = vmatprep.subr.bf16.mxu0 0
      %5978 = vmatpush1.bf16.msra.mxu0 0
      %5979 = vmatprep.subr.bf16.mxu0 0
      %5980 = vmatpush1.bf16.msra.mxu0 0
      %5981 = vmatprep.subr.bf16.mxu0 0
      %5982 = vmatpush1.bf16.msra.mxu0 0
      %5983 = vmatprep.subr.bf16.mxu0 0
      %5984 = vmatpush1.bf16.msra.mxu0 0
      %5985 = vmatprep.subr.bf16.mxu0 0
      %5986 = vmatpush1.bf16.msra.mxu0 0
      %5987 = vmatprep.subr.bf16.mxu0 0
      %5988 = vmatpush1.bf16.msra.mxu0 0
      %5989 = vmatprep.subr.bf16.mxu0 0
      %5990 = vmatpush1.bf16.msra.mxu0 0
      %5991 = vmatprep.subr.bf16.mxu0 0
      %5992 = vmatpush1.bf16.msra.mxu0 0
      %5993 = vmatprep.subr.bf16.mxu0 0
      %5994 = vmatpush1.bf16.msra.mxu0 0
      %5995 = vmatprep.subr.bf16.mxu0 0
      %5996 = vmatpush1.bf16.msra.mxu0 0
      %5997 = vmatprep.subr.bf16.mxu0 0
      %5998 = vmatpush1.bf16.msra.mxu0 0
      %5999 = vmatprep.subr.bf16.mxu0 0
      %6000 = vmatpush1.bf16.msra.mxu0 0
      %6001 = vmatprep.subr.bf16.mxu0 0
      %6002 = vmatpush1.bf16.msra.mxu0 0
      %6003 = vmatprep.subr.bf16.mxu0 0
      %6004 = vmatpush1.bf16.msra.mxu0 0
      %6005 = vmatprep.mubr.bf16.mxu0 0
      %6006 = vmatmul.mubr.bf16.gmra.mrb[0].mxu0 %v5968
      %v6007 = vpop.f32.mrb[0].mxu0
      %v6008 = vadd.f32 0.0, %v6007
      %v6009 = vpop.f32.mrb[0].mxu0
      %v6010 = vpop.f32.mrb[0].mxu0
      %v6011 = vadd.f32 0.0, %v6010
      %v6012 = vpop.f32.mrb[0].mxu0
      %6013 = vdwg.mxu0
      %v6015 = vsel %vm1762, %v5960, 0
      %v6018 = vsel %vm1951, %v5360, 0
      %6020 = vmatprep.subr.bf16.mxu0 0
      %6021 = vmatpush1.bf16.msra.mxu0 %v6018
      %6022 = vmatprep.subr.bf16.mxu0 0
      %6023 = vmatpush1.bf16.msra.mxu0 0
      %6024 = vmatprep.subr.bf16.mxu0 0
      %6025 = vmatpush1.bf16.msra.mxu0 0
      %6026 = vmatprep.subr.bf16.mxu0 0
      %6027 = vmatpush1.bf16.msra.mxu0 0
      %6028 = vmatprep.subr.bf16.mxu0 0
      %6029 = vmatpush1.bf16.msra.mxu0 0
      %6030 = vmatprep.subr.bf16.mxu0 0
      %6031 = vmatpush1.bf16.msra.mxu0 0
      %6032 = vmatprep.subr.bf16.mxu0 0
      %6033 = vmatpush1.bf16.msra.mxu0 0
      %6034 = vmatprep.subr.bf16.mxu0 0
      %6035 = vmatpush1.bf16.msra.mxu0 0
      %6036 = vmatprep.subr.bf16.mxu0 0
      %6037 = vmatpush1.bf16.msra.mxu0 0
      %6038 = vmatprep.subr.bf16.mxu0 0
      %6039 = vmatpush1.bf16.msra.mxu0 0
      %6040 = vmatprep.subr.bf16.mxu0 0
      %6041 = vmatpush1.bf16.msra.mxu0 0
      %6042 = vmatprep.subr.bf16.mxu0 0
      %6043 = vmatpush1.bf16.msra.mxu0 0
      %6044 = vmatprep.subr.bf16.mxu0 0
      %6045 = vmatpush1.bf16.msra.mxu0 0
      %6046 = vmatprep.subr.bf16.mxu0 0
      %6047 = vmatpush1.bf16.msra.mxu0 0
      %6048 = vmatprep.subr.bf16.mxu0 0
      %6049 = vmatpush1.bf16.msra.mxu0 0
      %6050 = vmatprep.subr.bf16.mxu0 0
      %6051 = vmatpush1.bf16.msra.mxu0 0
      %6052 = vmatprep.mubr.bf16.mxu0 0
      %6053 = vmatmul.mubr.bf16.gmra.mrb[0].mxu0 %v6015
      %v6054 = vpop.f32.mrb[0].mxu0
      %v6055 = vadd.f32 0.0, %v6054
      %v6056 = vpop.f32.mrb[0].mxu0
      %v6057 = vpop.f32.mrb[0].mxu0
      %v6058 = vadd.f32 0.0, %v6057
      %v6059 = vpop.f32.mrb[0].mxu0
      %6060 = vdwg.mxu0
      %v6062 = vsel %vm1762, %v5961, 0
      %v6065 = vsel %vm1951, %v5361, 0
      %6067 = vmatprep.subr.bf16.mxu0 0
      %6068 = vmatpush1.bf16.msra.mxu0 %v6065
      %6069 = vmatprep.subr.bf16.mxu0 0
      %6070 = vmatpush1.bf16.msra.mxu0 0
      %6071 = vmatprep.subr.bf16.mxu0 0
      %6072 = vmatpush1.bf16.msra.mxu0 0
      %6073 = vmatprep.subr.bf16.mxu0 0
      %6074 = vmatpush1.bf16.msra.mxu0 0
      %6075 = vmatprep.subr.bf16.mxu0 0
      %6076 = vmatpush1.bf16.msra.mxu0 0
      %6077 = vmatprep.subr.bf16.mxu0 0
      %6078 = vmatpush1.bf16.msra.mxu0 0
      %6079 = vmatprep.subr.bf16.mxu0 0
      %6080 = vmatpush1.bf16.msra.mxu0 0
      %6081 = vmatprep.subr.bf16.mxu0 0
      %6082 = vmatpush1.bf16.msra.mxu0 0
      %6083 = vmatprep.subr.bf16.mxu0 0
      %6084 = vmatpush1.bf16.msra.mxu0 0
      %6085 = vmatprep.subr.bf16.mxu0 0
      %6086 = vmatpush1.bf16.msra.mxu0 0
      %6087 = vmatprep.subr.bf16.mxu0 0
      %6088 = vmatpush1.bf16.msra.mxu0 0
      %6089 = vmatprep.subr.bf16.mxu0 0
      %6090 = vmatpush1.bf16.msra.mxu0 0
      %6091 = vmatprep.subr.bf16.mxu0 0
      %6092 = vmatpush1.bf16.msra.mxu0 0
      %6093 = vmatprep.subr.bf16.mxu0 0
      %6094 = vmatpush1.bf16.msra.mxu0 0
      %6095 = vmatprep.subr.bf16.mxu0 0
      %6096 = vmatpush1.bf16.msra.mxu0 0
      %6097 = vmatprep.subr.bf16.mxu0 0
      %6098 = vmatpush1.bf16.msra.mxu0 0
      %6099 = vmatprep.mubr.bf16.mxu0 0
      %6100 = vmatmul.mubr.bf16.gmra.mrb[0].mxu0 %v6062
      %v6101 = vpop.f32.mrb[0].mxu0
      %v6102 = vadd.f32 0.0, %v6101
      %v6103 = vpop.f32.mrb[0].mxu0
      %v6104 = vpop.f32.mrb[0].mxu0
      %v6105 = vadd.f32 0.0, %v6104
      %v6106 = vpop.f32.mrb[0].mxu0
      %6107 = vdwg.mxu0
      %v6109 = vsel %vm1762, %v5962, 0
      %v6112 = vsel %vm1951, %v5362, 0
      %6114 = vmatprep.subr.bf16.mxu0 0
      %6115 = vmatpush1.bf16.msra.mxu0 %v6112
      %6116 = vmatprep.subr.bf16.mxu0 0
      %6117 = vmatpush1.bf16.msra.mxu0 0
      %6118 = vmatprep.subr.bf16.mxu0 0
      %6119 = vmatpush1.bf16.msra.mxu0 0
      %6120 = vmatprep.subr.bf16.mxu0 0
      %6121 = vmatpush1.bf16.msra.mxu0 0
      %6122 = vmatprep.subr.bf16.mxu0 0
      %6123 = vmatpush1.bf16.msra.mxu0 0
      %6124 = vmatprep.subr.bf16.mxu0 0
      %6125 = vmatpush1.bf16.msra.mxu0 0
      %6126 = vmatprep.subr.bf16.mxu0 0
      %6127 = vmatpush1.bf16.msra.mxu0 0
      %6128 = vmatprep.subr.bf16.mxu0 0
      %6129 = vmatpush1.bf16.msra.mxu0 0
      %6130 = vmatprep.subr.bf16.mxu0 0
      %6131 = vmatpush1.bf16.msra.mxu0 0
      %6132 = vmatprep.subr.bf16.mxu0 0
      %6133 = vmatpush1.bf16.msra.mxu0 0
      %6134 = vmatprep.subr.bf16.mxu0 0
      %6135 = vmatpush1.bf16.msra.mxu0 0
      %6136 = vmatprep.subr.bf16.mxu0 0
      %6137 = vmatpush1.bf16.msra.mxu0 0
      %6138 = vmatprep.subr.bf16.mxu0 0
      %6139 = vmatpush1.bf16.msra.mxu0 0
      %6140 = vmatprep.subr.bf16.mxu0 0
      %6141 = vmatpush1.bf16.msra.mxu0 0
      %6142 = vmatprep.subr.bf16.mxu0 0
      %6143 = vmatpush1.bf16.msra.mxu0 0
      %6144 = vmatprep.subr.bf16.mxu0 0
      %6145 = vmatpush1.bf16.msra.mxu0 0
      %6146 = vmatprep.mubr.bf16.mxu0 0
      %6147 = vmatmul.mubr.bf16.gmra.mrb[0].mxu0 %v6109
      %v6148 = vpop.f32.mrb[0].mxu0
      %v6149 = vadd.f32 0.0, %v6148
      %v6150 = vpop.f32.mrb[0].mxu0
      %v6151 = vpop.f32.mrb[0].mxu0
      %v6152 = vadd.f32 0.0, %v6151
      %v6153 = vpop.f32.mrb[0].mxu0
      %6154 = vdwg.mxu0
      %v6156 = vsel %vm1762, %v5963, 0
      %v6159 = vsel %vm1951, %v5363, 0
      %6161 = vmatprep.subr.bf16.mxu0 0
      %6162 = vmatpush1.bf16.msra.mxu0 %v6159
      %6163 = vmatprep.subr.bf16.mxu0 0
      %6164 = vmatpush1.bf16.msra.mxu0 0
      %6165 = vmatprep.subr.bf16.mxu0 0
      %6166 = vmatpush1.bf16.msra.mxu0 0
      %6167 = vmatprep.subr.bf16.mxu0 0
      %6168 = vmatpush1.bf16.msra.mxu0 0
      %6169 = vmatprep.subr.bf16.mxu0 0
      %6170 = vmatpush1.bf16.msra.mxu0 0
      %6171 = vmatprep.subr.bf16.mxu0 0
      %6172 = vmatpush1.bf16.msra.mxu0 0
      %6173 = vmatprep.subr.bf16.mxu0 0
      %6174 = vmatpush1.bf16.msra.mxu0 0
      %6175 = vmatprep.subr.bf16.mxu0 0
      %6176 = vmatpush1.bf16.msra.mxu0 0
      %6177 = vmatprep.subr.bf16.mxu0 0
      %6178 = vmatpush1.bf16.msra.mxu0 0
      %6179 = vmatprep.subr.bf16.mxu0 0
      %6180 = vmatpush1.bf16.msra.mxu0 0
      %6181 = vmatprep.subr.bf16.mxu0 0
      %6182 = vmatpush1.bf16.msra.mxu0 0
      %6183 = vmatprep.subr.bf16.mxu0 0
      %6184 = vmatpush1.bf16.msra.mxu0 0
      %6185 = vmatprep.subr.bf16.mxu0 0
      %6186 = vmatpush1.bf16.msra.mxu0 0
      %6187 = vmatprep.subr.bf16.mxu0 0
      %6188 = vmatpush1.bf16.msra.mxu0 0
      %6189 = vmatprep.subr.bf16.mxu0 0
      %6190 = vmatpush1.bf16.msra.mxu0 0
      %6191 = vmatprep.subr.bf16.mxu0 0
      %6192 = vmatpush1.bf16.msra.mxu0 0
      %6193 = vmatprep.mubr.bf16.mxu0 0
      %6194 = vmatmul.mubr.bf16.gmra.mrb[0].mxu0 %v6156
      %v6195 = vpop.f32.mrb[0].mxu0
      %v6196 = vadd.f32 0.0, %v6195
      %v6197 = vpop.f32.mrb[0].mxu0
      %v6198 = vpop.f32.mrb[0].mxu0
      %v6199 = vadd.f32 0.0, %v6198
      %v6200 = vpop.f32.mrb[0].mxu0
      %6201 = vdwg.mxu0
      %v6203 = vsel %vm1762, %v5964, 0
      %v6206 = vsel %vm1951, %v5364, 0
      %6208 = vmatprep.subr.bf16.mxu0 0
      %6209 = vmatpush1.bf16.msra.mxu0 %v6206
      %6210 = vmatprep.subr.bf16.mxu0 0
      %6211 = vmatpush1.bf16.msra.mxu0 0
      %6212 = vmatprep.subr.bf16.mxu0 0
      %6213 = vmatpush1.bf16.msra.mxu0 0
      %6214 = vmatprep.subr.bf16.mxu0 0
      %6215 = vmatpush1.bf16.msra.mxu0 0
      %6216 = vmatprep.subr.bf16.mxu0 0
      %6217 = vmatpush1.bf16.msra.mxu0 0
      %6218 = vmatprep.subr.bf16.mxu0 0
      %6219 = vmatpush1.bf16.msra.mxu0 0
      %6220 = vmatprep.subr.bf16.mxu0 0
      %6221 = vmatpush1.bf16.msra.mxu0 0
      %6222 = vmatprep.subr.bf16.mxu0 0
      %6223 = vmatpush1.bf16.msra.mxu0 0
      %6224 = vmatprep.subr.bf16.mxu0 0
      %6225 = vmatpush1.bf16.msra.mxu0 0
      %6226 = vmatprep.subr.bf16.mxu0 0
      %6227 = vmatpush1.bf16.msra.mxu0 0
      %6228 = vmatprep.subr.bf16.mxu0 0
      %6229 = vmatpush1.bf16.msra.mxu0 0
      %6230 = vmatprep.subr.bf16.mxu0 0
      %6231 = vmatpush1.bf16.msra.mxu0 0
      %6232 = vmatprep.subr.bf16.mxu0 0
      %6233 = vmatpush1.bf16.msra.mxu0 0
      %6234 = vmatprep.subr.bf16.mxu0 0
      %6235 = vmatpush1.bf16.msra.mxu0 0
      %6236 = vmatprep.subr.bf16.mxu0 0
      %6237 = vmatpush1.bf16.msra.mxu0 0
      %6238 = vmatprep.subr.bf16.mxu0 0
      %6239 = vmatpush1.bf16.msra.mxu0 0
      %6240 = vmatprep.mubr.bf16.mxu0 0
      %6241 = vmatmul.mubr.bf16.gmra.mrb[0].mxu0 %v6203
      %v6242 = vpop.f32.mrb[0].mxu0
      %v6243 = vadd.f32 0.0, %v6242
      %v6244 = vpop.f32.mrb[0].mxu0
      %v6245 = vpop.f32.mrb[0].mxu0
      %v6246 = vadd.f32 0.0, %v6245
      %v6247 = vpop.f32.mrb[0].mxu0
      %6248 = vdwg.mxu0
      %v6250 = vsel %vm1762, %v5965, 0
      %v6253 = vsel %vm1951, %v5365, 0
      %6255 = vmatprep.subr.bf16.mxu0 0
      %6256 = vmatpush1.bf16.msra.mxu0 %v6253
      %6257 = vmatprep.subr.bf16.mxu0 0
      %6258 = vmatpush1.bf16.msra.mxu0 0
      %6259 = vmatprep.subr.bf16.mxu0 0
      %6260 = vmatpush1.bf16.msra.mxu0 0
      %6261 = vmatprep.subr.bf16.mxu0 0
      %6262 = vmatpush1.bf16.msra.mxu0 0
      %6263 = vmatprep.subr.bf16.mxu0 0
      %6264 = vmatpush1.bf16.msra.mxu0 0
      %6265 = vmatprep.subr.bf16.mxu0 0
      %6266 = vmatpush1.bf16.msra.mxu0 0
      %6267 = vmatprep.subr.bf16.mxu0 0
      %6268 = vmatpush1.bf16.msra.mxu0 0
      %6269 = vmatprep.subr.bf16.mxu0 0
      %6270 = vmatpush1.bf16.msra.mxu0 0
      %6271 = vmatprep.subr.bf16.mxu0 0
      %6272 = vmatpush1.bf16.msra.mxu0 0
      %6273 = vmatprep.subr.bf16.mxu0 0
      %6274 = vmatpush1.bf16.msra.mxu0 0
      %6275 = vmatprep.subr.bf16.mxu0 0
      %6276 = vmatpush1.bf16.msra.mxu0 0
      %6277 = vmatprep.subr.bf16.mxu0 0
      %6278 = vmatpush1.bf16.msra.mxu0 0
      %6279 = vmatprep.subr.bf16.mxu0 0
      %6280 = vmatpush1.bf16.msra.mxu0 0
      %6281 = vmatprep.subr.bf16.mxu0 0
      %6282 = vmatpush1.bf16.msra.mxu0 0
      %6283 = vmatprep.subr.bf16.mxu0 0
      %6284 = vmatpush1.bf16.msra.mxu0 0
      %6285 = vmatprep.subr.bf16.mxu0 0
      %6286 = vmatpush1.bf16.msra.mxu0 0
      %6287 = vmatprep.mubr.bf16.mxu0 0
      %6288 = vmatmul.mubr.bf16.gmra.mrb[0].mxu0 %v6250
      %v6289 = vpop.f32.mrb[0].mxu0
      %v6290 = vadd.f32 0.0, %v6289
      %v6291 = vpop.f32.mrb[0].mxu0
      %v6292 = vpop.f32.mrb[0].mxu0
      %v6293 = vadd.f32 0.0, %v6292
      %v6294 = vpop.f32.mrb[0].mxu0
      %6295 = vdwg.mxu0
      %v6297 = vsel %vm1762, %v5966, 0
      %v6300 = vsel %vm1951, %v5366, 0
      %6302 = vmatprep.subr.bf16.mxu0 0
      %6303 = vmatpush1.bf16.msra.mxu0 %v6300
      %6304 = vmatprep.subr.bf16.mxu0 0
      %6305 = vmatpush1.bf16.msra.mxu0 0
      %6306 = vmatprep.subr.bf16.mxu0 0
      %6307 = vmatpush1.bf16.msra.mxu0 0
      %6308 = vmatprep.subr.bf16.mxu0 0
      %6309 = vmatpush1.bf16.msra.mxu0 0
      %6310 = vmatprep.subr.bf16.mxu0 0
      %6311 = vmatpush1.bf16.msra.mxu0 0
      %6312 = vmatprep.subr.bf16.mxu0 0
      %6313 = vmatpush1.bf16.msra.mxu0 0
      %6314 = vmatprep.subr.bf16.mxu0 0
      %6315 = vmatpush1.bf16.msra.mxu0 0
      %6316 = vmatprep.subr.bf16.mxu0 0
      %6317 = vmatpush1.bf16.msra.mxu0 0
      %6318 = vmatprep.subr.bf16.mxu0 0
      %6319 = vmatpush1.bf16.msra.mxu0 0
      %6320 = vmatprep.subr.bf16.mxu0 0
      %6321 = vmatpush1.bf16.msra.mxu0 0
      %6322 = vmatprep.subr.bf16.mxu0 0
      %6323 = vmatpush1.bf16.msra.mxu0 0
      %6324 = vmatprep.subr.bf16.mxu0 0
      %6325 = vmatpush1.bf16.msra.mxu0 0
      %6326 = vmatprep.subr.bf16.mxu0 0
      %6327 = vmatpush1.bf16.msra.mxu0 0
      %6328 = vmatprep.subr.bf16.mxu0 0
      %6329 = vmatpush1.bf16.msra.mxu0 0
      %6330 = vmatprep.subr.bf16.mxu0 0
      %6331 = vmatpush1.bf16.msra.mxu0 0
      %6332 = vmatprep.subr.bf16.mxu0 0
      %6333 = vmatpush1.bf16.msra.mxu0 0
      %6334 = vmatprep.mubr.bf16.mxu0 0
      %6335 = vmatmul.mubr.bf16.gmra.mrb[0].mxu0 %v6297
      %v6336 = vpop.f32.mrb[0].mxu0
      %v6337 = vadd.f32 0.0, %v6336
      %v6338 = vpop.f32.mrb[0].mxu0
      %v6339 = vpop.f32.mrb[0].mxu0
      %v6340 = vadd.f32 0.0, %v6339
      %v6341 = vpop.f32.mrb[0].mxu0
      %6342 = vdwg.mxu0
      %6345 = vrot.lane.b32.xlu0 %v6055, 8
      %v6346 = vpop.permute.xlu0 %6345
      %6347 = vrot.lane.b32.xlu0 %v6058, 8
      %v6348 = vpop.permute.xlu0 %6347
      %6353 = vrot.lane.b32.xlu0 %v6102, 16
      %v6354 = vpop.permute.xlu0 %6353
      %6355 = vrot.lane.b32.xlu0 %v6105, 16
      %v6356 = vpop.permute.xlu0 %6355
      %6361 = vrot.lane.b32.xlu0 %v6149, 24
      %v6362 = vpop.permute.xlu0 %6361
      %6363 = vrot.lane.b32.xlu0 %v6152, 24
      %v6364 = vpop.permute.xlu0 %6363
      %6369 = vrot.lane.b32.xlu0 %v6196, 32
      %v6370 = vpop.permute.xlu0 %6369
      %6371 = vrot.lane.b32.xlu0 %v6199, 32
      %v6372 = vpop.permute.xlu0 %6371
      %6377 = vrot.lane.b32.xlu0 %v6243, 40
      %v6378 = vpop.permute.xlu0 %6377
      %6379 = vrot.lane.b32.xlu0 %v6246, 40
      %v6380 = vpop.permute.xlu0 %6379
      %6385 = vrot.lane.b32.xlu0 %v6290, 48
      %v6386 = vpop.permute.xlu0 %6385
      %6387 = vrot.lane.b32.xlu0 %v6293, 48
      %v6388 = vpop.permute.xlu0 %6387
      %6393 = vrot.lane.b32.xlu0 %v6337, 56
      %v6394 = vpop.permute.xlu0 %6393
      %6395 = vrot.lane.b32.xlu0 %v6340, 56
      %v6396 = vpop.permute.xlu0 %6395
      %v6399 = vsel %vm1344, %v6008, %v6346
      %v6400 = vsel %vm1344, %v6011, %v6348
      %v6401 = vsel %vm2383, %v6399, %v6354
      %v6402 = vsel %vm2383, %v6400, %v6356
      %v6403 = vsel %vm2386, %v6401, %v6362
      %v6404 = vsel %vm2386, %v6402, %v6364
      %v6405 = vsel %vm2389, %v6403, %v6370
      %v6406 = vsel %vm2389, %v6404, %v6372
      %v6407 = vsel %vm2392, %v6405, %v6378
      %v6408 = vsel %vm2392, %v6406, %v6380
      %v6409 = vsel %vm2395, %v6407, %v6386
      %v6410 = vsel %vm2395, %v6408, %v6388
      %v6411 = vsel %vm2398, %v6409, %v6394
      %v6412 = vsel %vm2398, %v6410, %v6396
      %v6413 = vpack.c.bf16 %v6412, %v6411
      %s6414 = scalar_lea.vmem %s10, 64
      %v6415 = vld [vmem:[%s6414] sm:$0xf]
      %v6416 = vld [vmem:[%s6414 + $0x4] sm:$0xf]
      %v6417 = vld [vmem:[%s6414 + $0x8] sm:$0xf]
      %v6418 = vld [vmem:[%s6414 + $0xc] sm:$0xf]
      %v6419 = vld [vmem:[%s6414 + $0x10] sm:$0xf]
      %v6420 = vld [vmem:[%s6414 + $0x14] sm:$0xf]
      %v6421 = vld [vmem:[%s6414 + $0x18] sm:$0xf]
      %v6422 = vld [vmem:[%s6414 + $0x1c] sm:$0xf]
      %s6423 = scalar_lea.vmem %s11, 2
      %v6424 = vld [vmem:[%s6423] sm:$0x1]
      %v6426 = vlaneseq
      %v6427 = vshrl.u32 %v6426, 7
      %v6428 = vsub.s32 0, %v6427
      %v6429 = vrot.slane %v6424, %v6428
      %v6439 = vunpack.c.l.b16 %v6415
      %v6440 = vunpack.c.l.b16 %v6416
      %v6441 = vunpack.c.l.b16 %v6417
      %v6442 = vunpack.c.l.b16 %v6418
      %v6443 = vunpack.c.l.b16 %v6419
      %v6444 = vunpack.c.l.b16 %v6420
      %v6445 = vunpack.c.l.b16 %v6421
      %v6446 = vunpack.c.l.b16 %v6422
      %v6447 = vpack.c.b16 %v6440, %v6439
      %v6448 = vpack.c.b16 %v6442, %v6441
      %v6449 = vpack.c.b16 %v6444, %v6443
      %v6450 = vpack.c.b16 %v6446, %v6445
      %v6456 = vsel %vm1190, %v6413, 0
      %6458 = vmatprep.subr.bf16.mxu0 0
      %6459 = vmatpush1.bf16.msra.mxu0 %v6447
      %6460 = vmatprep.subr.bf16.mxu0 0
      %6461 = vmatpush1.bf16.msra.mxu0 %v6448
      %6462 = vmatprep.subr.bf16.mxu0 0
      %6463 = vmatpush1.bf16.msra.mxu0 %v6449
      %6464 = vmatprep.subr.bf16.mxu0 0
      %6465 = vmatpush1.bf16.msra.mxu0 %v6450
      %6466 = vmatprep.subr.bf16.mxu0 0
      %6467 = vmatpush1.bf16.msra.mxu0 0
      %6468 = vmatprep.subr.bf16.mxu0 0
      %6469 = vmatpush1.bf16.msra.mxu0 0
      %6470 = vmatprep.subr.bf16.mxu0 0
      %6471 = vmatpush1.bf16.msra.mxu0 0
      %6472 = vmatprep.subr.bf16.mxu0 0
      %6473 = vmatpush1.bf16.msra.mxu0 0
      %6474 = vmatprep.subr.bf16.mxu0 0
      %6475 = vmatpush1.bf16.msra.mxu0 0
      %6476 = vmatprep.subr.bf16.mxu0 0
      %6477 = vmatpush1.bf16.msra.mxu0 0
      %6478 = vmatprep.subr.bf16.mxu0 0
      %6479 = vmatpush1.bf16.msra.mxu0 0
      %6480 = vmatprep.subr.bf16.mxu0 0
      %6481 = vmatpush1.bf16.msra.mxu0 0
      %6482 = vmatprep.subr.bf16.mxu0 0
      %6483 = vmatpush1.bf16.msra.mxu0 0
      %6484 = vmatprep.subr.bf16.mxu0 0
      %6485 = vmatpush1.bf16.msra.mxu0 0
      %6486 = vmatprep.subr.bf16.mxu0 0
      %6487 = vmatpush1.bf16.msra.mxu0 0
      %6488 = vmatprep.subr.bf16.mxu0 0
      %6489 = vmatpush1.bf16.msra.mxu0 0
      %6490 = vmatprep.mubr.bf16.mxu0 0
      %6491 = vmatmul.mubr.bf16.gmra.mrb[0].mxu0 %v6456
      %v6492 = vpop.f32.mrb[0].mxu0
      %v6493 = vadd.f32 %v6429, %v6492
      %v6494 = vpop.f32.mrb[0].mxu0
      %v6495 = vpop.f32.mrb[0].mxu0
      %v6496 = vadd.f32 %v6429, %v6495
      %v6497 = vpop.f32.mrb[0].mxu0
      %6498 = vdwg.mxu0
      %v6499 = vadd.f32 %v5152, %v6493
      %v6500 = vadd.f32 %v5153, %v6496
      %s6501 = scalar_lea.vmem %s12, 2
      %v6502 = vld [vmem:[%s6501] sm:$0x1]
      %s6503 = scalar_lea.vmem %s13, 2
      %v6504 = vld [vmem:[%s6503] sm:$0x1]
      %v6505 = vsel %vm1190, %v6499, 0.0
      %6506 = vadd.xlane.f32.xlu0 %v6505
      %v6507 = vpop.xlane.xlu0 %6506
      %v6508 = vsel %vm2492, %v6500, 0.0
      %6509 = vadd.xlane.f32.xlu0 %v6508
      %v6510 = vpop.xlane.xlu0 %6509
      %v6511 = vmul.f32 %v6507, %v2496
      %v6512 = vmul.f32 %v6510, %v2496
      %v6513 = vsub.f32 %v6499, %v6511
      %v6514 = vsub.f32 %v6500, %v6512
      %v6515 = vmul.f32 %v6513, %v6513
      %v6516 = vmul.f32 %v6514, %v6514
      %v6517 = vsel %vm1190, %v6515, 0.0
      %6518 = vadd.xlane.f32.xlu0 %v6517
      %v6519 = vpop.xlane.xlu0 %6518
      %v6520 = vsel %vm2492, %v6516, 0.0
      %6521 = vadd.xlane.f32.xlu0 %v6520
      %v6522 = vpop.xlane.xlu0 %6521
      %v6523 = vmul.f32 %v6519, %v2496
      %v6524 = vmul.f32 %v6522, %v2496
      %v6525 = vadd.f32 %v6523, 1e-05
      %v6526 = vadd.f32 %v6524, 1e-05
      %v6527 = vrsqrt.pop %v6525
      %v6528 = vrsqrt.pop %v6526
      %v6529 = vmul.f32 %v6513, %v6527
      %v6530 = vmul.f32 %v6514, %v6528
      %v6532 = vlaneseq
      %v6533 = vshrl.u32 %v6532, 7
      %v6534 = vsub.s32 0, %v6533
      %v6535 = vrot.slane %v6502, %v6534
      %v6537 = vmul.f32 %v6529, %v6535
      %v6538 = vmul.f32 %v6530, %v6535
      %v6540 = vlaneseq
      %v6541 = vshrl.u32 %v6540, 7
      %v6542 = vsub.s32 0, %v6541
      %v6543 = vrot.slane %v6504, %v6542
      %v6545 = vadd.f32 %v6537, %v6543
      %v6546 = vadd.f32 %v6538, %v6543
      %v6547 = vpack.c.bf16 %v6546, %v6545
      %s6548 = scalar_lea.vmem %s14, 256
      %v6549 = vld [vmem:[%s6548] sm:$0xff]
      %v6550 = vld [vmem:[%s6548 + $0x8] sm:$0xff]
      %v6551 = vld [vmem:[%s6548 + $0x10] sm:$0xff]
      %v6552 = vld [vmem:[%s6548 + $0x18] sm:$0xff]
      %v6553 = vld [vmem:[%s6548 + $0x20] sm:$0xff]
      %v6554 = vld [vmem:[%s6548 + $0x28] sm:$0xff]
      %v6555 = vld [vmem:[%s6548 + $0x30] sm:$0xff]
      %v6556 = vld [vmem:[%s6548 + $0x38] sm:$0xff]
      %v6557 = vld [vmem:[%s6548 + $0x40] sm:$0xff]
      %v6558 = vld [vmem:[%s6548 + $0x48] sm:$0xff]
      %v6559 = vld [vmem:[%s6548 + $0x50] sm:$0xff]
      %v6560 = vld [vmem:[%s6548 + $0x58] sm:$0xff]
      %v6561 = vld [vmem:[%s6548 + $0x60] sm:$0xff]
      %v6562 = vld [vmem:[%s6548 + $0x68] sm:$0xff]
      %v6563 = vld [vmem:[%s6548 + $0x70] sm:$0xff]
      %v6564 = vld [vmem:[%s6548 + $0x78] sm:$0xff]
      %s6565 = scalar_lea.vmem %s15, 8
      %v6566 = vld [vmem:[%s6565] sm:$0xf]
      %v6568 = vlaneseq
      %v6569 = vshrl.u32 %v6568, 7
      %v6570 = vsub.s32 0, %v6569
      %v6571 = vrot.slane %v6566, %v6570
      %v6572 = vlaneseq
      %v6573 = vshrl.u32 %v6572, 7
      %v6574 = vsub.s32 1, %v6573
      %v6575 = vrot.slane %v6566, %v6574
      %v6576 = vlaneseq
      %v6577 = vshrl.u32 %v6576, 7
      %v6578 = vsub.s32 2, %v6577
      %v6579 = vrot.slane %v6566, %v6578
      %v6580 = vlaneseq
      %v6581 = vshrl.u32 %v6580, 7
      %v6582 = vsub.s32 3, %v6581
      %v6583 = vrot.slane %v6566, %v6582
      %v6604 = vunpack.c.l.b16 %v6549
      %v6605 = vunpack.c.h.b16 %v6549
      %v6606 = vunpack.c.l.b16 %v6550
      %v6607 = vunpack.c.h.b16 %v6550
      %v6608 = vunpack.c.l.b16 %v6551
      %v6609 = vunpack.c.h.b16 %v6551
      %v6610 = vunpack.c.l.b16 %v6552
      %v6611 = vunpack.c.h.b16 %v6552
      %v6612 = vunpack.c.l.b16 %v6553
      %v6613 = vunpack.c.h.b16 %v6553
      %v6614 = vunpack.c.l.b16 %v6554
      %v6615 = vunpack.c.h.b16 %v6554
      %v6616 = vunpack.c.l.b16 %v6555
      %v6617 = vunpack.c.h.b16 %v6555
      %v6618 = vunpack.c.l.b16 %v6556
      %v6619 = vunpack.c.h.b16 %v6556
      %v6620 = vunpack.c.l.b16 %v6557
      %v6621 = vunpack.c.h.b16 %v6557
      %v6622 = vunpack.c.l.b16 %v6558
      %v6623 = vunpack.c.h.b16 %v6558
      %v6624 = vunpack.c.l.b16 %v6559
      %v6625 = vunpack.c.h.b16 %v6559
      %v6626 = vunpack.c.l.b16 %v6560
      %v6627 = vunpack.c.h.b16 %v6560
      %v6628 = vunpack.c.l.b16 %v6561
      %v6629 = vunpack.c.h.b16 %v6561
      %v6630 = vunpack.c.l.b16 %v6562
      %v6631 = vunpack.c.h.b16 %v6562
      %v6632 = vunpack.c.l.b16 %v6563
      %v6633 = vunpack.c.h.b16 %v6563
      %v6634 = vunpack.c.l.b16 %v6564
      %v6635 = vunpack.c.h.b16 %v6564
      %v6636 = vpack.c.b16 %v6608, %v6604
      %v6637 = vpack.c.b16 %v6609, %v6605
      %v6638 = vpack.c.b16 %v6610, %v6606
      %v6639 = vpack.c.b16 %v6611, %v6607
      %v6640 = vpack.c.b16 %v6616, %v6612
      %v6641 = vpack.c.b16 %v6617, %v6613
      %v6642 = vpack.c.b16 %v6618, %v6614
      %v6643 = vpack.c.b16 %v6619, %v6615
      %v6644 = vpack.c.b16 %v6624, %v6620
      %v6645 = vpack.c.b16 %v6625, %v6621
      %v6646 = vpack.c.b16 %v6626, %v6622
      %v6647 = vpack.c.b16 %v6627, %v6623
      %v6648 = vpack.c.b16 %v6632, %v6628
      %v6649 = vpack.c.b16 %v6633, %v6629
      %v6650 = vpack.c.b16 %v6634, %v6630
      %v6651 = vpack.c.b16 %v6635, %v6631
      %v6669 = vsel %vm1190, %v6547, 0
      %6671 = vmatprep.subr.bf16.mxu0 %v6637
      %6672 = vmatpush1.bf16.msra.mxu0 %v6636
      %6673 = vmatprep.subr.bf16.mxu0 %v6641
      %6674 = vmatpush1.bf16.msra.mxu0 %v6640
      %6675 = vmatprep.subr.bf16.mxu0 %v6645
      %6676 = vmatpush1.bf16.msra.mxu0 %v6644
      %6677 = vmatprep.subr.bf16.mxu0 %v6649
      %6678 = vmatpush1.bf16.msra.mxu0 %v6648
      %6679 = vmatprep.subr.bf16.mxu0 0
      %6680 = vmatpush1.bf16.msra.mxu0 0
      %6681 = vmatprep.subr.bf16.mxu0 0
      %6682 = vmatpush1.bf16.msra.mxu0 0
      %6683 = vmatprep.subr.bf16.mxu0 0
      %6684 = vmatpush1.bf16.msra.mxu0 0
      %6685 = vmatprep.subr.bf16.mxu0 0
      %6686 = vmatpush1.bf16.msra.mxu0 0
      %6687 = vmatprep.subr.bf16.mxu0 0
      %6688 = vmatpush1.bf16.msra.mxu0 0
      %6689 = vmatprep.subr.bf16.mxu0 0
      %6690 = vmatpush1.bf16.msra.mxu0 0
      %6691 = vmatprep.subr.bf16.mxu0 0
      %6692 = vmatpush1.bf16.msra.mxu0 0
      %6693 = vmatprep.subr.bf16.mxu0 0
      %6694 = vmatpush1.bf16.msra.mxu0 0
      %6695 = vmatprep.subr.bf16.mxu0 0
      %6696 = vmatpush1.bf16.msra.mxu0 0
      %6697 = vmatprep.subr.bf16.mxu0 0
      %6698 = vmatpush1.bf16.msra.mxu0 0
      %6699 = vmatprep.subr.bf16.mxu0 0
      %6700 = vmatpush1.bf16.msra.mxu0 0
      %6701 = vmatprep.subr.bf16.mxu0 0
      %6702 = vmatpush1.bf16.msra.mxu0 0
      %6703 = vmatprep.mubr.bf16.mxu0 0
      %6704 = vmatmul.mubr.bf16.gmra.mrb[0].mxu0 %v6669
      %v6705 = vpop.f32.mrb[0].mxu0
      %v6706 = vadd.f32 %v6571, %v6705
      %v6707 = vpop.f32.mrb[0].mxu0
      %v6708 = vadd.f32 %v6575, %v6707
      %v6709 = vpop.f32.mrb[0].mxu0
      %v6710 = vadd.f32 %v6571, %v6709
      %v6711 = vpop.f32.mrb[0].mxu0
      %v6712 = vadd.f32 %v6575, %v6711
      %6713 = vdwg.mxu0
      %6714 = vmatprep.subr.bf16.mxu0 %v6639
      %6715 = vmatpush1.bf16.msra.mxu0 %v6638
      %6716 = vmatprep.subr.bf16.mxu0 %v6643
      %6717 = vmatpush1.bf16.msra.mxu0 %v6642
      %6718 = vmatprep.subr.bf16.mxu0 %v6647
      %6719 = vmatpush1.bf16.msra.mxu0 %v6646
      %6720 = vmatprep.subr.bf16.mxu0 %v6651
      %6721 = vmatpush1.bf16.msra.mxu0 %v6650
      %6722 = vmatprep.subr.bf16.mxu0 0
      %6723 = vmatpush1.bf16.msra.mxu0 0
      %6724 = vmatprep.subr.bf16.mxu0 0
      %6725 = vmatpush1.bf16.msra.mxu0 0
      %6726 = vmatprep.subr.bf16.mxu0 0
      %6727 = vmatpush1.bf16.msra.mxu0 0
      %6728 = vmatprep.subr.bf16.mxu0 0
      %6729 = vmatpush1.bf16.msra.mxu0 0
      %6730 = vmatprep.subr.bf16.mxu0 0
      %6731 = vmatpush1.bf16.msra.mxu0 0
      %6732 = vmatprep.subr.bf16.mxu0 0
      %6733 = vmatpush1.bf16.msra.mxu0 0
      %6734 = vmatprep.subr.bf16.mxu0 0
      %6735 = vmatpush1.bf16.msra.mxu0 0
      %6736 = vmatprep.subr.bf16.mxu0 0
      %6737 = vmatpush1.bf16.msra.mxu0 0
      %6738 = vmatprep.subr.bf16.mxu0 0
      %6739 = vmatpush1.bf16.msra.mxu0 0
      %6740 = vmatprep.subr.bf16.mxu0 0
      %6741 = vmatpush1.bf16.msra.mxu0 0
      %6742 = vmatprep.subr.bf16.mxu0 0
      %6743 = vmatpush1.bf16.msra.mxu0 0
      %6744 = vmatprep.subr.bf16.mxu0 0
      %6745 = vmatpush1.bf16.msra.mxu0 0
      %6746 = vmatprep.mubr.bf16.mxu0 0
      %6747 = vmatmul.mubr.bf16.gmra.mrb[0].mxu0 %v6669
      %v6748 = vpop.f32.mrb[0].mxu0
      %v6749 = vadd.f32 %v6579, %v6748
      %v6750 = vpop.f32.mrb[0].mxu0
      %v6751 = vadd.f32 %v6583, %v6750
      %v6752 = vpop.f32.mrb[0].mxu0
      %v6753 = vadd.f32 %v6579, %v6752
      %v6754 = vpop.f32.mrb[0].mxu0
      %v6755 = vadd.f32 %v6583, %v6754
      %6756 = vdwg.mxu0
      %v6757 = vmax.f32 %v6706, 0.0
      %v6758 = vmax.f32 %v6708, 0.0
      %v6759 = vmax.f32 %v6749, 0.0
      %v6760 = vmax.f32 %v6751, 0.0
      %v6761 = vmax.f32 %v6710, 0.0
      %v6762 = vmax.f32 %v6712, 0.0
      %v6763 = vmax.f32 %v6753, 0.0
      %v6764 = vmax.f32 %v6755, 0.0
      %v6765 = vpack.c.bf16 %v6761, %v6757
      %v6766 = vpack.c.bf16 %v6762, %v6758
      %v6767 = vpack.c.bf16 %v6763, %v6759
      %v6768 = vpack.c.bf16 %v6764, %v6760
      %s6769 = scalar_lea.vmem %s16, 512
      %v6770 = vld [vmem:[%s6769] sm:$0xf]
      %v6771 = vld [vmem:[%s6769 + $0x4] sm:$0xf]
      %v6772 = vld [vmem:[%s6769 + $0x8] sm:$0xf]
      %v6773 = vld [vmem:[%s6769 + $0xc] sm:$0xf]
      %v6774 = vld [vmem:[%s6769 + $0x10] sm:$0xf]
      %v6775 = vld [vmem:[%s6769 + $0x14] sm:$0xf]
      %v6776 = vld [vmem:[%s6769 + $0x18] sm:$0xf]
      %v6777 = vld [vmem:[%s6769 + $0x1c] sm:$0xf]
      %v6778 = vld [vmem:[%s6769 + $0x20] sm:$0xf]
      %v6779 = vld [vmem:[%s6769 + $0x24] sm:$0xf]
      %v6780 = vld [vmem:[%s6769 + $0x28] sm:$0xf]
      %v6781 = vld [vmem:[%s6769 + $0x2c] sm:$0xf]
      %v6782 = vld [vmem:[%s6769 + $0x30] sm:$0xf]
      %v6783 = vld [vmem:[%s6769 + $0x34] sm:$0xf]
      %v6784 = vld [vmem:[%s6769 + $0x38] sm:$0xf]
      %v6785 = vld [vmem:[%s6769 + $0x3c] sm:$0xf]
      %v6786 = vld [vmem:[%s6769 + $0x40] sm:$0xf]
      %v6787 = vld [vmem:[%s6769 + $0x44] sm:$0xf]
      %v6788 = vld [vmem:[%s6769 + $0x48] sm:$0xf]
      %v6789 = vld [vmem:[%s6769 + $0x4c] sm:$0xf]
      %v6790 = vld [vmem:[%s6769 + $0x50] sm:$0xf]
      %v6791 = vld [vmem:[%s6769 + $0x54] sm:$0xf]
      %v6792 = vld [vmem:[%s6769 + $0x58] sm:$0xf]
      %v6793 = vld [vmem:[%s6769 + $0x5c] sm:$0xf]
      %v6794 = vld [vmem:[%s6769 + $0x60] sm:$0xf]
      %v6795 = vld [vmem:[%s6769 + $0x64] sm:$0xf]
      %v6796 = vld [vmem:[%s6769 + $0x68] sm:$0xf]
      %v6797 = vld [vmem:[%s6769 + $0x6c] sm:$0xf]
      %v6798 = vld [vmem:[%s6769 + $0x70] sm:$0xf]
      %v6799 = vld [vmem:[%s6769 + $0x74] sm:$0xf]
      %v6800 = vld [vmem:[%s6769 + $0x78] sm:$0xf]
      %v6801 = vld [vmem:[%s6769 + $0x7c] sm:$0xf]
      %v6802 = vld [vmem:[%s6769 + $0x80] sm:$0xf]
      %v6803 = vld [vmem:[%s6769 + $0x84] sm:$0xf]
      %v6804 = vld [vmem:[%s6769 + $0x88] sm:$0xf]
      %v6805 = vld [vmem:[%s6769 + $0x8c] sm:$0xf]
      %v6806 = vld [vmem:[%s6769 + $0x90] sm:$0xf]
      %v6807 = vld [vmem:[%s6769 + $0x94] sm:$0xf]
      %v6808 = vld [vmem:[%s6769 + $0x98] sm:$0xf]
      %v6809 = vld [vmem:[%s6769 + $0x9c] sm:$0xf]
      %v6810 = vld [vmem:[%s6769 + $0xa0] sm:$0xf]
      %v6811 = vld [vmem:[%s6769 + $0xa4] sm:$0xf]
      %v6812 = vld [vmem:[%s6769 + $0xa8] sm:$0xf]
      %v6813 = vld [vmem:[%s6769 + $0xac] sm:$0xf]
      %v6814 = vld [vmem:[%s6769 + $0xb0] sm:$0xf]
      %v6815 = vld [vmem:[%s6769 + $0xb4] sm:$0xf]
      %v6816 = vld [vmem:[%s6769 + $0xb8] sm:$0xf]
      %v6817 = vld [vmem:[%s6769 + $0xbc] sm:$0xf]
      %v6818 = vld [vmem:[%s6769 + $0xc0] sm:$0xf]
      %v6819 = vld [vmem:[%s6769 + $0xc4] sm:$0xf]
      %v6820 = vld [vmem:[%s6769 + $0xc8] sm:$0xf]
      %v6821 = vld [vmem:[%s6769 + $0xcc] sm:$0xf]
      %v6822 = vld [vmem:[%s6769 + $0xd0] sm:$0xf]
      %v6823 = vld [vmem:[%s6769 + $0xd4] sm:$0xf]
      %v6824 = vld [vmem:[%s6769 + $0xd8] sm:$0xf]
      %v6825 = vld [vmem:[%s6769 + $0xdc] sm:$0xf]
      %v6826 = vld [vmem:[%s6769 + $0xe0] sm:$0xf]
      %v6827 = vld [vmem:[%s6769 + $0xe4] sm:$0xf]
      %v6828 = vld [vmem:[%s6769 + $0xe8] sm:$0xf]
      %v6829 = vld [vmem:[%s6769 + $0xec] sm:$0xf]
      %v6830 = vld [vmem:[%s6769 + $0xf0] sm:$0xf]
      %v6831 = vld [vmem:[%s6769 + $0xf4] sm:$0xf]
      %v6832 = vld [vmem:[%s6769 + $0xf8] sm:$0xf]
      %v6833 = vld [vmem:[%s6769 + $0xfc] sm:$0xf]
      %s6834 = scalar_lea.vmem %s17, 2
      %v6835 = vld [vmem:[%s6834] sm:$0x1]
      %v6837 = vlaneseq
      %v6838 = vshrl.u32 %v6837, 7
      %v6839 = vsub.s32 0, %v6838
      %v6840 = vrot.slane %v6835, %v6839
      %v6906 = vunpack.c.l.b16 %v6770
      %v6907 = vunpack.c.l.b16 %v6771
      %v6908 = vunpack.c.l.b16 %v6772
      %v6909 = vunpack.c.l.b16 %v6773
      %v6910 = vunpack.c.l.b16 %v6774
      %v6911 = vunpack.c.l.b16 %v6775
      %v6912 = vunpack.c.l.b16 %v6776
      %v6913 = vunpack.c.l.b16 %v6777
      %v6914 = vunpack.c.l.b16 %v6778
      %v6915 = vunpack.c.l.b16 %v6779
      %v6916 = vunpack.c.l.b16 %v6780
      %v6917 = vunpack.c.l.b16 %v6781
      %v6918 = vunpack.c.l.b16 %v6782
      %v6919 = vunpack.c.l.b16 %v6783
      %v6920 = vunpack.c.l.b16 %v6784
      %v6921 = vunpack.c.l.b16 %v6785
      %v6922 = vunpack.c.l.b16 %v6786
      %v6923 = vunpack.c.l.b16 %v6787
      %v6924 = vunpack.c.l.b16 %v6788
      %v6925 = vunpack.c.l.b16 %v6789
      %v6926 = vunpack.c.l.b16 %v6790
      %v6927 = vunpack.c.l.b16 %v6791
      %v6928 = vunpack.c.l.b16 %v6792
      %v6929 = vunpack.c.l.b16 %v6793
      %v6930 = vunpack.c.l.b16 %v6794
      %v6931 = vunpack.c.l.b16 %v6795
      %v6932 = vunpack.c.l.b16 %v6796
      %v6933 = vunpack.c.l.b16 %v6797
      %v6934 = vunpack.c.l.b16 %v6798
      %v6935 = vunpack.c.l.b16 %v6799
      %v6936 = vunpack.c.l.b16 %v6800
      %v6937 = vunpack.c.l.b16 %v6801
      %v6938 = vunpack.c.l.b16 %v6802
      %v6939 = vunpack.c.l.b16 %v6803
      %v6940 = vunpack.c.l.b16 %v6804
      %v6941 = vunpack.c.l.b16 %v6805
      %v6942 = vunpack.c.l.b16 %v6806
      %v6943 = vunpack.c.l.b16 %v6807
      %v6944 = vunpack.c.l.b16 %v6808
      %v6945 = vunpack.c.l.b16 %v6809
      %v6946 = vunpack.c.l.b16 %v6810
      %v6947 = vunpack.c.l.b16 %v6811
      %v6948 = vunpack.c.l.b16 %v6812
      %v6949 = vunpack.c.l.b16 %v6813
      %v6950 = vunpack.c.l.b16 %v6814
      %v6951 = vunpack.c.l.b16 %v6815
      %v6952 = vunpack.c.l.b16 %v6816
      %v6953 = vunpack.c.l.b16 %v6817
      %v6954 = vunpack.c.l.b16 %v6818
      %v6955 = vunpack.c.l.b16 %v6819
      %v6956 = vunpack.c.l.b16 %v6820
      %v6957 = vunpack.c.l.b16 %v6821
      %v6958 = vunpack.c.l.b16 %v6822
      %v6959 = vunpack.c.l.b16 %v6823
      %v6960 = vunpack.c.l.b16 %v6824
      %v6961 = vunpack.c.l.b16 %v6825
      %v6962 = vunpack.c.l.b16 %v6826
      %v6963 = vunpack.c.l.b16 %v6827
      %v6964 = vunpack.c.l.b16 %v6828
      %v6965 = vunpack.c.l.b16 %v6829
      %v6966 = vunpack.c.l.b16 %v6830
      %v6967 = vunpack.c.l.b16 %v6831
      %v6968 = vunpack.c.l.b16 %v6832
      %v6969 = vunpack.c.l.b16 %v6833
      %v6970 = vpack.c.b16 %v6907, %v6906
      %v6971 = vpack.c.b16 %v6909, %v6908
      %v6972 = vpack.c.b16 %v6911, %v6910
      %v6973 = vpack.c.b16 %v6913, %v6912
      %v6974 = vpack.c.b16 %v6915, %v6914
      %v6975 = vpack.c.b16 %v6917, %v6916
      %v6976 = vpack.c.b16 %v6919, %v6918
      %v6977 = vpack.c.b16 %v6921, %v6920
      %v6978 = vpack.c.b16 %v6923, %v6922
      %v6979 = vpack.c.b16 %v6925, %v6924
      %v6980 = vpack.c.b16 %v6927, %v6926
      %v6981 = vpack.c.b16 %v6929, %v6928
      %v6982 = vpack.c.b16 %v6931, %v6930
      %v6983 = vpack.c.b16 %v6933, %v6932
      %v6984 = vpack.c.b16 %v6935, %v6934
      %v6985 = vpack.c.b16 %v6937, %v6936
      %v6986 = vpack.c.b16 %v6939, %v6938
      %v6987 = vpack.c.b16 %v6941, %v6940
      %v6988 = vpack.c.b16 %v6943, %v6942
      %v6989 = vpack.c.b16 %v6945, %v6944
      %v6990 = vpack.c.b16 %v6947, %v6946
      %v6991 = vpack.c.b16 %v6949, %v6948
      %v6992 = vpack.c.b16 %v6951, %v6950
      %v6993 = vpack.c.b16 %v6953, %v6952
      %v6994 = vpack.c.b16 %v6955, %v6954
      %v6995 = vpack.c.b16 %v6957, %v6956
      %v6996 = vpack.c.b16 %v6959, %v6958
      %v6997 = vpack.c.b16 %v6961, %v6960
      %v6998 = vpack.c.b16 %v6963, %v6962
      %v6999 = vpack.c.b16 %v6965, %v6964
      %v7000 = vpack.c.b16 %v6967, %v6966
      %v7001 = vpack.c.b16 %v6969, %v6968
      %7034 = vmatprep.subr.bf16.mxu0 0
      %7035 = vmatpush1.bf16.msra.mxu0 %v6970
      %7036 = vmatprep.subr.bf16.mxu0 0
      %7037 = vmatpush1.bf16.msra.mxu0 %v6971
      %7038 = vmatprep.subr.bf16.mxu0 0
      %7039 = vmatpush1.bf16.msra.mxu0 %v6972
      %7040 = vmatprep.subr.bf16.mxu0 0
      %7041 = vmatpush1.bf16.msra.mxu0 %v6973
      %7042 = vmatprep.subr.bf16.mxu0 0
      %7043 = vmatpush1.bf16.msra.mxu0 %v6974
      %7044 = vmatprep.subr.bf16.mxu0 0
      %7045 = vmatpush1.bf16.msra.mxu0 %v6975
      %7046 = vmatprep.subr.bf16.mxu0 0
      %7047 = vmatpush1.bf16.msra.mxu0 %v6976
      %7048 = vmatprep.subr.bf16.mxu0 0
      %7049 = vmatpush1.bf16.msra.mxu0 %v6977
      %7050 = vmatprep.subr.bf16.mxu0 0
      %7051 = vmatpush1.bf16.msra.mxu0 %v6978
      %7052 = vmatprep.subr.bf16.mxu0 0
      %7053 = vmatpush1.bf16.msra.mxu0 %v6979
      %7054 = vmatprep.subr.bf16.mxu0 0
      %7055 = vmatpush1.bf16.msra.mxu0 %v6980
      %7056 = vmatprep.subr.bf16.mxu0 0
      %7057 = vmatpush1.bf16.msra.mxu0 %v6981
      %7058 = vmatprep.subr.bf16.mxu0 0
      %7059 = vmatpush1.bf16.msra.mxu0 %v6982
      %7060 = vmatprep.subr.bf16.mxu0 0
      %7061 = vmatpush1.bf16.msra.mxu0 %v6983
      %7062 = vmatprep.subr.bf16.mxu0 0
      %7063 = vmatpush1.bf16.msra.mxu0 %v6984
      %7064 = vmatprep.subr.bf16.mxu0 0
      %7065 = vmatpush1.bf16.msra.mxu0 %v6985
      %7066 = vmatprep.mubr.bf16.mxu0 %v6766
      %7067 = vmatmul.mubr.bf16.gmra.mrb[0].mxu0 %v6765
      %v7068 = vpop.f32.mrb[0].mxu0
      %v7069 = vadd.f32 %v6840, %v7068
      %v7070 = vpop.f32.mrb[0].mxu0
      %v7071 = vpop.f32.mrb[0].mxu0
      %v7072 = vadd.f32 %v6840, %v7071
      %v7073 = vpop.f32.mrb[0].mxu0
      %7074 = vdwg.mxu0
      %7075 = vmatprep.subr.bf16.mxu0 0
      %7076 = vmatpush1.bf16.msra.mxu0 %v6986
      %7077 = vmatprep.subr.bf16.mxu0 0
      %7078 = vmatpush1.bf16.msra.mxu0 %v6987
      %7079 = vmatprep.subr.bf16.mxu0 0
      %7080 = vmatpush1.bf16.msra.mxu0 %v6988
      %7081 = vmatprep.subr.bf16.mxu0 0
      %7082 = vmatpush1.bf16.msra.mxu0 %v6989
      %7083 = vmatprep.subr.bf16.mxu0 0
      %7084 = vmatpush1.bf16.msra.mxu0 %v6990
      %7085 = vmatprep.subr.bf16.mxu0 0
      %7086 = vmatpush1.bf16.msra.mxu0 %v6991
      %7087 = vmatprep.subr.bf16.mxu0 0
      %7088 = vmatpush1.bf16.msra.mxu0 %v6992
      %7089 = vmatprep.subr.bf16.mxu0 0
      %7090 = vmatpush1.bf16.msra.mxu0 %v6993
      %7091 = vmatprep.subr.bf16.mxu0 0
      %7092 = vmatpush1.bf16.msra.mxu0 %v6994
      %7093 = vmatprep.subr.bf16.mxu0 0
      %7094 = vmatpush1.bf16.msra.mxu0 %v6995
      %7095 = vmatprep.subr.bf16.mxu0 0
      %7096 = vmatpush1.bf16.msra.mxu0 %v6996
      %7097 = vmatprep.subr.bf16.mxu0 0
      %7098 = vmatpush1.bf16.msra.mxu0 %v6997
      %7099 = vmatprep.subr.bf16.mxu0 0
      %7100 = vmatpush1.bf16.msra.mxu0 %v6998
      %7101 = vmatprep.subr.bf16.mxu0 0
      %7102 = vmatpush1.bf16.msra.mxu0 %v6999
      %7103 = vmatprep.subr.bf16.mxu0 0
      %7104 = vmatpush1.bf16.msra.mxu0 %v7000
      %7105 = vmatprep.subr.bf16.mxu0 0
      %7106 = vmatpush1.bf16.msra.mxu0 %v7001
      %7107 = vmatprep.mubr.bf16.mxu0 %v6768
      %7108 = vmatmul.mubr.bf16.gmra.mrb[0].mxu0 %v6767
      %v7109 = vpop.f32.mrb[0].mxu0
      %v7110 = vadd.f32 %v7069, %v7109
      %v7111 = vpop.f32.mrb[0].mxu0
      %v7112 = vpop.f32.mrb[0].mxu0
      %v7113 = vadd.f32 %v7072, %v7112
      %v7114 = vpop.f32.mrb[0].mxu0
      %7115 = vdwg.mxu0
      %v7116 = vadd.f32 %v6545, %v7110
      %v7117 = vadd.f32 %v6546, %v7113
      %s7118 = scalar_lea.vmem %s18, 2
      %v7119 = vld [vmem:[%s7118] sm:$0x1]
      %s7120 = scalar_lea.vmem %s19, 2
      %v7121 = vld [vmem:[%s7120] sm:$0x1]
      %v7122 = vsel %vm1190, %v7116, 0.0
      %7123 = vadd.xlane.f32.xlu0 %v7122
      %v7124 = vpop.xlane.xlu0 %7123
      %v7125 = vsel %vm2492, %v7117, 0.0
      %7126 = vadd.xlane.f32.xlu0 %v7125
      %v7127 = vpop.xlane.xlu0 %7126
      %v7128 = vmul.f32 %v7124, %v2496
      %v7129 = vmul.f32 %v7127, %v2496
      %v7130 = vsub.f32 %v7116, %v7128
      %v7131 = vsub.f32 %v7117, %v7129
      %v7132 = vmul.f32 %v7130, %v7130
      %v7133 = vmul.f32 %v7131, %v7131
      %v7134 = vsel %vm1190, %v7132, 0.0
      %7135 = vadd.xlane.f32.xlu0 %v7134
      %v7136 = vpop.xlane.xlu0 %7135
      %v7137 = vsel %vm2492, %v7133, 0.0
      %7138 = vadd.xlane.f32.xlu0 %v7137
      %v7139 = vpop.xlane.xlu0 %7138
      %v7140 = vmul.f32 %v7136, %v2496
      %v7141 = vmul.f32 %v7139, %v2496
      %v7142 = vadd.f32 %v7140, 1e-05
      %v7143 = vadd.f32 %v7141, 1e-05
      %v7144 = vrsqrt.pop %v7142
      %v7145 = vrsqrt.pop %v7143
      %v7146 = vmul.f32 %v7130, %v7144
      %v7147 = vmul.f32 %v7131, %v7145
      %v7149 = vlaneseq
      %v7150 = vshrl.u32 %v7149, 7
      %v7151 = vsub.s32 0, %v7150
      %v7152 = vrot.slane %v7119, %v7151
      %v7154 = vmul.f32 %v7146, %v7152
      %v7155 = vmul.f32 %v7147, %v7152
      %v7157 = vlaneseq
      %v7158 = vshrl.u32 %v7157, 7
      %v7159 = vsub.s32 0, %v7158
      %v7160 = vrot.slane %v7121, %v7159
      %v7162 = vadd.f32 %v7154, %v7160
      %v7163 = vadd.f32 %v7155, %v7160
      %v7164 = vpack.c.bf16 %v7163, %v7162
      %s7165 = scalar_lea.vmem %s8, 192
      %v7166 = vld [vmem:[%s7165] sm:$0xff]
      %v7167 = vld [vmem:[%s7165 + $0x8] sm:$0xff]
      %v7168 = vld [vmem:[%s7165 + $0x10] sm:$0xff]
      %v7169 = vld [vmem:[%s7165 + $0x18] sm:$0xff]
      %v7170 = vld [vmem:[%s7165 + $0x20] sm:$0xff]
      %v7171 = vld [vmem:[%s7165 + $0x28] sm:$0xff]
      %v7172 = vld [vmem:[%s7165 + $0x30] sm:$0xff]
      %v7173 = vld [vmem:[%s7165 + $0x38] sm:$0xff]
      %s7174 = scalar_lea.vmem %s9, 6
      %v7175 = vld [vmem:[%s7174] sm:$0x3]
      %v7177 = vlaneseq
      %v7178 = vshrl.u32 %v7177, 7
      %v7179 = vsub.s32 0, %v7178
      %v7180 = vrot.slane %v7175, %v7179
      %v7181 = vlaneseq
      %v7182 = vshrl.u32 %v7181, 7
      %v7183 = vsub.s32 1, %v7182
      %v7184 = vrot.slane %v7175, %v7183
      %v7195 = vunpack.c.l.b16 %v7166
      %v7196 = vunpack.c.h.b16 %v7166
      %v7197 = vunpack.c.l.b16 %v7167
      %v7198 = vunpack.c.h.b16 %v7167
      %v7199 = vunpack.c.l.b16 %v7168
      %v7200 = vunpack.c.h.b16 %v7168
      %v7201 = vunpack.c.l.b16 %v7169
      %v7202 = vunpack.c.h.b16 %v7169
      %v7203 = vunpack.c.l.b16 %v7170
      %v7204 = vunpack.c.h.b16 %v7170
      %v7205 = vunpack.c.l.b16 %v7171
      %v7206 = vunpack.c.h.b16 %v7171
      %v7207 = vunpack.c.l.b16 %v7172
      %v7208 = vunpack.c.h.b16 %v7172
      %v7209 = vunpack.c.l.b16 %v7173
      %v7210 = vunpack.c.h.b16 %v7173
      %v7211 = vpack.c.b16 %v7197, %v7195
      %v7212 = vpack.c.b16 %v7198, %v7196
      %v7213 = vpack.c.b16 %v7201, %v7199
      %v7214 = vpack.c.b16 %v7202, %v7200
      %v7215 = vpack.c.b16 %v7205, %v7203
      %v7216 = vpack.c.b16 %v7206, %v7204
      %v7217 = vpack.c.b16 %v7209, %v7207
      %v7218 = vpack.c.b16 %v7210, %v7208
      %v7228 = vsel %vm1190, %v7164, 0
      %7230 = vmatprep.subr.bf16.mxu0 %v7212
      %7231 = vmatpush1.bf16.msra.mxu0 %v7211
      %7232 = vmatprep.subr.bf16.mxu0 %v7214
      %7233 = vmatpush1.bf16.msra.mxu0 %v7213
      %7234 = vmatprep.subr.bf16.mxu0 %v7216
      %7235 = vmatpush1.bf16.msra.mxu0 %v7215
      %7236 = vmatprep.subr.bf16.mxu0 %v7218
      %7237 = vmatpush1.bf16.msra.mxu0 %v7217
      %7238 = vmatprep.subr.bf16.mxu0 0
      %7239 = vmatpush1.bf16.msra.mxu0 0
      %7240 = vmatprep.subr.bf16.mxu0 0
      %7241 = vmatpush1.bf16.msra.mxu0 0
      %7242 = vmatprep.subr.bf16.mxu0 0
      %7243 = vmatpush1.bf16.msra.mxu0 0
      %7244 = vmatprep.subr.bf16.mxu0 0
      %7245 = vmatpush1.bf16.msra.mxu0 0
      %7246 = vmatprep.subr.bf16.mxu0 0
      %7247 = vmatpush1.bf16.msra.mxu0 0
      %7248 = vmatprep.subr.bf16.mxu0 0
      %7249 = vmatpush1.bf16.msra.mxu0 0
      %7250 = vmatprep.subr.bf16.mxu0 0
      %7251 = vmatpush1.bf16.msra.mxu0 0
      %7252 = vmatprep.subr.bf16.mxu0 0
      %7253 = vmatpush1.bf16.msra.mxu0 0
      %7254 = vmatprep.subr.bf16.mxu0 0
      %7255 = vmatpush1.bf16.msra.mxu0 0
      %7256 = vmatprep.subr.bf16.mxu0 0
      %7257 = vmatpush1.bf16.msra.mxu0 0
      %7258 = vmatprep.subr.bf16.mxu0 0
      %7259 = vmatpush1.bf16.msra.mxu0 0
      %7260 = vmatprep.subr.bf16.mxu0 0
      %7261 = vmatpush1.bf16.msra.mxu0 0
      %7262 = vmatprep.mubr.bf16.mxu0 0
      %7263 = vmatmul.mubr.bf16.gmra.mrb[0].mxu0 %v7228
      %v7264 = vpop.f32.mrb[0].mxu0
      %v7265 = vadd.f32 %v7180, %v7264
      %v7266 = vpop.f32.mrb[0].mxu0
      %v7267 = vadd.f32 %v7184, %v7266
      %v7268 = vpop.f32.mrb[0].mxu0
      %v7269 = vadd.f32 %v7180, %v7268
      %v7270 = vpop.f32.mrb[0].mxu0
      %v7271 = vadd.f32 %v7184, %v7270
      %7272 = vdwg.mxu0
      %7275 = vrot.lane.b32.xlu0 %v7265, 120
      %v7276 = vpop.permute.xlu0 %7275
      %7277 = vrot.lane.b32.xlu0 %v7269, 120
      %v7278 = vpop.permute.xlu0 %7277
      %7281 = vrot.lane.b32.xlu0 %v7265, 112
      %v7282 = vpop.permute.xlu0 %7281
      %7283 = vrot.lane.b32.xlu0 %v7269, 112
      %v7284 = vpop.permute.xlu0 %7283
      %7287 = vrot.lane.b32.xlu0 %v7265, 104
      %v7288 = vpop.permute.xlu0 %7287
      %7289 = vrot.lane.b32.xlu0 %v7269, 104
      %v7290 = vpop.permute.xlu0 %7289
      %7293 = vrot.lane.b32.xlu0 %v7265, 96
      %v7294 = vpop.permute.xlu0 %7293
      %7295 = vrot.lane.b32.xlu0 %v7269, 96
      %v7296 = vpop.permute.xlu0 %7295
      %7299 = vrot.lane.b32.xlu0 %v7265, 88
      %v7300 = vpop.permute.xlu0 %7299
      %7301 = vrot.lane.b32.xlu0 %v7269, 88
      %v7302 = vpop.permute.xlu0 %7301
      %7305 = vrot.lane.b32.xlu0 %v7265, 80
      %v7306 = vpop.permute.xlu0 %7305
      %7307 = vrot.lane.b32.xlu0 %v7269, 80
      %v7308 = vpop.permute.xlu0 %7307
      %7311 = vrot.lane.b32.xlu0 %v7265, 72
      %v7312 = vpop.permute.xlu0 %7311
      %7313 = vrot.lane.b32.xlu0 %v7269, 72
      %v7314 = vpop.permute.xlu0 %7313
      %v7317 = vpack.c.bf16 %v7269, %v7265
      %v7318 = vpack.c.bf16 %v7278, %v7276
      %v7319 = vpack.c.bf16 %v7284, %v7282
      %v7320 = vpack.c.bf16 %v7290, %v7288
      %v7321 = vpack.c.bf16 %v7296, %v7294
      %v7322 = vpack.c.bf16 %v7302, %v7300
      %v7323 = vpack.c.bf16 %v7308, %v7306
      %v7324 = vpack.c.bf16 %v7314, %v7312
      %7327 = vrot.lane.b32.xlu0 %v7267, 120
      %v7328 = vpop.permute.xlu0 %7327
      %7329 = vrot.lane.b32.xlu0 %v7271, 120
      %v7330 = vpop.permute.xlu0 %7329
      %7333 = vrot.lane.b32.xlu0 %v7267, 112
      %v7334 = vpop.permute.xlu0 %7333
      %7335 = vrot.lane.b32.xlu0 %v7271, 112
      %v7336 = vpop.permute.xlu0 %7335
      %7339 = vrot.lane.b32.xlu0 %v7267, 104
      %v7340 = vpop.permute.xlu0 %7339
      %7341 = vrot.lane.b32.xlu0 %v7271, 104
      %v7342 = vpop.permute.xlu0 %7341
      %7345 = vrot.lane.b32.xlu0 %v7267, 96
      %v7346 = vpop.permute.xlu0 %7345
      %7347 = vrot.lane.b32.xlu0 %v7271, 96
      %v7348 = vpop.permute.xlu0 %7347
      %7351 = vrot.lane.b32.xlu0 %v7267, 88
      %v7352 = vpop.permute.xlu0 %7351
      %7353 = vrot.lane.b32.xlu0 %v7271, 88
      %v7354 = vpop.permute.xlu0 %7353
      %7357 = vrot.lane.b32.xlu0 %v7267, 80
      %v7358 = vpop.permute.xlu0 %7357
      %7359 = vrot.lane.b32.xlu0 %v7271, 80
      %v7360 = vpop.permute.xlu0 %7359
      %7363 = vrot.lane.b32.xlu0 %v7267, 72
      %v7364 = vpop.permute.xlu0 %7363
      %7365 = vrot.lane.b32.xlu0 %v7271, 72
      %v7366 = vpop.permute.xlu0 %7365
      %v7369 = vpack.c.bf16 %v7271, %v7267
      %v7370 = vpack.c.bf16 %v7330, %v7328
      %v7371 = vpack.c.bf16 %v7336, %v7334
      %v7372 = vpack.c.bf16 %v7342, %v7340
      %v7373 = vpack.c.bf16 %v7348, %v7346
      %v7374 = vpack.c.bf16 %v7354, %v7352
      %v7375 = vpack.c.bf16 %v7360, %v7358
      %v7376 = vpack.c.bf16 %v7366, %v7364
      %7378 = vrot.lane.b32.xlu0 %v7317, 64
      %v7379 = vpop.permute.xlu0 %7378
      %v7381 = vsel %vm1344, %v7317, 0
      %v7384 = vsel %vm1344, %v7379, 0
      %7386 = vmatprep.subr.bf16.mxu0 0
      %7387 = vmatpush1.bf16.xpose.msra.mxu0 %v7384
      %7388 = vmatprep.subr.bf16.mxu0 0
      %7389 = vmatpush1.bf16.xpose.msra.mxu0 0
      %7390 = vmatprep.subr.bf16.mxu0 0
      %7391 = vmatpush1.bf16.xpose.msra.mxu0 0
      %7392 = vmatprep.subr.bf16.mxu0 0
      %7393 = vmatpush1.bf16.xpose.msra.mxu0 0
      %7394 = vmatprep.subr.bf16.mxu0 0
      %7395 = vmatpush1.bf16.xpose.msra.mxu0 0
      %7396 = vmatprep.subr.bf16.mxu0 0
      %7397 = vmatpush1.bf16.xpose.msra.mxu0 0
      %7398 = vmatprep.subr.bf16.mxu0 0
      %7399 = vmatpush1.bf16.xpose.msra.mxu0 0
      %7400 = vmatprep.subr.bf16.mxu0 0
      %7401 = vmatpush1.bf16.xpose.msra.mxu0 0
      %7402 = vmatprep.subr.bf16.mxu0 0
      %7403 = vmatpush1.bf16.xpose.msra.mxu0 0
      %7404 = vmatprep.subr.bf16.mxu0 0
      %7405 = vmatpush1.bf16.xpose.msra.mxu0 0
      %7406 = vmatprep.subr.bf16.mxu0 0
      %7407 = vmatpush1.bf16.xpose.msra.mxu0 0
      %7408 = vmatprep.subr.bf16.mxu0 0
      %7409 = vmatpush1.bf16.xpose.msra.mxu0 0
      %7410 = vmatprep.subr.bf16.mxu0 0
      %7411 = vmatpush1.bf16.xpose.msra.mxu0 0
      %7412 = vmatprep.subr.bf16.mxu0 0
      %7413 = vmatpush1.bf16.xpose.msra.mxu0 0
      %7414 = vmatprep.subr.bf16.mxu0 0
      %7415 = vmatpush1.bf16.xpose.msra.mxu0 0
      %7416 = vmatprep.subr.bf16.mxu0 0
      %7417 = vmatpush1.bf16.xpose.msra.mxu0 0
      %7418 = vmatprep.mubr.bf16.mxu0 0
      %7419 = vmatmul.mubr.bf16.gmra.mrb[0].mxu0 %v7381
      %v7420 = vpop.f32.mrb[0].mxu0
      %v7421 = vadd.f32 0.0, %v7420
      %v7422 = vpop.f32.mrb[0].mxu0
      %v7423 = vpop.f32.mrb[0].mxu0
      %v7424 = vadd.f32 0.0, %v7423
      %v7425 = vpop.f32.mrb[0].mxu0
      %7426 = vdwg.mxu0
      %7428 = vrot.lane.b32.xlu0 %v7318, 64
      %v7429 = vpop.permute.xlu0 %7428
      %v7431 = vsel %vm1344, %v7318, 0
      %v7434 = vsel %vm1344, %v7429, 0
      %7436 = vmatprep.subr.bf16.mxu0 0
      %7437 = vmatpush1.bf16.xpose.msra.mxu0 %v7434
      %7438 = vmatprep.subr.bf16.mxu0 0
      %7439 = vmatpush1.bf16.xpose.msra.mxu0 0
      %7440 = vmatprep.subr.bf16.mxu0 0
      %7441 = vmatpush1.bf16.xpose.msra.mxu0 0
      %7442 = vmatprep.subr.bf16.mxu0 0
      %7443 = vmatpush1.bf16.xpose.msra.mxu0 0
      %7444 = vmatprep.subr.bf16.mxu0 0
      %7445 = vmatpush1.bf16.xpose.msra.mxu0 0
      %7446 = vmatprep.subr.bf16.mxu0 0
      %7447 = vmatpush1.bf16.xpose.msra.mxu0 0
      %7448 = vmatprep.subr.bf16.mxu0 0
      %7449 = vmatpush1.bf16.xpose.msra.mxu0 0
      %7450 = vmatprep.subr.bf16.mxu0 0
      %7451 = vmatpush1.bf16.xpose.msra.mxu0 0
      %7452 = vmatprep.subr.bf16.mxu0 0
      %7453 = vmatpush1.bf16.xpose.msra.mxu0 0
      %7454 = vmatprep.subr.bf16.mxu0 0
      %7455 = vmatpush1.bf16.xpose.msra.mxu0 0
      %7456 = vmatprep.subr.bf16.mxu0 0
      %7457 = vmatpush1.bf16.xpose.msra.mxu0 0
      %7458 = vmatprep.subr.bf16.mxu0 0
      %7459 = vmatpush1.bf16.xpose.msra.mxu0 0
      %7460 = vmatprep.subr.bf16.mxu0 0
      %7461 = vmatpush1.bf16.xpose.msra.mxu0 0
      %7462 = vmatprep.subr.bf16.mxu0 0
      %7463 = vmatpush1.bf16.xpose.msra.mxu0 0
      %7464 = vmatprep.subr.bf16.mxu0 0
      %7465 = vmatpush1.bf16.xpose.msra.mxu0 0
      %7466 = vmatprep.subr.bf16.mxu0 0
      %7467 = vmatpush1.bf16.xpose.msra.mxu0 0
      %7468 = vmatprep.mubr.bf16.mxu0 0
      %7469 = vmatmul.mubr.bf16.gmra.mrb[0].mxu0 %v7431
      %v7470 = vpop.f32.mrb[0].mxu0
      %v7471 = vadd.f32 0.0, %v7470
      %v7472 = vpop.f32.mrb[0].mxu0
      %v7473 = vpop.f32.mrb[0].mxu0
      %v7474 = vadd.f32 0.0, %v7473
      %v7475 = vpop.f32.mrb[0].mxu0
      %7476 = vdwg.mxu0
      %7478 = vrot.lane.b32.xlu0 %v7319, 64
      %v7479 = vpop.permute.xlu0 %7478
      %v7481 = vsel %vm1344, %v7319, 0
      %v7484 = vsel %vm1344, %v7479, 0
      %7486 = vmatprep.subr.bf16.mxu0 0
      %7487 = vmatpush1.bf16.xpose.msra.mxu0 %v7484
      %7488 = vmatprep.subr.bf16.mxu0 0
      %7489 = vmatpush1.bf16.xpose.msra.mxu0 0
      %7490 = vmatprep.subr.bf16.mxu0 0
      %7491 = vmatpush1.bf16.xpose.msra.mxu0 0
      %7492 = vmatprep.subr.bf16.mxu0 0
      %7493 = vmatpush1.bf16.xpose.msra.mxu0 0
      %7494 = vmatprep.subr.bf16.mxu0 0
      %7495 = vmatpush1.bf16.xpose.msra.mxu0 0
      %7496 = vmatprep.subr.bf16.mxu0 0
      %7497 = vmatpush1.bf16.xpose.msra.mxu0 0
      %7498 = vmatprep.subr.bf16.mxu0 0
      %7499 = vmatpush1.bf16.xpose.msra.mxu0 0
      %7500 = vmatprep.subr.bf16.mxu0 0
      %7501 = vmatpush1.bf16.xpose.msra.mxu0 0
      %7502 = vmatprep.subr.bf16.mxu0 0
      %7503 = vmatpush1.bf16.xpose.msra.mxu0 0
      %7504 = vmatprep.subr.bf16.mxu0 0
      %7505 = vmatpush1.bf16.xpose.msra.mxu0 0
      %7506 = vmatprep.subr.bf16.mxu0 0
      %7507 = vmatpush1.bf16.xpose.msra.mxu0 0
      %7508 = vmatprep.subr.bf16.mxu0 0
      %7509 = vmatpush1.bf16.xpose.msra.mxu0 0
      %7510 = vmatprep.subr.bf16.mxu0 0
      %7511 = vmatpush1.bf16.xpose.msra.mxu0 0
      %7512 = vmatprep.subr.bf16.mxu0 0
      %7513 = vmatpush1.bf16.xpose.msra.mxu0 0
      %7514 = vmatprep.subr.bf16.mxu0 0
      %7515 = vmatpush1.bf16.xpose.msra.mxu0 0
      %7516 = vmatprep.subr.bf16.mxu0 0
      %7517 = vmatpush1.bf16.xpose.msra.mxu0 0
      %7518 = vmatprep.mubr.bf16.mxu0 0
      %7519 = vmatmul.mubr.bf16.gmra.mrb[0].mxu0 %v7481
      %v7520 = vpop.f32.mrb[0].mxu0
      %v7521 = vadd.f32 0.0, %v7520
      %v7522 = vpop.f32.mrb[0].mxu0
      %v7523 = vpop.f32.mrb[0].mxu0
      %v7524 = vadd.f32 0.0, %v7523
      %v7525 = vpop.f32.mrb[0].mxu0
      %7526 = vdwg.mxu0
      %7528 = vrot.lane.b32.xlu0 %v7320, 64
      %v7529 = vpop.permute.xlu0 %7528
      %v7531 = vsel %vm1344, %v7320, 0
      %v7534 = vsel %vm1344, %v7529, 0
      %7536 = vmatprep.subr.bf16.mxu0 0
      %7537 = vmatpush1.bf16.xpose.msra.mxu0 %v7534
      %7538 = vmatprep.subr.bf16.mxu0 0
      %7539 = vmatpush1.bf16.xpose.msra.mxu0 0
      %7540 = vmatprep.subr.bf16.mxu0 0
      %7541 = vmatpush1.bf16.xpose.msra.mxu0 0
      %7542 = vmatprep.subr.bf16.mxu0 0
      %7543 = vmatpush1.bf16.xpose.msra.mxu0 0
      %7544 = vmatprep.subr.bf16.mxu0 0
      %7545 = vmatpush1.bf16.xpose.msra.mxu0 0
      %7546 = vmatprep.subr.bf16.mxu0 0
      %7547 = vmatpush1.bf16.xpose.msra.mxu0 0
      %7548 = vmatprep.subr.bf16.mxu0 0
      %7549 = vmatpush1.bf16.xpose.msra.mxu0 0
      %7550 = vmatprep.subr.bf16.mxu0 0
      %7551 = vmatpush1.bf16.xpose.msra.mxu0 0
      %7552 = vmatprep.subr.bf16.mxu0 0
      %7553 = vmatpush1.bf16.xpose.msra.mxu0 0
      %7554 = vmatprep.subr.bf16.mxu0 0
      %7555 = vmatpush1.bf16.xpose.msra.mxu0 0
      %7556 = vmatprep.subr.bf16.mxu0 0
      %7557 = vmatpush1.bf16.xpose.msra.mxu0 0
      %7558 = vmatprep.subr.bf16.mxu0 0
      %7559 = vmatpush1.bf16.xpose.msra.mxu0 0
      %7560 = vmatprep.subr.bf16.mxu0 0
      %7561 = vmatpush1.bf16.xpose.msra.mxu0 0
      %7562 = vmatprep.subr.bf16.mxu0 0
      %7563 = vmatpush1.bf16.xpose.msra.mxu0 0
      %7564 = vmatprep.subr.bf16.mxu0 0
      %7565 = vmatpush1.bf16.xpose.msra.mxu0 0
      %7566 = vmatprep.subr.bf16.mxu0 0
      %7567 = vmatpush1.bf16.xpose.msra.mxu0 0
      %7568 = vmatprep.mubr.bf16.mxu0 0
      %7569 = vmatmul.mubr.bf16.gmra.mrb[0].mxu0 %v7531
      %v7570 = vpop.f32.mrb[0].mxu0
      %v7571 = vadd.f32 0.0, %v7570
      %v7572 = vpop.f32.mrb[0].mxu0
      %v7573 = vpop.f32.mrb[0].mxu0
      %v7574 = vadd.f32 0.0, %v7573
      %v7575 = vpop.f32.mrb[0].mxu0
      %7576 = vdwg.mxu0
      %7578 = vrot.lane.b32.xlu0 %v7321, 64
      %v7579 = vpop.permute.xlu0 %7578
      %v7581 = vsel %vm1344, %v7321, 0
      %v7584 = vsel %vm1344, %v7579, 0
      %7586 = vmatprep.subr.bf16.mxu0 0
      %7587 = vmatpush1.bf16.xpose.msra.mxu0 %v7584
      %7588 = vmatprep.subr.bf16.mxu0 0
      %7589 = vmatpush1.bf16.xpose.msra.mxu0 0
      %7590 = vmatprep.subr.bf16.mxu0 0
      %7591 = vmatpush1.bf16.xpose.msra.mxu0 0
      %7592 = vmatprep.subr.bf16.mxu0 0
      %7593 = vmatpush1.bf16.xpose.msra.mxu0 0
      %7594 = vmatprep.subr.bf16.mxu0 0
      %7595 = vmatpush1.bf16.xpose.msra.mxu0 0
      %7596 = vmatprep.subr.bf16.mxu0 0
      %7597 = vmatpush1.bf16.xpose.msra.mxu0 0
      %7598 = vmatprep.subr.bf16.mxu0 0
      %7599 = vmatpush1.bf16.xpose.msra.mxu0 0
      %7600 = vmatprep.subr.bf16.mxu0 0
      %7601 = vmatpush1.bf16.xpose.msra.mxu0 0
      %7602 = vmatprep.subr.bf16.mxu0 0
      %7603 = vmatpush1.bf16.xpose.msra.mxu0 0
      %7604 = vmatprep.subr.bf16.mxu0 0
      %7605 = vmatpush1.bf16.xpose.msra.mxu0 0
      %7606 = vmatprep.subr.bf16.mxu0 0
      %7607 = vmatpush1.bf16.xpose.msra.mxu0 0
      %7608 = vmatprep.subr.bf16.mxu0 0
      %7609 = vmatpush1.bf16.xpose.msra.mxu0 0
      %7610 = vmatprep.subr.bf16.mxu0 0
      %7611 = vmatpush1.bf16.xpose.msra.mxu0 0
      %7612 = vmatprep.subr.bf16.mxu0 0
      %7613 = vmatpush1.bf16.xpose.msra.mxu0 0
      %7614 = vmatprep.subr.bf16.mxu0 0
      %7615 = vmatpush1.bf16.xpose.msra.mxu0 0
      %7616 = vmatprep.subr.bf16.mxu0 0
      %7617 = vmatpush1.bf16.xpose.msra.mxu0 0
      %7618 = vmatprep.mubr.bf16.mxu0 0
      %7619 = vmatmul.mubr.bf16.gmra.mrb[0].mxu0 %v7581
      %v7620 = vpop.f32.mrb[0].mxu0
      %v7621 = vadd.f32 0.0, %v7620
      %v7622 = vpop.f32.mrb[0].mxu0
      %v7623 = vpop.f32.mrb[0].mxu0
      %v7624 = vadd.f32 0.0, %v7623
      %v7625 = vpop.f32.mrb[0].mxu0
      %7626 = vdwg.mxu0
      %7628 = vrot.lane.b32.xlu0 %v7322, 64
      %v7629 = vpop.permute.xlu0 %7628
      %v7631 = vsel %vm1344, %v7322, 0
      %v7634 = vsel %vm1344, %v7629, 0
      %7636 = vmatprep.subr.bf16.mxu0 0
      %7637 = vmatpush1.bf16.xpose.msra.mxu0 %v7634
      %7638 = vmatprep.subr.bf16.mxu0 0
      %7639 = vmatpush1.bf16.xpose.msra.mxu0 0
      %7640 = vmatprep.subr.bf16.mxu0 0
      %7641 = vmatpush1.bf16.xpose.msra.mxu0 0
      %7642 = vmatprep.subr.bf16.mxu0 0
      %7643 = vmatpush1.bf16.xpose.msra.mxu0 0
      %7644 = vmatprep.subr.bf16.mxu0 0
      %7645 = vmatpush1.bf16.xpose.msra.mxu0 0
      %7646 = vmatprep.subr.bf16.mxu0 0
      %7647 = vmatpush1.bf16.xpose.msra.mxu0 0
      %7648 = vmatprep.subr.bf16.mxu0 0
      %7649 = vmatpush1.bf16.xpose.msra.mxu0 0
      %7650 = vmatprep.subr.bf16.mxu0 0
      %7651 = vmatpush1.bf16.xpose.msra.mxu0 0
      %7652 = vmatprep.subr.bf16.mxu0 0
      %7653 = vmatpush1.bf16.xpose.msra.mxu0 0
      %7654 = vmatprep.subr.bf16.mxu0 0
      %7655 = vmatpush1.bf16.xpose.msra.mxu0 0
      %7656 = vmatprep.subr.bf16.mxu0 0
      %7657 = vmatpush1.bf16.xpose.msra.mxu0 0
      %7658 = vmatprep.subr.bf16.mxu0 0
      %7659 = vmatpush1.bf16.xpose.msra.mxu0 0
      %7660 = vmatprep.subr.bf16.mxu0 0
      %7661 = vmatpush1.bf16.xpose.msra.mxu0 0
      %7662 = vmatprep.subr.bf16.mxu0 0
      %7663 = vmatpush1.bf16.xpose.msra.mxu0 0
      %7664 = vmatprep.subr.bf16.mxu0 0
      %7665 = vmatpush1.bf16.xpose.msra.mxu0 0
      %7666 = vmatprep.subr.bf16.mxu0 0
      %7667 = vmatpush1.bf16.xpose.msra.mxu0 0
      %7668 = vmatprep.mubr.bf16.mxu0 0
      %7669 = vmatmul.mubr.bf16.gmra.mrb[0].mxu0 %v7631
      %v7670 = vpop.f32.mrb[0].mxu0
      %v7671 = vadd.f32 0.0, %v7670
      %v7672 = vpop.f32.mrb[0].mxu0
      %v7673 = vpop.f32.mrb[0].mxu0
      %v7674 = vadd.f32 0.0, %v7673
      %v7675 = vpop.f32.mrb[0].mxu0
      %7676 = vdwg.mxu0
      %7678 = vrot.lane.b32.xlu0 %v7323, 64
      %v7679 = vpop.permute.xlu0 %7678
      %v7681 = vsel %vm1344, %v7323, 0
      %v7684 = vsel %vm1344, %v7679, 0
      %7686 = vmatprep.subr.bf16.mxu0 0
      %7687 = vmatpush1.bf16.xpose.msra.mxu0 %v7684
      %7688 = vmatprep.subr.bf16.mxu0 0
      %7689 = vmatpush1.bf16.xpose.msra.mxu0 0
      %7690 = vmatprep.subr.bf16.mxu0 0
      %7691 = vmatpush1.bf16.xpose.msra.mxu0 0
      %7692 = vmatprep.subr.bf16.mxu0 0
      %7693 = vmatpush1.bf16.xpose.msra.mxu0 0
      %7694 = vmatprep.subr.bf16.mxu0 0
      %7695 = vmatpush1.bf16.xpose.msra.mxu0 0
      %7696 = vmatprep.subr.bf16.mxu0 0
      %7697 = vmatpush1.bf16.xpose.msra.mxu0 0
      %7698 = vmatprep.subr.bf16.mxu0 0
      %7699 = vmatpush1.bf16.xpose.msra.mxu0 0
      %7700 = vmatprep.subr.bf16.mxu0 0
      %7701 = vmatpush1.bf16.xpose.msra.mxu0 0
      %7702 = vmatprep.subr.bf16.mxu0 0
      %7703 = vmatpush1.bf16.xpose.msra.mxu0 0
      %7704 = vmatprep.subr.bf16.mxu0 0
      %7705 = vmatpush1.bf16.xpose.msra.mxu0 0
      %7706 = vmatprep.subr.bf16.mxu0 0
      %7707 = vmatpush1.bf16.xpose.msra.mxu0 0
      %7708 = vmatprep.subr.bf16.mxu0 0
      %7709 = vmatpush1.bf16.xpose.msra.mxu0 0
      %7710 = vmatprep.subr.bf16.mxu0 0
      %7711 = vmatpush1.bf16.xpose.msra.mxu0 0
      %7712 = vmatprep.subr.bf16.mxu0 0
      %7713 = vmatpush1.bf16.xpose.msra.mxu0 0
      %7714 = vmatprep.subr.bf16.mxu0 0
      %7715 = vmatpush1.bf16.xpose.msra.mxu0 0
      %7716 = vmatprep.subr.bf16.mxu0 0
      %7717 = vmatpush1.bf16.xpose.msra.mxu0 0
      %7718 = vmatprep.mubr.bf16.mxu0 0
      %7719 = vmatmul.mubr.bf16.gmra.mrb[0].mxu0 %v7681
      %v7720 = vpop.f32.mrb[0].mxu0
      %v7721 = vadd.f32 0.0, %v7720
      %v7722 = vpop.f32.mrb[0].mxu0
      %v7723 = vpop.f32.mrb[0].mxu0
      %v7724 = vadd.f32 0.0, %v7723
      %v7725 = vpop.f32.mrb[0].mxu0
      %7726 = vdwg.mxu0
      %7728 = vrot.lane.b32.xlu0 %v7324, 64
      %v7729 = vpop.permute.xlu0 %7728
      %v7731 = vsel %vm1344, %v7324, 0
      %v7734 = vsel %vm1344, %v7729, 0
      %7736 = vmatprep.subr.bf16.mxu0 0
      %7737 = vmatpush1.bf16.xpose.msra.mxu0 %v7734
      %7738 = vmatprep.subr.bf16.mxu0 0
      %7739 = vmatpush1.bf16.xpose.msra.mxu0 0
      %7740 = vmatprep.subr.bf16.mxu0 0
      %7741 = vmatpush1.bf16.xpose.msra.mxu0 0
      %7742 = vmatprep.subr.bf16.mxu0 0
      %7743 = vmatpush1.bf16.xpose.msra.mxu0 0
      %7744 = vmatprep.subr.bf16.mxu0 0
      %7745 = vmatpush1.bf16.xpose.msra.mxu0 0
      %7746 = vmatprep.subr.bf16.mxu0 0
      %7747 = vmatpush1.bf16.xpose.msra.mxu0 0
      %7748 = vmatprep.subr.bf16.mxu0 0
      %7749 = vmatpush1.bf16.xpose.msra.mxu0 0
      %7750 = vmatprep.subr.bf16.mxu0 0
      %7751 = vmatpush1.bf16.xpose.msra.mxu0 0
      %7752 = vmatprep.subr.bf16.mxu0 0
      %7753 = vmatpush1.bf16.xpose.msra.mxu0 0
      %7754 = vmatprep.subr.bf16.mxu0 0
      %7755 = vmatpush1.bf16.xpose.msra.mxu0 0
      %7756 = vmatprep.subr.bf16.mxu0 0
      %7757 = vmatpush1.bf16.xpose.msra.mxu0 0
      %7758 = vmatprep.subr.bf16.mxu0 0
      %7759 = vmatpush1.bf16.xpose.msra.mxu0 0
      %7760 = vmatprep.subr.bf16.mxu0 0
      %7761 = vmatpush1.bf16.xpose.msra.mxu0 0
      %7762 = vmatprep.subr.bf16.mxu0 0
      %7763 = vmatpush1.bf16.xpose.msra.mxu0 0
      %7764 = vmatprep.subr.bf16.mxu0 0
      %7765 = vmatpush1.bf16.xpose.msra.mxu0 0
      %7766 = vmatprep.subr.bf16.mxu0 0
      %7767 = vmatpush1.bf16.xpose.msra.mxu0 0
      %7768 = vmatprep.mubr.bf16.mxu0 0
      %7769 = vmatmul.mubr.bf16.gmra.mrb[0].mxu0 %v7731
      %v7770 = vpop.f32.mrb[0].mxu0
      %v7771 = vadd.f32 0.0, %v7770
      %v7772 = vpop.f32.mrb[0].mxu0
      %v7773 = vpop.f32.mrb[0].mxu0
      %v7774 = vadd.f32 0.0, %v7773
      %v7775 = vpop.f32.mrb[0].mxu0
      %7776 = vdwg.mxu0
      %v7777 = vsel %vm1744, %v7421, -1e+09
      %v7778 = vsel %vm1745, %v7424, -1e+09
      %v7779 = vsel %vm1744, %v7471, -1e+09
      %v7780 = vsel %vm1745, %v7474, -1e+09
      %v7781 = vsel %vm1744, %v7521, -1e+09
      %v7782 = vsel %vm1745, %v7524, -1e+09
      %v7783 = vsel %vm1744, %v7571, -1e+09
      %v7784 = vsel %vm1745, %v7574, -1e+09
      %v7785 = vsel %vm1744, %v7621, -1e+09
      %v7786 = vsel %vm1745, %v7624, -1e+09
      %v7787 = vsel %vm1744, %v7671, -1e+09
      %v7788 = vsel %vm1745, %v7674, -1e+09
      %v7789 = vsel %vm1744, %v7721, -1e+09
      %v7790 = vsel %vm1745, %v7724, -1e+09
      %v7791 = vsel %vm1744, %v7771, -1e+09
      %v7792 = vsel %vm1745, %v7774, -1e+09
      %v7793 = vsel %vm1762, %v7777, -inf
      %7794 = vmax.xlane.f32.xlu0 %v7793
      %v7795 = vpop.xlane.xlu0 %7794
      %v7796 = vsel %vm1766, %v7778, -inf
      %7797 = vmax.xlane.f32.xlu0 %v7796
      %v7798 = vpop.xlane.xlu0 %7797
      %v7799 = vsel %vm1762, %v7779, -inf
      %7800 = vmax.xlane.f32.xlu0 %v7799
      %v7801 = vpop.xlane.xlu0 %7800
      %v7802 = vsel %vm1766, %v7780, -inf
      %7803 = vmax.xlane.f32.xlu0 %v7802
      %v7804 = vpop.xlane.xlu0 %7803
      %v7805 = vsel %vm1762, %v7781, -inf
      %7806 = vmax.xlane.f32.xlu0 %v7805
      %v7807 = vpop.xlane.xlu0 %7806
      %v7808 = vsel %vm1766, %v7782, -inf
      %7809 = vmax.xlane.f32.xlu0 %v7808
      %v7810 = vpop.xlane.xlu0 %7809
      %v7811 = vsel %vm1762, %v7783, -inf
      %7812 = vmax.xlane.f32.xlu0 %v7811
      %v7813 = vpop.xlane.xlu0 %7812
      %v7814 = vsel %vm1766, %v7784, -inf
      %7815 = vmax.xlane.f32.xlu0 %v7814
      %v7816 = vpop.xlane.xlu0 %7815
      %v7817 = vsel %vm1762, %v7785, -inf
      %7818 = vmax.xlane.f32.xlu0 %v7817
      %v7819 = vpop.xlane.xlu0 %7818
      %v7820 = vsel %vm1766, %v7786, -inf
      %7821 = vmax.xlane.f32.xlu0 %v7820
      %v7822 = vpop.xlane.xlu0 %7821
      %v7823 = vsel %vm1762, %v7787, -inf
      %7824 = vmax.xlane.f32.xlu0 %v7823
      %v7825 = vpop.xlane.xlu0 %7824
      %v7826 = vsel %vm1766, %v7788, -inf
      %7827 = vmax.xlane.f32.xlu0 %v7826
      %v7828 = vpop.xlane.xlu0 %7827
      %v7829 = vsel %vm1762, %v7789, -inf
      %7830 = vmax.xlane.f32.xlu0 %v7829
      %v7831 = vpop.xlane.xlu0 %7830
      %v7832 = vsel %vm1766, %v7790, -inf
      %7833 = vmax.xlane.f32.xlu0 %v7832
      %v7834 = vpop.xlane.xlu0 %7833
      %v7835 = vsel %vm1762, %v7791, -inf
      %7836 = vmax.xlane.f32.xlu0 %v7835
      %v7837 = vpop.xlane.xlu0 %7836
      %v7838 = vsel %vm1766, %v7792, -inf
      %7839 = vmax.xlane.f32.xlu0 %v7838
      %v7840 = vpop.xlane.xlu0 %7839
      %v7841 = vsub.f32 %v7777, %v7795
      %v7842 = vsub.f32 %v7778, %v7798
      %v7843 = vsub.f32 %v7779, %v7801
      %v7844 = vsub.f32 %v7780, %v7804
      %v7845 = vsub.f32 %v7781, %v7807
      %v7846 = vsub.f32 %v7782, %v7810
      %v7847 = vsub.f32 %v7783, %v7813
      %v7848 = vsub.f32 %v7784, %v7816
      %v7849 = vsub.f32 %v7785, %v7819
      %v7850 = vsub.f32 %v7786, %v7822
      %v7851 = vsub.f32 %v7787, %v7825
      %v7852 = vsub.f32 %v7788, %v7828
      %v7853 = vsub.f32 %v7789, %v7831
      %v7854 = vsub.f32 %v7790, %v7834
      %v7855 = vsub.f32 %v7791, %v7837
      %v7856 = vsub.f32 %v7792, %v7840
      %v7857 = vmul.f32 %v7841, 1.442695
      %v7858 = vpow.pop %v7857
      %v7859 = vmul.f32 %v7842, 1.442695
      %v7860 = vpow.pop %v7859
      %v7861 = vmul.f32 %v7843, 1.442695
      %v7862 = vpow.pop %v7861
      %v7863 = vmul.f32 %v7844, 1.442695
      %v7864 = vpow.pop %v7863
      %v7865 = vmul.f32 %v7845, 1.442695
      %v7866 = vpow.pop %v7865
      %v7867 = vmul.f32 %v7846, 1.442695
      %v7868 = vpow.pop %v7867
      %v7869 = vmul.f32 %v7847, 1.442695
      %v7870 = vpow.pop %v7869
      %v7871 = vmul.f32 %v7848, 1.442695
      %v7872 = vpow.pop %v7871
      %v7873 = vmul.f32 %v7849, 1.442695
      %v7874 = vpow.pop %v7873
      %v7875 = vmul.f32 %v7850, 1.442695
      %v7876 = vpow.pop %v7875
      %v7877 = vmul.f32 %v7851, 1.442695
      %v7878 = vpow.pop %v7877
      %v7879 = vmul.f32 %v7852, 1.442695
      %v7880 = vpow.pop %v7879
      %v7881 = vmul.f32 %v7853, 1.442695
      %v7882 = vpow.pop %v7881
      %v7883 = vmul.f32 %v7854, 1.442695
      %v7884 = vpow.pop %v7883
      %v7885 = vmul.f32 %v7855, 1.442695
      %v7886 = vpow.pop %v7885
      %v7887 = vmul.f32 %v7856, 1.442695
      %v7888 = vpow.pop %v7887
      %v7889 = vsel %vm1762, %v7858, 0.0
      %7890 = vadd.xlane.f32.xlu0 %v7889
      %v7891 = vpop.xlane.xlu0 %7890
      %v7892 = vsel %vm1766, %v7860, 0.0
      %7893 = vadd.xlane.f32.xlu0 %v7892
      %v7894 = vpop.xlane.xlu0 %7893
      %v7895 = vsel %vm1762, %v7862, 0.0
      %7896 = vadd.xlane.f32.xlu0 %v7895
      %v7897 = vpop.xlane.xlu0 %7896
      %v7898 = vsel %vm1766, %v7864, 0.0
      %7899 = vadd.xlane.f32.xlu0 %v7898
      %v7900 = vpop.xlane.xlu0 %7899
      %v7901 = vsel %vm1762, %v7866, 0.0
      %7902 = vadd.xlane.f32.xlu0 %v7901
      %v7903 = vpop.xlane.xlu0 %7902
      %v7904 = vsel %vm1766, %v7868, 0.0
      %7905 = vadd.xlane.f32.xlu0 %v7904
      %v7906 = vpop.xlane.xlu0 %7905
      %v7907 = vsel %vm1762, %v7870, 0.0
      %7908 = vadd.xlane.f32.xlu0 %v7907
      %v7909 = vpop.xlane.xlu0 %7908
      %v7910 = vsel %vm1766, %v7872, 0.0
      %7911 = vadd.xlane.f32.xlu0 %v7910
      %v7912 = vpop.xlane.xlu0 %7911
      %v7913 = vsel %vm1762, %v7874, 0.0
      %7914 = vadd.xlane.f32.xlu0 %v7913
      %v7915 = vpop.xlane.xlu0 %7914
      %v7916 = vsel %vm1766, %v7876, 0.0
      %7917 = vadd.xlane.f32.xlu0 %v7916
      %v7918 = vpop.xlane.xlu0 %7917
      %v7919 = vsel %vm1762, %v7878, 0.0
      %7920 = vadd.xlane.f32.xlu0 %v7919
      %v7921 = vpop.xlane.xlu0 %7920
      %v7922 = vsel %vm1766, %v7880, 0.0
      %7923 = vadd.xlane.f32.xlu0 %v7922
      %v7924 = vpop.xlane.xlu0 %7923
      %v7925 = vsel %vm1762, %v7882, 0.0
      %7926 = vadd.xlane.f32.xlu0 %v7925
      %v7927 = vpop.xlane.xlu0 %7926
      %v7928 = vsel %vm1766, %v7884, 0.0
      %7929 = vadd.xlane.f32.xlu0 %v7928
      %v7930 = vpop.xlane.xlu0 %7929
      %v7931 = vsel %vm1762, %v7886, 0.0
      %7932 = vadd.xlane.f32.xlu0 %v7931
      %v7933 = vpop.xlane.xlu0 %7932
      %v7934 = vsel %vm1766, %v7888, 0.0
      %7935 = vadd.xlane.f32.xlu0 %v7934
      %v7936 = vpop.xlane.xlu0 %7935
      %v7937 = vrcp.pop %v7891
      %v7938 = vrcp.pop %v7894
      %v7939 = vrcp.pop %v7897
      %v7940 = vrcp.pop %v7900
      %v7941 = vrcp.pop %v7903
      %v7942 = vrcp.pop %v7906
      %v7943 = vrcp.pop %v7909
      %v7944 = vrcp.pop %v7912
      %v7945 = vrcp.pop %v7915
      %v7946 = vrcp.pop %v7918
      %v7947 = vrcp.pop %v7921
      %v7948 = vrcp.pop %v7924
      %v7949 = vrcp.pop %v7927
      %v7950 = vrcp.pop %v7930
      %v7951 = vrcp.pop %v7933
      %v7952 = vrcp.pop %v7936
      %v7953 = vmul.f32 %v7858, %v7937
      %v7954 = vmul.f32 %v7860, %v7938
      %v7955 = vmul.f32 %v7862, %v7939
      %v7956 = vmul.f32 %v7864, %v7940
      %v7957 = vmul.f32 %v7866, %v7941
      %v7958 = vmul.f32 %v7868, %v7942
      %v7959 = vmul.f32 %v7870, %v7943
      %v7960 = vmul.f32 %v7872, %v7944
      %v7961 = vmul.f32 %v7874, %v7945
      %v7962 = vmul.f32 %v7876, %v7946
      %v7963 = vmul.f32 %v7878, %v7947
      %v7964 = vmul.f32 %v7880, %v7948
      %v7965 = vmul.f32 %v7882, %v7949
      %v7966 = vmul.f32 %v7884, %v7950
      %v7967 = vmul.f32 %v7886, %v7951
      %v7968 = vmul.f32 %v7888, %v7952
      %v7969 = vpack.c.bf16 %v7954, %v7953
      %v7970 = vpack.c.bf16 %v7956, %v7955
      %v7971 = vpack.c.bf16 %v7958, %v7957
      %v7972 = vpack.c.bf16 %v7960, %v7959
      %v7973 = vpack.c.bf16 %v7962, %v7961
      %v7974 = vpack.c.bf16 %v7964, %v7963
      %v7975 = vpack.c.bf16 %v7966, %v7965
      %v7976 = vpack.c.bf16 %v7968, %v7967
      %v7978 = vsel %vm1762, %v7969, 0
      %v7981 = vsel %vm1951, %v7369, 0
      %7983 = vmatprep.subr.bf16.mxu0 0
      %7984 = vmatpush1.bf16.msra.mxu0 %v7981
      %7985 = vmatprep.subr.bf16.mxu0 0
      %7986 = vmatpush1.bf16.msra.mxu0 0
      %7987 = vmatprep.subr.bf16.mxu0 0
      %7988 = vmatpush1.bf16.msra.mxu0 0
      %7989 = vmatprep.subr.bf16.mxu0 0
      %7990 = vmatpush1.bf16.msra.mxu0 0
      %7991 = vmatprep.subr.bf16.mxu0 0
      %7992 = vmatpush1.bf16.msra.mxu0 0
      %7993 = vmatprep.subr.bf16.mxu0 0
      %7994 = vmatpush1.bf16.msra.mxu0 0
      %7995 = vmatprep.subr.bf16.mxu0 0
      %7996 = vmatpush1.bf16.msra.mxu0 0
      %7997 = vmatprep.subr.bf16.mxu0 0
      %7998 = vmatpush1.bf16.msra.mxu0 0
      %7999 = vmatprep.subr.bf16.mxu0 0
      %8000 = vmatpush1.bf16.msra.mxu0 0
      %8001 = vmatprep.subr.bf16.mxu0 0
      %8002 = vmatpush1.bf16.msra.mxu0 0
      %8003 = vmatprep.subr.bf16.mxu0 0
      %8004 = vmatpush1.bf16.msra.mxu0 0
      %8005 = vmatprep.subr.bf16.mxu0 0
      %8006 = vmatpush1.bf16.msra.mxu0 0
      %8007 = vmatprep.subr.bf16.mxu0 0
      %8008 = vmatpush1.bf16.msra.mxu0 0
      %8009 = vmatprep.subr.bf16.mxu0 0
      %8010 = vmatpush1.bf16.msra.mxu0 0
      %8011 = vmatprep.subr.bf16.mxu0 0
      %8012 = vmatpush1.bf16.msra.mxu0 0
      %8013 = vmatprep.subr.bf16.mxu0 0
      %8014 = vmatpush1.bf16.msra.mxu0 0
      %8015 = vmatprep.mubr.bf16.mxu0 0
      %8016 = vmatmul.mubr.bf16.gmra.mrb[0].mxu0 %v7978
      %v8017 = vpop.f32.mrb[0].mxu0
      %v8018 = vadd.f32 0.0, %v8017
      %v8019 = vpop.f32.mrb[0].mxu0
      %v8020 = vpop.f32.mrb[0].mxu0
      %v8021 = vadd.f32 0.0, %v8020
      %v8022 = vpop.f32.mrb[0].mxu0
      %8023 = vdwg.mxu0
      %v8025 = vsel %vm1762, %v7970, 0
      %v8028 = vsel %vm1951, %v7370, 0
      %8030 = vmatprep.subr.bf16.mxu0 0
      %8031 = vmatpush1.bf16.msra.mxu0 %v8028
      %8032 = vmatprep.subr.bf16.mxu0 0
      %8033 = vmatpush1.bf16.msra.mxu0 0
      %8034 = vmatprep.subr.bf16.mxu0 0
      %8035 = vmatpush1.bf16.msra.mxu0 0
      %8036 = vmatprep.subr.bf16.mxu0 0
      %8037 = vmatpush1.bf16.msra.mxu0 0
      %8038 = vmatprep.subr.bf16.mxu0 0
      %8039 = vmatpush1.bf16.msra.mxu0 0
      %8040 = vmatprep.subr.bf16.mxu0 0
      %8041 = vmatpush1.bf16.msra.mxu0 0
      %8042 = vmatprep.subr.bf16.mxu0 0
      %8043 = vmatpush1.bf16.msra.mxu0 0
      %8044 = vmatprep.subr.bf16.mxu0 0
      %8045 = vmatpush1.bf16.msra.mxu0 0
      %8046 = vmatprep.subr.bf16.mxu0 0
      %8047 = vmatpush1.bf16.msra.mxu0 0
      %8048 = vmatprep.subr.bf16.mxu0 0
      %8049 = vmatpush1.bf16.msra.mxu0 0
      %8050 = vmatprep.subr.bf16.mxu0 0
      %8051 = vmatpush1.bf16.msra.mxu0 0
      %8052 = vmatprep.subr.bf16.mxu0 0
      %8053 = vmatpush1.bf16.msra.mxu0 0
      %8054 = vmatprep.subr.bf16.mxu0 0
      %8055 = vmatpush1.bf16.msra.mxu0 0
      %8056 = vmatprep.subr.bf16.mxu0 0
      %8057 = vmatpush1.bf16.msra.mxu0 0
      %8058 = vmatprep.subr.bf16.mxu0 0
      %8059 = vmatpush1.bf16.msra.mxu0 0
      %8060 = vmatprep.subr.bf16.mxu0 0
      %8061 = vmatpush1.bf16.msra.mxu0 0
      %8062 = vmatprep.mubr.bf16.mxu0 0
      %8063 = vmatmul.mubr.bf16.gmra.mrb[0].mxu0 %v8025
      %v8064 = vpop.f32.mrb[0].mxu0
      %v8065 = vadd.f32 0.0, %v8064
      %v8066 = vpop.f32.mrb[0].mxu0
      %v8067 = vpop.f32.mrb[0].mxu0
      %v8068 = vadd.f32 0.0, %v8067
      %v8069 = vpop.f32.mrb[0].mxu0
      %8070 = vdwg.mxu0
      %v8072 = vsel %vm1762, %v7971, 0
      %v8075 = vsel %vm1951, %v7371, 0
      %8077 = vmatprep.subr.bf16.mxu0 0
      %8078 = vmatpush1.bf16.msra.mxu0 %v8075
      %8079 = vmatprep.subr.bf16.mxu0 0
      %8080 = vmatpush1.bf16.msra.mxu0 0
      %8081 = vmatprep.subr.bf16.mxu0 0
      %8082 = vmatpush1.bf16.msra.mxu0 0
      %8083 = vmatprep.subr.bf16.mxu0 0
      %8084 = vmatpush1.bf16.msra.mxu0 0
      %8085 = vmatprep.subr.bf16.mxu0 0
      %8086 = vmatpush1.bf16.msra.mxu0 0
      %8087 = vmatprep.subr.bf16.mxu0 0
      %8088 = vmatpush1.bf16.msra.mxu0 0
      %8089 = vmatprep.subr.bf16.mxu0 0
      %8090 = vmatpush1.bf16.msra.mxu0 0
      %8091 = vmatprep.subr.bf16.mxu0 0
      %8092 = vmatpush1.bf16.msra.mxu0 0
      %8093 = vmatprep.subr.bf16.mxu0 0
      %8094 = vmatpush1.bf16.msra.mxu0 0
      %8095 = vmatprep.subr.bf16.mxu0 0
      %8096 = vmatpush1.bf16.msra.mxu0 0
      %8097 = vmatprep.subr.bf16.mxu0 0
      %8098 = vmatpush1.bf16.msra.mxu0 0
      %8099 = vmatprep.subr.bf16.mxu0 0
      %8100 = vmatpush1.bf16.msra.mxu0 0
      %8101 = vmatprep.subr.bf16.mxu0 0
      %8102 = vmatpush1.bf16.msra.mxu0 0
      %8103 = vmatprep.subr.bf16.mxu0 0
      %8104 = vmatpush1.bf16.msra.mxu0 0
      %8105 = vmatprep.subr.bf16.mxu0 0
      %8106 = vmatpush1.bf16.msra.mxu0 0
      %8107 = vmatprep.subr.bf16.mxu0 0
      %8108 = vmatpush1.bf16.msra.mxu0 0
      %8109 = vmatprep.mubr.bf16.mxu0 0
      %8110 = vmatmul.mubr.bf16.gmra.mrb[0].mxu0 %v8072
      %v8111 = vpop.f32.mrb[0].mxu0
      %v8112 = vadd.f32 0.0, %v8111
      %v8113 = vpop.f32.mrb[0].mxu0
      %v8114 = vpop.f32.mrb[0].mxu0
      %v8115 = vadd.f32 0.0, %v8114
      %v8116 = vpop.f32.mrb[0].mxu0
      %8117 = vdwg.mxu0
      %v8119 = vsel %vm1762, %v7972, 0
      %v8122 = vsel %vm1951, %v7372, 0
      %8124 = vmatprep.subr.bf16.mxu0 0
      %8125 = vmatpush1.bf16.msra.mxu0 %v8122
      %8126 = vmatprep.subr.bf16.mxu0 0
      %8127 = vmatpush1.bf16.msra.mxu0 0
      %8128 = vmatprep.subr.bf16.mxu0 0
      %8129 = vmatpush1.bf16.msra.mxu0 0
      %8130 = vmatprep.subr.bf16.mxu0 0
      %8131 = vmatpush1.bf16.msra.mxu0 0
      %8132 = vmatprep.subr.bf16.mxu0 0
      %8133 = vmatpush1.bf16.msra.mxu0 0
      %8134 = vmatprep.subr.bf16.mxu0 0
      %8135 = vmatpush1.bf16.msra.mxu0 0
      %8136 = vmatprep.subr.bf16.mxu0 0
      %8137 = vmatpush1.bf16.msra.mxu0 0
      %8138 = vmatprep.subr.bf16.mxu0 0
      %8139 = vmatpush1.bf16.msra.mxu0 0
      %8140 = vmatprep.subr.bf16.mxu0 0
      %8141 = vmatpush1.bf16.msra.mxu0 0
      %8142 = vmatprep.subr.bf16.mxu0 0
      %8143 = vmatpush1.bf16.msra.mxu0 0
      %8144 = vmatprep.subr.bf16.mxu0 0
      %8145 = vmatpush1.bf16.msra.mxu0 0
      %8146 = vmatprep.subr.bf16.mxu0 0
      %8147 = vmatpush1.bf16.msra.mxu0 0
      %8148 = vmatprep.subr.bf16.mxu0 0
      %8149 = vmatpush1.bf16.msra.mxu0 0
      %8150 = vmatprep.subr.bf16.mxu0 0
      %8151 = vmatpush1.bf16.msra.mxu0 0
      %8152 = vmatprep.subr.bf16.mxu0 0
      %8153 = vmatpush1.bf16.msra.mxu0 0
      %8154 = vmatprep.subr.bf16.mxu0 0
      %8155 = vmatpush1.bf16.msra.mxu0 0
      %8156 = vmatprep.mubr.bf16.mxu0 0
      %8157 = vmatmul.mubr.bf16.gmra.mrb[0].mxu0 %v8119
      %v8158 = vpop.f32.mrb[0].mxu0
      %v8159 = vadd.f32 0.0, %v8158
      %v8160 = vpop.f32.mrb[0].mxu0
      %v8161 = vpop.f32.mrb[0].mxu0
      %v8162 = vadd.f32 0.0, %v8161
      %v8163 = vpop.f32.mrb[0].mxu0
      %8164 = vdwg.mxu0
      %v8166 = vsel %vm1762, %v7973, 0
      %v8169 = vsel %vm1951, %v7373, 0
      %8171 = vmatprep.subr.bf16.mxu0 0
      %8172 = vmatpush1.bf16.msra.mxu0 %v8169
      %8173 = vmatprep.subr.bf16.mxu0 0
      %8174 = vmatpush1.bf16.msra.mxu0 0
      %8175 = vmatprep.subr.bf16.mxu0 0
      %8176 = vmatpush1.bf16.msra.mxu0 0
      %8177 = vmatprep.subr.bf16.mxu0 0
      %8178 = vmatpush1.bf16.msra.mxu0 0
      %8179 = vmatprep.subr.bf16.mxu0 0
      %8180 = vmatpush1.bf16.msra.mxu0 0
      %8181 = vmatprep.subr.bf16.mxu0 0
      %8182 = vmatpush1.bf16.msra.mxu0 0
      %8183 = vmatprep.subr.bf16.mxu0 0
      %8184 = vmatpush1.bf16.msra.mxu0 0
      %8185 = vmatprep.subr.bf16.mxu0 0
      %8186 = vmatpush1.bf16.msra.mxu0 0
      %8187 = vmatprep.subr.bf16.mxu0 0
      %8188 = vmatpush1.bf16.msra.mxu0 0
      %8189 = vmatprep.subr.bf16.mxu0 0
      %8190 = vmatpush1.bf16.msra.mxu0 0
      %8191 = vmatprep.subr.bf16.mxu0 0
      %8192 = vmatpush1.bf16.msra.mxu0 0
      %8193 = vmatprep.subr.bf16.mxu0 0
      %8194 = vmatpush1.bf16.msra.mxu0 0
      %8195 = vmatprep.subr.bf16.mxu0 0
      %8196 = vmatpush1.bf16.msra.mxu0 0
      %8197 = vmatprep.subr.bf16.mxu0 0
      %8198 = vmatpush1.bf16.msra.mxu0 0
      %8199 = vmatprep.subr.bf16.mxu0 0
      %8200 = vmatpush1.bf16.msra.mxu0 0
      %8201 = vmatprep.subr.bf16.mxu0 0
      %8202 = vmatpush1.bf16.msra.mxu0 0
      %8203 = vmatprep.mubr.bf16.mxu0 0
      %8204 = vmatmul.mubr.bf16.gmra.mrb[0].mxu0 %v8166
      %v8205 = vpop.f32.mrb[0].mxu0
      %v8206 = vadd.f32 0.0, %v8205
      %v8207 = vpop.f32.mrb[0].mxu0
      %v8208 = vpop.f32.mrb[0].mxu0
      %v8209 = vadd.f32 0.0, %v8208
      %v8210 = vpop.f32.mrb[0].mxu0
      %8211 = vdwg.mxu0
      %v8213 = vsel %vm1762, %v7974, 0
      %v8216 = vsel %vm1951, %v7374, 0
      %8218 = vmatprep.subr.bf16.mxu0 0
      %8219 = vmatpush1.bf16.msra.mxu0 %v8216
      %8220 = vmatprep.subr.bf16.mxu0 0
      %8221 = vmatpush1.bf16.msra.mxu0 0
      %8222 = vmatprep.subr.bf16.mxu0 0
      %8223 = vmatpush1.bf16.msra.mxu0 0
      %8224 = vmatprep.subr.bf16.mxu0 0
      %8225 = vmatpush1.bf16.msra.mxu0 0
      %8226 = vmatprep.subr.bf16.mxu0 0
      %8227 = vmatpush1.bf16.msra.mxu0 0
      %8228 = vmatprep.subr.bf16.mxu0 0
      %8229 = vmatpush1.bf16.msra.mxu0 0
      %8230 = vmatprep.subr.bf16.mxu0 0
      %8231 = vmatpush1.bf16.msra.mxu0 0
      %8232 = vmatprep.subr.bf16.mxu0 0
      %8233 = vmatpush1.bf16.msra.mxu0 0
      %8234 = vmatprep.subr.bf16.mxu0 0
      %8235 = vmatpush1.bf16.msra.mxu0 0
      %8236 = vmatprep.subr.bf16.mxu0 0
      %8237 = vmatpush1.bf16.msra.mxu0 0
      %8238 = vmatprep.subr.bf16.mxu0 0
      %8239 = vmatpush1.bf16.msra.mxu0 0
      %8240 = vmatprep.subr.bf16.mxu0 0
      %8241 = vmatpush1.bf16.msra.mxu0 0
      %8242 = vmatprep.subr.bf16.mxu0 0
      %8243 = vmatpush1.bf16.msra.mxu0 0
      %8244 = vmatprep.subr.bf16.mxu0 0
      %8245 = vmatpush1.bf16.msra.mxu0 0
      %8246 = vmatprep.subr.bf16.mxu0 0
      %8247 = vmatpush1.bf16.msra.mxu0 0
      %8248 = vmatprep.subr.bf16.mxu0 0
      %8249 = vmatpush1.bf16.msra.mxu0 0
      %8250 = vmatprep.mubr.bf16.mxu0 0
      %8251 = vmatmul.mubr.bf16.gmra.mrb[0].mxu0 %v8213
      %v8252 = vpop.f32.mrb[0].mxu0
      %v8253 = vadd.f32 0.0, %v8252
      %v8254 = vpop.f32.mrb[0].mxu0
      %v8255 = vpop.f32.mrb[0].mxu0
      %v8256 = vadd.f32 0.0, %v8255
      %v8257 = vpop.f32.mrb[0].mxu0
      %8258 = vdwg.mxu0
      %v8260 = vsel %vm1762, %v7975, 0
      %v8263 = vsel %vm1951, %v7375, 0
      %8265 = vmatprep.subr.bf16.mxu0 0
      %8266 = vmatpush1.bf16.msra.mxu0 %v8263
      %8267 = vmatprep.subr.bf16.mxu0 0
      %8268 = vmatpush1.bf16.msra.mxu0 0
      %8269 = vmatprep.subr.bf16.mxu0 0
      %8270 = vmatpush1.bf16.msra.mxu0 0
      %8271 = vmatprep.subr.bf16.mxu0 0
      %8272 = vmatpush1.bf16.msra.mxu0 0
      %8273 = vmatprep.subr.bf16.mxu0 0
      %8274 = vmatpush1.bf16.msra.mxu0 0
      %8275 = vmatprep.subr.bf16.mxu0 0
      %8276 = vmatpush1.bf16.msra.mxu0 0
      %8277 = vmatprep.subr.bf16.mxu0 0
      %8278 = vmatpush1.bf16.msra.mxu0 0
      %8279 = vmatprep.subr.bf16.mxu0 0
      %8280 = vmatpush1.bf16.msra.mxu0 0
      %8281 = vmatprep.subr.bf16.mxu0 0
      %8282 = vmatpush1.bf16.msra.mxu0 0
      %8283 = vmatprep.subr.bf16.mxu0 0
      %8284 = vmatpush1.bf16.msra.mxu0 0
      %8285 = vmatprep.subr.bf16.mxu0 0
      %8286 = vmatpush1.bf16.msra.mxu0 0
      %8287 = vmatprep.subr.bf16.mxu0 0
      %8288 = vmatpush1.bf16.msra.mxu0 0
      %8289 = vmatprep.subr.bf16.mxu0 0
      %8290 = vmatpush1.bf16.msra.mxu0 0
      %8291 = vmatprep.subr.bf16.mxu0 0
      %8292 = vmatpush1.bf16.msra.mxu0 0
      %8293 = vmatprep.subr.bf16.mxu0 0
      %8294 = vmatpush1.bf16.msra.mxu0 0
      %8295 = vmatprep.subr.bf16.mxu0 0
      %8296 = vmatpush1.bf16.msra.mxu0 0
      %8297 = vmatprep.mubr.bf16.mxu0 0
      %8298 = vmatmul.mubr.bf16.gmra.mrb[0].mxu0 %v8260
      %v8299 = vpop.f32.mrb[0].mxu0
      %v8300 = vadd.f32 0.0, %v8299
      %v8301 = vpop.f32.mrb[0].mxu0
      %v8302 = vpop.f32.mrb[0].mxu0
      %v8303 = vadd.f32 0.0, %v8302
      %v8304 = vpop.f32.mrb[0].mxu0
      %8305 = vdwg.mxu0
      %v8307 = vsel %vm1762, %v7976, 0
      %v8310 = vsel %vm1951, %v7376, 0
      %8312 = vmatprep.subr.bf16.mxu0 0
      %8313 = vmatpush1.bf16.msra.mxu0 %v8310
      %8314 = vmatprep.subr.bf16.mxu0 0
      %8315 = vmatpush1.bf16.msra.mxu0 0
      %8316 = vmatprep.subr.bf16.mxu0 0
      %8317 = vmatpush1.bf16.msra.mxu0 0
      %8318 = vmatprep.subr.bf16.mxu0 0
      %8319 = vmatpush1.bf16.msra.mxu0 0
      %8320 = vmatprep.subr.bf16.mxu0 0
      %8321 = vmatpush1.bf16.msra.mxu0 0
      %8322 = vmatprep.subr.bf16.mxu0 0
      %8323 = vmatpush1.bf16.msra.mxu0 0
      %8324 = vmatprep.subr.bf16.mxu0 0
      %8325 = vmatpush1.bf16.msra.mxu0 0
      %8326 = vmatprep.subr.bf16.mxu0 0
      %8327 = vmatpush1.bf16.msra.mxu0 0
      %8328 = vmatprep.subr.bf16.mxu0 0
      %8329 = vmatpush1.bf16.msra.mxu0 0
      %8330 = vmatprep.subr.bf16.mxu0 0
      %8331 = vmatpush1.bf16.msra.mxu0 0
      %8332 = vmatprep.subr.bf16.mxu0 0
      %8333 = vmatpush1.bf16.msra.mxu0 0
      %8334 = vmatprep.subr.bf16.mxu0 0
      %8335 = vmatpush1.bf16.msra.mxu0 0
      %8336 = vmatprep.subr.bf16.mxu0 0
      %8337 = vmatpush1.bf16.msra.mxu0 0
      %8338 = vmatprep.subr.bf16.mxu0 0
      %8339 = vmatpush1.bf16.msra.mxu0 0
      %8340 = vmatprep.subr.bf16.mxu0 0
      %8341 = vmatpush1.bf16.msra.mxu0 0
      %8342 = vmatprep.subr.bf16.mxu0 0
      %8343 = vmatpush1.bf16.msra.mxu0 0
      %8344 = vmatprep.mubr.bf16.mxu0 0
      %8345 = vmatmul.mubr.bf16.gmra.mrb[0].mxu0 %v8307
      %v8346 = vpop.f32.mrb[0].mxu0
      %v8347 = vadd.f32 0.0, %v8346
      %v8348 = vpop.f32.mrb[0].mxu0
      %v8349 = vpop.f32.mrb[0].mxu0
      %v8350 = vadd.f32 0.0, %v8349
      %v8351 = vpop.f32.mrb[0].mxu0
      %8352 = vdwg.mxu0
      %8355 = vrot.lane.b32.xlu0 %v8065, 8
      %v8356 = vpop.permute.xlu0 %8355
      %8357 = vrot.lane.b32.xlu0 %v8068, 8
      %v8358 = vpop.permute.xlu0 %8357
      %8363 = vrot.lane.b32.xlu0 %v8112, 16
      %v8364 = vpop.permute.xlu0 %8363
      %8365 = vrot.lane.b32.xlu0 %v8115, 16
      %v8366 = vpop.permute.xlu0 %8365
      %8371 = vrot.lane.b32.xlu0 %v8159, 24
      %v8372 = vpop.permute.xlu0 %8371
      %8373 = vrot.lane.b32.xlu0 %v8162, 24
      %v8374 = vpop.permute.xlu0 %8373
      %8379 = vrot.lane.b32.xlu0 %v8206, 32
      %v8380 = vpop.permute.xlu0 %8379
      %8381 = vrot.lane.b32.xlu0 %v8209, 32
      %v8382 = vpop.permute.xlu0 %8381
      %8387 = vrot.lane.b32.xlu0 %v8253, 40
      %v8388 = vpop.permute.xlu0 %8387
      %8389 = vrot.lane.b32.xlu0 %v8256, 40
      %v8390 = vpop.permute.xlu0 %8389
      %8395 = vrot.lane.b32.xlu0 %v8300, 48
      %v8396 = vpop.permute.xlu0 %8395
      %8397 = vrot.lane.b32.xlu0 %v8303, 48
      %v8398 = vpop.permute.xlu0 %8397
      %8403 = vrot.lane.b32.xlu0 %v8347, 56
      %v8404 = vpop.permute.xlu0 %8403
      %8405 = vrot.lane.b32.xlu0 %v8350, 56
      %v8406 = vpop.permute.xlu0 %8405
      %v8409 = vsel %vm1344, %v8018, %v8356
      %v8410 = vsel %vm1344, %v8021, %v8358
      %v8411 = vsel %vm2383, %v8409, %v8364
      %v8412 = vsel %vm2383, %v8410, %v8366
      %v8413 = vsel %vm2386, %v8411, %v8372
      %v8414 = vsel %vm2386, %v8412, %v8374
      %v8415 = vsel %vm2389, %v8413, %v8380
      %v8416 = vsel %vm2389, %v8414, %v8382
      %v8417 = vsel %vm2392, %v8415, %v8388
      %v8418 = vsel %vm2392, %v8416, %v8390
      %v8419 = vsel %vm2395, %v8417, %v8396
      %v8420 = vsel %vm2395, %v8418, %v8398
      %v8421 = vsel %vm2398, %v8419, %v8404
      %v8422 = vsel %vm2398, %v8420, %v8406
      %v8423 = vpack.c.bf16 %v8422, %v8421
      %s8424 = scalar_lea.vmem %s10, 96
      %v8425 = vld [vmem:[%s8424] sm:$0xf]
      %v8426 = vld [vmem:[%s8424 + $0x4] sm:$0xf]
      %v8427 = vld [vmem:[%s8424 + $0x8] sm:$0xf]
      %v8428 = vld [vmem:[%s8424 + $0xc] sm:$0xf]
      %v8429 = vld [vmem:[%s8424 + $0x10] sm:$0xf]
      %v8430 = vld [vmem:[%s8424 + $0x14] sm:$0xf]
      %v8431 = vld [vmem:[%s8424 + $0x18] sm:$0xf]
      %v8432 = vld [vmem:[%s8424 + $0x1c] sm:$0xf]
      %s8433 = scalar_lea.vmem %s11, 3
      %v8434 = vld [vmem:[%s8433] sm:$0x1]
      %v8436 = vlaneseq
      %v8437 = vshrl.u32 %v8436, 7
      %v8438 = vsub.s32 0, %v8437
      %v8439 = vrot.slane %v8434, %v8438
      %v8449 = vunpack.c.l.b16 %v8425
      %v8450 = vunpack.c.l.b16 %v8426
      %v8451 = vunpack.c.l.b16 %v8427
      %v8452 = vunpack.c.l.b16 %v8428
      %v8453 = vunpack.c.l.b16 %v8429
      %v8454 = vunpack.c.l.b16 %v8430
      %v8455 = vunpack.c.l.b16 %v8431
      %v8456 = vunpack.c.l.b16 %v8432
      %v8457 = vpack.c.b16 %v8450, %v8449
      %v8458 = vpack.c.b16 %v8452, %v8451
      %v8459 = vpack.c.b16 %v8454, %v8453
      %v8460 = vpack.c.b16 %v8456, %v8455
      %v8466 = vsel %vm1190, %v8423, 0
      %8468 = vmatprep.subr.bf16.mxu0 0
      %8469 = vmatpush1.bf16.msra.mxu0 %v8457
      %8470 = vmatprep.subr.bf16.mxu0 0
      %8471 = vmatpush1.bf16.msra.mxu0 %v8458
      %8472 = vmatprep.subr.bf16.mxu0 0
      %8473 = vmatpush1.bf16.msra.mxu0 %v8459
      %8474 = vmatprep.subr.bf16.mxu0 0
      %8475 = vmatpush1.bf16.msra.mxu0 %v8460
      %8476 = vmatprep.subr.bf16.mxu0 0
      %8477 = vmatpush1.bf16.msra.mxu0 0
      %8478 = vmatprep.subr.bf16.mxu0 0
      %8479 = vmatpush1.bf16.msra.mxu0 0
      %8480 = vmatprep.subr.bf16.mxu0 0
      %8481 = vmatpush1.bf16.msra.mxu0 0
      %8482 = vmatprep.subr.bf16.mxu0 0
      %8483 = vmatpush1.bf16.msra.mxu0 0
      %8484 = vmatprep.subr.bf16.mxu0 0
      %8485 = vmatpush1.bf16.msra.mxu0 0
      %8486 = vmatprep.subr.bf16.mxu0 0
      %8487 = vmatpush1.bf16.msra.mxu0 0
      %8488 = vmatprep.subr.bf16.mxu0 0
      %8489 = vmatpush1.bf16.msra.mxu0 0
      %8490 = vmatprep.subr.bf16.mxu0 0
      %8491 = vmatpush1.bf16.msra.mxu0 0
      %8492 = vmatprep.subr.bf16.mxu0 0
      %8493 = vmatpush1.bf16.msra.mxu0 0
      %8494 = vmatprep.subr.bf16.mxu0 0
      %8495 = vmatpush1.bf16.msra.mxu0 0
      %8496 = vmatprep.subr.bf16.mxu0 0
      %8497 = vmatpush1.bf16.msra.mxu0 0
      %8498 = vmatprep.subr.bf16.mxu0 0
      %8499 = vmatpush1.bf16.msra.mxu0 0
      %8500 = vmatprep.mubr.bf16.mxu0 0
      %8501 = vmatmul.mubr.bf16.gmra.mrb[0].mxu0 %v8466
      %v8502 = vpop.f32.mrb[0].mxu0
      %v8503 = vadd.f32 %v8439, %v8502
      %v8504 = vpop.f32.mrb[0].mxu0
      %v8505 = vpop.f32.mrb[0].mxu0
      %v8506 = vadd.f32 %v8439, %v8505
      %v8507 = vpop.f32.mrb[0].mxu0
      %8508 = vdwg.mxu0
      %v8509 = vadd.f32 %v7162, %v8503
      %v8510 = vadd.f32 %v7163, %v8506
      %s8511 = scalar_lea.vmem %s12, 3
      %v8512 = vld [vmem:[%s8511] sm:$0x1]
      %s8513 = scalar_lea.vmem %s13, 3
      %v8514 = vld [vmem:[%s8513] sm:$0x1]
      %v8515 = vsel %vm1190, %v8509, 0.0
      %8516 = vadd.xlane.f32.xlu0 %v8515
      %v8517 = vpop.xlane.xlu0 %8516
      %v8518 = vsel %vm2492, %v8510, 0.0
      %8519 = vadd.xlane.f32.xlu0 %v8518
      %v8520 = vpop.xlane.xlu0 %8519
      %v8521 = vmul.f32 %v8517, %v2496
      %v8522 = vmul.f32 %v8520, %v2496
      %v8523 = vsub.f32 %v8509, %v8521
      %v8524 = vsub.f32 %v8510, %v8522
      %v8525 = vmul.f32 %v8523, %v8523
      %v8526 = vmul.f32 %v8524, %v8524
      %v8527 = vsel %vm1190, %v8525, 0.0
      %8528 = vadd.xlane.f32.xlu0 %v8527
      %v8529 = vpop.xlane.xlu0 %8528
      %v8530 = vsel %vm2492, %v8526, 0.0
      %8531 = vadd.xlane.f32.xlu0 %v8530
      %v8532 = vpop.xlane.xlu0 %8531
      %v8533 = vmul.f32 %v8529, %v2496
      %v8534 = vmul.f32 %v8532, %v2496
      %v8535 = vadd.f32 %v8533, 1e-05
      %v8536 = vadd.f32 %v8534, 1e-05
      %v8537 = vrsqrt.pop %v8535
      %v8538 = vrsqrt.pop %v8536
      %v8539 = vmul.f32 %v8523, %v8537
      %v8540 = vmul.f32 %v8524, %v8538
      %v8542 = vlaneseq
      %v8543 = vshrl.u32 %v8542, 7
      %v8544 = vsub.s32 0, %v8543
      %v8545 = vrot.slane %v8512, %v8544
      %v8547 = vmul.f32 %v8539, %v8545
      %v8548 = vmul.f32 %v8540, %v8545
      %v8550 = vlaneseq
      %v8551 = vshrl.u32 %v8550, 7
      %v8552 = vsub.s32 0, %v8551
      %v8553 = vrot.slane %v8514, %v8552
      %v8555 = vadd.f32 %v8547, %v8553
      %v8556 = vadd.f32 %v8548, %v8553
      %v8557 = vpack.c.bf16 %v8556, %v8555
      %s8558 = scalar_lea.vmem %s14, 384
      %v8559 = vld [vmem:[%s8558] sm:$0xff]
      %v8560 = vld [vmem:[%s8558 + $0x8] sm:$0xff]
      %v8561 = vld [vmem:[%s8558 + $0x10] sm:$0xff]
      %v8562 = vld [vmem:[%s8558 + $0x18] sm:$0xff]
      %v8563 = vld [vmem:[%s8558 + $0x20] sm:$0xff]
      %v8564 = vld [vmem:[%s8558 + $0x28] sm:$0xff]
      %v8565 = vld [vmem:[%s8558 + $0x30] sm:$0xff]
      %v8566 = vld [vmem:[%s8558 + $0x38] sm:$0xff]
      %v8567 = vld [vmem:[%s8558 + $0x40] sm:$0xff]
      %v8568 = vld [vmem:[%s8558 + $0x48] sm:$0xff]
      %v8569 = vld [vmem:[%s8558 + $0x50] sm:$0xff]
      %v8570 = vld [vmem:[%s8558 + $0x58] sm:$0xff]
      %v8571 = vld [vmem:[%s8558 + $0x60] sm:$0xff]
      %v8572 = vld [vmem:[%s8558 + $0x68] sm:$0xff]
      %v8573 = vld [vmem:[%s8558 + $0x70] sm:$0xff]
      %v8574 = vld [vmem:[%s8558 + $0x78] sm:$0xff]
      %s8575 = scalar_lea.vmem %s15, 12
      %v8576 = vld [vmem:[%s8575] sm:$0xf]
      %v8578 = vlaneseq
      %v8579 = vshrl.u32 %v8578, 7
      %v8580 = vsub.s32 0, %v8579
      %v8581 = vrot.slane %v8576, %v8580
      %v8582 = vlaneseq
      %v8583 = vshrl.u32 %v8582, 7
      %v8584 = vsub.s32 1, %v8583
      %v8585 = vrot.slane %v8576, %v8584
      %v8586 = vlaneseq
      %v8587 = vshrl.u32 %v8586, 7
      %v8588 = vsub.s32 2, %v8587
      %v8589 = vrot.slane %v8576, %v8588
      %v8590 = vlaneseq
      %v8591 = vshrl.u32 %v8590, 7
      %v8592 = vsub.s32 3, %v8591
      %v8593 = vrot.slane %v8576, %v8592
      %v8614 = vunpack.c.l.b16 %v8559
      %v8615 = vunpack.c.h.b16 %v8559
      %v8616 = vunpack.c.l.b16 %v8560
      %v8617 = vunpack.c.h.b16 %v8560
      %v8618 = vunpack.c.l.b16 %v8561
      %v8619 = vunpack.c.h.b16 %v8561
      %v8620 = vunpack.c.l.b16 %v8562
      %v8621 = vunpack.c.h.b16 %v8562
      %v8622 = vunpack.c.l.b16 %v8563
      %v8623 = vunpack.c.h.b16 %v8563
      %v8624 = vunpack.c.l.b16 %v8564
      %v8625 = vunpack.c.h.b16 %v8564
      %v8626 = vunpack.c.l.b16 %v8565
      %v8627 = vunpack.c.h.b16 %v8565
      %v8628 = vunpack.c.l.b16 %v8566
      %v8629 = vunpack.c.h.b16 %v8566
      %v8630 = vunpack.c.l.b16 %v8567
      %v8631 = vunpack.c.h.b16 %v8567
      %v8632 = vunpack.c.l.b16 %v8568
      %v8633 = vunpack.c.h.b16 %v8568
      %v8634 = vunpack.c.l.b16 %v8569
      %v8635 = vunpack.c.h.b16 %v8569
      %v8636 = vunpack.c.l.b16 %v8570
      %v8637 = vunpack.c.h.b16 %v8570
      %v8638 = vunpack.c.l.b16 %v8571
      %v8639 = vunpack.c.h.b16 %v8571
      %v8640 = vunpack.c.l.b16 %v8572
      %v8641 = vunpack.c.h.b16 %v8572
      %v8642 = vunpack.c.l.b16 %v8573
      %v8643 = vunpack.c.h.b16 %v8573
      %v8644 = vunpack.c.l.b16 %v8574
      %v8645 = vunpack.c.h.b16 %v8574
      %v8646 = vpack.c.b16 %v8618, %v8614
      %v8647 = vpack.c.b16 %v8619, %v8615
      %v8648 = vpack.c.b16 %v8620, %v8616
      %v8649 = vpack.c.b16 %v8621, %v8617
      %v8650 = vpack.c.b16 %v8626, %v8622
      %v8651 = vpack.c.b16 %v8627, %v8623
      %v8652 = vpack.c.b16 %v8628, %v8624
      %v8653 = vpack.c.b16 %v8629, %v8625
      %v8654 = vpack.c.b16 %v8634, %v8630
      %v8655 = vpack.c.b16 %v8635, %v8631
      %v8656 = vpack.c.b16 %v8636, %v8632
      %v8657 = vpack.c.b16 %v8637, %v8633
      %v8658 = vpack.c.b16 %v8642, %v8638
      %v8659 = vpack.c.b16 %v8643, %v8639
      %v8660 = vpack.c.b16 %v8644, %v8640
      %v8661 = vpack.c.b16 %v8645, %v8641
      %v8679 = vsel %vm1190, %v8557, 0
      %8681 = vmatprep.subr.bf16.mxu0 %v8647
      %8682 = vmatpush1.bf16.msra.mxu0 %v8646
      %8683 = vmatprep.subr.bf16.mxu0 %v8651
      %8684 = vmatpush1.bf16.msra.mxu0 %v8650
      %8685 = vmatprep.subr.bf16.mxu0 %v8655
      %8686 = vmatpush1.bf16.msra.mxu0 %v8654
      %8687 = vmatprep.subr.bf16.mxu0 %v8659
      %8688 = vmatpush1.bf16.msra.mxu0 %v8658
      %8689 = vmatprep.subr.bf16.mxu0 0
      %8690 = vmatpush1.bf16.msra.mxu0 0
      %8691 = vmatprep.subr.bf16.mxu0 0
      %8692 = vmatpush1.bf16.msra.mxu0 0
      %8693 = vmatprep.subr.bf16.mxu0 0
      %8694 = vmatpush1.bf16.msra.mxu0 0
      %8695 = vmatprep.subr.bf16.mxu0 0
      %8696 = vmatpush1.bf16.msra.mxu0 0
      %8697 = vmatprep.subr.bf16.mxu0 0
      %8698 = vmatpush1.bf16.msra.mxu0 0
      %8699 = vmatprep.subr.bf16.mxu0 0
      %8700 = vmatpush1.bf16.msra.mxu0 0
      %8701 = vmatprep.subr.bf16.mxu0 0
      %8702 = vmatpush1.bf16.msra.mxu0 0
      %8703 = vmatprep.subr.bf16.mxu0 0
      %8704 = vmatpush1.bf16.msra.mxu0 0
      %8705 = vmatprep.subr.bf16.mxu0 0
      %8706 = vmatpush1.bf16.msra.mxu0 0
      %8707 = vmatprep.subr.bf16.mxu0 0
      %8708 = vmatpush1.bf16.msra.mxu0 0
      %8709 = vmatprep.subr.bf16.mxu0 0
      %8710 = vmatpush1.bf16.msra.mxu0 0
      %8711 = vmatprep.subr.bf16.mxu0 0
      %8712 = vmatpush1.bf16.msra.mxu0 0
      %8713 = vmatprep.mubr.bf16.mxu0 0
      %8714 = vmatmul.mubr.bf16.gmra.mrb[0].mxu0 %v8679
      %v8715 = vpop.f32.mrb[0].mxu0
      %v8716 = vadd.f32 %v8581, %v8715
      %v8717 = vpop.f32.mrb[0].mxu0
      %v8718 = vadd.f32 %v8585, %v8717
      %v8719 = vpop.f32.mrb[0].mxu0
      %v8720 = vadd.f32 %v8581, %v8719
      %v8721 = vpop.f32.mrb[0].mxu0
      %v8722 = vadd.f32 %v8585, %v8721
      %8723 = vdwg.mxu0
      %8724 = vmatprep.subr.bf16.mxu0 %v8649
      %8725 = vmatpush1.bf16.msra.mxu0 %v8648
      %8726 = vmatprep.subr.bf16.mxu0 %v8653
      %8727 = vmatpush1.bf16.msra.mxu0 %v8652
      %8728 = vmatprep.subr.bf16.mxu0 %v8657
      %8729 = vmatpush1.bf16.msra.mxu0 %v8656
      %8730 = vmatprep.subr.bf16.mxu0 %v8661
      %8731 = vmatpush1.bf16.msra.mxu0 %v8660
      %8732 = vmatprep.subr.bf16.mxu0 0
      %8733 = vmatpush1.bf16.msra.mxu0 0
      %8734 = vmatprep.subr.bf16.mxu0 0
      %8735 = vmatpush1.bf16.msra.mxu0 0
      %8736 = vmatprep.subr.bf16.mxu0 0
      %8737 = vmatpush1.bf16.msra.mxu0 0
      %8738 = vmatprep.subr.bf16.mxu0 0
      %8739 = vmatpush1.bf16.msra.mxu0 0
      %8740 = vmatprep.subr.bf16.mxu0 0
      %8741 = vmatpush1.bf16.msra.mxu0 0
      %8742 = vmatprep.subr.bf16.mxu0 0
      %8743 = vmatpush1.bf16.msra.mxu0 0
      %8744 = vmatprep.subr.bf16.mxu0 0
      %8745 = vmatpush1.bf16.msra.mxu0 0
      %8746 = vmatprep.subr.bf16.mxu0 0
      %8747 = vmatpush1.bf16.msra.mxu0 0
      %8748 = vmatprep.subr.bf16.mxu0 0
      %8749 = vmatpush1.bf16.msra.mxu0 0
      %8750 = vmatprep.subr.bf16.mxu0 0
      %8751 = vmatpush1.bf16.msra.mxu0 0
      %8752 = vmatprep.subr.bf16.mxu0 0
      %8753 = vmatpush1.bf16.msra.mxu0 0
      %8754 = vmatprep.subr.bf16.mxu0 0
      %8755 = vmatpush1.bf16.msra.mxu0 0
      %8756 = vmatprep.mubr.bf16.mxu0 0
      %8757 = vmatmul.mubr.bf16.gmra.mrb[0].mxu0 %v8679
      %v8758 = vpop.f32.mrb[0].mxu0
      %v8759 = vadd.f32 %v8589, %v8758
      %v8760 = vpop.f32.mrb[0].mxu0
      %v8761 = vadd.f32 %v8593, %v8760
      %v8762 = vpop.f32.mrb[0].mxu0
      %v8763 = vadd.f32 %v8589, %v8762
      %v8764 = vpop.f32.mrb[0].mxu0
      %v8765 = vadd.f32 %v8593, %v8764
      %8766 = vdwg.mxu0
      %v8767 = vmax.f32 %v8716, 0.0
      %v8768 = vmax.f32 %v8718, 0.0
      %v8769 = vmax.f32 %v8759, 0.0
      %v8770 = vmax.f32 %v8761, 0.0
      %v8771 = vmax.f32 %v8720, 0.0
      %v8772 = vmax.f32 %v8722, 0.0
      %v8773 = vmax.f32 %v8763, 0.0
      %v8774 = vmax.f32 %v8765, 0.0
      %v8775 = vpack.c.bf16 %v8771, %v8767
      %v8776 = vpack.c.bf16 %v8772, %v8768
      %v8777 = vpack.c.bf16 %v8773, %v8769
      %v8778 = vpack.c.bf16 %v8774, %v8770
      %s8779 = scalar_lea.vmem %s16, 768
      %v8780 = vld [vmem:[%s8779] sm:$0xf]
      %v8781 = vld [vmem:[%s8779 + $0x4] sm:$0xf]
      %v8782 = vld [vmem:[%s8779 + $0x8] sm:$0xf]
      %v8783 = vld [vmem:[%s8779 + $0xc] sm:$0xf]
      %v8784 = vld [vmem:[%s8779 + $0x10] sm:$0xf]
      %v8785 = vld [vmem:[%s8779 + $0x14] sm:$0xf]
      %v8786 = vld [vmem:[%s8779 + $0x18] sm:$0xf]
      %v8787 = vld [vmem:[%s8779 + $0x1c] sm:$0xf]
      %v8788 = vld [vmem:[%s8779 + $0x20] sm:$0xf]
      %v8789 = vld [vmem:[%s8779 + $0x24] sm:$0xf]
      %v8790 = vld [vmem:[%s8779 + $0x28] sm:$0xf]
      %v8791 = vld [vmem:[%s8779 + $0x2c] sm:$0xf]
      %v8792 = vld [vmem:[%s8779 + $0x30] sm:$0xf]
      %v8793 = vld [vmem:[%s8779 + $0x34] sm:$0xf]
      %v8794 = vld [vmem:[%s8779 + $0x38] sm:$0xf]
      %v8795 = vld [vmem:[%s8779 + $0x3c] sm:$0xf]
      %v8796 = vld [vmem:[%s8779 + $0x40] sm:$0xf]
      %v8797 = vld [vmem:[%s8779 + $0x44] sm:$0xf]
      %v8798 = vld [vmem:[%s8779 + $0x48] sm:$0xf]
      %v8799 = vld [vmem:[%s8779 + $0x4c] sm:$0xf]
      %v8800 = vld [vmem:[%s8779 + $0x50] sm:$0xf]
      %v8801 = vld [vmem:[%s8779 + $0x54] sm:$0xf]
      %v8802 = vld [vmem:[%s8779 + $0x58] sm:$0xf]
      %v8803 = vld [vmem:[%s8779 + $0x5c] sm:$0xf]
      %v8804 = vld [vmem:[%s8779 + $0x60] sm:$0xf]
      %v8805 = vld [vmem:[%s8779 + $0x64] sm:$0xf]
      %v8806 = vld [vmem:[%s8779 + $0x68] sm:$0xf]
      %v8807 = vld [vmem:[%s8779 + $0x6c] sm:$0xf]
      %v8808 = vld [vmem:[%s8779 + $0x70] sm:$0xf]
      %v8809 = vld [vmem:[%s8779 + $0x74] sm:$0xf]
      %v8810 = vld [vmem:[%s8779 + $0x78] sm:$0xf]
      %v8811 = vld [vmem:[%s8779 + $0x7c] sm:$0xf]
      %v8812 = vld [vmem:[%s8779 + $0x80] sm:$0xf]
      %v8813 = vld [vmem:[%s8779 + $0x84] sm:$0xf]
      %v8814 = vld [vmem:[%s8779 + $0x88] sm:$0xf]
      %v8815 = vld [vmem:[%s8779 + $0x8c] sm:$0xf]
      %v8816 = vld [vmem:[%s8779 + $0x90] sm:$0xf]
      %v8817 = vld [vmem:[%s8779 + $0x94] sm:$0xf]
      %v8818 = vld [vmem:[%s8779 + $0x98] sm:$0xf]
      %v8819 = vld [vmem:[%s8779 + $0x9c] sm:$0xf]
      %v8820 = vld [vmem:[%s8779 + $0xa0] sm:$0xf]
      %v8821 = vld [vmem:[%s8779 + $0xa4] sm:$0xf]
      %v8822 = vld [vmem:[%s8779 + $0xa8] sm:$0xf]
      %v8823 = vld [vmem:[%s8779 + $0xac] sm:$0xf]
      %v8824 = vld [vmem:[%s8779 + $0xb0] sm:$0xf]
      %v8825 = vld [vmem:[%s8779 + $0xb4] sm:$0xf]
      %v8826 = vld [vmem:[%s8779 + $0xb8] sm:$0xf]
      %v8827 = vld [vmem:[%s8779 + $0xbc] sm:$0xf]
      %v8828 = vld [vmem:[%s8779 + $0xc0] sm:$0xf]
      %v8829 = vld [vmem:[%s8779 + $0xc4] sm:$0xf]
      %v8830 = vld [vmem:[%s8779 + $0xc8] sm:$0xf]
      %v8831 = vld [vmem:[%s8779 + $0xcc] sm:$0xf]
      %v8832 = vld [vmem:[%s8779 + $0xd0] sm:$0xf]
      %v8833 = vld [vmem:[%s8779 + $0xd4] sm:$0xf]
      %v8834 = vld [vmem:[%s8779 + $0xd8] sm:$0xf]
      %v8835 = vld [vmem:[%s8779 + $0xdc] sm:$0xf]
      %v8836 = vld [vmem:[%s8779 + $0xe0] sm:$0xf]
      %v8837 = vld [vmem:[%s8779 + $0xe4] sm:$0xf]
      %v8838 = vld [vmem:[%s8779 + $0xe8] sm:$0xf]
      %v8839 = vld [vmem:[%s8779 + $0xec] sm:$0xf]
      %v8840 = vld [vmem:[%s8779 + $0xf0] sm:$0xf]
      %v8841 = vld [vmem:[%s8779 + $0xf4] sm:$0xf]
      %v8842 = vld [vmem:[%s8779 + $0xf8] sm:$0xf]
      %v8843 = vld [vmem:[%s8779 + $0xfc] sm:$0xf]
      %s8844 = scalar_lea.vmem %s17, 3
      %v8845 = vld [vmem:[%s8844] sm:$0x1]
      %v8847 = vlaneseq
      %v8848 = vshrl.u32 %v8847, 7
      %v8849 = vsub.s32 0, %v8848
      %v8850 = vrot.slane %v8845, %v8849
      %v8916 = vunpack.c.l.b16 %v8780
      %v8917 = vunpack.c.l.b16 %v8781
      %v8918 = vunpack.c.l.b16 %v8782
      %v8919 = vunpack.c.l.b16 %v8783
      %v8920 = vunpack.c.l.b16 %v8784
      %v8921 = vunpack.c.l.b16 %v8785
      %v8922 = vunpack.c.l.b16 %v8786
      %v8923 = vunpack.c.l.b16 %v8787
      %v8924 = vunpack.c.l.b16 %v8788
      %v8925 = vunpack.c.l.b16 %v8789
      %v8926 = vunpack.c.l.b16 %v8790
      %v8927 = vunpack.c.l.b16 %v8791
      %v8928 = vunpack.c.l.b16 %v8792
      %v8929 = vunpack.c.l.b16 %v8793
      %v8930 = vunpack.c.l.b16 %v8794
      %v8931 = vunpack.c.l.b16 %v8795
      %v8932 = vunpack.c.l.b16 %v8796
      %v8933 = vunpack.c.l.b16 %v8797
      %v8934 = vunpack.c.l.b16 %v8798
      %v8935 = vunpack.c.l.b16 %v8799
      %v8936 = vunpack.c.l.b16 %v8800
      %v8937 = vunpack.c.l.b16 %v8801
      %v8938 = vunpack.c.l.b16 %v8802
      %v8939 = vunpack.c.l.b16 %v8803
      %v8940 = vunpack.c.l.b16 %v8804
      %v8941 = vunpack.c.l.b16 %v8805
      %v8942 = vunpack.c.l.b16 %v8806
      %v8943 = vunpack.c.l.b16 %v8807
      %v8944 = vunpack.c.l.b16 %v8808
      %v8945 = vunpack.c.l.b16 %v8809
      %v8946 = vunpack.c.l.b16 %v8810
      %v8947 = vunpack.c.l.b16 %v8811
      %v8948 = vunpack.c.l.b16 %v8812
      %v8949 = vunpack.c.l.b16 %v8813
      %v8950 = vunpack.c.l.b16 %v8814
      %v8951 = vunpack.c.l.b16 %v8815
      %v8952 = vunpack.c.l.b16 %v8816
      %v8953 = vunpack.c.l.b16 %v8817
      %v8954 = vunpack.c.l.b16 %v8818
      %v8955 = vunpack.c.l.b16 %v8819
      %v8956 = vunpack.c.l.b16 %v8820
      %v8957 = vunpack.c.l.b16 %v8821
      %v8958 = vunpack.c.l.b16 %v8822
      %v8959 = vunpack.c.l.b16 %v8823
      %v8960 = vunpack.c.l.b16 %v8824
      %v8961 = vunpack.c.l.b16 %v8825
      %v8962 = vunpack.c.l.b16 %v8826
      %v8963 = vunpack.c.l.b16 %v8827
      %v8964 = vunpack.c.l.b16 %v8828
      %v8965 = vunpack.c.l.b16 %v8829
      %v8966 = vunpack.c.l.b16 %v8830
      %v8967 = vunpack.c.l.b16 %v8831
      %v8968 = vunpack.c.l.b16 %v8832
      %v8969 = vunpack.c.l.b16 %v8833
      %v8970 = vunpack.c.l.b16 %v8834
      %v8971 = vunpack.c.l.b16 %v8835
      %v8972 = vunpack.c.l.b16 %v8836
      %v8973 = vunpack.c.l.b16 %v8837
      %v8974 = vunpack.c.l.b16 %v8838
      %v8975 = vunpack.c.l.b16 %v8839
      %v8976 = vunpack.c.l.b16 %v8840
      %v8977 = vunpack.c.l.b16 %v8841
      %v8978 = vunpack.c.l.b16 %v8842
      %v8979 = vunpack.c.l.b16 %v8843
      %v8980 = vpack.c.b16 %v8917, %v8916
      %v8981 = vpack.c.b16 %v8919, %v8918
      %v8982 = vpack.c.b16 %v8921, %v8920
      %v8983 = vpack.c.b16 %v8923, %v8922
      %v8984 = vpack.c.b16 %v8925, %v8924
      %v8985 = vpack.c.b16 %v8927, %v8926
      %v8986 = vpack.c.b16 %v8929, %v8928
      %v8987 = vpack.c.b16 %v8931, %v8930
      %v8988 = vpack.c.b16 %v8933, %v8932
      %v8989 = vpack.c.b16 %v8935, %v8934
      %v8990 = vpack.c.b16 %v8937, %v8936
      %v8991 = vpack.c.b16 %v8939, %v8938
      %v8992 = vpack.c.b16 %v8941, %v8940
      %v8993 = vpack.c.b16 %v8943, %v8942
      %v8994 = vpack.c.b16 %v8945, %v8944
      %v8995 = vpack.c.b16 %v8947, %v8946
      %v8996 = vpack.c.b16 %v8949, %v8948
      %v8997 = vpack.c.b16 %v8951, %v8950
      %v8998 = vpack.c.b16 %v8953, %v8952
      %v8999 = vpack.c.b16 %v8955, %v8954
      %v9000 = vpack.c.b16 %v8957, %v8956
      %v9001 = vpack.c.b16 %v8959, %v8958
      %v9002 = vpack.c.b16 %v8961, %v8960
      %v9003 = vpack.c.b16 %v8963, %v8962
      %v9004 = vpack.c.b16 %v8965, %v8964
      %v9005 = vpack.c.b16 %v8967, %v8966
      %v9006 = vpack.c.b16 %v8969, %v8968
      %v9007 = vpack.c.b16 %v8971, %v8970
      %v9008 = vpack.c.b16 %v8973, %v8972
      %v9009 = vpack.c.b16 %v8975, %v8974
      %v9010 = vpack.c.b16 %v8977, %v8976
      %v9011 = vpack.c.b16 %v8979, %v8978
      %9044 = vmatprep.subr.bf16.mxu0 0
      %9045 = vmatpush1.bf16.msra.mxu0 %v8980
      %9046 = vmatprep.subr.bf16.mxu0 0
      %9047 = vmatpush1.bf16.msra.mxu0 %v8981
      %9048 = vmatprep.subr.bf16.mxu0 0
      %9049 = vmatpush1.bf16.msra.mxu0 %v8982
      %9050 = vmatprep.subr.bf16.mxu0 0
      %9051 = vmatpush1.bf16.msra.mxu0 %v8983
      %9052 = vmatprep.subr.bf16.mxu0 0
      %9053 = vmatpush1.bf16.msra.mxu0 %v8984
      %9054 = vmatprep.subr.bf16.mxu0 0
      %9055 = vmatpush1.bf16.msra.mxu0 %v8985
      %9056 = vmatprep.subr.bf16.mxu0 0
      %9057 = vmatpush1.bf16.msra.mxu0 %v8986
      %9058 = vmatprep.subr.bf16.mxu0 0
      %9059 = vmatpush1.bf16.msra.mxu0 %v8987
      %9060 = vmatprep.subr.bf16.mxu0 0
      %9061 = vmatpush1.bf16.msra.mxu0 %v8988
      %9062 = vmatprep.subr.bf16.mxu0 0
      %9063 = vmatpush1.bf16.msra.mxu0 %v8989
      %9064 = vmatprep.subr.bf16.mxu0 0
      %9065 = vmatpush1.bf16.msra.mxu0 %v8990
      %9066 = vmatprep.subr.bf16.mxu0 0
      %9067 = vmatpush1.bf16.msra.mxu0 %v8991
      %9068 = vmatprep.subr.bf16.mxu0 0
      %9069 = vmatpush1.bf16.msra.mxu0 %v8992
      %9070 = vmatprep.subr.bf16.mxu0 0
      %9071 = vmatpush1.bf16.msra.mxu0 %v8993
      %9072 = vmatprep.subr.bf16.mxu0 0
      %9073 = vmatpush1.bf16.msra.mxu0 %v8994
      %9074 = vmatprep.subr.bf16.mxu0 0
      %9075 = vmatpush1.bf16.msra.mxu0 %v8995
      %9076 = vmatprep.mubr.bf16.mxu0 %v8776
      %9077 = vmatmul.mubr.bf16.gmra.mrb[0].mxu0 %v8775
      %v9078 = vpop.f32.mrb[0].mxu0
      %v9079 = vadd.f32 %v8850, %v9078
      %v9080 = vpop.f32.mrb[0].mxu0
      %v9081 = vpop.f32.mrb[0].mxu0
      %v9082 = vadd.f32 %v8850, %v9081
      %v9083 = vpop.f32.mrb[0].mxu0
      %9084 = vdwg.mxu0
      %9085 = vmatprep.subr.bf16.mxu0 0
      %9086 = vmatpush1.bf16.msra.mxu0 %v8996
      %9087 = vmatprep.subr.bf16.mxu0 0
      %9088 = vmatpush1.bf16.msra.mxu0 %v8997
      %9089 = vmatprep.subr.bf16.mxu0 0
      %9090 = vmatpush1.bf16.msra.mxu0 %v8998
      %9091 = vmatprep.subr.bf16.mxu0 0
      %9092 = vmatpush1.bf16.msra.mxu0 %v8999
      %9093 = vmatprep.subr.bf16.mxu0 0
      %9094 = vmatpush1.bf16.msra.mxu0 %v9000
      %9095 = vmatprep.subr.bf16.mxu0 0
      %9096 = vmatpush1.bf16.msra.mxu0 %v9001
      %9097 = vmatprep.subr.bf16.mxu0 0
      %9098 = vmatpush1.bf16.msra.mxu0 %v9002
      %9099 = vmatprep.subr.bf16.mxu0 0
      %9100 = vmatpush1.bf16.msra.mxu0 %v9003
      %9101 = vmatprep.subr.bf16.mxu0 0
      %9102 = vmatpush1.bf16.msra.mxu0 %v9004
      %9103 = vmatprep.subr.bf16.mxu0 0
      %9104 = vmatpush1.bf16.msra.mxu0 %v9005
      %9105 = vmatprep.subr.bf16.mxu0 0
      %9106 = vmatpush1.bf16.msra.mxu0 %v9006
      %9107 = vmatprep.subr.bf16.mxu0 0
      %9108 = vmatpush1.bf16.msra.mxu0 %v9007
      %9109 = vmatprep.subr.bf16.mxu0 0
      %9110 = vmatpush1.bf16.msra.mxu0 %v9008
      %9111 = vmatprep.subr.bf16.mxu0 0
      %9112 = vmatpush1.bf16.msra.mxu0 %v9009
      %9113 = vmatprep.subr.bf16.mxu0 0
      %9114 = vmatpush1.bf16.msra.mxu0 %v9010
      %9115 = vmatprep.subr.bf16.mxu0 0
      %9116 = vmatpush1.bf16.msra.mxu0 %v9011
      %9117 = vmatprep.mubr.bf16.mxu0 %v8778
      %9118 = vmatmul.mubr.bf16.gmra.mrb[0].mxu0 %v8777
      %v9119 = vpop.f32.mrb[0].mxu0
      %v9120 = vadd.f32 %v9079, %v9119
      %v9121 = vpop.f32.mrb[0].mxu0
      %v9122 = vpop.f32.mrb[0].mxu0
      %v9123 = vadd.f32 %v9082, %v9122
      %v9124 = vpop.f32.mrb[0].mxu0
      %9125 = vdwg.mxu0
      %v9126 = vadd.f32 %v8555, %v9120
      %v9127 = vadd.f32 %v8556, %v9123
      %s9128 = scalar_lea.vmem %s18, 3
      %v9129 = vld [vmem:[%s9128] sm:$0x1]
      %s9130 = scalar_lea.vmem %s19, 3
      %v9131 = vld [vmem:[%s9130] sm:$0x1]
      %v9132 = vsel %vm1190, %v9126, 0.0
      %9133 = vadd.xlane.f32.xlu0 %v9132
      %v9134 = vpop.xlane.xlu0 %9133
      %v9135 = vsel %vm2492, %v9127, 0.0
      %9136 = vadd.xlane.f32.xlu0 %v9135
      %v9137 = vpop.xlane.xlu0 %9136
      %v9138 = vmul.f32 %v9134, %v2496
      %v9139 = vmul.f32 %v9137, %v2496
      %v9140 = vsub.f32 %v9126, %v9138
      %v9141 = vsub.f32 %v9127, %v9139
      %v9142 = vmul.f32 %v9140, %v9140
      %v9143 = vmul.f32 %v9141, %v9141
      %v9144 = vsel %vm1190, %v9142, 0.0
      %9145 = vadd.xlane.f32.xlu0 %v9144
      %v9146 = vpop.xlane.xlu0 %9145
      %v9147 = vsel %vm2492, %v9143, 0.0
      %9148 = vadd.xlane.f32.xlu0 %v9147
      %v9149 = vpop.xlane.xlu0 %9148
      %v9150 = vmul.f32 %v9146, %v2496
      %v9151 = vmul.f32 %v9149, %v2496
      %v9152 = vadd.f32 %v9150, 1e-05
      %v9153 = vadd.f32 %v9151, 1e-05
      %v9154 = vrsqrt.pop %v9152
      %v9155 = vrsqrt.pop %v9153
      %v9156 = vmul.f32 %v9140, %v9154
      %v9157 = vmul.f32 %v9141, %v9155
      %v9159 = vlaneseq
      %v9160 = vshrl.u32 %v9159, 7
      %v9161 = vsub.s32 0, %v9160
      %v9162 = vrot.slane %v9129, %v9161
      %v9164 = vmul.f32 %v9156, %v9162
      %v9165 = vmul.f32 %v9157, %v9162
      %v9167 = vlaneseq
      %v9168 = vshrl.u32 %v9167, 7
      %v9169 = vsub.s32 0, %v9168
      %v9170 = vrot.slane %v9131, %v9169
      %v9172 = vadd.f32 %v9164, %v9170
      %v9173 = vadd.f32 %v9165, %v9170
      %v9174 = vlaneseq
      %v9175 = vshrl.u32 %v9174, 7
      %vm9176 = vcmp.eq.s32.totalorder %v1120, %v9175
      %v9177 = vsel %vm9176, 1, 0
      %v9178 = vcvt.s32.f32 %v9177
      %vm9179 = vcmask 91136
      %v9180 = vsel %vm9179, %v9178, 0.0
      %9181 = vadd.xlane.f32.xlu0 %v9180
      %v9182 = vpop.xlane.xlu0 %9181
      %v9183 = vmax.f32 %v9182, 1.0
      %v9184 = vrcp.pop %v9183
      %v9185 = vmul.f32 %v9178, %v9184
      %v9187 = vsel %vm1762, %v9185, 0
      %vm9189 = vcmask 1043456
      %v9191 = vsel %vm9189, %v9173, 0
      %9193 = vmatprep.subr.mxu0 0.0
      %9194 = vmatpush1.msra.mxu0 %v9172
      %9195 = vmatprep.subr.mxu0 0.0
      %9196 = vmatpush1.msra.mxu0 %v9191
      %9197 = vmatprep.subr.mxu0 0.0
      %9198 = vmatpush1.msra.mxu0 0.0
      %9199 = vmatprep.subr.mxu0 0.0
      %9200 = vmatpush1.msra.mxu0 0.0
      %9201 = vmatprep.subr.mxu0 0.0
      %9202 = vmatpush1.msra.mxu0 0.0
      %9203 = vmatprep.subr.mxu0 0.0
      %9204 = vmatpush1.msra.mxu0 0.0
      %9205 = vmatprep.subr.mxu0 0.0
      %9206 = vmatpush1.msra.mxu0 0.0
      %9207 = vmatprep.subr.mxu0 0.0
      %9208 = vmatpush1.msra.mxu0 0.0
      %9209 = vmatprep.subr.mxu0 0.0
      %9210 = vmatpush1.msra.mxu0 0.0
      %9211 = vmatprep.subr.mxu0 0.0
      %9212 = vmatpush1.msra.mxu0 0.0
      %9213 = vmatprep.subr.mxu0 0.0
      %9214 = vmatpush1.msra.mxu0 0.0
      %9215 = vmatprep.subr.mxu0 0.0
      %9216 = vmatpush1.msra.mxu0 0.0
      %9217 = vmatprep.subr.mxu0 0.0
      %9218 = vmatpush1.msra.mxu0 0.0
      %9219 = vmatprep.subr.mxu0 0.0
      %9220 = vmatpush1.msra.mxu0 0.0
      %9221 = vmatprep.subr.mxu0 0.0
      %9222 = vmatpush1.msra.mxu0 0.0
      %9223 = vmatprep.subr.mxu0 0.0
      %9224 = vmatpush1.msra.mxu0 0.0
      %9225 = vmatprep.subr.mxu0 0.0
      %9226 = vmatpush1.msra.mxu0 0.0
      %9227 = vmatprep.subr.mxu0 0.0
      %9228 = vmatpush1.msra.mxu0 0.0
      %9229 = vmatprep.subr.mxu0 0.0
      %9230 = vmatpush1.msra.mxu0 0.0
      %9231 = vmatprep.subr.mxu0 0.0
      %9232 = vmatpush1.msra.mxu0 0.0
      %9233 = vmatprep.subr.mxu0 0.0
      %9234 = vmatpush1.msra.mxu0 0.0
      %9235 = vmatprep.subr.mxu0 0.0
      %9236 = vmatpush1.msra.mxu0 0.0
      %9237 = vmatprep.subr.mxu0 0.0
      %9238 = vmatpush1.msra.mxu0 0.0
      %9239 = vmatprep.subr.mxu0 0.0
      %9240 = vmatpush1.msra.mxu0 0.0
      %9241 = vmatprep.subr.mxu0 0.0
      %9242 = vmatpush1.msra.mxu0 0.0
      %9243 = vmatprep.subr.mxu0 0.0
      %9244 = vmatpush1.msra.mxu0 0.0
      %9245 = vmatprep.subr.mxu0 0.0
      %9246 = vmatpush1.msra.mxu0 0.0
      %9247 = vmatprep.subr.mxu0 0.0
      %9248 = vmatpush1.msra.mxu0 0.0
      %9249 = vmatprep.subr.mxu0 0.0
      %9250 = vmatpush1.msra.mxu0 0.0
      %9251 = vmatprep.subr.mxu0 0.0
      %9252 = vmatpush1.msra.mxu0 0.0
      %9253 = vmatprep.subr.mxu0 0.0
      %9254 = vmatpush1.msra.mxu0 0.0
      %9255 = vmatprep.subr.mxu0 0.0
      %9256 = vmatpush1.msra.mxu0 0.0
      %9257 = vmatprep.mubr.f32.mxu0 0.0
      %9258 = vmatmul.mubr.f32.gmra.mrb[0].mxu0 %v9187
      %v9259 = vpop.f32.mrb[0].mxu0
      %v9260 = vadd.f32 0.0, %v9259
      %v9261 = vpop.f32.mrb[0].mxu0
      %9262 = vdwg.mxu0
      %v9263 = vld [vmem:[#allocation2] sm:$0x1]
      %v9264 = vsub.f32 0.0, %v9263
      %v9265 = vmul.f32 %v9264, 1.442695
      %v9266 = vpow.pop %v9265
      %v9267 = vadd.f32 %v9266, 1.0
      %v9268 = vrcp.pop %v9267
      %v9269 = vmul.f32 1.0, %v9268
      %v9270 = vsub.f32 1.0, %v9269
      %v9272 = vlaneseq
      %v9273 = vshrl.u32 %v9272, 7
      %v9274 = vsub.s32 0, %v9273
      %v9275 = vrot.slane %v9270, %v9274
      %9276 = vset.pattern.permute.xlu0 0
      %9277 = vperm.xlu0 %9276, %v9275
      %v9278 = vpop.permute.xlu0 %9277
      %v9280 = vmul.f32 %v9278, %v9260
      %v9282 = vlaneseq
      %v9283 = vshrl.u32 %v9282, 7
      %v9284 = vsub.s32 0, %v9283
      %v9285 = vrot.slane %v9269, %v9284
      %9286 = vset.pattern.permute.xlu0 0
      %9287 = vperm.xlu0 %9286, %v9285
      %v9288 = vpop.permute.xlu0 %9287
      %v9290 = vmul.f32 %v9288, %v990
      %v9291 = vadd.f32 %v9280, %v9290
      %vm9292 = vcmask 517120
      %9293 = vst.msk [vmem:[%s683] sm:$0x3] %vm9292, %v9291
      %p9294 = scmp.lt.s32.totalorder %s33, 1
      %s9295 = scalar_select %p9294, %s33, 1
      %s9296 = smul.addr %s9295, 2
      %s9297 = scalar_lea.vmem %s20, %s9296
      // Predicated region
      $region101: #{d1model1_forward.2} parent=99 // pred_check
        %p9298 = pneg %p491
      $region102: #{d1model1_forward.2} parent=99 // pred_check_branch
        %9300 = sbr.rel (%p9298) target = $region104
      $region103: #{d1model1_forward.2} parent=99 // pred_region
        _
      $region104: #{d1model1_forward.2} parent=99 // pred_fallthru
        _
    $region100: #{d1model1_forward.2} parent=5 // pred_fallthru
      _
    %p9301 = scmp.le.s32.totalorder 2, %s28
    // Predicated region
    $region105: #{d1model1_forward.2} parent=5 // pred_check
      %p9302 = pneg %p9301
    $region106: #{d1model1_forward.2} parent=5 // pred_check_branch
      %9304 = sbr.rel (%p9302) target = $region108
    $region107: #{d1model1_forward.2} parent=5 // pred_region
      %s9305 = ssub.s32 %s28, 2
      // Predicated region
      $region109: #{d1model1_forward.2} parent=107 // pred_check
        %p9306 = pneg %p497
      $region110: #{d1model1_forward.2} parent=107 // pred_check_branch
        %9308 = sbr.rel (%p9306) target = $region112
      $region111: #{d1model1_forward.2} parent=107 // pred_region
        %p9309 = scmp.lt.s32.totalorder %s34, 1
        %s9310 = scalar_select %p9309, %s34, 1
        %s9311 = smul.addr %s9310, 2
        %s9312 = scalar_lea.vmem %s20, %s9311
      $region112: #{d1model1_forward.2} parent=107 // pred_fallthru
        _
    $region108: #{d1model1_forward.2} parent=5 // pred_fallthru
      _
  $region6: #{d1model1_forward.2} parent=0 // loop_footer
    %s32 = sadd.s32 1, %s28
  $region7: #{d1model1_forward.2} parent=0 // loop_footer_branch
    %27 = sbr.rel target = $region3
  $region8: #{d1model1_forward.2} parent=0 // loop_exit
    _

</llo_original>
